<compile_context>
chip_gen: v7x
topology: tpu7x:2x2x1
jax: 0.10.0
libtpu: 0.0.40
codegen_flags: <defaults>
</compile_context>

<pallas_src>
import numpy as np
import jax
import jax.numpy as jnp
from jax import lax
from jax.experimental import pallas as pl
from jax.experimental.pallas import tpu as pltpu

IMG_SIZE = 32
NUM_CHANNEL = 3
LEAK = 0.2
CPAD = 128                      # K / channel padding unit (MXU lane width)


# --------------------------- host-side constants -----------------------------

def _gather_matrix(batch, s_in):
    """Constant 0/1 matrix G such that (G @ Y)[t*M_out + m, :] = Y[src(m, t), :]
    (or 0 for zero padding).  Y rows are (b, h, w) row-major over an s_in x s_in
    grid; tap t = 3*kh + kw implements the 3x3 / stride-2 / pad-1 im2col."""
    s_out = s_in // 2
    m_in = batch * s_in * s_in
    m_out = batch * s_out * s_out
    g = np.zeros((9 * m_out, m_in), np.float32)
    for t in range(9):
        kh, kw = t // 3, t % 3
        for b in range(batch):
            for ho in range(s_out):
                hi = 2 * ho + kh - 1
                if hi < 0 or hi >= s_in:
                    continue
                for wo in range(s_out):
                    wi = 2 * wo + kw - 1
                    if wi < 0 or wi >= s_in:
                        continue
                    row = t * m_out + (b * s_out + ho) * s_out + wo
                    col = (b * s_in + hi) * s_in + wi
                    g[row, col] = 1.0
    return jnp.asarray(g, jnp.bfloat16)


def _tap_weights(w, cout_pad):
    """(Cout, Cin, 3, 3) torch conv weight -> (9*CPAD, cout_pad) bf16,
    tap-major, one zero-padded (CPAD, cout_pad) block per tap."""
    cout, cin = w.shape[0], w.shape[1]
    blocks = []
    for t in range(9):
        kh, kw = t // 3, t % 3
        wt = w[:, :, kh, kw].T                                    # (cin, cout)
        wt = jnp.pad(wt, ((0, CPAD - cin), (0, cout_pad - cout)))
        blocks.append(wt)
    return jnp.concatenate(blocks, axis=0).astype(jnp.bfloat16)


def _epilogue_params(p, cout_pad, bn):
    """(3, cout_pad) f32: row0 = bias, row1 = BN scale, row2 = BN shift.
    BatchNorm is folded to an affine (eval mode, running stats)."""
    cout = p["b"].shape[0]
    bias = jnp.pad(p["b"].astype(jnp.float32), (0, cout_pad - cout))
    if bn:
        scale = p["gamma"] / jnp.sqrt(p["var"] + p["eps"])
        shift = p["beta"] - p["mean"] * scale
    else:
        scale = jnp.ones((cout,), jnp.float32)
        shift = jnp.zeros((cout,), jnp.float32)
    scale = jnp.pad(scale.astype(jnp.float32), (0, cout_pad - cout))
    shift = jnp.pad(shift.astype(jnp.float32), (0, cout_pad - cout))
    return jnp.stack([bias, scale, shift], axis=0)


def _im2col_3x3_s2_p1(x_nchw):
    """Input-layer im2col (XLA, runs once on the raw network input).
    (B, C, H, W) -> (B*Ho*Wo, C*9) patch matrix, K ordered (c, tap)."""
    B, C, H, W = x_nchw.shape
    Ho, Wo = H // 2, W // 2
    xp = jnp.pad(x_nchw, ((0, 0), (0, 0), (1, 1), (1, 1)))
    cols = [xp[:, :, i:i + 2 * Ho:2, j:j + 2 * Wo:2]
            for i in range(3) for j in range(3)]
    p = jnp.stack(cols, axis=-1)             # (B, C, Ho, Wo, 9)
    p = p.transpose(0, 2, 3, 1, 4)           # (B, Ho, Wo, C, 9)
    return p.reshape(B * Ho * Wo, C * 9)


# ------------------------------ Pallas kernel --------------------------------

def _make_kernel(batch):
    m2 = batch * 8 * 8           # rows of block-2 output
    m3 = batch * 4 * 4
    m4 = batch * 2 * 2

    def leaky(x):
        return jnp.where(x >= 0.0, x, LEAK * x)

    def kernel(a1_ref, w1_ref, e1_ref,
               g2_ref, w2_ref, e2_ref,
               g3_ref, w3_ref, e3_ref,
               g4_ref, w4_ref, e4_ref,
               wadv_ref, badv_ref, out_ref):

        def conv_block(y_prev_bf16, g_ref, w_ref, e_ref, m_out, bn):
            # Gather the 9 im2col taps with one MXU matmul.  G is 0/1, so the
            # f32 -> bf16 round trip of U below is exact.
            u = jnp.dot(g_ref[...], y_prev_bf16,
                        preferred_element_type=jnp.float32)     # (9*m_out, 128)
            n_out = w_ref.shape[1]
            acc = jnp.zeros((m_out, n_out), jnp.float32)
            for t in range(9):                                   # unrolled
                ut = u[t * m_out:(t + 1) * m_out, :].astype(jnp.bfloat16)
                wt = w_ref[t * CPAD:(t + 1) * CPAD, :]
                acc = acc + jnp.dot(ut, wt,
                                    preferred_element_type=jnp.float32)
            z = leaky(acc + e_ref[0:1, :])          # bias + LeakyReLU (f32 VPU)
            # Dropout2d(0.25) is identity in eval mode.
            if bn:                                  # folded eval-mode BatchNorm
                z = z * e_ref[1:2, :] + e_ref[2:3, :]
            return z

        # ---- block 1 (no BN): pre-im2col'ed input, one aligned matmul -------
        z1 = jnp.dot(a1_ref[...], w1_ref[...],
                     preferred_element_type=jnp.float32)
        y1 = leaky(z1 + e1_ref[0:1, :]).astype(jnp.bfloat16)     # (B*256, 128)

        # ---- blocks 2..4, activations stay in VMEM ---------------------------
        y2 = conv_block(y1, g2_ref, w2_ref, e2_ref, m2, True).astype(jnp.bfloat16)
        y3 = conv_block(y2, g3_ref, w3_ref, e3_ref, m3, True).astype(jnp.bfloat16)
        y4 = conv_block(y3, g4_ref, w4_ref, e4_ref, m4, True)    # (B*4, 256) f32

        # ---- adv head (Linear(1024,1) + Sigmoid) as a VPU reduction ----------
        # logit[b] = sum_{r,c} y4[4b + r, c] * wadv[4b + r, c] + badv
        rowsum = jnp.sum(y4 * wadv_ref[...], axis=1, keepdims=True)   # (B*4, 1)
        logits = []
        for b in range(batch):
            logits.append(jnp.sum(rowsum[4 * b:4 * b + 4, :],
                                  axis=0, keepdims=True))             # (1, 1)
        logit = jnp.concatenate(logits, axis=0) + badv_ref[...]       # (B, 1)
        out_ref[...] = pl.reciprocal(1.0 + jnp.exp(-logit), approx=True)

    return kernel


# ------------------------------- forward pass --------------------------------

def discriminator_forward(img_nchw, params):
    """Eval-mode forward of the PyTorch Discriminator; returns validity (B, 1)."""
    B = img_nchw.shape[0]

    # block 1 operands (the only XLA-side prep: im2col of the raw input)
    a1 = _im2col_3x3_s2_p1(img_nchw)                       # (B*256, 27)
    k1 = a1.shape[1]
    a1 = jnp.pad(a1, ((0, 0), (0, CPAD - k1))).astype(jnp.bfloat16)
    w1 = params["c1"]["w"].reshape(32, k1).T               # (27, 32), rows c*9+t
    w1 = jnp.pad(w1, ((0, CPAD - k1), (0, CPAD - 32))).astype(jnp.bfloat16)
    e1 = _epilogue_params(params["c1"], CPAD, bn=False)

    # blocks 2..4: constant gather matrices + per-tap packed weights
    g2 = _gather_matrix(B, 16)
    w2 = _tap_weights(params["c2"]["w"], CPAD)
    e2 = _epilogue_params(params["c2"], CPAD, bn=True)
    g3 = _gather_matrix(B, 8)
    w3 = _tap_weights(params["c3"]["w"], CPAD)
    e3 = _epilogue_params(params["c3"], CPAD, bn=True)
    g4 = _gather_matrix(B, 4)
    w4 = _tap_weights(params["c4"]["w"], 256)
    e4 = _epilogue_params(params["c4"], 256, bn=True)

    # adv head: torch flattens (B, 256, 2, 2) as k = c*4 + (2h + w); y4 rows are
    # (b, h, w)-major, so permute adv_w offline to (2h+w, c) and tile over B.
    wadv = params["adv_w"].reshape(256, 4).T.astype(jnp.float32)   # (4, 256)
    wadv = jnp.tile(wadv, (B, 1))                                  # (B*4, 256)
    badv = params["adv_b"].reshape(1, 1).astype(jnp.float32)

    operands = (a1, w1, e1, g2, w2, e2, g3, w3, e3, g4, w4, e4, wadv, badv)
    in_specs = [pl.BlockSpec(x.shape, lambda i: (0, 0)) for x in operands]

    def mm(m, k, n):
        return 2 * m * k * n
    flops = (mm(B * 256, CPAD, CPAD)
             + mm(9 * B * 64, B * 256, CPAD) + 9 * mm(B * 64, CPAD, CPAD)
             + mm(9 * B * 16, B * 64, CPAD) + 9 * mm(B * 16, CPAD, CPAD)
             + mm(9 * B * 4, B * 16, CPAD) + 9 * mm(B * 4, CPAD, 256))
    bytes_accessed = sum(int(np.prod(x.shape)) * x.dtype.itemsize
                         for x in operands) + B * 4

    return pl.pallas_call(
        _make_kernel(B),
        out_shape=jax.ShapeDtypeStruct((B, 1), jnp.float32),
        grid=(1,),
        in_specs=in_specs,
        out_specs=pl.BlockSpec((B, 1), lambda i: (0, 0)),
        compiler_params=pltpu.CompilerParams(
            dimension_semantics=("arbitrary",)),
        cost_estimate=pl.CostEstimate(
            flops=flops, transcendentals=B, bytes_accessed=bytes_accessed),
    )(*operands)
    # TODO(synk): aux_layer (Linear+Softmax) is defined in __init__ but never
    # used in forward(), so it is not executed here either.


# --------------------------- parameters & reference ---------------------------

def init_params(key):
    def conv_p(k, cin, cout, bn):
        kw, kb, km, kv = jax.random.split(k, 4)
        lim = 1.0 / float(np.sqrt(cin * 9.0))
        p = {
            "w": jax.random.uniform(kw, (cout, cin, 3, 3), jnp.float32, -lim, lim),
            "b": jax.random.uniform(kb, (cout,), jnp.float32, -lim, lim),
        }
        if bn:
            p.update(
                gamma=jnp.ones((cout,), jnp.float32),
                beta=jnp.zeros((cout,), jnp.float32),
                mean=0.1 * jax.random.normal(km, (cout,), jnp.float32),
                var=jax.random.uniform(kv, (cout,), jnp.float32, 0.5, 1.5),
                eps=jnp.float32(0.8),  # nn.BatchNorm2d(out_filters, 0.8) -> eps=0.8
            )
        return p

    k1, k2, k3, k4, k5 = jax.random.split(key, 5)
    ds = IMG_SIZE // (2 ** 4)
    feat = 256 * ds * ds                                   # 1024
    klw, klb = jax.random.split(k5)
    lim = 1.0 / float(np.sqrt(feat))
    return {
        "c1": conv_p(k1, NUM_CHANNEL, 32, bn=False),
        "c2": conv_p(k2, 32, 64, bn=True),
        "c3": conv_p(k3, 64, 128, bn=True),
        "c4": conv_p(k4, 128, 256, bn=True),
        "adv_w": jax.random.uniform(klw, (1, feat), jnp.float32, -lim, lim),
        "adv_b": jax.random.uniform(klb, (1,), jnp.float32, -lim, lim),
    }


def _reference_forward(img_nchw, params):
    """Pure-JAX f32 reference (eval mode) for validation."""
    def block(x, p, bn):
        y = lax.conv_general_dilated(
            x, p["w"], window_strides=(2, 2), padding=((1, 1), (1, 1)),
            dimension_numbers=("NCHW", "OIHW", "NCHW"),
            precision=lax.Precision.HIGHEST)
        y = y + p["b"].reshape(1, -1, 1, 1)
        y = jnp.where(y >= 0.0, y, LEAK * y)
        if bn:
            scale = p["gamma"] / jnp.sqrt(p["var"] + p["eps"])
            shift = p["beta"] - p["mean"] * scale
            y = y * scale.reshape(1, -1, 1, 1) + shift.reshape(1, -1, 1, 1)
        return y

    x = block(img_nchw, params["c1"], False)
    x = block(x, params["c2"], True)
    x = block(x, params["c3"], True)
    x = block(x, params["c4"], True)
    flat = x.reshape(x.shape[0], -1)
    logit = jnp.matmul(flat, params["adv_w"].T,
                       precision=lax.Precision.HIGHEST) + params["adv_b"]
    return jax.nn.sigmoid(logit)


# ----------------------------------- main -------------------------------------

if __name__ == "__main__":
    key = jax.random.PRNGKey(0)
    k_img, k_param = jax.random.split(key)
    img = jax.random.normal(k_img, (2, NUM_CHANNEL, IMG_SIZE, IMG_SIZE),
                            dtype=jnp.float32)
    params = init_params(k_param)

    fwd = jax.jit(discriminator_forward)
    validity = fwd(img, params)
    jax.block_until_ready(validity)
    assert validity.shape == (2, 1)

    ref = _reference_forward(img, params)
    max_err = float(jnp.max(jnp.abs(validity - ref)))
    assert max_err < 5e-2, f"kernel/reference mismatch: max |err| = {max_err}"
    print("KERNEL_OK")
</pallas_src>

<mosaic_0001>
module attributes {stable_mosaic.version = 11 : i64} {
  func.func @kernel(%arg0: i32, %arg1: memref<512x128xbf16, #tpu.memory_space<vmem>>, %arg2: memref<128x128xbf16, #tpu.memory_space<vmem>>, %arg3: memref<3x128xf32, #tpu.memory_space<vmem>>, %arg4: memref<1152x512xbf16, #tpu.memory_space<vmem>>, %arg5: memref<1152x128xbf16, #tpu.memory_space<vmem>>, %arg6: memref<3x128xf32, #tpu.memory_space<vmem>>, %arg7: memref<288x128xbf16, #tpu.memory_space<vmem>>, %arg8: memref<1152x128xbf16, #tpu.memory_space<vmem>>, %arg9: memref<3x128xf32, #tpu.memory_space<vmem>>, %arg10: memref<72x32xbf16, #tpu.memory_space<vmem>>, %arg11: memref<1152x256xbf16, #tpu.memory_space<vmem>>, %arg12: memref<3x256xf32, #tpu.memory_space<vmem>>, %arg13: memref<8x256xf32, #tpu.memory_space<vmem>>, %arg14: memref<1x1xf32, #tpu.memory_space<vmem>>, %arg15: memref<2x1xf32, #tpu.memory_space<vmem>>) attributes {dimension_semantics = [#tpu.dimension_semantics<arbitrary>], iteration_bounds = array<i64: 1>, scalar_prefetch = 0 : i64, scratch_operands = 0 : i64, tpu.core_type = #tpu.core_type<tc>, window_params = [{pipeline_mode = #tpu.pipeline_mode<synchronous>, transform_indices = @transform_0, window_bounds = array<i64: 512, 128>}, {pipeline_mode = #tpu.pipeline_mode<synchronous>, transform_indices = @transform_1, window_bounds = array<i64: 128, 128>}, {pipeline_mode = #tpu.pipeline_mode<synchronous>, transform_indices = @transform_2, window_bounds = array<i64: 3, 128>}, {pipeline_mode = #tpu.pipeline_mode<synchronous>, transform_indices = @transform_3, window_bounds = array<i64: 1152, 512>}, {pipeline_mode = #tpu.pipeline_mode<synchronous>, transform_indices = @transform_4, window_bounds = array<i64: 1152, 128>}, {pipeline_mode = #tpu.pipeline_mode<synchronous>, transform_indices = @transform_5, window_bounds = array<i64: 3, 128>}, {pipeline_mode = #tpu.pipeline_mode<synchronous>, transform_indices = @transform_6, window_bounds = array<i64: 288, 128>}, {pipeline_mode = #tpu.pipeline_mode<synchronous>, transform_indices = @transform_7, window_bounds = array<i64: 1152, 128>}, {pipeline_mode = #tpu.pipeline_mode<synchronous>, transform_indices = @transform_8, window_bounds = array<i64: 3, 128>}, {pipeline_mode = #tpu.pipeline_mode<synchronous>, transform_indices = @transform_9, window_bounds = array<i64: 72, 32>}, {pipeline_mode = #tpu.pipeline_mode<synchronous>, transform_indices = @transform_10, window_bounds = array<i64: 1152, 256>}, {pipeline_mode = #tpu.pipeline_mode<synchronous>, transform_indices = @transform_11, window_bounds = array<i64: 3, 256>}, {pipeline_mode = #tpu.pipeline_mode<synchronous>, transform_indices = @transform_12, window_bounds = array<i64: 8, 256>}, {pipeline_mode = #tpu.pipeline_mode<synchronous>, transform_indices = @transform_13, window_bounds = array<i64: 1, 1>}, {pipeline_mode = #tpu.pipeline_mode<synchronous>, transform_indices = @transform_14, window_bounds = array<i64: 2, 1>}]} {
    %c0 = arith.constant 0 : index
    %c0_0 = arith.constant 0 : index
    %0 = vector.load %arg1[%c0, %c0_0] : memref<512x128xbf16, #tpu.memory_space<vmem>>, vector<512x128xbf16>
    %c0_1 = arith.constant 0 : index
    %c0_2 = arith.constant 0 : index
    %1 = vector.load %arg2[%c0_1, %c0_2] : memref<128x128xbf16, #tpu.memory_space<vmem>>, vector<128x128xbf16>
    %cst = arith.constant dense<0.000000e+00> : vector<512x128xf32>
    %2 = tpu.matmul %0, %1, %cst {dimension_numbers = #tpu.dot_dimension_numbers<[1], [0], [0], [1], [0, 0, 1, 1], [], []>} : vector<512x128xbf16>, vector<128x128xbf16>, vector<512x128xf32> -> vector<512x128xf32>
    %c0_3 = arith.constant 0 : index
    %c0_4 = arith.constant 0 : index
    %3 = vector.load %arg3[%c0_3, %c0_4] : memref<3x128xf32, #tpu.memory_space<vmem>>, vector<1x128xf32>
    %4 = vector.broadcast %3 : vector<1x128xf32> to vector<512x128xf32>
    %5 = arith.addf %2, %4 : vector<512x128xf32>
    %cst_5 = arith.constant 0.000000e+00 : f32
    %6 = vector.broadcast %cst_5 : f32 to vector<512x128xf32>
    %7 = arith.cmpf oge, %5, %6 : vector<512x128xf32>
    %cst_6 = arith.constant 2.000000e-01 : f32
    %8 = vector.broadcast %cst_6 : f32 to vector<512x128xf32>
    %9 = arith.mulf %8, %5 : vector<512x128xf32>
    %10 = arith.select %7, %5, %9 : vector<512x128xi1>, vector<512x128xf32>
    %11 = arith.truncf %10 : vector<512x128xf32> to vector<512x128xbf16>
    %c0_7 = arith.constant 0 : index
    %c0_8 = arith.constant 0 : index
    %12 = vector.load %arg4[%c0_7, %c0_8] : memref<1152x512xbf16, #tpu.memory_space<vmem>>, vector<1152x512xbf16>
    %cst_9 = arith.constant dense<0.000000e+00> : vector<1152x128xf32>
    %13 = tpu.matmul %12, %11, %cst_9 {dimension_numbers = #tpu.dot_dimension_numbers<[1], [0], [0], [1], [0, 0, 1, 1], [], []>} : vector<1152x512xbf16>, vector<512x128xbf16>, vector<1152x128xf32> -> vector<1152x128xf32>
    %cst_10 = arith.constant 0.000000e+00 : f32
    %14 = vector.broadcast %cst_10 : f32 to vector<128x128xf32>
    %15 = vector.extract_strided_slice %13 {offsets = [0, 0], sizes = [128, 128], strides = [1, 1]} : vector<1152x128xf32> to vector<128x128xf32>
    %16 = arith.truncf %15 : vector<128x128xf32> to vector<128x128xbf16>
    %c0_11 = arith.constant 0 : index
    %c0_12 = arith.constant 0 : index
    %17 = vector.load %arg5[%c0_11, %c0_12] : memref<1152x128xbf16, #tpu.memory_space<vmem>>, vector<128x128xbf16>
    %cst_13 = arith.constant dense<0.000000e+00> : vector<128x128xf32>
    %18 = tpu.matmul %16, %17, %cst_13 {dimension_numbers = #tpu.dot_dimension_numbers<[1], [0], [0], [1], [0, 0, 1, 1], [], []>} : vector<128x128xbf16>, vector<128x128xbf16>, vector<128x128xf32> -> vector<128x128xf32>
    %19 = arith.addf %14, %18 : vector<128x128xf32>
    %20 = vector.extract_strided_slice %13 {offsets = [128, 0], sizes = [128, 128], strides = [1, 1]} : vector<1152x128xf32> to vector<128x128xf32>
    %21 = arith.truncf %20 : vector<128x128xf32> to vector<128x128xbf16>
    %c128 = arith.constant 128 : index
    %c0_14 = arith.constant 0 : index
    %22 = vector.load %arg5[%c128, %c0_14] : memref<1152x128xbf16, #tpu.memory_space<vmem>>, vector<128x128xbf16>
    %cst_15 = arith.constant dense<0.000000e+00> : vector<128x128xf32>
    %23 = tpu.matmul %21, %22, %cst_15 {dimension_numbers = #tpu.dot_dimension_numbers<[1], [0], [0], [1], [0, 0, 1, 1], [], []>} : vector<128x128xbf16>, vector<128x128xbf16>, vector<128x128xf32> -> vector<128x128xf32>
    %24 = arith.addf %19, %23 : vector<128x128xf32>
    %25 = vector.extract_strided_slice %13 {offsets = [256, 0], sizes = [128, 128], strides = [1, 1]} : vector<1152x128xf32> to vector<128x128xf32>
    %26 = arith.truncf %25 : vector<128x128xf32> to vector<128x128xbf16>
    %c256 = arith.constant 256 : index
    %c0_16 = arith.constant 0 : index
    %27 = vector.load %arg5[%c256, %c0_16] : memref<1152x128xbf16, #tpu.memory_space<vmem>>, vector<128x128xbf16>
    %cst_17 = arith.constant dense<0.000000e+00> : vector<128x128xf32>
    %28 = tpu.matmul %26, %27, %cst_17 {dimension_numbers = #tpu.dot_dimension_numbers<[1], [0], [0], [1], [0, 0, 1, 1], [], []>} : vector<128x128xbf16>, vector<128x128xbf16>, vector<128x128xf32> -> vector<128x128xf32>
    %29 = arith.addf %24, %28 : vector<128x128xf32>
    %30 = vector.extract_strided_slice %13 {offsets = [384, 0], sizes = [128, 128], strides = [1, 1]} : vector<1152x128xf32> to vector<128x128xf32>
    %31 = arith.truncf %30 : vector<128x128xf32> to vector<128x128xbf16>
    %c384 = arith.constant 384 : index
    %c0_18 = arith.constant 0 : index
    %32 = vector.load %arg5[%c384, %c0_18] : memref<1152x128xbf16, #tpu.memory_space<vmem>>, vector<128x128xbf16>
    %cst_19 = arith.constant dense<0.000000e+00> : vector<128x128xf32>
    %33 = tpu.matmul %31, %32, %cst_19 {dimension_numbers = #tpu.dot_dimension_numbers<[1], [0], [0], [1], [0, 0, 1, 1], [], []>} : vector<128x128xbf16>, vector<128x128xbf16>, vector<128x128xf32> -> vector<128x128xf32>
    %34 = arith.addf %29, %33 : vector<128x128xf32>
    %35 = vector.extract_strided_slice %13 {offsets = [512, 0], sizes = [128, 128], strides = [1, 1]} : vector<1152x128xf32> to vector<128x128xf32>
    %36 = arith.truncf %35 : vector<128x128xf32> to vector<128x128xbf16>
    %c512 = arith.constant 512 : index
    %c0_20 = arith.constant 0 : index
    %37 = vector.load %arg5[%c512, %c0_20] : memref<1152x128xbf16, #tpu.memory_space<vmem>>, vector<128x128xbf16>
    %cst_21 = arith.constant dense<0.000000e+00> : vector<128x128xf32>
    %38 = tpu.matmul %36, %37, %cst_21 {dimension_numbers = #tpu.dot_dimension_numbers<[1], [0], [0], [1], [0, 0, 1, 1], [], []>} : vector<128x128xbf16>, vector<128x128xbf16>, vector<128x128xf32> -> vector<128x128xf32>
    %39 = arith.addf %34, %38 : vector<128x128xf32>
    %40 = vector.extract_strided_slice %13 {offsets = [640, 0], sizes = [128, 128], strides = [1, 1]} : vector<1152x128xf32> to vector<128x128xf32>
    %41 = arith.truncf %40 : vector<128x128xf32> to vector<128x128xbf16>
    %c640 = arith.constant 640 : index
    %c0_22 = arith.constant 0 : index
    %42 = vector.load %arg5[%c640, %c0_22] : memref<1152x128xbf16, #tpu.memory_space<vmem>>, vector<128x128xbf16>
    %cst_23 = arith.constant dense<0.000000e+00> : vector<128x128xf32>
    %43 = tpu.matmul %41, %42, %cst_23 {dimension_numbers = #tpu.dot_dimension_numbers<[1], [0], [0], [1], [0, 0, 1, 1], [], []>} : vector<128x128xbf16>, vector<128x128xbf16>, vector<128x128xf32> -> vector<128x128xf32>
    %44 = arith.addf %39, %43 : vector<128x128xf32>
    %45 = vector.extract_strided_slice %13 {offsets = [768, 0], sizes = [128, 128], strides = [1, 1]} : vector<1152x128xf32> to vector<128x128xf32>
    %46 = arith.truncf %45 : vector<128x128xf32> to vector<128x128xbf16>
    %c768 = arith.constant 768 : index
    %c0_24 = arith.constant 0 : index
    %47 = vector.load %arg5[%c768, %c0_24] : memref<1152x128xbf16, #tpu.memory_space<vmem>>, vector<128x128xbf16>
    %cst_25 = arith.constant dense<0.000000e+00> : vector<128x128xf32>
    %48 = tpu.matmul %46, %47, %cst_25 {dimension_numbers = #tpu.dot_dimension_numbers<[1], [0], [0], [1], [0, 0, 1, 1], [], []>} : vector<128x128xbf16>, vector<128x128xbf16>, vector<128x128xf32> -> vector<128x128xf32>
    %49 = arith.addf %44, %48 : vector<128x128xf32>
    %50 = vector.extract_strided_slice %13 {offsets = [896, 0], sizes = [128, 128], strides = [1, 1]} : vector<1152x128xf32> to vector<128x128xf32>
    %51 = arith.truncf %50 : vector<128x128xf32> to vector<128x128xbf16>
    %c896 = arith.constant 896 : index
    %c0_26 = arith.constant 0 : index
    %52 = vector.load %arg5[%c896, %c0_26] : memref<1152x128xbf16, #tpu.memory_space<vmem>>, vector<128x128xbf16>
    %cst_27 = arith.constant dense<0.000000e+00> : vector<128x128xf32>
    %53 = tpu.matmul %51, %52, %cst_27 {dimension_numbers = #tpu.dot_dimension_numbers<[1], [0], [0], [1], [0, 0, 1, 1], [], []>} : vector<128x128xbf16>, vector<128x128xbf16>, vector<128x128xf32> -> vector<128x128xf32>
    %54 = arith.addf %49, %53 : vector<128x128xf32>
    %55 = vector.extract_strided_slice %13 {offsets = [1024, 0], sizes = [128, 128], strides = [1, 1]} : vector<1152x128xf32> to vector<128x128xf32>
    %56 = arith.truncf %55 : vector<128x128xf32> to vector<128x128xbf16>
    %c1024 = arith.constant 1024 : index
    %c0_28 = arith.constant 0 : index
    %57 = vector.load %arg5[%c1024, %c0_28] : memref<1152x128xbf16, #tpu.memory_space<vmem>>, vector<128x128xbf16>
    %cst_29 = arith.constant dense<0.000000e+00> : vector<128x128xf32>
    %58 = tpu.matmul %56, %57, %cst_29 {dimension_numbers = #tpu.dot_dimension_numbers<[1], [0], [0], [1], [0, 0, 1, 1], [], []>} : vector<128x128xbf16>, vector<128x128xbf16>, vector<128x128xf32> -> vector<128x128xf32>
    %59 = arith.addf %54, %58 : vector<128x128xf32>
    %c0_30 = arith.constant 0 : index
    %c0_31 = arith.constant 0 : index
    %60 = vector.load %arg6[%c0_30, %c0_31] : memref<3x128xf32, #tpu.memory_space<vmem>>, vector<1x128xf32>
    %61 = vector.broadcast %60 : vector<1x128xf32> to vector<128x128xf32>
    %62 = arith.addf %59, %61 : vector<128x128xf32>
    %cst_32 = arith.constant 0.000000e+00 : f32
    %63 = vector.broadcast %cst_32 : f32 to vector<128x128xf32>
    %64 = arith.cmpf oge, %62, %63 : vector<128x128xf32>
    %cst_33 = arith.constant 2.000000e-01 : f32
    %65 = vector.broadcast %cst_33 : f32 to vector<128x128xf32>
    %66 = arith.mulf %65, %62 : vector<128x128xf32>
    %67 = arith.select %64, %62, %66 : vector<128x128xi1>, vector<128x128xf32>
    %c1 = arith.constant 1 : index
    %c0_34 = arith.constant 0 : index
    %68 = vector.load %arg6[%c1, %c0_34] : memref<3x128xf32, #tpu.memory_space<vmem>>, vector<1x128xf32>
    %69 = vector.broadcast %68 : vector<1x128xf32> to vector<128x128xf32>
    %70 = arith.mulf %67, %69 : vector<128x128xf32>
    %c2 = arith.constant 2 : index
    %c0_35 = arith.constant 0 : index
    %71 = vector.load %arg6[%c2, %c0_35] : memref<3x128xf32, #tpu.memory_space<vmem>>, vector<1x128xf32>
    %72 = vector.broadcast %71 : vector<1x128xf32> to vector<128x128xf32>
    %73 = arith.addf %70, %72 : vector<128x128xf32>
    %74 = arith.truncf %73 : vector<128x128xf32> to vector<128x128xbf16>
    %c0_36 = arith.constant 0 : index
    %c0_37 = arith.constant 0 : index
    %75 = vector.load %arg7[%c0_36, %c0_37] : memref<288x128xbf16, #tpu.memory_space<vmem>>, vector<288x128xbf16>
    %cst_38 = arith.constant dense<0.000000e+00> : vector<288x128xf32>
    %76 = tpu.matmul %75, %74, %cst_38 {dimension_numbers = #tpu.dot_dimension_numbers<[1], [0], [0], [1], [0, 0, 1, 1], [], []>} : vector<288x128xbf16>, vector<128x128xbf16>, vector<288x128xf32> -> vector<288x128xf32>
    %cst_39 = arith.constant 0.000000e+00 : f32
    %77 = vector.broadcast %cst_39 : f32 to vector<32x128xf32>
    %78 = vector.extract_strided_slice %76 {offsets = [0, 0], sizes = [32, 128], strides = [1, 1]} : vector<288x128xf32> to vector<32x128xf32>
    %79 = arith.truncf %78 : vector<32x128xf32> to vector<32x128xbf16>
    %c0_40 = arith.constant 0 : index
    %c0_41 = arith.constant 0 : index
    %80 = vector.load %arg8[%c0_40, %c0_41] : memref<1152x128xbf16, #tpu.memory_space<vmem>>, vector<128x128xbf16>
    %cst_42 = arith.constant dense<0.000000e+00> : vector<32x128xf32>
    %81 = tpu.matmul %79, %80, %cst_42 {dimension_numbers = #tpu.dot_dimension_numbers<[1], [0], [0], [1], [0, 0, 1, 1], [], []>} : vector<32x128xbf16>, vector<128x128xbf16>, vector<32x128xf32> -> vector<32x128xf32>
    %82 = arith.addf %77, %81 : vector<32x128xf32>
    %83 = vector.extract_strided_slice %76 {offsets = [32, 0], sizes = [32, 128], strides = [1, 1]} : vector<288x128xf32> to vector<32x128xf32>
    %84 = arith.truncf %83 : vector<32x128xf32> to vector<32x128xbf16>
    %c128_43 = arith.constant 128 : index
    %c0_44 = arith.constant 0 : index
    %85 = vector.load %arg8[%c128_43, %c0_44] : memref<1152x128xbf16, #tpu.memory_space<vmem>>, vector<128x128xbf16>
    %cst_45 = arith.constant dense<0.000000e+00> : vector<32x128xf32>
    %86 = tpu.matmul %84, %85, %cst_45 {dimension_numbers = #tpu.dot_dimension_numbers<[1], [0], [0], [1], [0, 0, 1, 1], [], []>} : vector<32x128xbf16>, vector<128x128xbf16>, vector<32x128xf32> -> vector<32x128xf32>
    %87 = arith.addf %82, %86 : vector<32x128xf32>
    %88 = vector.extract_strided_slice %76 {offsets = [64, 0], sizes = [32, 128], strides = [1, 1]} : vector<288x128xf32> to vector<32x128xf32>
    %89 = arith.truncf %88 : vector<32x128xf32> to vector<32x128xbf16>
    %c256_46 = arith.constant 256 : index
    %c0_47 = arith.constant 0 : index
    %90 = vector.load %arg8[%c256_46, %c0_47] : memref<1152x128xbf16, #tpu.memory_space<vmem>>, vector<128x128xbf16>
    %cst_48 = arith.constant dense<0.000000e+00> : vector<32x128xf32>
    %91 = tpu.matmul %89, %90, %cst_48 {dimension_numbers = #tpu.dot_dimension_numbers<[1], [0], [0], [1], [0, 0, 1, 1], [], []>} : vector<32x128xbf16>, vector<128x128xbf16>, vector<32x128xf32> -> vector<32x128xf32>
    %92 = arith.addf %87, %91 : vector<32x128xf32>
    %93 = vector.extract_strided_slice %76 {offsets = [96, 0], sizes = [32, 128], strides = [1, 1]} : vector<288x128xf32> to vector<32x128xf32>
    %94 = arith.truncf %93 : vector<32x128xf32> to vector<32x128xbf16>
    %c384_49 = arith.constant 384 : index
    %c0_50 = arith.constant 0 : index
    %95 = vector.load %arg8[%c384_49, %c0_50] : memref<1152x128xbf16, #tpu.memory_space<vmem>>, vector<128x128xbf16>
    %cst_51 = arith.constant dense<0.000000e+00> : vector<32x128xf32>
    %96 = tpu.matmul %94, %95, %cst_51 {dimension_numbers = #tpu.dot_dimension_numbers<[1], [0], [0], [1], [0, 0, 1, 1], [], []>} : vector<32x128xbf16>, vector<128x128xbf16>, vector<32x128xf32> -> vector<32x128xf32>
    %97 = arith.addf %92, %96 : vector<32x128xf32>
    %98 = vector.extract_strided_slice %76 {offsets = [128, 0], sizes = [32, 128], strides = [1, 1]} : vector<288x128xf32> to vector<32x128xf32>
    %99 = arith.truncf %98 : vector<32x128xf32> to vector<32x128xbf16>
    %c512_52 = arith.constant 512 : index
    %c0_53 = arith.constant 0 : index
    %100 = vector.load %arg8[%c512_52, %c0_53] : memref<1152x128xbf16, #tpu.memory_space<vmem>>, vector<128x128xbf16>
    %cst_54 = arith.constant dense<0.000000e+00> : vector<32x128xf32>
    %101 = tpu.matmul %99, %100, %cst_54 {dimension_numbers = #tpu.dot_dimension_numbers<[1], [0], [0], [1], [0, 0, 1, 1], [], []>} : vector<32x128xbf16>, vector<128x128xbf16>, vector<32x128xf32> -> vector<32x128xf32>
    %102 = arith.addf %97, %101 : vector<32x128xf32>
    %103 = vector.extract_strided_slice %76 {offsets = [160, 0], sizes = [32, 128], strides = [1, 1]} : vector<288x128xf32> to vector<32x128xf32>
    %104 = arith.truncf %103 : vector<32x128xf32> to vector<32x128xbf16>
    %c640_55 = arith.constant 640 : index
    %c0_56 = arith.constant 0 : index
    %105 = vector.load %arg8[%c640_55, %c0_56] : memref<1152x128xbf16, #tpu.memory_space<vmem>>, vector<128x128xbf16>
    %cst_57 = arith.constant dense<0.000000e+00> : vector<32x128xf32>
    %106 = tpu.matmul %104, %105, %cst_57 {dimension_numbers = #tpu.dot_dimension_numbers<[1], [0], [0], [1], [0, 0, 1, 1], [], []>} : vector<32x128xbf16>, vector<128x128xbf16>, vector<32x128xf32> -> vector<32x128xf32>
    %107 = arith.addf %102, %106 : vector<32x128xf32>
    %108 = vector.extract_strided_slice %76 {offsets = [192, 0], sizes = [32, 128], strides = [1, 1]} : vector<288x128xf32> to vector<32x128xf32>
    %109 = arith.truncf %108 : vector<32x128xf32> to vector<32x128xbf16>
    %c768_58 = arith.constant 768 : index
    %c0_59 = arith.constant 0 : index
    %110 = vector.load %arg8[%c768_58, %c0_59] : memref<1152x128xbf16, #tpu.memory_space<vmem>>, vector<128x128xbf16>
    %cst_60 = arith.constant dense<0.000000e+00> : vector<32x128xf32>
    %111 = tpu.matmul %109, %110, %cst_60 {dimension_numbers = #tpu.dot_dimension_numbers<[1], [0], [0], [1], [0, 0, 1, 1], [], []>} : vector<32x128xbf16>, vector<128x128xbf16>, vector<32x128xf32> -> vector<32x128xf32>
    %112 = arith.addf %107, %111 : vector<32x128xf32>
    %113 = vector.extract_strided_slice %76 {offsets = [224, 0], sizes = [32, 128], strides = [1, 1]} : vector<288x128xf32> to vector<32x128xf32>
    %114 = arith.truncf %113 : vector<32x128xf32> to vector<32x128xbf16>
    %c896_61 = arith.constant 896 : index
    %c0_62 = arith.constant 0 : index
    %115 = vector.load %arg8[%c896_61, %c0_62] : memref<1152x128xbf16, #tpu.memory_space<vmem>>, vector<128x128xbf16>
    %cst_63 = arith.constant dense<0.000000e+00> : vector<32x128xf32>
    %116 = tpu.matmul %114, %115, %cst_63 {dimension_numbers = #tpu.dot_dimension_numbers<[1], [0], [0], [1], [0, 0, 1, 1], [], []>} : vector<32x128xbf16>, vector<128x128xbf16>, vector<32x128xf32> -> vector<32x128xf32>
    %117 = arith.addf %112, %116 : vector<32x128xf32>
    %118 = vector.extract_strided_slice %76 {offsets = [256, 0], sizes = [32, 128], strides = [1, 1]} : vector<288x128xf32> to vector<32x128xf32>
    %119 = arith.truncf %118 : vector<32x128xf32> to vector<32x128xbf16>
    %c1024_64 = arith.constant 1024 : index
    %c0_65 = arith.constant 0 : index
    %120 = vector.load %arg8[%c1024_64, %c0_65] : memref<1152x128xbf16, #tpu.memory_space<vmem>>, vector<128x128xbf16>
    %cst_66 = arith.constant dense<0.000000e+00> : vector<32x128xf32>
    %121 = tpu.matmul %119, %120, %cst_66 {dimension_numbers = #tpu.dot_dimension_numbers<[1], [0], [0], [1], [0, 0, 1, 1], [], []>} : vector<32x128xbf16>, vector<128x128xbf16>, vector<32x128xf32> -> vector<32x128xf32>
    %122 = arith.addf %117, %121 : vector<32x128xf32>
    %c0_67 = arith.constant 0 : index
    %c0_68 = arith.constant 0 : index
    %123 = vector.load %arg9[%c0_67, %c0_68] : memref<3x128xf32, #tpu.memory_space<vmem>>, vector<1x128xf32>
    %124 = vector.broadcast %123 : vector<1x128xf32> to vector<32x128xf32>
    %125 = arith.addf %122, %124 : vector<32x128xf32>
    %cst_69 = arith.constant 0.000000e+00 : f32
    %126 = vector.broadcast %cst_69 : f32 to vector<32x128xf32>
    %127 = arith.cmpf oge, %125, %126 : vector<32x128xf32>
    %cst_70 = arith.constant 2.000000e-01 : f32
    %128 = vector.broadcast %cst_70 : f32 to vector<32x128xf32>
    %129 = arith.mulf %128, %125 : vector<32x128xf32>
    %130 = arith.select %127, %125, %129 : vector<32x128xi1>, vector<32x128xf32>
    %c1_71 = arith.constant 1 : index
    %c0_72 = arith.constant 0 : index
    %131 = vector.load %arg9[%c1_71, %c0_72] : memref<3x128xf32, #tpu.memory_space<vmem>>, vector<1x128xf32>
    %132 = vector.broadcast %131 : vector<1x128xf32> to vector<32x128xf32>
    %133 = arith.mulf %130, %132 : vector<32x128xf32>
    %c2_73 = arith.constant 2 : index
    %c0_74 = arith.constant 0 : index
    %134 = vector.load %arg9[%c2_73, %c0_74] : memref<3x128xf32, #tpu.memory_space<vmem>>, vector<1x128xf32>
    %135 = vector.broadcast %134 : vector<1x128xf32> to vector<32x128xf32>
    %136 = arith.addf %133, %135 : vector<32x128xf32>
    %137 = arith.truncf %136 : vector<32x128xf32> to vector<32x128xbf16>
    %c0_75 = arith.constant 0 : index
    %c0_76 = arith.constant 0 : index
    %138 = vector.load %arg10[%c0_75, %c0_76] : memref<72x32xbf16, #tpu.memory_space<vmem>>, vector<72x32xbf16>
    %cst_77 = arith.constant dense<0.000000e+00> : vector<72x128xf32>
    %139 = tpu.matmul %138, %137, %cst_77 {dimension_numbers = #tpu.dot_dimension_numbers<[1], [0], [0], [1], [0, 0, 1, 1], [], []>} : vector<72x32xbf16>, vector<32x128xbf16>, vector<72x128xf32> -> vector<72x128xf32>
    %cst_78 = arith.constant 0.000000e+00 : f32
    %140 = vector.broadcast %cst_78 : f32 to vector<8x256xf32>
    %141 = vector.extract_strided_slice %139 {offsets = [0, 0], sizes = [8, 128], strides = [1, 1]} : vector<72x128xf32> to vector<8x128xf32>
    %142 = arith.truncf %141 : vector<8x128xf32> to vector<8x128xbf16>
    %c0_79 = arith.constant 0 : index
    %c0_80 = arith.constant 0 : index
    %143 = vector.load %arg11[%c0_79, %c0_80] : memref<1152x256xbf16, #tpu.memory_space<vmem>>, vector<128x256xbf16>
    %cst_81 = arith.constant dense<0.000000e+00> : vector<8x256xf32>
    %144 = tpu.matmul %142, %143, %cst_81 {dimension_numbers = #tpu.dot_dimension_numbers<[1], [0], [0], [1], [0, 0, 1, 1], [], []>} : vector<8x128xbf16>, vector<128x256xbf16>, vector<8x256xf32> -> vector<8x256xf32>
    %145 = arith.addf %140, %144 : vector<8x256xf32>
    %146 = vector.extract_strided_slice %139 {offsets = [8, 0], sizes = [8, 128], strides = [1, 1]} : vector<72x128xf32> to vector<8x128xf32>
    %147 = arith.truncf %146 : vector<8x128xf32> to vector<8x128xbf16>
    %c128_82 = arith.constant 128 : index
    %c0_83 = arith.constant 0 : index
    %148 = vector.load %arg11[%c128_82, %c0_83] : memref<1152x256xbf16, #tpu.memory_space<vmem>>, vector<128x256xbf16>
    %cst_84 = arith.constant dense<0.000000e+00> : vector<8x256xf32>
    %149 = tpu.matmul %147, %148, %cst_84 {dimension_numbers = #tpu.dot_dimension_numbers<[1], [0], [0], [1], [0, 0, 1, 1], [], []>} : vector<8x128xbf16>, vector<128x256xbf16>, vector<8x256xf32> -> vector<8x256xf32>
    %150 = arith.addf %145, %149 : vector<8x256xf32>
    %151 = vector.extract_strided_slice %139 {offsets = [16, 0], sizes = [8, 128], strides = [1, 1]} : vector<72x128xf32> to vector<8x128xf32>
    %152 = arith.truncf %151 : vector<8x128xf32> to vector<8x128xbf16>
    %c256_85 = arith.constant 256 : index
    %c0_86 = arith.constant 0 : index
    %153 = vector.load %arg11[%c256_85, %c0_86] : memref<1152x256xbf16, #tpu.memory_space<vmem>>, vector<128x256xbf16>
    %cst_87 = arith.constant dense<0.000000e+00> : vector<8x256xf32>
    %154 = tpu.matmul %152, %153, %cst_87 {dimension_numbers = #tpu.dot_dimension_numbers<[1], [0], [0], [1], [0, 0, 1, 1], [], []>} : vector<8x128xbf16>, vector<128x256xbf16>, vector<8x256xf32> -> vector<8x256xf32>
    %155 = arith.addf %150, %154 : vector<8x256xf32>
    %156 = vector.extract_strided_slice %139 {offsets = [24, 0], sizes = [8, 128], strides = [1, 1]} : vector<72x128xf32> to vector<8x128xf32>
    %157 = arith.truncf %156 : vector<8x128xf32> to vector<8x128xbf16>
    %c384_88 = arith.constant 384 : index
    %c0_89 = arith.constant 0 : index
    %158 = vector.load %arg11[%c384_88, %c0_89] : memref<1152x256xbf16, #tpu.memory_space<vmem>>, vector<128x256xbf16>
    %cst_90 = arith.constant dense<0.000000e+00> : vector<8x256xf32>
    %159 = tpu.matmul %157, %158, %cst_90 {dimension_numbers = #tpu.dot_dimension_numbers<[1], [0], [0], [1], [0, 0, 1, 1], [], []>} : vector<8x128xbf16>, vector<128x256xbf16>, vector<8x256xf32> -> vector<8x256xf32>
    %160 = arith.addf %155, %159 : vector<8x256xf32>
    %161 = vector.extract_strided_slice %139 {offsets = [32, 0], sizes = [8, 128], strides = [1, 1]} : vector<72x128xf32> to vector<8x128xf32>
    %162 = arith.truncf %161 : vector<8x128xf32> to vector<8x128xbf16>
    %c512_91 = arith.constant 512 : index
    %c0_92 = arith.constant 0 : index
    %163 = vector.load %arg11[%c512_91, %c0_92] : memref<1152x256xbf16, #tpu.memory_space<vmem>>, vector<128x256xbf16>
    %cst_93 = arith.constant dense<0.000000e+00> : vector<8x256xf32>
    %164 = tpu.matmul %162, %163, %cst_93 {dimension_numbers = #tpu.dot_dimension_numbers<[1], [0], [0], [1], [0, 0, 1, 1], [], []>} : vector<8x128xbf16>, vector<128x256xbf16>, vector<8x256xf32> -> vector<8x256xf32>
    %165 = arith.addf %160, %164 : vector<8x256xf32>
    %166 = vector.extract_strided_slice %139 {offsets = [40, 0], sizes = [8, 128], strides = [1, 1]} : vector<72x128xf32> to vector<8x128xf32>
    %167 = arith.truncf %166 : vector<8x128xf32> to vector<8x128xbf16>
    %c640_94 = arith.constant 640 : index
    %c0_95 = arith.constant 0 : index
    %168 = vector.load %arg11[%c640_94, %c0_95] : memref<1152x256xbf16, #tpu.memory_space<vmem>>, vector<128x256xbf16>
    %cst_96 = arith.constant dense<0.000000e+00> : vector<8x256xf32>
    %169 = tpu.matmul %167, %168, %cst_96 {dimension_numbers = #tpu.dot_dimension_numbers<[1], [0], [0], [1], [0, 0, 1, 1], [], []>} : vector<8x128xbf16>, vector<128x256xbf16>, vector<8x256xf32> -> vector<8x256xf32>
    %170 = arith.addf %165, %169 : vector<8x256xf32>
    %171 = vector.extract_strided_slice %139 {offsets = [48, 0], sizes = [8, 128], strides = [1, 1]} : vector<72x128xf32> to vector<8x128xf32>
    %172 = arith.truncf %171 : vector<8x128xf32> to vector<8x128xbf16>
    %c768_97 = arith.constant 768 : index
    %c0_98 = arith.constant 0 : index
    %173 = vector.load %arg11[%c768_97, %c0_98] : memref<1152x256xbf16, #tpu.memory_space<vmem>>, vector<128x256xbf16>
    %cst_99 = arith.constant dense<0.000000e+00> : vector<8x256xf32>
    %174 = tpu.matmul %172, %173, %cst_99 {dimension_numbers = #tpu.dot_dimension_numbers<[1], [0], [0], [1], [0, 0, 1, 1], [], []>} : vector<8x128xbf16>, vector<128x256xbf16>, vector<8x256xf32> -> vector<8x256xf32>
    %175 = arith.addf %170, %174 : vector<8x256xf32>
    %176 = vector.extract_strided_slice %139 {offsets = [56, 0], sizes = [8, 128], strides = [1, 1]} : vector<72x128xf32> to vector<8x128xf32>
    %177 = arith.truncf %176 : vector<8x128xf32> to vector<8x128xbf16>
    %c896_100 = arith.constant 896 : index
    %c0_101 = arith.constant 0 : index
    %178 = vector.load %arg11[%c896_100, %c0_101] : memref<1152x256xbf16, #tpu.memory_space<vmem>>, vector<128x256xbf16>
    %cst_102 = arith.constant dense<0.000000e+00> : vector<8x256xf32>
    %179 = tpu.matmul %177, %178, %cst_102 {dimension_numbers = #tpu.dot_dimension_numbers<[1], [0], [0], [1], [0, 0, 1, 1], [], []>} : vector<8x128xbf16>, vector<128x256xbf16>, vector<8x256xf32> -> vector<8x256xf32>
    %180 = arith.addf %175, %179 : vector<8x256xf32>
    %181 = vector.extract_strided_slice %139 {offsets = [64, 0], sizes = [8, 128], strides = [1, 1]} : vector<72x128xf32> to vector<8x128xf32>
    %182 = arith.truncf %181 : vector<8x128xf32> to vector<8x128xbf16>
    %c1024_103 = arith.constant 1024 : index
    %c0_104 = arith.constant 0 : index
    %183 = vector.load %arg11[%c1024_103, %c0_104] : memref<1152x256xbf16, #tpu.memory_space<vmem>>, vector<128x256xbf16>
    %cst_105 = arith.constant dense<0.000000e+00> : vector<8x256xf32>
    %184 = tpu.matmul %182, %183, %cst_105 {dimension_numbers = #tpu.dot_dimension_numbers<[1], [0], [0], [1], [0, 0, 1, 1], [], []>} : vector<8x128xbf16>, vector<128x256xbf16>, vector<8x256xf32> -> vector<8x256xf32>
    %185 = arith.addf %180, %184 : vector<8x256xf32>
    %c0_106 = arith.constant 0 : index
    %c0_107 = arith.constant 0 : index
    %186 = vector.load %arg12[%c0_106, %c0_107] : memref<3x256xf32, #tpu.memory_space<vmem>>, vector<1x256xf32>
    %187 = vector.broadcast %186 : vector<1x256xf32> to vector<8x256xf32>
    %188 = arith.addf %185, %187 : vector<8x256xf32>
    %cst_108 = arith.constant 0.000000e+00 : f32
    %189 = vector.broadcast %cst_108 : f32 to vector<8x256xf32>
    %190 = arith.cmpf oge, %188, %189 : vector<8x256xf32>
    %cst_109 = arith.constant 2.000000e-01 : f32
    %191 = vector.broadcast %cst_109 : f32 to vector<8x256xf32>
    %192 = arith.mulf %191, %188 : vector<8x256xf32>
    %193 = arith.select %190, %188, %192 : vector<8x256xi1>, vector<8x256xf32>
    %c1_110 = arith.constant 1 : index
    %c0_111 = arith.constant 0 : index
    %194 = vector.load %arg12[%c1_110, %c0_111] : memref<3x256xf32, #tpu.memory_space<vmem>>, vector<1x256xf32>
    %195 = vector.broadcast %194 : vector<1x256xf32> to vector<8x256xf32>
    %196 = arith.mulf %193, %195 : vector<8x256xf32>
    %c2_112 = arith.constant 2 : index
    %c0_113 = arith.constant 0 : index
    %197 = vector.load %arg12[%c2_112, %c0_113] : memref<3x256xf32, #tpu.memory_space<vmem>>, vector<1x256xf32>
    %198 = vector.broadcast %197 : vector<1x256xf32> to vector<8x256xf32>
    %199 = arith.addf %196, %198 : vector<8x256xf32>
    %c0_114 = arith.constant 0 : index
    %c0_115 = arith.constant 0 : index
    %200 = vector.load %arg13[%c0_114, %c0_115] : memref<8x256xf32, #tpu.memory_space<vmem>>, vector<8x256xf32>
    %201 = arith.mulf %199, %200 : vector<8x256xf32>
    %cst_116 = arith.constant dense<0.000000e+00> : vector<8xf32>
    %202 = vector.multi_reduction <add>, %201, %cst_116 [1] : vector<8x256xf32> to vector<8xf32>
    %203 = vector.shape_cast %202 : vector<8xf32> to vector<8x1xf32>
    %204 = vector.extract_strided_slice %203 {offsets = [0, 0], sizes = [4, 1], strides = [1, 1]} : vector<8x1xf32> to vector<4x1xf32>
    %cst_117 = arith.constant dense<0.000000e+00> : vector<1xf32>
    %205 = vector.multi_reduction <add>, %204, %cst_117 [0] : vector<4x1xf32> to vector<1xf32>
    %206 = vector.shape_cast %205 : vector<1xf32> to vector<1x1xf32>
    %207 = vector.extract_strided_slice %203 {offsets = [4, 0], sizes = [4, 1], strides = [1, 1]} : vector<8x1xf32> to vector<4x1xf32>
    %cst_118 = arith.constant dense<0.000000e+00> : vector<1xf32>
    %208 = vector.multi_reduction <add>, %207, %cst_118 [0] : vector<4x1xf32> to vector<1xf32>
    %209 = vector.shape_cast %208 : vector<1xf32> to vector<1x1xf32>
    %210 = tpu.concatenate %206, %209 in 0 : vector<1x1xf32>, vector<1x1xf32> -> vector<2x1xf32>
    %c0_119 = arith.constant 0 : index
    %c0_120 = arith.constant 0 : index
    %211 = vector.load %arg14[%c0_119, %c0_120] : memref<1x1xf32, #tpu.memory_space<vmem>>, vector<1x1xf32>
    %212 = vector.broadcast %211 : vector<1x1xf32> to vector<2x1xf32>
    %213 = arith.addf %210, %212 : vector<2x1xf32>
    %cst_121 = arith.constant 0.000000e+00 : f32
    %214 = vector.broadcast %cst_121 : f32 to vector<2x1xf32>
    %215 = arith.subf %214, %213 : vector<2x1xf32>
    %216 = math.exp %215 : vector<2x1xf32>
    %cst_122 = arith.constant 1.000000e+00 : f32
    %217 = vector.broadcast %cst_122 : f32 to vector<2x1xf32>
    %218 = arith.addf %217, %216 : vector<2x1xf32>
    %219 = tpu.reciprocal %218 {approx = true} : vector<2x1xf32> -> vector<2x1xf32>
    %c0_123 = arith.constant 0 : index
    %c0_124 = arith.constant 0 : index
    %220 = vector.load %arg15[%c0_123, %c0_124] : memref<2x1xf32, #tpu.memory_space<vmem>>, vector<2x1xf32>
    tpu.vector_store %arg15[%c0_123, %c0_124], %219 {strides = array<i32>} : memref<2x1xf32, #tpu.memory_space<vmem>>, vector<2x1xf32>,
    return
  }
  func.func @transform_0(%arg0: i32) -> (i32, i32) {
    %c0_i32 = arith.constant 0 : i32
    %c0_i32_0 = arith.constant 0 : i32
    %c0_i32_1 = arith.constant 0 : i32
    return %c0_i32, %c0_i32_0 : i32, i32
  }
  func.func @transform_1(%arg0: i32) -> (i32, i32) {
    %c0_i32 = arith.constant 0 : i32
    %c0_i32_0 = arith.constant 0 : i32
    %c0_i32_1 = arith.constant 0 : i32
    return %c0_i32, %c0_i32_0 : i32, i32
  }
  func.func @transform_2(%arg0: i32) -> (i32, i32) {
    %c0_i32 = arith.constant 0 : i32
    %c0_i32_0 = arith.constant 0 : i32
    %c0_i32_1 = arith.constant 0 : i32
    return %c0_i32, %c0_i32_0 : i32, i32
  }
  func.func @transform_3(%arg0: i32) -> (i32, i32) {
    %c0_i32 = arith.constant 0 : i32
    %c0_i32_0 = arith.constant 0 : i32
    %c0_i32_1 = arith.constant 0 : i32
    return %c0_i32, %c0_i32_0 : i32, i32
  }
  func.func @transform_4(%arg0: i32) -> (i32, i32) {
    %c0_i32 = arith.constant 0 : i32
    %c0_i32_0 = arith.constant 0 : i32
    %c0_i32_1 = arith.constant 0 : i32
    return %c0_i32, %c0_i32_0 : i32, i32
  }
  func.func @transform_5(%arg0: i32) -> (i32, i32) {
    %c0_i32 = arith.constant 0 : i32
    %c0_i32_0 = arith.constant 0 : i32
    %c0_i32_1 = arith.constant 0 : i32
    return %c0_i32, %c0_i32_0 : i32, i32
  }
  func.func @transform_6(%arg0: i32) -> (i32, i32) {
    %c0_i32 = arith.constant 0 : i32
    %c0_i32_0 = arith.constant 0 : i32
    %c0_i32_1 = arith.constant 0 : i32
    return %c0_i32, %c0_i32_0 : i32, i32
  }
  func.func @transform_7(%arg0: i32) -> (i32, i32) {
    %c0_i32 = arith.constant 0 : i32
    %c0_i32_0 = arith.constant 0 : i32
    %c0_i32_1 = arith.constant 0 : i32
    return %c0_i32, %c0_i32_0 : i32, i32
  }
  func.func @transform_8(%arg0: i32) -> (i32, i32) {
    %c0_i32 = arith.constant 0 : i32
    %c0_i32_0 = arith.constant 0 : i32
    %c0_i32_1 = arith.constant 0 : i32
    return %c0_i32, %c0_i32_0 : i32, i32
  }
  func.func @transform_9(%arg0: i32) -> (i32, i32) {
    %c0_i32 = arith.constant 0 : i32
    %c0_i32_0 = arith.constant 0 : i32
    %c0_i32_1 = arith.constant 0 : i32
    return %c0_i32, %c0_i32_0 : i32, i32
  }
  func.func @transform_10(%arg0: i32) -> (i32, i32) {
    %c0_i32 = arith.constant 0 : i32
    %c0_i32_0 = arith.constant 0 : i32
    %c0_i32_1 = arith.constant 0 : i32
    return %c0_i32, %c0_i32_0 : i32, i32
  }
  func.func @transform_11(%arg0: i32) -> (i32, i32) {
    %c0_i32 = arith.constant 0 : i32
    %c0_i32_0 = arith.constant 0 : i32
    %c0_i32_1 = arith.constant 0 : i32
    return %c0_i32, %c0_i32_0 : i32, i32
  }
  func.func @transform_12(%arg0: i32) -> (i32, i32) {
    %c0_i32 = arith.constant 0 : i32
    %c0_i32_0 = arith.constant 0 : i32
    %c0_i32_1 = arith.constant 0 : i32
    return %c0_i32, %c0_i32_0 : i32, i32
  }
  func.func @transform_13(%arg0: i32) -> (i32, i32) {
    %c0_i32 = arith.constant 0 : i32
    %c0_i32_0 = arith.constant 0 : i32
    %c0_i32_1 = arith.constant 0 : i32
    return %c0_i32, %c0_i32_0 : i32, i32
  }
  func.func @transform_14(%arg0: i32) -> (i32, i32) {
    %c0_i32 = arith.constant 0 : i32
    %c0_i32_0 = arith.constant 0 : i32
    %c0_i32_1 = arith.constant 0 : i32
    return %c0_i32, %c0_i32_0 : i32, i32
  }
}

</mosaic_0001>

<llo_original>
// kernel: tile.9
$region0: #{tile.9}
  %s0 = inlined_call_operand.vmem [shape: f32[2,4,256], index: 0, kind: input, shape index: {}]
  %s1 = inlined_call_operand.vmem [shape: f32[8,256], index: 1, kind: output, shape index: {}]
  $region1: #{tile.9} parent=0
    #allocation0 [shape = 'u8[16384]{0}', space=vmem, size = 0x4000, scoped, tag = 'scoped mem for input reshape']
    %s3 = sshllo.u32 0, 4
    %s4 = smul.addr 4, 3
    %s5 = scalar_lea.vmem %s0, %s4
    %v6 = vld [vmem:[%s5] sm:%s3]
    %s7 = scalar_lea.vmem [#allocation0], 24
    %8 = vst [vmem:[%s7] sm:%s3] %v6
    %s9 = smul.addr 4, 2
    %s10 = scalar_lea.vmem %s0, %s9
    %v11 = vld [vmem:[%s10] sm:%s3]
    %s12 = scalar_lea.vmem [#allocation0], 16
    %13 = vst [vmem:[%s12] sm:%s3] %v11
    %s14 = scalar_lea.vmem %s0, 4
    %v15 = vld [vmem:[%s14] sm:%s3]
    %s16 = scalar_lea.vmem [#allocation0], 8
    %17 = vst [vmem:[%s16] sm:%s3] %v15
    %v18 = vld [vmem:[%s0] sm:%s3]
    %19 = vst [vmem:[#allocation0] sm:%s3] %v18
    %v20 = vld [vmem:[#allocation0] sm:$0xf]
    %21 = vst [vmem:[%s1] sm:$0xf] %v20
    %s22 = scalar_lea.vmem [#allocation0], 8
    %v23 = vld [vmem:[%s22] sm:$0xf]
    %s24 = scalar_lea.vmem %s1, 8
    %25 = vst [vmem:[%s24] sm:$0xf] %v23
    %s26 = scalar_lea.vmem [#allocation0], 16
    %v27 = vld [vmem:[%s26] sm:$0xf]
    %s28 = scalar_lea.vmem %s1, 4
    %29 = vst [vmem:[%s28] sm:$0xf] %v27
    %s30 = scalar_lea.vmem [#allocation0], 24
    %v31 = vld [vmem:[%s30] sm:$0xf]
    %s32 = scalar_lea.vmem %s1, 12
    %33 = vst [vmem:[%s32] sm:$0xf] %v31

// kernel: discriminator_forward.1
$region0: #{discriminator_forward.1}
  #allocation0 [shape = 'u32[]', space=smem, size = 0x4, offset = 0x4, fixed_abs, tag = 'smem constant byte address 0x4 - core index']
  #allocation1 [shape = 'u32[144,128]{1,0:T(1,128)}', space=vmem, size = 0x12000, scoped, tag = 'internal scratch']
  #allocation2 [shape = 'f32[1,1]{1,0:T(1,128)S(1)}', space=vmem, size = 0x200, scoped, tag = 'scoped memory for discriminator_forward.1']
  %s0 = inlined_call_operand.vmem [shape: bf16[512,128], index: 0, kind: input, shape index: {}]
  %s1 = inlined_call_operand.vmem [shape: bf16[128,128], index: 1, kind: input, shape index: {}]
  %s2 = inlined_call_operand.vmem [shape: f32[3,128], index: 2, kind: input, shape index: {}]
  %s3 = inlined_call_operand.vmem [shape: bf16[1152,512], index: 3, kind: input, shape index: {}]
  %s4 = inlined_call_operand.vmem [shape: bf16[1152,128], index: 4, kind: input, shape index: {}]
  %s5 = inlined_call_operand.vmem [shape: f32[3,128], index: 5, kind: input, shape index: {}]
  %s6 = inlined_call_operand.vmem [shape: bf16[288,128], index: 6, kind: input, shape index: {}]
  %s7 = inlined_call_operand.vmem [shape: bf16[1152,128], index: 7, kind: input, shape index: {}]
  %s8 = inlined_call_operand.vmem [shape: f32[3,128], index: 8, kind: input, shape index: {}]
  %s9 = inlined_call_operand.vmem [shape: bf16[72,32], index: 9, kind: input, shape index: {}]
  %s10 = inlined_call_operand.vmem [shape: bf16[1152,256], index: 10, kind: input, shape index: {}]
  %s11 = inlined_call_operand.vmem [shape: f32[3,256], index: 11, kind: input, shape index: {}]
  %s12 = inlined_call_operand.vmem [shape: f32[8,256], index: 12, kind: input, shape index: {}]
  %s13 = inlined_call_operand.<no memory space> [shape: f32[1,1], index: 13, kind: input, shape index: {}]
  %s14 = inlined_call_operand.vmem [shape: f32[2,1], index: 14, kind: output, shape index: {}]
  %s15 = sld [smem:[#allocation0]]
  $region66: #{discriminator_forward.1} parent=0
    _
  %s17 = ssub.s32 1, %s15
  %s18 = scalar_select 0, %s17, %s15
  %v19 = vstv %s13
  %20 = vst [vmem:[#allocation2] sm:$0x1] %v19
  // Predicated region
  $region2: #{discriminator_forward.1} parent=0 // pred_check
    _
  $region3: #{discriminator_forward.1} parent=0 // pred_check_branch
    %22 = sbr.rel (0) target = $region5
  $region4: #{discriminator_forward.1} parent=0 // pred_region
    _
  $region5: #{discriminator_forward.1} parent=0 // pred_fallthru
    _
  // Predicated region
  $region6: #{discriminator_forward.1} parent=0 // pred_check
    _
  $region7: #{discriminator_forward.1} parent=0 // pred_check_branch
    %24 = sbr.rel (0) target = $region9
  $region8: #{discriminator_forward.1} parent=0 // pred_region
    _
  $region9: #{discriminator_forward.1} parent=0 // pred_fallthru
    _
  // Predicated region
  $region10: #{discriminator_forward.1} parent=0 // pred_check
    _
  $region11: #{discriminator_forward.1} parent=0 // pred_check_branch
    %26 = sbr.rel (0) target = $region13
  $region12: #{discriminator_forward.1} parent=0 // pred_region
    _
  $region13: #{discriminator_forward.1} parent=0 // pred_fallthru
    _
  // Predicated region
  $region14: #{discriminator_forward.1} parent=0 // pred_check
    _
  $region15: #{discriminator_forward.1} parent=0 // pred_check_branch
    %28 = sbr.rel (0) target = $region17
  $region16: #{discriminator_forward.1} parent=0 // pred_region
    _
  $region17: #{discriminator_forward.1} parent=0 // pred_fallthru
    _
  // Predicated region
  $region18: #{discriminator_forward.1} parent=0 // pred_check
    _
  $region19: #{discriminator_forward.1} parent=0 // pred_check_branch
    %30 = sbr.rel (0) target = $region21
  $region20: #{discriminator_forward.1} parent=0 // pred_region
    _
  $region21: #{discriminator_forward.1} parent=0 // pred_fallthru
    _
  // Predicated region
  $region22: #{discriminator_forward.1} parent=0 // pred_check
    _
  $region23: #{discriminator_forward.1} parent=0 // pred_check_branch
    %32 = sbr.rel (0) target = $region25
  $region24: #{discriminator_forward.1} parent=0 // pred_region
    _
  $region25: #{discriminator_forward.1} parent=0 // pred_fallthru
    _
  // Predicated region
  $region26: #{discriminator_forward.1} parent=0 // pred_check
    _
  $region27: #{discriminator_forward.1} parent=0 // pred_check_branch
    %34 = sbr.rel (0) target = $region29
  $region28: #{discriminator_forward.1} parent=0 // pred_region
    _
  $region29: #{discriminator_forward.1} parent=0 // pred_fallthru
    _
  // Predicated region
  $region30: #{discriminator_forward.1} parent=0 // pred_check
    _
  $region31: #{discriminator_forward.1} parent=0 // pred_check_branch
    %36 = sbr.rel (0) target = $region33
  $region32: #{discriminator_forward.1} parent=0 // pred_region
    _
  $region33: #{discriminator_forward.1} parent=0 // pred_fallthru
    _
  // Predicated region
  $region34: #{discriminator_forward.1} parent=0 // pred_check
    _
  $region35: #{discriminator_forward.1} parent=0 // pred_check_branch
    %38 = sbr.rel (0) target = $region37
  $region36: #{discriminator_forward.1} parent=0 // pred_region
    _
  $region37: #{discriminator_forward.1} parent=0 // pred_fallthru
    _
  // Predicated region
  $region38: #{discriminator_forward.1} parent=0 // pred_check
    _
  $region39: #{discriminator_forward.1} parent=0 // pred_check_branch
    %40 = sbr.rel (0) target = $region41
  $region40: #{discriminator_forward.1} parent=0 // pred_region
    _
  $region41: #{discriminator_forward.1} parent=0 // pred_fallthru
    _
  // Predicated region
  $region42: #{discriminator_forward.1} parent=0 // pred_check
    _
  $region43: #{discriminator_forward.1} parent=0 // pred_check_branch
    %42 = sbr.rel (0) target = $region45
  $region44: #{discriminator_forward.1} parent=0 // pred_region
    _
  $region45: #{discriminator_forward.1} parent=0 // pred_fallthru
    _
  // Predicated region
  $region46: #{discriminator_forward.1} parent=0 // pred_check
    _
  $region47: #{discriminator_forward.1} parent=0 // pred_check_branch
    %44 = sbr.rel (0) target = $region49
  $region48: #{discriminator_forward.1} parent=0 // pred_region
    _
  $region49: #{discriminator_forward.1} parent=0 // pred_fallthru
    _
  // Predicated region
  $region50: #{discriminator_forward.1} parent=0 // pred_check
    _
  $region51: #{discriminator_forward.1} parent=0 // pred_check_branch
    %46 = sbr.rel (0) target = $region53
  $region52: #{discriminator_forward.1} parent=0 // pred_region
    _
  $region53: #{discriminator_forward.1} parent=0 // pred_fallthru
    _
  // Predicated region
  $region54: #{discriminator_forward.1} parent=0 // pred_check
    _
  $region55: #{discriminator_forward.1} parent=0 // pred_check_branch
    %48 = sbr.rel (0) target = $region57
  $region56: #{discriminator_forward.1} parent=0 // pred_region
    _
  $region57: #{discriminator_forward.1} parent=0 // pred_fallthru
    _
  %v50 = vld [vmem:[%s0] sm:$0xf]
  %v51 = vld [vmem:[%s0 + $0x4] sm:$0xf]
  %v52 = vld [vmem:[%s0 + $0x8] sm:$0xf]
  %v53 = vld [vmem:[%s0 + $0xc] sm:$0xf]
  %v54 = vld [vmem:[%s0 + $0x10] sm:$0xf]
  %v55 = vld [vmem:[%s0 + $0x14] sm:$0xf]
  %v56 = vld [vmem:[%s0 + $0x18] sm:$0xf]
  %v57 = vld [vmem:[%s0 + $0x1c] sm:$0xf]
  %v58 = vld [vmem:[%s0 + $0x20] sm:$0xf]
  %v59 = vld [vmem:[%s0 + $0x24] sm:$0xf]
  %v60 = vld [vmem:[%s0 + $0x28] sm:$0xf]
  %v61 = vld [vmem:[%s0 + $0x2c] sm:$0xf]
  %v62 = vld [vmem:[%s0 + $0x30] sm:$0xf]
  %v63 = vld [vmem:[%s0 + $0x34] sm:$0xf]
  %v64 = vld [vmem:[%s0 + $0x38] sm:$0xf]
  %v65 = vld [vmem:[%s0 + $0x3c] sm:$0xf]
  %v66 = vld [vmem:[%s0 + $0x40] sm:$0xf]
  %v67 = vld [vmem:[%s0 + $0x44] sm:$0xf]
  %v68 = vld [vmem:[%s0 + $0x48] sm:$0xf]
  %v69 = vld [vmem:[%s0 + $0x4c] sm:$0xf]
  %v70 = vld [vmem:[%s0 + $0x50] sm:$0xf]
  %v71 = vld [vmem:[%s0 + $0x54] sm:$0xf]
  %v72 = vld [vmem:[%s0 + $0x58] sm:$0xf]
  %v73 = vld [vmem:[%s0 + $0x5c] sm:$0xf]
  %v74 = vld [vmem:[%s0 + $0x60] sm:$0xf]
  %v75 = vld [vmem:[%s0 + $0x64] sm:$0xf]
  %v76 = vld [vmem:[%s0 + $0x68] sm:$0xf]
  %v77 = vld [vmem:[%s0 + $0x6c] sm:$0xf]
  %v78 = vld [vmem:[%s0 + $0x70] sm:$0xf]
  %v79 = vld [vmem:[%s0 + $0x74] sm:$0xf]
  %v80 = vld [vmem:[%s0 + $0x78] sm:$0xf]
  %v81 = vld [vmem:[%s0 + $0x7c] sm:$0xf]
  %v82 = vld [vmem:[%s0 + $0x80] sm:$0xf]
  %v83 = vld [vmem:[%s0 + $0x84] sm:$0xf]
  %v84 = vld [vmem:[%s0 + $0x88] sm:$0xf]
  %v85 = vld [vmem:[%s0 + $0x8c] sm:$0xf]
  %v86 = vld [vmem:[%s0 + $0x90] sm:$0xf]
  %v87 = vld [vmem:[%s0 + $0x94] sm:$0xf]
  %v88 = vld [vmem:[%s0 + $0x98] sm:$0xf]
  %v89 = vld [vmem:[%s0 + $0x9c] sm:$0xf]
  %v90 = vld [vmem:[%s0 + $0xa0] sm:$0xf]
  %v91 = vld [vmem:[%s0 + $0xa4] sm:$0xf]
  %v92 = vld [vmem:[%s0 + $0xa8] sm:$0xf]
  %v93 = vld [vmem:[%s0 + $0xac] sm:$0xf]
  %v94 = vld [vmem:[%s0 + $0xb0] sm:$0xf]
  %v95 = vld [vmem:[%s0 + $0xb4] sm:$0xf]
  %v96 = vld [vmem:[%s0 + $0xb8] sm:$0xf]
  %v97 = vld [vmem:[%s0 + $0xbc] sm:$0xf]
  %v98 = vld [vmem:[%s0 + $0xc0] sm:$0xf]
  %v99 = vld [vmem:[%s0 + $0xc4] sm:$0xf]
  %v100 = vld [vmem:[%s0 + $0xc8] sm:$0xf]
  %v101 = vld [vmem:[%s0 + $0xcc] sm:$0xf]
  %v102 = vld [vmem:[%s0 + $0xd0] sm:$0xf]
  %v103 = vld [vmem:[%s0 + $0xd4] sm:$0xf]
  %v104 = vld [vmem:[%s0 + $0xd8] sm:$0xf]
  %v105 = vld [vmem:[%s0 + $0xdc] sm:$0xf]
  %v106 = vld [vmem:[%s0 + $0xe0] sm:$0xf]
  %v107 = vld [vmem:[%s0 + $0xe4] sm:$0xf]
  %v108 = vld [vmem:[%s0 + $0xe8] sm:$0xf]
  %v109 = vld [vmem:[%s0 + $0xec] sm:$0xf]
  %v110 = vld [vmem:[%s0 + $0xf0] sm:$0xf]
  %v111 = vld [vmem:[%s0 + $0xf4] sm:$0xf]
  %v112 = vld [vmem:[%s0 + $0xf8] sm:$0xf]
  %v113 = vld [vmem:[%s0 + $0xfc] sm:$0xf]
  %v114 = vld [vmem:[%s1] sm:$0xf]
  %v115 = vld [vmem:[%s1 + $0x4] sm:$0xf]
  %v116 = vld [vmem:[%s1 + $0x8] sm:$0xf]
  %v117 = vld [vmem:[%s1 + $0xc] sm:$0xf]
  %v118 = vld [vmem:[%s1 + $0x10] sm:$0xf]
  %v119 = vld [vmem:[%s1 + $0x14] sm:$0xf]
  %v120 = vld [vmem:[%s1 + $0x18] sm:$0xf]
  %v121 = vld [vmem:[%s1 + $0x1c] sm:$0xf]
  %v122 = vld [vmem:[%s1 + $0x20] sm:$0xf]
  %v123 = vld [vmem:[%s1 + $0x24] sm:$0xf]
  %v124 = vld [vmem:[%s1 + $0x28] sm:$0xf]
  %v125 = vld [vmem:[%s1 + $0x2c] sm:$0xf]
  %v126 = vld [vmem:[%s1 + $0x30] sm:$0xf]
  %v127 = vld [vmem:[%s1 + $0x34] sm:$0xf]
  %v128 = vld [vmem:[%s1 + $0x38] sm:$0xf]
  %v129 = vld [vmem:[%s1 + $0x3c] sm:$0xf]
  %v130 = vld [vmem:[%s2] sm:$0x1]
  %v131 = vlaneseq
  %v132 = vshrl.u32 %v131, 7
  %v133 = vsub.s32 0, %v132
  %v134 = vrot.slane %v130, %v133
  %v199 = vunpack.c.l.b16 %v50
  %v200 = vunpack.c.l.b16 %v51
  %v201 = vunpack.c.l.b16 %v52
  %v202 = vunpack.c.l.b16 %v53
  %v203 = vunpack.c.l.b16 %v54
  %v204 = vunpack.c.l.b16 %v55
  %v205 = vunpack.c.l.b16 %v56
  %v206 = vunpack.c.l.b16 %v57
  %v207 = vunpack.c.l.b16 %v58
  %v208 = vunpack.c.l.b16 %v59
  %v209 = vunpack.c.l.b16 %v60
  %v210 = vunpack.c.l.b16 %v61
  %v211 = vunpack.c.l.b16 %v62
  %v212 = vunpack.c.l.b16 %v63
  %v213 = vunpack.c.l.b16 %v64
  %v214 = vunpack.c.l.b16 %v65
  %v215 = vunpack.c.l.b16 %v66
  %v216 = vunpack.c.l.b16 %v67
  %v217 = vunpack.c.l.b16 %v68
  %v218 = vunpack.c.l.b16 %v69
  %v219 = vunpack.c.l.b16 %v70
  %v220 = vunpack.c.l.b16 %v71
  %v221 = vunpack.c.l.b16 %v72
  %v222 = vunpack.c.l.b16 %v73
  %v223 = vunpack.c.l.b16 %v74
  %v224 = vunpack.c.l.b16 %v75
  %v225 = vunpack.c.l.b16 %v76
  %v226 = vunpack.c.l.b16 %v77
  %v227 = vunpack.c.l.b16 %v78
  %v228 = vunpack.c.l.b16 %v79
  %v229 = vunpack.c.l.b16 %v80
  %v230 = vunpack.c.l.b16 %v81
  %v231 = vunpack.c.l.b16 %v82
  %v232 = vunpack.c.l.b16 %v83
  %v233 = vunpack.c.l.b16 %v84
  %v234 = vunpack.c.l.b16 %v85
  %v235 = vunpack.c.l.b16 %v86
  %v236 = vunpack.c.l.b16 %v87
  %v237 = vunpack.c.l.b16 %v88
  %v238 = vunpack.c.l.b16 %v89
  %v239 = vunpack.c.l.b16 %v90
  %v240 = vunpack.c.l.b16 %v91
  %v241 = vunpack.c.l.b16 %v92
  %v242 = vunpack.c.l.b16 %v93
  %v243 = vunpack.c.l.b16 %v94
  %v244 = vunpack.c.l.b16 %v95
  %v245 = vunpack.c.l.b16 %v96
  %v246 = vunpack.c.l.b16 %v97
  %v247 = vunpack.c.l.b16 %v98
  %v248 = vunpack.c.l.b16 %v99
  %v249 = vunpack.c.l.b16 %v100
  %v250 = vunpack.c.l.b16 %v101
  %v251 = vunpack.c.l.b16 %v102
  %v252 = vunpack.c.l.b16 %v103
  %v253 = vunpack.c.l.b16 %v104
  %v254 = vunpack.c.l.b16 %v105
  %v255 = vunpack.c.l.b16 %v106
  %v256 = vunpack.c.l.b16 %v107
  %v257 = vunpack.c.l.b16 %v108
  %v258 = vunpack.c.l.b16 %v109
  %v259 = vunpack.c.l.b16 %v110
  %v260 = vunpack.c.l.b16 %v111
  %v261 = vunpack.c.l.b16 %v112
  %v262 = vunpack.c.l.b16 %v113
  %v263 = vpack.c.b16 %v200, %v199
  %v264 = vpack.c.b16 %v202, %v201
  %v265 = vpack.c.b16 %v204, %v203
  %v266 = vpack.c.b16 %v206, %v205
  %v267 = vpack.c.b16 %v208, %v207
  %v268 = vpack.c.b16 %v210, %v209
  %v269 = vpack.c.b16 %v212, %v211
  %v270 = vpack.c.b16 %v214, %v213
  %v271 = vpack.c.b16 %v216, %v215
  %v272 = vpack.c.b16 %v218, %v217
  %v273 = vpack.c.b16 %v220, %v219
  %v274 = vpack.c.b16 %v222, %v221
  %v275 = vpack.c.b16 %v224, %v223
  %v276 = vpack.c.b16 %v226, %v225
  %v277 = vpack.c.b16 %v228, %v227
  %v278 = vpack.c.b16 %v230, %v229
  %v279 = vpack.c.b16 %v232, %v231
  %v280 = vpack.c.b16 %v234, %v233
  %v281 = vpack.c.b16 %v236, %v235
  %v282 = vpack.c.b16 %v238, %v237
  %v283 = vpack.c.b16 %v240, %v239
  %v284 = vpack.c.b16 %v242, %v241
  %v285 = vpack.c.b16 %v244, %v243
  %v286 = vpack.c.b16 %v246, %v245
  %v287 = vpack.c.b16 %v248, %v247
  %v288 = vpack.c.b16 %v250, %v249
  %v289 = vpack.c.b16 %v252, %v251
  %v290 = vpack.c.b16 %v254, %v253
  %v291 = vpack.c.b16 %v256, %v255
  %v292 = vpack.c.b16 %v258, %v257
  %v293 = vpack.c.b16 %v260, %v259
  %v294 = vpack.c.b16 %v262, %v261
  %v343 = vunpack.c.l.b16 %v114
  %v344 = vunpack.c.l.b16 %v115
  %v345 = vunpack.c.l.b16 %v116
  %v346 = vunpack.c.l.b16 %v117
  %v347 = vunpack.c.l.b16 %v118
  %v348 = vunpack.c.l.b16 %v119
  %v349 = vunpack.c.l.b16 %v120
  %v350 = vunpack.c.l.b16 %v121
  %v351 = vunpack.c.l.b16 %v122
  %v352 = vunpack.c.l.b16 %v123
  %v353 = vunpack.c.l.b16 %v124
  %v354 = vunpack.c.l.b16 %v125
  %v355 = vunpack.c.l.b16 %v126
  %v356 = vunpack.c.l.b16 %v127
  %v357 = vunpack.c.l.b16 %v128
  %v358 = vunpack.c.l.b16 %v129
  %v359 = vpack.c.b16 %v344, %v343
  %v360 = vpack.c.b16 %v346, %v345
  %v361 = vpack.c.b16 %v348, %v347
  %v362 = vpack.c.b16 %v350, %v349
  %v363 = vpack.c.b16 %v352, %v351
  %v364 = vpack.c.b16 %v354, %v353
  %v365 = vpack.c.b16 %v356, %v355
  %v366 = vpack.c.b16 %v358, %v357
  %375 = vmatprep.subr.bf16.mxu0 0
  %376 = vmatpush1.bf16.msra.mxu0 %v359
  %377 = vmatprep.subr.bf16.mxu0 0
  %378 = vmatpush1.bf16.msra.mxu0 %v360
  %379 = vmatprep.subr.bf16.mxu0 0
  %380 = vmatpush1.bf16.msra.mxu0 %v361
  %381 = vmatprep.subr.bf16.mxu0 0
  %382 = vmatpush1.bf16.msra.mxu0 %v362
  %383 = vmatprep.subr.bf16.mxu0 0
  %384 = vmatpush1.bf16.msra.mxu0 %v363
  %385 = vmatprep.subr.bf16.mxu0 0
  %386 = vmatpush1.bf16.msra.mxu0 %v364
  %387 = vmatprep.subr.bf16.mxu0 0
  %388 = vmatpush1.bf16.msra.mxu0 %v365
  %389 = vmatprep.subr.bf16.mxu0 0
  %390 = vmatpush1.bf16.msra.mxu0 %v366
  %391 = vmatprep.subr.bf16.mxu0 0
  %392 = vmatpush1.bf16.msra.mxu0 0
  %393 = vmatprep.subr.bf16.mxu0 0
  %394 = vmatpush1.bf16.msra.mxu0 0
  %395 = vmatprep.subr.bf16.mxu0 0
  %396 = vmatpush1.bf16.msra.mxu0 0
  %397 = vmatprep.subr.bf16.mxu0 0
  %398 = vmatpush1.bf16.msra.mxu0 0
  %399 = vmatprep.subr.bf16.mxu0 0
  %400 = vmatpush1.bf16.msra.mxu0 0
  %401 = vmatprep.subr.bf16.mxu0 0
  %402 = vmatpush1.bf16.msra.mxu0 0
  %403 = vmatprep.subr.bf16.mxu0 0
  %404 = vmatpush1.bf16.msra.mxu0 0
  %405 = vmatprep.subr.bf16.mxu0 0
  %406 = vmatpush1.bf16.msra.mxu0 0
  %407 = vmatprep.mubr.bf16.mxu0 0
  %408 = vmatmul.mubr.bf16.gmra.mrb[0].mxu0 %v263
  %v409 = vpop.f32.mrb[0].mxu0
  %v410 = vadd.f32 %v134, %v409
  %v411 = vpop.f32.mrb[0].mxu0
  %v412 = vpop.f32.mrb[0].mxu0
  %v413 = vadd.f32 %v134, %v412
  %v414 = vpop.f32.mrb[0].mxu0
  %415 = vmatprep.mubr.bf16.mxu0 0
  %416 = vmatmul.mubr.bf16.gmra.mrb[0].mxu0 %v264
  %v417 = vpop.f32.mrb[0].mxu0
  %v418 = vadd.f32 %v134, %v417
  %v419 = vpop.f32.mrb[0].mxu0
  %v420 = vpop.f32.mrb[0].mxu0
  %v421 = vadd.f32 %v134, %v420
  %v422 = vpop.f32.mrb[0].mxu0
  %423 = vmatprep.mubr.bf16.mxu0 0
  %424 = vmatmul.mubr.bf16.gmra.mrb[0].mxu0 %v265
  %v425 = vpop.f32.mrb[0].mxu0
  %v426 = vadd.f32 %v134, %v425
  %v427 = vpop.f32.mrb[0].mxu0
  %v428 = vpop.f32.mrb[0].mxu0
  %v429 = vadd.f32 %v134, %v428
  %v430 = vpop.f32.mrb[0].mxu0
  %431 = vmatprep.mubr.bf16.mxu0 0
  %432 = vmatmul.mubr.bf16.gmra.mrb[0].mxu0 %v266
  %v433 = vpop.f32.mrb[0].mxu0
  %v434 = vadd.f32 %v134, %v433
  %v435 = vpop.f32.mrb[0].mxu0
  %v436 = vpop.f32.mrb[0].mxu0
  %v437 = vadd.f32 %v134, %v436
  %v438 = vpop.f32.mrb[0].mxu0
  %439 = vmatprep.mubr.bf16.mxu0 0
  %440 = vmatmul.mubr.bf16.gmra.mrb[0].mxu0 %v267
  %v441 = vpop.f32.mrb[0].mxu0
  %v442 = vadd.f32 %v134, %v441
  %v443 = vpop.f32.mrb[0].mxu0
  %v444 = vpop.f32.mrb[0].mxu0
  %v445 = vadd.f32 %v134, %v444
  %v446 = vpop.f32.mrb[0].mxu0
  %447 = vmatprep.mubr.bf16.mxu0 0
  %448 = vmatmul.mubr.bf16.gmra.mrb[0].mxu0 %v268
  %v449 = vpop.f32.mrb[0].mxu0
  %v450 = vadd.f32 %v134, %v449
  %v451 = vpop.f32.mrb[0].mxu0
  %v452 = vpop.f32.mrb[0].mxu0
  %v453 = vadd.f32 %v134, %v452
  %v454 = vpop.f32.mrb[0].mxu0
  %455 = vmatprep.mubr.bf16.mxu0 0
  %456 = vmatmul.mubr.bf16.gmra.mrb[0].mxu0 %v269
  %v457 = vpop.f32.mrb[0].mxu0
  %v458 = vadd.f32 %v134, %v457
  %v459 = vpop.f32.mrb[0].mxu0
  %v460 = vpop.f32.mrb[0].mxu0
  %v461 = vadd.f32 %v134, %v460
  %v462 = vpop.f32.mrb[0].mxu0
  %463 = vmatprep.mubr.bf16.mxu0 0
  %464 = vmatmul.mubr.bf16.gmra.mrb[0].mxu0 %v270
  %v465 = vpop.f32.mrb[0].mxu0
  %v466 = vadd.f32 %v134, %v465
  %v467 = vpop.f32.mrb[0].mxu0
  %v468 = vpop.f32.mrb[0].mxu0
  %v469 = vadd.f32 %v134, %v468
  %v470 = vpop.f32.mrb[0].mxu0
  %471 = vmatprep.mubr.bf16.mxu0 0
  %472 = vmatmul.mubr.bf16.gmra.mrb[0].mxu0 %v271
  %v473 = vpop.f32.mrb[0].mxu0
  %v474 = vadd.f32 %v134, %v473
  %v475 = vpop.f32.mrb[0].mxu0
  %v476 = vpop.f32.mrb[0].mxu0
  %v477 = vadd.f32 %v134, %v476
  %v478 = vpop.f32.mrb[0].mxu0
  %479 = vmatprep.mubr.bf16.mxu0 0
  %480 = vmatmul.mubr.bf16.gmra.mrb[0].mxu0 %v272
  %v481 = vpop.f32.mrb[0].mxu0
  %v482 = vadd.f32 %v134, %v481
  %v483 = vpop.f32.mrb[0].mxu0
  %v484 = vpop.f32.mrb[0].mxu0
  %v485 = vadd.f32 %v134, %v484
  %v486 = vpop.f32.mrb[0].mxu0
  %487 = vmatprep.mubr.bf16.mxu0 0
  %488 = vmatmul.mubr.bf16.gmra.mrb[0].mxu0 %v273
  %v489 = vpop.f32.mrb[0].mxu0
  %v490 = vadd.f32 %v134, %v489
  %v491 = vpop.f32.mrb[0].mxu0
  %v492 = vpop.f32.mrb[0].mxu0
  %v493 = vadd.f32 %v134, %v492
  %v494 = vpop.f32.mrb[0].mxu0
  %495 = vmatprep.mubr.bf16.mxu0 0
  %496 = vmatmul.mubr.bf16.gmra.mrb[0].mxu0 %v274
  %v497 = vpop.f32.mrb[0].mxu0
  %v498 = vadd.f32 %v134, %v497
  %v499 = vpop.f32.mrb[0].mxu0
  %v500 = vpop.f32.mrb[0].mxu0
  %v501 = vadd.f32 %v134, %v500
  %v502 = vpop.f32.mrb[0].mxu0
  %503 = vmatprep.mubr.bf16.mxu0 0
  %504 = vmatmul.mubr.bf16.gmra.mrb[0].mxu0 %v275
  %v505 = vpop.f32.mrb[0].mxu0
  %v506 = vadd.f32 %v134, %v505
  %v507 = vpop.f32.mrb[0].mxu0
  %v508 = vpop.f32.mrb[0].mxu0
  %v509 = vadd.f32 %v134, %v508
  %v510 = vpop.f32.mrb[0].mxu0
  %511 = vmatprep.mubr.bf16.mxu0 0
  %512 = vmatmul.mubr.bf16.gmra.mrb[0].mxu0 %v276
  %v513 = vpop.f32.mrb[0].mxu0
  %v514 = vadd.f32 %v134, %v513
  %v515 = vpop.f32.mrb[0].mxu0
  %v516 = vpop.f32.mrb[0].mxu0
  %v517 = vadd.f32 %v134, %v516
  %v518 = vpop.f32.mrb[0].mxu0
  %519 = vmatprep.mubr.bf16.mxu0 0
  %520 = vmatmul.mubr.bf16.gmra.mrb[0].mxu0 %v277
  %v521 = vpop.f32.mrb[0].mxu0
  %v522 = vadd.f32 %v134, %v521
  %v523 = vpop.f32.mrb[0].mxu0
  %v524 = vpop.f32.mrb[0].mxu0
  %v525 = vadd.f32 %v134, %v524
  %v526 = vpop.f32.mrb[0].mxu0
  %527 = vmatprep.mubr.bf16.mxu0 0
  %528 = vmatmul.mubr.bf16.gmra.mrb[0].mxu0 %v278
  %v529 = vpop.f32.mrb[0].mxu0
  %v530 = vadd.f32 %v134, %v529
  %v531 = vpop.f32.mrb[0].mxu0
  %v532 = vpop.f32.mrb[0].mxu0
  %v533 = vadd.f32 %v134, %v532
  %v534 = vpop.f32.mrb[0].mxu0
  %535 = vmatprep.mubr.bf16.mxu0 0
  %536 = vmatmul.mubr.bf16.gmra.mrb[0].mxu0 %v279
  %v537 = vpop.f32.mrb[0].mxu0
  %v538 = vadd.f32 %v134, %v537
  %v539 = vpop.f32.mrb[0].mxu0
  %v540 = vpop.f32.mrb[0].mxu0
  %v541 = vadd.f32 %v134, %v540
  %v542 = vpop.f32.mrb[0].mxu0
  %543 = vmatprep.mubr.bf16.mxu0 0
  %544 = vmatmul.mubr.bf16.gmra.mrb[0].mxu0 %v280
  %v545 = vpop.f32.mrb[0].mxu0
  %v546 = vadd.f32 %v134, %v545
  %v547 = vpop.f32.mrb[0].mxu0
  %v548 = vpop.f32.mrb[0].mxu0
  %v549 = vadd.f32 %v134, %v548
  %v550 = vpop.f32.mrb[0].mxu0
  %551 = vmatprep.mubr.bf16.mxu0 0
  %552 = vmatmul.mubr.bf16.gmra.mrb[0].mxu0 %v281
  %v553 = vpop.f32.mrb[0].mxu0
  %v554 = vadd.f32 %v134, %v553
  %v555 = vpop.f32.mrb[0].mxu0
  %v556 = vpop.f32.mrb[0].mxu0
  %v557 = vadd.f32 %v134, %v556
  %v558 = vpop.f32.mrb[0].mxu0
  %559 = vmatprep.mubr.bf16.mxu0 0
  %560 = vmatmul.mubr.bf16.gmra.mrb[0].mxu0 %v282
  %v561 = vpop.f32.mrb[0].mxu0
  %v562 = vadd.f32 %v134, %v561
  %v563 = vpop.f32.mrb[0].mxu0
  %v564 = vpop.f32.mrb[0].mxu0
  %v565 = vadd.f32 %v134, %v564
  %v566 = vpop.f32.mrb[0].mxu0
  %567 = vmatprep.mubr.bf16.mxu0 0
  %568 = vmatmul.mubr.bf16.gmra.mrb[0].mxu0 %v283
  %v569 = vpop.f32.mrb[0].mxu0
  %v570 = vadd.f32 %v134, %v569
  %v571 = vpop.f32.mrb[0].mxu0
  %v572 = vpop.f32.mrb[0].mxu0
  %v573 = vadd.f32 %v134, %v572
  %v574 = vpop.f32.mrb[0].mxu0
  %575 = vmatprep.mubr.bf16.mxu0 0
  %576 = vmatmul.mubr.bf16.gmra.mrb[0].mxu0 %v284
  %v577 = vpop.f32.mrb[0].mxu0
  %v578 = vadd.f32 %v134, %v577
  %v579 = vpop.f32.mrb[0].mxu0
  %v580 = vpop.f32.mrb[0].mxu0
  %v581 = vadd.f32 %v134, %v580
  %v582 = vpop.f32.mrb[0].mxu0
  %583 = vmatprep.mubr.bf16.mxu0 0
  %584 = vmatmul.mubr.bf16.gmra.mrb[0].mxu0 %v285
  %v585 = vpop.f32.mrb[0].mxu0
  %v586 = vadd.f32 %v134, %v585
  %v587 = vpop.f32.mrb[0].mxu0
  %v588 = vpop.f32.mrb[0].mxu0
  %v589 = vadd.f32 %v134, %v588
  %v590 = vpop.f32.mrb[0].mxu0
  %591 = vmatprep.mubr.bf16.mxu0 0
  %592 = vmatmul.mubr.bf16.gmra.mrb[0].mxu0 %v286
  %v593 = vpop.f32.mrb[0].mxu0
  %v594 = vadd.f32 %v134, %v593
  %v595 = vpop.f32.mrb[0].mxu0
  %v596 = vpop.f32.mrb[0].mxu0
  %v597 = vadd.f32 %v134, %v596
  %v598 = vpop.f32.mrb[0].mxu0
  %599 = vmatprep.mubr.bf16.mxu0 0
  %600 = vmatmul.mubr.bf16.gmra.mrb[0].mxu0 %v287
  %v601 = vpop.f32.mrb[0].mxu0
  %v602 = vadd.f32 %v134, %v601
  %v603 = vpop.f32.mrb[0].mxu0
  %v604 = vpop.f32.mrb[0].mxu0
  %v605 = vadd.f32 %v134, %v604
  %v606 = vpop.f32.mrb[0].mxu0
  %607 = vmatprep.mubr.bf16.mxu0 0
  %608 = vmatmul.mubr.bf16.gmra.mrb[0].mxu0 %v288
  %v609 = vpop.f32.mrb[0].mxu0
  %v610 = vadd.f32 %v134, %v609
  %v611 = vpop.f32.mrb[0].mxu0
  %v612 = vpop.f32.mrb[0].mxu0
  %v613 = vadd.f32 %v134, %v612
  %v614 = vpop.f32.mrb[0].mxu0
  %615 = vmatprep.mubr.bf16.mxu0 0
  %616 = vmatmul.mubr.bf16.gmra.mrb[0].mxu0 %v289
  %v617 = vpop.f32.mrb[0].mxu0
  %v618 = vadd.f32 %v134, %v617
  %v619 = vpop.f32.mrb[0].mxu0
  %v620 = vpop.f32.mrb[0].mxu0
  %v621 = vadd.f32 %v134, %v620
  %v622 = vpop.f32.mrb[0].mxu0
  %623 = vmatprep.mubr.bf16.mxu0 0
  %624 = vmatmul.mubr.bf16.gmra.mrb[0].mxu0 %v290
  %v625 = vpop.f32.mrb[0].mxu0
  %v626 = vadd.f32 %v134, %v625
  %v627 = vpop.f32.mrb[0].mxu0
  %v628 = vpop.f32.mrb[0].mxu0
  %v629 = vadd.f32 %v134, %v628
  %v630 = vpop.f32.mrb[0].mxu0
  %631 = vmatprep.mubr.bf16.mxu0 0
  %632 = vmatmul.mubr.bf16.gmra.mrb[0].mxu0 %v291
  %v633 = vpop.f32.mrb[0].mxu0
  %v634 = vadd.f32 %v134, %v633
  %v635 = vpop.f32.mrb[0].mxu0
  %v636 = vpop.f32.mrb[0].mxu0
  %v637 = vadd.f32 %v134, %v636
  %v638 = vpop.f32.mrb[0].mxu0
  %639 = vmatprep.mubr.bf16.mxu0 0
  %640 = vmatmul.mubr.bf16.gmra.mrb[0].mxu0 %v292
  %v641 = vpop.f32.mrb[0].mxu0
  %v642 = vadd.f32 %v134, %v641
  %v643 = vpop.f32.mrb[0].mxu0
  %v644 = vpop.f32.mrb[0].mxu0
  %v645 = vadd.f32 %v134, %v644
  %v646 = vpop.f32.mrb[0].mxu0
  %647 = vmatprep.mubr.bf16.mxu0 0
  %648 = vmatmul.mubr.bf16.gmra.mrb[0].mxu0 %v293
  %v649 = vpop.f32.mrb[0].mxu0
  %v650 = vadd.f32 %v134, %v649
  %v651 = vpop.f32.mrb[0].mxu0
  %v652 = vpop.f32.mrb[0].mxu0
  %v653 = vadd.f32 %v134, %v652
  %v654 = vpop.f32.mrb[0].mxu0
  %655 = vmatprep.mubr.bf16.mxu0 0
  %656 = vmatmul.mubr.bf16.gmra.mrb[0].mxu0 %v294
  %v657 = vpop.f32.mrb[0].mxu0
  %v658 = vadd.f32 %v134, %v657
  %v659 = vpop.f32.mrb[0].mxu0
  %v660 = vpop.f32.mrb[0].mxu0
  %v661 = vadd.f32 %v134, %v660
  %v662 = vpop.f32.mrb[0].mxu0
  %663 = vdwg.mxu0
  %vm664 = vcmp.ge.f32.partialorder %v410, 0.0
  %vm665 = vcmp.ge.f32.partialorder %v413, 0.0
  %vm666 = vcmp.ge.f32.partialorder %v418, 0.0
  %vm667 = vcmp.ge.f32.partialorder %v421, 0.0
  %vm668 = vcmp.ge.f32.partialorder %v426, 0.0
  %vm669 = vcmp.ge.f32.partialorder %v429, 0.0
  %vm670 = vcmp.ge.f32.partialorder %v434, 0.0
  %vm671 = vcmp.ge.f32.partialorder %v437, 0.0
  %vm672 = vcmp.ge.f32.partialorder %v442, 0.0
  %vm673 = vcmp.ge.f32.partialorder %v445, 0.0
  %vm674 = vcmp.ge.f32.partialorder %v450, 0.0
  %vm675 = vcmp.ge.f32.partialorder %v453, 0.0
  %vm676 = vcmp.ge.f32.partialorder %v458, 0.0
  %vm677 = vcmp.ge.f32.partialorder %v461, 0.0
  %vm678 = vcmp.ge.f32.partialorder %v466, 0.0
  %vm679 = vcmp.ge.f32.partialorder %v469, 0.0
  %vm680 = vcmp.ge.f32.partialorder %v474, 0.0
  %vm681 = vcmp.ge.f32.partialorder %v477, 0.0
  %vm682 = vcmp.ge.f32.partialorder %v482, 0.0
  %vm683 = vcmp.ge.f32.partialorder %v485, 0.0
  %vm684 = vcmp.ge.f32.partialorder %v490, 0.0
  %vm685 = vcmp.ge.f32.partialorder %v493, 0.0
  %vm686 = vcmp.ge.f32.partialorder %v498, 0.0
  %vm687 = vcmp.ge.f32.partialorder %v501, 0.0
  %vm688 = vcmp.ge.f32.partialorder %v506, 0.0
  %vm689 = vcmp.ge.f32.partialorder %v509, 0.0
  %vm690 = vcmp.ge.f32.partialorder %v514, 0.0
  %vm691 = vcmp.ge.f32.partialorder %v517, 0.0
  %vm692 = vcmp.ge.f32.partialorder %v522, 0.0
  %vm693 = vcmp.ge.f32.partialorder %v525, 0.0
  %vm694 = vcmp.ge.f32.partialorder %v530, 0.0
  %vm695 = vcmp.ge.f32.partialorder %v533, 0.0
  %vm696 = vcmp.ge.f32.partialorder %v538, 0.0
  %vm697 = vcmp.ge.f32.partialorder %v541, 0.0
  %vm698 = vcmp.ge.f32.partialorder %v546, 0.0
  %vm699 = vcmp.ge.f32.partialorder %v549, 0.0
  %vm700 = vcmp.ge.f32.partialorder %v554, 0.0
  %vm701 = vcmp.ge.f32.partialorder %v557, 0.0
  %vm702 = vcmp.ge.f32.partialorder %v562, 0.0
  %vm703 = vcmp.ge.f32.partialorder %v565, 0.0
  %vm704 = vcmp.ge.f32.partialorder %v570, 0.0
  %vm705 = vcmp.ge.f32.partialorder %v573, 0.0
  %vm706 = vcmp.ge.f32.partialorder %v578, 0.0
  %vm707 = vcmp.ge.f32.partialorder %v581, 0.0
  %vm708 = vcmp.ge.f32.partialorder %v586, 0.0
  %vm709 = vcmp.ge.f32.partialorder %v589, 0.0
  %vm710 = vcmp.ge.f32.partialorder %v594, 0.0
  %vm711 = vcmp.ge.f32.partialorder %v597, 0.0
  %vm712 = vcmp.ge.f32.partialorder %v602, 0.0
  %vm713 = vcmp.ge.f32.partialorder %v605, 0.0
  %vm714 = vcmp.ge.f32.partialorder %v610, 0.0
  %vm715 = vcmp.ge.f32.partialorder %v613, 0.0
  %vm716 = vcmp.ge.f32.partialorder %v618, 0.0
  %vm717 = vcmp.ge.f32.partialorder %v621, 0.0
  %vm718 = vcmp.ge.f32.partialorder %v626, 0.0
  %vm719 = vcmp.ge.f32.partialorder %v629, 0.0
  %vm720 = vcmp.ge.f32.partialorder %v634, 0.0
  %vm721 = vcmp.ge.f32.partialorder %v637, 0.0
  %vm722 = vcmp.ge.f32.partialorder %v642, 0.0
  %vm723 = vcmp.ge.f32.partialorder %v645, 0.0
  %vm724 = vcmp.ge.f32.partialorder %v650, 0.0
  %vm725 = vcmp.ge.f32.partialorder %v653, 0.0
  %vm726 = vcmp.ge.f32.partialorder %v658, 0.0
  %vm727 = vcmp.ge.f32.partialorder %v661, 0.0
  %v728 = vmul.f32 %v410, 0.2
  %v729 = vmul.f32 %v413, 0.2
  %v730 = vmul.f32 %v418, 0.2
  %v731 = vmul.f32 %v421, 0.2
  %v732 = vmul.f32 %v426, 0.2
  %v733 = vmul.f32 %v429, 0.2
  %v734 = vmul.f32 %v434, 0.2
  %v735 = vmul.f32 %v437, 0.2
  %v736 = vmul.f32 %v442, 0.2
  %v737 = vmul.f32 %v445, 0.2
  %v738 = vmul.f32 %v450, 0.2
  %v739 = vmul.f32 %v453, 0.2
  %v740 = vmul.f32 %v458, 0.2
  %v741 = vmul.f32 %v461, 0.2
  %v742 = vmul.f32 %v466, 0.2
  %v743 = vmul.f32 %v469, 0.2
  %v744 = vmul.f32 %v474, 0.2
  %v745 = vmul.f32 %v477, 0.2
  %v746 = vmul.f32 %v482, 0.2
  %v747 = vmul.f32 %v485, 0.2
  %v748 = vmul.f32 %v490, 0.2
  %v749 = vmul.f32 %v493, 0.2
  %v750 = vmul.f32 %v498, 0.2
  %v751 = vmul.f32 %v501, 0.2
  %v752 = vmul.f32 %v506, 0.2
  %v753 = vmul.f32 %v509, 0.2
  %v754 = vmul.f32 %v514, 0.2
  %v755 = vmul.f32 %v517, 0.2
  %v756 = vmul.f32 %v522, 0.2
  %v757 = vmul.f32 %v525, 0.2
  %v758 = vmul.f32 %v530, 0.2
  %v759 = vmul.f32 %v533, 0.2
  %v760 = vmul.f32 %v538, 0.2
  %v761 = vmul.f32 %v541, 0.2
  %v762 = vmul.f32 %v546, 0.2
  %v763 = vmul.f32 %v549, 0.2
  %v764 = vmul.f32 %v554, 0.2
  %v765 = vmul.f32 %v557, 0.2
  %v766 = vmul.f32 %v562, 0.2
  %v767 = vmul.f32 %v565, 0.2
  %v768 = vmul.f32 %v570, 0.2
  %v769 = vmul.f32 %v573, 0.2
  %v770 = vmul.f32 %v578, 0.2
  %v771 = vmul.f32 %v581, 0.2
  %v772 = vmul.f32 %v586, 0.2
  %v773 = vmul.f32 %v589, 0.2
  %v774 = vmul.f32 %v594, 0.2
  %v775 = vmul.f32 %v597, 0.2
  %v776 = vmul.f32 %v602, 0.2
  %v777 = vmul.f32 %v605, 0.2
  %v778 = vmul.f32 %v610, 0.2
  %v779 = vmul.f32 %v613, 0.2
  %v780 = vmul.f32 %v618, 0.2
  %v781 = vmul.f32 %v621, 0.2
  %v782 = vmul.f32 %v626, 0.2
  %v783 = vmul.f32 %v629, 0.2
  %v784 = vmul.f32 %v634, 0.2
  %v785 = vmul.f32 %v637, 0.2
  %v786 = vmul.f32 %v642, 0.2
  %v787 = vmul.f32 %v645, 0.2
  %v788 = vmul.f32 %v650, 0.2
  %v789 = vmul.f32 %v653, 0.2
  %v790 = vmul.f32 %v658, 0.2
  %v791 = vmul.f32 %v661, 0.2
  %v792 = vsel %vm664, %v410, %v728
  %v793 = vsel %vm665, %v413, %v729
  %v794 = vsel %vm666, %v418, %v730
  %v795 = vsel %vm667, %v421, %v731
  %v796 = vsel %vm668, %v426, %v732
  %v797 = vsel %vm669, %v429, %v733
  %v798 = vsel %vm670, %v434, %v734
  %v799 = vsel %vm671, %v437, %v735
  %v800 = vsel %vm672, %v442, %v736
  %v801 = vsel %vm673, %v445, %v737
  %v802 = vsel %vm674, %v450, %v738
  %v803 = vsel %vm675, %v453, %v739
  %v804 = vsel %vm676, %v458, %v740
  %v805 = vsel %vm677, %v461, %v741
  %v806 = vsel %vm678, %v466, %v742
  %v807 = vsel %vm679, %v469, %v743
  %v808 = vsel %vm680, %v474, %v744
  %v809 = vsel %vm681, %v477, %v745
  %v810 = vsel %vm682, %v482, %v746
  %v811 = vsel %vm683, %v485, %v747
  %v812 = vsel %vm684, %v490, %v748
  %v813 = vsel %vm685, %v493, %v749
  %v814 = vsel %vm686, %v498, %v750
  %v815 = vsel %vm687, %v501, %v751
  %v816 = vsel %vm688, %v506, %v752
  %v817 = vsel %vm689, %v509, %v753
  %v818 = vsel %vm690, %v514, %v754
  %v819 = vsel %vm691, %v517, %v755
  %v820 = vsel %vm692, %v522, %v756
  %v821 = vsel %vm693, %v525, %v757
  %v822 = vsel %vm694, %v530, %v758
  %v823 = vsel %vm695, %v533, %v759
  %v824 = vsel %vm696, %v538, %v760
  %v825 = vsel %vm697, %v541, %v761
  %v826 = vsel %vm698, %v546, %v762
  %v827 = vsel %vm699, %v549, %v763
  %v828 = vsel %vm700, %v554, %v764
  %v829 = vsel %vm701, %v557, %v765
  %v830 = vsel %vm702, %v562, %v766
  %v831 = vsel %vm703, %v565, %v767
  %v832 = vsel %vm704, %v570, %v768
  %v833 = vsel %vm705, %v573, %v769
  %v834 = vsel %vm706, %v578, %v770
  %v835 = vsel %vm707, %v581, %v771
  %v836 = vsel %vm708, %v586, %v772
  %v837 = vsel %vm709, %v589, %v773
  %v838 = vsel %vm710, %v594, %v774
  %v839 = vsel %vm711, %v597, %v775
  %v840 = vsel %vm712, %v602, %v776
  %v841 = vsel %vm713, %v605, %v777
  %v842 = vsel %vm714, %v610, %v778
  %v843 = vsel %vm715, %v613, %v779
  %v844 = vsel %vm716, %v618, %v780
  %v845 = vsel %vm717, %v621, %v781
  %v846 = vsel %vm718, %v626, %v782
  %v847 = vsel %vm719, %v629, %v783
  %v848 = vsel %vm720, %v634, %v784
  %v849 = vsel %vm721, %v637, %v785
  %v850 = vsel %vm722, %v642, %v786
  %v851 = vsel %vm723, %v645, %v787
  %v852 = vsel %vm724, %v650, %v788
  %v853 = vsel %vm725, %v653, %v789
  %v854 = vsel %vm726, %v658, %v790
  %v855 = vsel %vm727, %v661, %v791
  %v856 = vpack.c.bf16 %v793, %v792
  %v857 = vpack.c.bf16 %v795, %v794
  %v858 = vpack.c.bf16 %v797, %v796
  %v859 = vpack.c.bf16 %v799, %v798
  %v860 = vpack.c.bf16 %v801, %v800
  %v861 = vpack.c.bf16 %v803, %v802
  %v862 = vpack.c.bf16 %v805, %v804
  %v863 = vpack.c.bf16 %v807, %v806
  %v864 = vpack.c.bf16 %v809, %v808
  %v865 = vpack.c.bf16 %v811, %v810
  %v866 = vpack.c.bf16 %v813, %v812
  %v867 = vpack.c.bf16 %v815, %v814
  %v868 = vpack.c.bf16 %v817, %v816
  %v869 = vpack.c.bf16 %v819, %v818
  %v870 = vpack.c.bf16 %v821, %v820
  %v871 = vpack.c.bf16 %v823, %v822
  %v872 = vpack.c.bf16 %v825, %v824
  %v873 = vpack.c.bf16 %v827, %v826
  %v874 = vpack.c.bf16 %v829, %v828
  %v875 = vpack.c.bf16 %v831, %v830
  %v876 = vpack.c.bf16 %v833, %v832
  %v877 = vpack.c.bf16 %v835, %v834
  %v878 = vpack.c.bf16 %v837, %v836
  %v879 = vpack.c.bf16 %v839, %v838
  %v880 = vpack.c.bf16 %v841, %v840
  %v881 = vpack.c.bf16 %v843, %v842
  %v882 = vpack.c.bf16 %v845, %v844
  %v883 = vpack.c.bf16 %v847, %v846
  %v884 = vpack.c.bf16 %v849, %v848
  %v885 = vpack.c.bf16 %v851, %v850
  %v886 = vpack.c.bf16 %v853, %v852
  %v887 = vpack.c.bf16 %v855, %v854
  %v888 = vld [vmem:[%s3] sm:$0xff]
  %v889 = vld [vmem:[%s3 + $0x8] sm:$0xff]
  %v890 = vld [vmem:[%s3 + $0x10] sm:$0xff]
  %v891 = vld [vmem:[%s3 + $0x18] sm:$0xff]
  %v892 = vld [vmem:[%s3 + $0x20] sm:$0xff]
  %v893 = vld [vmem:[%s3 + $0x28] sm:$0xff]
  %v894 = vld [vmem:[%s3 + $0x30] sm:$0xff]
  %v895 = vld [vmem:[%s3 + $0x38] sm:$0xff]
  %v896 = vld [vmem:[%s3 + $0x40] sm:$0xff]
  %v897 = vld [vmem:[%s3 + $0x48] sm:$0xff]
  %v898 = vld [vmem:[%s3 + $0x50] sm:$0xff]
  %v899 = vld [vmem:[%s3 + $0x58] sm:$0xff]
  %v900 = vld [vmem:[%s3 + $0x60] sm:$0xff]
  %v901 = vld [vmem:[%s3 + $0x68] sm:$0xff]
  %v902 = vld [vmem:[%s3 + $0x70] sm:$0xff]
  %v903 = vld [vmem:[%s3 + $0x78] sm:$0xff]
  %v904 = vld [vmem:[%s3 + $0x80] sm:$0xff]
  %v905 = vld [vmem:[%s3 + $0x88] sm:$0xff]
  %v906 = vld [vmem:[%s3 + $0x90] sm:$0xff]
  %v907 = vld [vmem:[%s3 + $0x98] sm:$0xff]
  %v908 = vld [vmem:[%s3 + $0xa0] sm:$0xff]
  %v909 = vld [vmem:[%s3 + $0xa8] sm:$0xff]
  %v910 = vld [vmem:[%s3 + $0xb0] sm:$0xff]
  %v911 = vld [vmem:[%s3 + $0xb8] sm:$0xff]
  %v912 = vld [vmem:[%s3 + $0xc0] sm:$0xff]
  %v913 = vld [vmem:[%s3 + $0xc8] sm:$0xff]
  %v914 = vld [vmem:[%s3 + $0xd0] sm:$0xff]
  %v915 = vld [vmem:[%s3 + $0xd8] sm:$0xff]
  %v916 = vld [vmem:[%s3 + $0xe0] sm:$0xff]
  %v917 = vld [vmem:[%s3 + $0xe8] sm:$0xff]
  %v918 = vld [vmem:[%s3 + $0xf0] sm:$0xff]
  %v919 = vld [vmem:[%s3 + $0xf8] sm:$0xff]
  %v920 = vld [vmem:[%s3 + $0x100] sm:$0xff]
  %v921 = vld [vmem:[%s3 + $0x108] sm:$0xff]
  %v922 = vld [vmem:[%s3 + $0x110] sm:$0xff]
  %v923 = vld [vmem:[%s3 + $0x118] sm:$0xff]
  %v924 = vld [vmem:[%s3 + $0x120] sm:$0xff]
  %v925 = vld [vmem:[%s3 + $0x128] sm:$0xff]
  %v926 = vld [vmem:[%s3 + $0x130] sm:$0xff]
  %v927 = vld [vmem:[%s3 + $0x138] sm:$0xff]
  %v928 = vld [vmem:[%s3 + $0x140] sm:$0xff]
  %v929 = vld [vmem:[%s3 + $0x148] sm:$0xff]
  %v930 = vld [vmem:[%s3 + $0x150] sm:$0xff]
  %v931 = vld [vmem:[%s3 + $0x158] sm:$0xff]
  %v932 = vld [vmem:[%s3 + $0x160] sm:$0xff]
  %v933 = vld [vmem:[%s3 + $0x168] sm:$0xff]
  %v934 = vld [vmem:[%s3 + $0x170] sm:$0xff]
  %v935 = vld [vmem:[%s3 + $0x178] sm:$0xff]
  %v936 = vld [vmem:[%s3 + $0x180] sm:$0xff]
  %v937 = vld [vmem:[%s3 + $0x188] sm:$0xff]
  %v938 = vld [vmem:[%s3 + $0x190] sm:$0xff]
  %v939 = vld [vmem:[%s3 + $0x198] sm:$0xff]
  %v940 = vld [vmem:[%s3 + $0x1a0] sm:$0xff]
  %v941 = vld [vmem:[%s3 + $0x1a8] sm:$0xff]
  %v942 = vld [vmem:[%s3 + $0x1b0] sm:$0xff]
  %v943 = vld [vmem:[%s3 + $0x1b8] sm:$0xff]
  %v944 = vld [vmem:[%s3 + $0x1c0] sm:$0xff]
  %v945 = vld [vmem:[%s3 + $0x1c8] sm:$0xff]
  %v946 = vld [vmem:[%s3 + $0x1d0] sm:$0xff]
  %v947 = vld [vmem:[%s3 + $0x1d8] sm:$0xff]
  %v948 = vld [vmem:[%s3 + $0x1e0] sm:$0xff]
  %v949 = vld [vmem:[%s3 + $0x1e8] sm:$0xff]
  %v950 = vld [vmem:[%s3 + $0x1f0] sm:$0xff]
  %v951 = vld [vmem:[%s3 + $0x1f8] sm:$0xff]
  %v952 = vld [vmem:[%s3 + $0x200] sm:$0xff]
  %v953 = vld [vmem:[%s3 + $0x208] sm:$0xff]
  %v954 = vld [vmem:[%s3 + $0x210] sm:$0xff]
  %v955 = vld [vmem:[%s3 + $0x218] sm:$0xff]
  %v956 = vld [vmem:[%s3 + $0x220] sm:$0xff]
  %v957 = vld [vmem:[%s3 + $0x228] sm:$0xff]
  %v958 = vld [vmem:[%s3 + $0x230] sm:$0xff]
  %v959 = vld [vmem:[%s3 + $0x238] sm:$0xff]
  %v960 = vld [vmem:[%s3 + $0x240] sm:$0xff]
  %v961 = vld [vmem:[%s3 + $0x248] sm:$0xff]
  %v962 = vld [vmem:[%s3 + $0x250] sm:$0xff]
  %v963 = vld [vmem:[%s3 + $0x258] sm:$0xff]
  %v964 = vld [vmem:[%s3 + $0x260] sm:$0xff]
  %v965 = vld [vmem:[%s3 + $0x268] sm:$0xff]
  %v966 = vld [vmem:[%s3 + $0x270] sm:$0xff]
  %v967 = vld [vmem:[%s3 + $0x278] sm:$0xff]
  %v968 = vld [vmem:[%s3 + $0x280] sm:$0xff]
  %v969 = vld [vmem:[%s3 + $0x288] sm:$0xff]
  %v970 = vld [vmem:[%s3 + $0x290] sm:$0xff]
  %v971 = vld [vmem:[%s3 + $0x298] sm:$0xff]
  %v972 = vld [vmem:[%s3 + $0x2a0] sm:$0xff]
  %v973 = vld [vmem:[%s3 + $0x2a8] sm:$0xff]
  %v974 = vld [vmem:[%s3 + $0x2b0] sm:$0xff]
  %v975 = vld [vmem:[%s3 + $0x2b8] sm:$0xff]
  %v976 = vld [vmem:[%s3 + $0x2c0] sm:$0xff]
  %v977 = vld [vmem:[%s3 + $0x2c8] sm:$0xff]
  %v978 = vld [vmem:[%s3 + $0x2d0] sm:$0xff]
  %v979 = vld [vmem:[%s3 + $0x2d8] sm:$0xff]
  %v980 = vld [vmem:[%s3 + $0x2e0] sm:$0xff]
  %v981 = vld [vmem:[%s3 + $0x2e8] sm:$0xff]
  %v982 = vld [vmem:[%s3 + $0x2f0] sm:$0xff]
  %v983 = vld [vmem:[%s3 + $0x2f8] sm:$0xff]
  %v984 = vld [vmem:[%s3 + $0x300] sm:$0xff]
  %v985 = vld [vmem:[%s3 + $0x308] sm:$0xff]
  %v986 = vld [vmem:[%s3 + $0x310] sm:$0xff]
  %v987 = vld [vmem:[%s3 + $0x318] sm:$0xff]
  %v988 = vld [vmem:[%s3 + $0x320] sm:$0xff]
  %v989 = vld [vmem:[%s3 + $0x328] sm:$0xff]
  %v990 = vld [vmem:[%s3 + $0x330] sm:$0xff]
  %v991 = vld [vmem:[%s3 + $0x338] sm:$0xff]
  %v992 = vld [vmem:[%s3 + $0x340] sm:$0xff]
  %v993 = vld [vmem:[%s3 + $0x348] sm:$0xff]
  %v994 = vld [vmem:[%s3 + $0x350] sm:$0xff]
  %v995 = vld [vmem:[%s3 + $0x358] sm:$0xff]
  %v996 = vld [vmem:[%s3 + $0x360] sm:$0xff]
  %v997 = vld [vmem:[%s3 + $0x368] sm:$0xff]
  %v998 = vld [vmem:[%s3 + $0x370] sm:$0xff]
  %v999 = vld [vmem:[%s3 + $0x378] sm:$0xff]
  %v1000 = vld [vmem:[%s3 + $0x380] sm:$0xff]
  %v1001 = vld [vmem:[%s3 + $0x388] sm:$0xff]
  %v1002 = vld [vmem:[%s3 + $0x390] sm:$0xff]
  %v1003 = vld [vmem:[%s3 + $0x398] sm:$0xff]
  %v1004 = vld [vmem:[%s3 + $0x3a0] sm:$0xff]
  %v1005 = vld [vmem:[%s3 + $0x3a8] sm:$0xff]
  %v1006 = vld [vmem:[%s3 + $0x3b0] sm:$0xff]
  %v1007 = vld [vmem:[%s3 + $0x3b8] sm:$0xff]
  %v1008 = vld [vmem:[%s3 + $0x3c0] sm:$0xff]
  %v1009 = vld [vmem:[%s3 + $0x3c8] sm:$0xff]
  %v1010 = vld [vmem:[%s3 + $0x3d0] sm:$0xff]
  %v1011 = vld [vmem:[%s3 + $0x3d8] sm:$0xff]
  %v1012 = vld [vmem:[%s3 + $0x3e0] sm:$0xff]
  %v1013 = vld [vmem:[%s3 + $0x3e8] sm:$0xff]
  %v1014 = vld [vmem:[%s3 + $0x3f0] sm:$0xff]
  %v1015 = vld [vmem:[%s3 + $0x3f8] sm:$0xff]
  %v1016 = vld [vmem:[%s3 + $0x400] sm:$0xff]
  %v1017 = vld [vmem:[%s3 + $0x408] sm:$0xff]
  %v1018 = vld [vmem:[%s3 + $0x410] sm:$0xff]
  %v1019 = vld [vmem:[%s3 + $0x418] sm:$0xff]
  %v1020 = vld [vmem:[%s3 + $0x420] sm:$0xff]
  %v1021 = vld [vmem:[%s3 + $0x428] sm:$0xff]
  %v1022 = vld [vmem:[%s3 + $0x430] sm:$0xff]
  %v1023 = vld [vmem:[%s3 + $0x438] sm:$0xff]
  %v1024 = vld [vmem:[%s3 + $0x440] sm:$0xff]
  %v1025 = vld [vmem:[%s3 + $0x448] sm:$0xff]
  %v1026 = vld [vmem:[%s3 + $0x450] sm:$0xff]
  %v1027 = vld [vmem:[%s3 + $0x458] sm:$0xff]
  %v1028 = vld [vmem:[%s3 + $0x460] sm:$0xff]
  %v1029 = vld [vmem:[%s3 + $0x468] sm:$0xff]
  %v1030 = vld [vmem:[%s3 + $0x470] sm:$0xff]
  %v1031 = vld [vmem:[%s3 + $0x478] sm:$0xff]
  %v1032 = vld [vmem:[%s3 + $0x480] sm:$0xff]
  %v1033 = vld [vmem:[%s3 + $0x488] sm:$0xff]
  %v1034 = vld [vmem:[%s3 + $0x490] sm:$0xff]
  %v1035 = vld [vmem:[%s3 + $0x498] sm:$0xff]
  %v1036 = vld [vmem:[%s3 + $0x4a0] sm:$0xff]
  %v1037 = vld [vmem:[%s3 + $0x4a8] sm:$0xff]
  %v1038 = vld [vmem:[%s3 + $0x4b0] sm:$0xff]
  %v1039 = vld [vmem:[%s3 + $0x4b8] sm:$0xff]
  %v1040 = vld [vmem:[%s3 + $0x4c0] sm:$0xff]
  %v1041 = vld [vmem:[%s3 + $0x4c8] sm:$0xff]
  %v1042 = vld [vmem:[%s3 + $0x4d0] sm:$0xff]
  %v1043 = vld [vmem:[%s3 + $0x4d8] sm:$0xff]
  %v1044 = vld [vmem:[%s3 + $0x4e0] sm:$0xff]
  %v1045 = vld [vmem:[%s3 + $0x4e8] sm:$0xff]
  %v1046 = vld [vmem:[%s3 + $0x4f0] sm:$0xff]
  %v1047 = vld [vmem:[%s3 + $0x4f8] sm:$0xff]
  %v1048 = vld [vmem:[%s3 + $0x500] sm:$0xff]
  %v1049 = vld [vmem:[%s3 + $0x508] sm:$0xff]
  %v1050 = vld [vmem:[%s3 + $0x510] sm:$0xff]
  %v1051 = vld [vmem:[%s3 + $0x518] sm:$0xff]
  %v1052 = vld [vmem:[%s3 + $0x520] sm:$0xff]
  %v1053 = vld [vmem:[%s3 + $0x528] sm:$0xff]
  %v1054 = vld [vmem:[%s3 + $0x530] sm:$0xff]
  %v1055 = vld [vmem:[%s3 + $0x538] sm:$0xff]
  %v1056 = vld [vmem:[%s3 + $0x540] sm:$0xff]
  %v1057 = vld [vmem:[%s3 + $0x548] sm:$0xff]
  %v1058 = vld [vmem:[%s3 + $0x550] sm:$0xff]
  %v1059 = vld [vmem:[%s3 + $0x558] sm:$0xff]
  %v1060 = vld [vmem:[%s3 + $0x560] sm:$0xff]
  %v1061 = vld [vmem:[%s3 + $0x568] sm:$0xff]
  %v1062 = vld [vmem:[%s3 + $0x570] sm:$0xff]
  %v1063 = vld [vmem:[%s3 + $0x578] sm:$0xff]
  %v1064 = vld [vmem:[%s3 + $0x580] sm:$0xff]
  %v1065 = vld [vmem:[%s3 + $0x588] sm:$0xff]
  %v1066 = vld [vmem:[%s3 + $0x590] sm:$0xff]
  %v1067 = vld [vmem:[%s3 + $0x598] sm:$0xff]
  %v1068 = vld [vmem:[%s3 + $0x5a0] sm:$0xff]
  %v1069 = vld [vmem:[%s3 + $0x5a8] sm:$0xff]
  %v1070 = vld [vmem:[%s3 + $0x5b0] sm:$0xff]
  %v1071 = vld [vmem:[%s3 + $0x5b8] sm:$0xff]
  %v1072 = vld [vmem:[%s3 + $0x5c0] sm:$0xff]
  %v1073 = vld [vmem:[%s3 + $0x5c8] sm:$0xff]
  %v1074 = vld [vmem:[%s3 + $0x5d0] sm:$0xff]
  %v1075 = vld [vmem:[%s3 + $0x5d8] sm:$0xff]
  %v1076 = vld [vmem:[%s3 + $0x5e0] sm:$0xff]
  %v1077 = vld [vmem:[%s3 + $0x5e8] sm:$0xff]
  %v1078 = vld [vmem:[%s3 + $0x5f0] sm:$0xff]
  %v1079 = vld [vmem:[%s3 + $0x5f8] sm:$0xff]
  %v1080 = vld [vmem:[%s3 + $0x600] sm:$0xff]
  %v1081 = vld [vmem:[%s3 + $0x608] sm:$0xff]
  %v1082 = vld [vmem:[%s3 + $0x610] sm:$0xff]
  %v1083 = vld [vmem:[%s3 + $0x618] sm:$0xff]
  %v1084 = vld [vmem:[%s3 + $0x620] sm:$0xff]
  %v1085 = vld [vmem:[%s3 + $0x628] sm:$0xff]
  %v1086 = vld [vmem:[%s3 + $0x630] sm:$0xff]
  %v1087 = vld [vmem:[%s3 + $0x638] sm:$0xff]
  %v1088 = vld [vmem:[%s3 + $0x640] sm:$0xff]
  %v1089 = vld [vmem:[%s3 + $0x648] sm:$0xff]
  %v1090 = vld [vmem:[%s3 + $0x650] sm:$0xff]
  %v1091 = vld [vmem:[%s3 + $0x658] sm:$0xff]
  %v1092 = vld [vmem:[%s3 + $0x660] sm:$0xff]
  %v1093 = vld [vmem:[%s3 + $0x668] sm:$0xff]
  %v1094 = vld [vmem:[%s3 + $0x670] sm:$0xff]
  %v1095 = vld [vmem:[%s3 + $0x678] sm:$0xff]
  %v1096 = vld [vmem:[%s3 + $0x680] sm:$0xff]
  %v1097 = vld [vmem:[%s3 + $0x688] sm:$0xff]
  %v1098 = vld [vmem:[%s3 + $0x690] sm:$0xff]
  %v1099 = vld [vmem:[%s3 + $0x698] sm:$0xff]
  %v1100 = vld [vmem:[%s3 + $0x6a0] sm:$0xff]
  %v1101 = vld [vmem:[%s3 + $0x6a8] sm:$0xff]
  %v1102 = vld [vmem:[%s3 + $0x6b0] sm:$0xff]
  %v1103 = vld [vmem:[%s3 + $0x6b8] sm:$0xff]
  %v1104 = vld [vmem:[%s3 + $0x6c0] sm:$0xff]
  %v1105 = vld [vmem:[%s3 + $0x6c8] sm:$0xff]
  %v1106 = vld [vmem:[%s3 + $0x6d0] sm:$0xff]
  %v1107 = vld [vmem:[%s3 + $0x6d8] sm:$0xff]
  %v1108 = vld [vmem:[%s3 + $0x6e0] sm:$0xff]
  %v1109 = vld [vmem:[%s3 + $0x6e8] sm:$0xff]
  %v1110 = vld [vmem:[%s3 + $0x6f0] sm:$0xff]
  %v1111 = vld [vmem:[%s3 + $0x6f8] sm:$0xff]
  %v1112 = vld [vmem:[%s3 + $0x700] sm:$0xff]
  %v1113 = vld [vmem:[%s3 + $0x708] sm:$0xff]
  %v1114 = vld [vmem:[%s3 + $0x710] sm:$0xff]
  %v1115 = vld [vmem:[%s3 + $0x718] sm:$0xff]
  %v1116 = vld [vmem:[%s3 + $0x720] sm:$0xff]
  %v1117 = vld [vmem:[%s3 + $0x728] sm:$0xff]
  %v1118 = vld [vmem:[%s3 + $0x730] sm:$0xff]
  %v1119 = vld [vmem:[%s3 + $0x738] sm:$0xff]
  %v1120 = vld [vmem:[%s3 + $0x740] sm:$0xff]
  %v1121 = vld [vmem:[%s3 + $0x748] sm:$0xff]
  %v1122 = vld [vmem:[%s3 + $0x750] sm:$0xff]
  %v1123 = vld [vmem:[%s3 + $0x758] sm:$0xff]
  %v1124 = vld [vmem:[%s3 + $0x760] sm:$0xff]
  %v1125 = vld [vmem:[%s3 + $0x768] sm:$0xff]
  %v1126 = vld [vmem:[%s3 + $0x770] sm:$0xff]
  %v1127 = vld [vmem:[%s3 + $0x778] sm:$0xff]
  %v1128 = vld [vmem:[%s3 + $0x780] sm:$0xff]
  %v1129 = vld [vmem:[%s3 + $0x788] sm:$0xff]
  %v1130 = vld [vmem:[%s3 + $0x790] sm:$0xff]
  %v1131 = vld [vmem:[%s3 + $0x798] sm:$0xff]
  %v1132 = vld [vmem:[%s3 + $0x7a0] sm:$0xff]
  %v1133 = vld [vmem:[%s3 + $0x7a8] sm:$0xff]
  %v1134 = vld [vmem:[%s3 + $0x7b0] sm:$0xff]
  %v1135 = vld [vmem:[%s3 + $0x7b8] sm:$0xff]
  %v1136 = vld [vmem:[%s3 + $0x7c0] sm:$0xff]
  %v1137 = vld [vmem:[%s3 + $0x7c8] sm:$0xff]
  %v1138 = vld [vmem:[%s3 + $0x7d0] sm:$0xff]
  %v1139 = vld [vmem:[%s3 + $0x7d8] sm:$0xff]
  %v1140 = vld [vmem:[%s3 + $0x7e0] sm:$0xff]
  %v1141 = vld [vmem:[%s3 + $0x7e8] sm:$0xff]
  %v1142 = vld [vmem:[%s3 + $0x7f0] sm:$0xff]
  %v1143 = vld [vmem:[%s3 + $0x7f8] sm:$0xff]
  %v1144 = vld [vmem:[%s3 + $0x800] sm:$0xff]
  %v1145 = vld [vmem:[%s3 + $0x808] sm:$0xff]
  %v1146 = vld [vmem:[%s3 + $0x810] sm:$0xff]
  %v1147 = vld [vmem:[%s3 + $0x818] sm:$0xff]
  %v1148 = vld [vmem:[%s3 + $0x820] sm:$0xff]
  %v1149 = vld [vmem:[%s3 + $0x828] sm:$0xff]
  %v1150 = vld [vmem:[%s3 + $0x830] sm:$0xff]
  %v1151 = vld [vmem:[%s3 + $0x838] sm:$0xff]
  %v1152 = vld [vmem:[%s3 + $0x840] sm:$0xff]
  %v1153 = vld [vmem:[%s3 + $0x848] sm:$0xff]
  %v1154 = vld [vmem:[%s3 + $0x850] sm:$0xff]
  %v1155 = vld [vmem:[%s3 + $0x858] sm:$0xff]
  %v1156 = vld [vmem:[%s3 + $0x860] sm:$0xff]
  %v1157 = vld [vmem:[%s3 + $0x868] sm:$0xff]
  %v1158 = vld [vmem:[%s3 + $0x870] sm:$0xff]
  %v1159 = vld [vmem:[%s3 + $0x878] sm:$0xff]
  %v1160 = vld [vmem:[%s3 + $0x880] sm:$0xff]
  %v1161 = vld [vmem:[%s3 + $0x888] sm:$0xff]
  %v1162 = vld [vmem:[%s3 + $0x890] sm:$0xff]
  %v1163 = vld [vmem:[%s3 + $0x898] sm:$0xff]
  %v1164 = vld [vmem:[%s3 + $0x8a0] sm:$0xff]
  %v1165 = vld [vmem:[%s3 + $0x8a8] sm:$0xff]
  %v1166 = vld [vmem:[%s3 + $0x8b0] sm:$0xff]
  %v1167 = vld [vmem:[%s3 + $0x8b8] sm:$0xff]
  %v1168 = vld [vmem:[%s3 + $0x8c0] sm:$0xff]
  %v1169 = vld [vmem:[%s3 + $0x8c8] sm:$0xff]
  %v1170 = vld [vmem:[%s3 + $0x8d0] sm:$0xff]
  %v1171 = vld [vmem:[%s3 + $0x8d8] sm:$0xff]
  %v1172 = vld [vmem:[%s3 + $0x8e0] sm:$0xff]
  %v1173 = vld [vmem:[%s3 + $0x8e8] sm:$0xff]
  %v1174 = vld [vmem:[%s3 + $0x8f0] sm:$0xff]
  %v1175 = vld [vmem:[%s3 + $0x8f8] sm:$0xff]
  %v1464 = vunpack.c.l.b16 %v888
  %v1465 = vunpack.c.h.b16 %v888
  %v1466 = vunpack.c.l.b16 %v889
  %v1467 = vunpack.c.h.b16 %v889
  %v1468 = vunpack.c.l.b16 %v890
  %v1469 = vunpack.c.h.b16 %v890
  %v1470 = vunpack.c.l.b16 %v891
  %v1471 = vunpack.c.h.b16 %v891
  %v1472 = vunpack.c.l.b16 %v892
  %v1473 = vunpack.c.h.b16 %v892
  %v1474 = vunpack.c.l.b16 %v893
  %v1475 = vunpack.c.h.b16 %v893
  %v1476 = vunpack.c.l.b16 %v894
  %v1477 = vunpack.c.h.b16 %v894
  %v1478 = vunpack.c.l.b16 %v895
  %v1479 = vunpack.c.h.b16 %v895
  %v1480 = vunpack.c.l.b16 %v896
  %v1481 = vunpack.c.h.b16 %v896
  %v1482 = vunpack.c.l.b16 %v897
  %v1483 = vunpack.c.h.b16 %v897
  %v1484 = vunpack.c.l.b16 %v898
  %v1485 = vunpack.c.h.b16 %v898
  %v1486 = vunpack.c.l.b16 %v899
  %v1487 = vunpack.c.h.b16 %v899
  %v1488 = vunpack.c.l.b16 %v900
  %v1489 = vunpack.c.h.b16 %v900
  %v1490 = vunpack.c.l.b16 %v901
  %v1491 = vunpack.c.h.b16 %v901
  %v1492 = vunpack.c.l.b16 %v902
  %v1493 = vunpack.c.h.b16 %v902
  %v1494 = vunpack.c.l.b16 %v903
  %v1495 = vunpack.c.h.b16 %v903
  %v1496 = vunpack.c.l.b16 %v904
  %v1497 = vunpack.c.h.b16 %v904
  %v1498 = vunpack.c.l.b16 %v905
  %v1499 = vunpack.c.h.b16 %v905
  %v1500 = vunpack.c.l.b16 %v906
  %v1501 = vunpack.c.h.b16 %v906
  %v1502 = vunpack.c.l.b16 %v907
  %v1503 = vunpack.c.h.b16 %v907
  %v1504 = vunpack.c.l.b16 %v908
  %v1505 = vunpack.c.h.b16 %v908
  %v1506 = vunpack.c.l.b16 %v909
  %v1507 = vunpack.c.h.b16 %v909
  %v1508 = vunpack.c.l.b16 %v910
  %v1509 = vunpack.c.h.b16 %v910
  %v1510 = vunpack.c.l.b16 %v911
  %v1511 = vunpack.c.h.b16 %v911
  %v1512 = vunpack.c.l.b16 %v912
  %v1513 = vunpack.c.h.b16 %v912
  %v1514 = vunpack.c.l.b16 %v913
  %v1515 = vunpack.c.h.b16 %v913
  %v1516 = vunpack.c.l.b16 %v914
  %v1517 = vunpack.c.h.b16 %v914
  %v1518 = vunpack.c.l.b16 %v915
  %v1519 = vunpack.c.h.b16 %v915
  %v1520 = vunpack.c.l.b16 %v916
  %v1521 = vunpack.c.h.b16 %v916
  %v1522 = vunpack.c.l.b16 %v917
  %v1523 = vunpack.c.h.b16 %v917
  %v1524 = vunpack.c.l.b16 %v918
  %v1525 = vunpack.c.h.b16 %v918
  %v1526 = vunpack.c.l.b16 %v919
  %v1527 = vunpack.c.h.b16 %v919
  %v1528 = vunpack.c.l.b16 %v920
  %v1529 = vunpack.c.h.b16 %v920
  %v1530 = vunpack.c.l.b16 %v921
  %v1531 = vunpack.c.h.b16 %v921
  %v1532 = vunpack.c.l.b16 %v922
  %v1533 = vunpack.c.h.b16 %v922
  %v1534 = vunpack.c.l.b16 %v923
  %v1535 = vunpack.c.h.b16 %v923
  %v1536 = vunpack.c.l.b16 %v924
  %v1537 = vunpack.c.h.b16 %v924
  %v1538 = vunpack.c.l.b16 %v925
  %v1539 = vunpack.c.h.b16 %v925
  %v1540 = vunpack.c.l.b16 %v926
  %v1541 = vunpack.c.h.b16 %v926
  %v1542 = vunpack.c.l.b16 %v927
  %v1543 = vunpack.c.h.b16 %v927
  %v1544 = vunpack.c.l.b16 %v928
  %v1545 = vunpack.c.h.b16 %v928
  %v1546 = vunpack.c.l.b16 %v929
  %v1547 = vunpack.c.h.b16 %v929
  %v1548 = vunpack.c.l.b16 %v930
  %v1549 = vunpack.c.h.b16 %v930
  %v1550 = vunpack.c.l.b16 %v931
  %v1551 = vunpack.c.h.b16 %v931
  %v1552 = vunpack.c.l.b16 %v932
  %v1553 = vunpack.c.h.b16 %v932
  %v1554 = vunpack.c.l.b16 %v933
  %v1555 = vunpack.c.h.b16 %v933
  %v1556 = vunpack.c.l.b16 %v934
  %v1557 = vunpack.c.h.b16 %v934
  %v1558 = vunpack.c.l.b16 %v935
  %v1559 = vunpack.c.h.b16 %v935
  %v1560 = vunpack.c.l.b16 %v936
  %v1561 = vunpack.c.h.b16 %v936
  %v1562 = vunpack.c.l.b16 %v937
  %v1563 = vunpack.c.h.b16 %v937
  %v1564 = vunpack.c.l.b16 %v938
  %v1565 = vunpack.c.h.b16 %v938
  %v1566 = vunpack.c.l.b16 %v939
  %v1567 = vunpack.c.h.b16 %v939
  %v1568 = vunpack.c.l.b16 %v940
  %v1569 = vunpack.c.h.b16 %v940
  %v1570 = vunpack.c.l.b16 %v941
  %v1571 = vunpack.c.h.b16 %v941
  %v1572 = vunpack.c.l.b16 %v942
  %v1573 = vunpack.c.h.b16 %v942
  %v1574 = vunpack.c.l.b16 %v943
  %v1575 = vunpack.c.h.b16 %v943
  %v1576 = vunpack.c.l.b16 %v944
  %v1577 = vunpack.c.h.b16 %v944
  %v1578 = vunpack.c.l.b16 %v945
  %v1579 = vunpack.c.h.b16 %v945
  %v1580 = vunpack.c.l.b16 %v946
  %v1581 = vunpack.c.h.b16 %v946
  %v1582 = vunpack.c.l.b16 %v947
  %v1583 = vunpack.c.h.b16 %v947
  %v1584 = vunpack.c.l.b16 %v948
  %v1585 = vunpack.c.h.b16 %v948
  %v1586 = vunpack.c.l.b16 %v949
  %v1587 = vunpack.c.h.b16 %v949
  %v1588 = vunpack.c.l.b16 %v950
  %v1589 = vunpack.c.h.b16 %v950
  %v1590 = vunpack.c.l.b16 %v951
  %v1591 = vunpack.c.h.b16 %v951
  %v1592 = vunpack.c.l.b16 %v952
  %v1593 = vunpack.c.h.b16 %v952
  %v1594 = vunpack.c.l.b16 %v953
  %v1595 = vunpack.c.h.b16 %v953
  %v1596 = vunpack.c.l.b16 %v954
  %v1597 = vunpack.c.h.b16 %v954
  %v1598 = vunpack.c.l.b16 %v955
  %v1599 = vunpack.c.h.b16 %v955
  %v1600 = vunpack.c.l.b16 %v956
  %v1601 = vunpack.c.h.b16 %v956
  %v1602 = vunpack.c.l.b16 %v957
  %v1603 = vunpack.c.h.b16 %v957
  %v1604 = vunpack.c.l.b16 %v958
  %v1605 = vunpack.c.h.b16 %v958
  %v1606 = vunpack.c.l.b16 %v959
  %v1607 = vunpack.c.h.b16 %v959
  %v1608 = vunpack.c.l.b16 %v960
  %v1609 = vunpack.c.h.b16 %v960
  %v1610 = vunpack.c.l.b16 %v961
  %v1611 = vunpack.c.h.b16 %v961
  %v1612 = vunpack.c.l.b16 %v962
  %v1613 = vunpack.c.h.b16 %v962
  %v1614 = vunpack.c.l.b16 %v963
  %v1615 = vunpack.c.h.b16 %v963
  %v1616 = vunpack.c.l.b16 %v964
  %v1617 = vunpack.c.h.b16 %v964
  %v1618 = vunpack.c.l.b16 %v965
  %v1619 = vunpack.c.h.b16 %v965
  %v1620 = vunpack.c.l.b16 %v966
  %v1621 = vunpack.c.h.b16 %v966
  %v1622 = vunpack.c.l.b16 %v967
  %v1623 = vunpack.c.h.b16 %v967
  %v1624 = vunpack.c.l.b16 %v968
  %v1625 = vunpack.c.h.b16 %v968
  %v1626 = vunpack.c.l.b16 %v969
  %v1627 = vunpack.c.h.b16 %v969
  %v1628 = vunpack.c.l.b16 %v970
  %v1629 = vunpack.c.h.b16 %v970
  %v1630 = vunpack.c.l.b16 %v971
  %v1631 = vunpack.c.h.b16 %v971
  %v1632 = vunpack.c.l.b16 %v972
  %v1633 = vunpack.c.h.b16 %v972
  %v1634 = vunpack.c.l.b16 %v973
  %v1635 = vunpack.c.h.b16 %v973
  %v1636 = vunpack.c.l.b16 %v974
  %v1637 = vunpack.c.h.b16 %v974
  %v1638 = vunpack.c.l.b16 %v975
  %v1639 = vunpack.c.h.b16 %v975
  %v1640 = vunpack.c.l.b16 %v976
  %v1641 = vunpack.c.h.b16 %v976
  %v1642 = vunpack.c.l.b16 %v977
  %v1643 = vunpack.c.h.b16 %v977
  %v1644 = vunpack.c.l.b16 %v978
  %v1645 = vunpack.c.h.b16 %v978
  %v1646 = vunpack.c.l.b16 %v979
  %v1647 = vunpack.c.h.b16 %v979
  %v1648 = vunpack.c.l.b16 %v980
  %v1649 = vunpack.c.h.b16 %v980
  %v1650 = vunpack.c.l.b16 %v981
  %v1651 = vunpack.c.h.b16 %v981
  %v1652 = vunpack.c.l.b16 %v982
  %v1653 = vunpack.c.h.b16 %v982
  %v1654 = vunpack.c.l.b16 %v983
  %v1655 = vunpack.c.h.b16 %v983
  %v1656 = vunpack.c.l.b16 %v984
  %v1657 = vunpack.c.h.b16 %v984
  %v1658 = vunpack.c.l.b16 %v985
  %v1659 = vunpack.c.h.b16 %v985
  %v1660 = vunpack.c.l.b16 %v986
  %v1661 = vunpack.c.h.b16 %v986
  %v1662 = vunpack.c.l.b16 %v987
  %v1663 = vunpack.c.h.b16 %v987
  %v1664 = vunpack.c.l.b16 %v988
  %v1665 = vunpack.c.h.b16 %v988
  %v1666 = vunpack.c.l.b16 %v989
  %v1667 = vunpack.c.h.b16 %v989
  %v1668 = vunpack.c.l.b16 %v990
  %v1669 = vunpack.c.h.b16 %v990
  %v1670 = vunpack.c.l.b16 %v991
  %v1671 = vunpack.c.h.b16 %v991
  %v1672 = vunpack.c.l.b16 %v992
  %v1673 = vunpack.c.h.b16 %v992
  %v1674 = vunpack.c.l.b16 %v993
  %v1675 = vunpack.c.h.b16 %v993
  %v1676 = vunpack.c.l.b16 %v994
  %v1677 = vunpack.c.h.b16 %v994
  %v1678 = vunpack.c.l.b16 %v995
  %v1679 = vunpack.c.h.b16 %v995
  %v1680 = vunpack.c.l.b16 %v996
  %v1681 = vunpack.c.h.b16 %v996
  %v1682 = vunpack.c.l.b16 %v997
  %v1683 = vunpack.c.h.b16 %v997
  %v1684 = vunpack.c.l.b16 %v998
  %v1685 = vunpack.c.h.b16 %v998
  %v1686 = vunpack.c.l.b16 %v999
  %v1687 = vunpack.c.h.b16 %v999
  %v1688 = vunpack.c.l.b16 %v1000
  %v1689 = vunpack.c.h.b16 %v1000
  %v1690 = vunpack.c.l.b16 %v1001
  %v1691 = vunpack.c.h.b16 %v1001
  %v1692 = vunpack.c.l.b16 %v1002
  %v1693 = vunpack.c.h.b16 %v1002
  %v1694 = vunpack.c.l.b16 %v1003
  %v1695 = vunpack.c.h.b16 %v1003
  %v1696 = vunpack.c.l.b16 %v1004
  %v1697 = vunpack.c.h.b16 %v1004
  %v1698 = vunpack.c.l.b16 %v1005
  %v1699 = vunpack.c.h.b16 %v1005
  %v1700 = vunpack.c.l.b16 %v1006
  %v1701 = vunpack.c.h.b16 %v1006
  %v1702 = vunpack.c.l.b16 %v1007
  %v1703 = vunpack.c.h.b16 %v1007
  %v1704 = vunpack.c.l.b16 %v1008
  %v1705 = vunpack.c.h.b16 %v1008
  %v1706 = vunpack.c.l.b16 %v1009
  %v1707 = vunpack.c.h.b16 %v1009
  %v1708 = vunpack.c.l.b16 %v1010
  %v1709 = vunpack.c.h.b16 %v1010
  %v1710 = vunpack.c.l.b16 %v1011
  %v1711 = vunpack.c.h.b16 %v1011
  %v1712 = vunpack.c.l.b16 %v1012
  %v1713 = vunpack.c.h.b16 %v1012
  %v1714 = vunpack.c.l.b16 %v1013
  %v1715 = vunpack.c.h.b16 %v1013
  %v1716 = vunpack.c.l.b16 %v1014
  %v1717 = vunpack.c.h.b16 %v1014
  %v1718 = vunpack.c.l.b16 %v1015
  %v1719 = vunpack.c.h.b16 %v1015
  %v1720 = vunpack.c.l.b16 %v1016
  %v1721 = vunpack.c.h.b16 %v1016
  %v1722 = vunpack.c.l.b16 %v1017
  %v1723 = vunpack.c.h.b16 %v1017
  %v1724 = vunpack.c.l.b16 %v1018
  %v1725 = vunpack.c.h.b16 %v1018
  %v1726 = vunpack.c.l.b16 %v1019
  %v1727 = vunpack.c.h.b16 %v1019
  %v1728 = vunpack.c.l.b16 %v1020
  %v1729 = vunpack.c.h.b16 %v1020
  %v1730 = vunpack.c.l.b16 %v1021
  %v1731 = vunpack.c.h.b16 %v1021
  %v1732 = vunpack.c.l.b16 %v1022
  %v1733 = vunpack.c.h.b16 %v1022
  %v1734 = vunpack.c.l.b16 %v1023
  %v1735 = vunpack.c.h.b16 %v1023
  %v1736 = vunpack.c.l.b16 %v1024
  %v1737 = vunpack.c.h.b16 %v1024
  %v1738 = vunpack.c.l.b16 %v1025
  %v1739 = vunpack.c.h.b16 %v1025
  %v1740 = vunpack.c.l.b16 %v1026
  %v1741 = vunpack.c.h.b16 %v1026
  %v1742 = vunpack.c.l.b16 %v1027
  %v1743 = vunpack.c.h.b16 %v1027
  %v1744 = vunpack.c.l.b16 %v1028
  %v1745 = vunpack.c.h.b16 %v1028
  %v1746 = vunpack.c.l.b16 %v1029
  %v1747 = vunpack.c.h.b16 %v1029
  %v1748 = vunpack.c.l.b16 %v1030
  %v1749 = vunpack.c.h.b16 %v1030
  %v1750 = vunpack.c.l.b16 %v1031
  %v1751 = vunpack.c.h.b16 %v1031
  %v1752 = vunpack.c.l.b16 %v1032
  %v1753 = vunpack.c.h.b16 %v1032
  %v1754 = vunpack.c.l.b16 %v1033
  %v1755 = vunpack.c.h.b16 %v1033
  %v1756 = vunpack.c.l.b16 %v1034
  %v1757 = vunpack.c.h.b16 %v1034
  %v1758 = vunpack.c.l.b16 %v1035
  %v1759 = vunpack.c.h.b16 %v1035
  %v1760 = vunpack.c.l.b16 %v1036
  %v1761 = vunpack.c.h.b16 %v1036
  %v1762 = vunpack.c.l.b16 %v1037
  %v1763 = vunpack.c.h.b16 %v1037
  %v1764 = vunpack.c.l.b16 %v1038
  %v1765 = vunpack.c.h.b16 %v1038
  %v1766 = vunpack.c.l.b16 %v1039
  %v1767 = vunpack.c.h.b16 %v1039
  %v1768 = vunpack.c.l.b16 %v1040
  %v1769 = vunpack.c.h.b16 %v1040
  %v1770 = vunpack.c.l.b16 %v1041
  %v1771 = vunpack.c.h.b16 %v1041
  %v1772 = vunpack.c.l.b16 %v1042
  %v1773 = vunpack.c.h.b16 %v1042
  %v1774 = vunpack.c.l.b16 %v1043
  %v1775 = vunpack.c.h.b16 %v1043
  %v1776 = vunpack.c.l.b16 %v1044
  %v1777 = vunpack.c.h.b16 %v1044
  %v1778 = vunpack.c.l.b16 %v1045
  %v1779 = vunpack.c.h.b16 %v1045
  %v1780 = vunpack.c.l.b16 %v1046
  %v1781 = vunpack.c.h.b16 %v1046
  %v1782 = vunpack.c.l.b16 %v1047
  %v1783 = vunpack.c.h.b16 %v1047
  %v1784 = vunpack.c.l.b16 %v1048
  %v1785 = vunpack.c.h.b16 %v1048
  %v1786 = vunpack.c.l.b16 %v1049
  %v1787 = vunpack.c.h.b16 %v1049
  %v1788 = vunpack.c.l.b16 %v1050
  %v1789 = vunpack.c.h.b16 %v1050
  %v1790 = vunpack.c.l.b16 %v1051
  %v1791 = vunpack.c.h.b16 %v1051
  %v1792 = vunpack.c.l.b16 %v1052
  %v1793 = vunpack.c.h.b16 %v1052
  %v1794 = vunpack.c.l.b16 %v1053
  %v1795 = vunpack.c.h.b16 %v1053
  %v1796 = vunpack.c.l.b16 %v1054
  %v1797 = vunpack.c.h.b16 %v1054
  %v1798 = vunpack.c.l.b16 %v1055
  %v1799 = vunpack.c.h.b16 %v1055
  %v1800 = vunpack.c.l.b16 %v1056
  %v1801 = vunpack.c.h.b16 %v1056
  %v1802 = vunpack.c.l.b16 %v1057
  %v1803 = vunpack.c.h.b16 %v1057
  %v1804 = vunpack.c.l.b16 %v1058
  %v1805 = vunpack.c.h.b16 %v1058
  %v1806 = vunpack.c.l.b16 %v1059
  %v1807 = vunpack.c.h.b16 %v1059
  %v1808 = vunpack.c.l.b16 %v1060
  %v1809 = vunpack.c.h.b16 %v1060
  %v1810 = vunpack.c.l.b16 %v1061
  %v1811 = vunpack.c.h.b16 %v1061
  %v1812 = vunpack.c.l.b16 %v1062
  %v1813 = vunpack.c.h.b16 %v1062
  %v1814 = vunpack.c.l.b16 %v1063
  %v1815 = vunpack.c.h.b16 %v1063
  %v1816 = vunpack.c.l.b16 %v1064
  %v1817 = vunpack.c.h.b16 %v1064
  %v1818 = vunpack.c.l.b16 %v1065
  %v1819 = vunpack.c.h.b16 %v1065
  %v1820 = vunpack.c.l.b16 %v1066
  %v1821 = vunpack.c.h.b16 %v1066
  %v1822 = vunpack.c.l.b16 %v1067
  %v1823 = vunpack.c.h.b16 %v1067
  %v1824 = vunpack.c.l.b16 %v1068
  %v1825 = vunpack.c.h.b16 %v1068
  %v1826 = vunpack.c.l.b16 %v1069
  %v1827 = vunpack.c.h.b16 %v1069
  %v1828 = vunpack.c.l.b16 %v1070
  %v1829 = vunpack.c.h.b16 %v1070
  %v1830 = vunpack.c.l.b16 %v1071
  %v1831 = vunpack.c.h.b16 %v1071
  %v1832 = vunpack.c.l.b16 %v1072
  %v1833 = vunpack.c.h.b16 %v1072
  %v1834 = vunpack.c.l.b16 %v1073
  %v1835 = vunpack.c.h.b16 %v1073
  %v1836 = vunpack.c.l.b16 %v1074
  %v1837 = vunpack.c.h.b16 %v1074
  %v1838 = vunpack.c.l.b16 %v1075
  %v1839 = vunpack.c.h.b16 %v1075
  %v1840 = vunpack.c.l.b16 %v1076
  %v1841 = vunpack.c.h.b16 %v1076
  %v1842 = vunpack.c.l.b16 %v1077
  %v1843 = vunpack.c.h.b16 %v1077
  %v1844 = vunpack.c.l.b16 %v1078
  %v1845 = vunpack.c.h.b16 %v1078
  %v1846 = vunpack.c.l.b16 %v1079
  %v1847 = vunpack.c.h.b16 %v1079
  %v1848 = vunpack.c.l.b16 %v1080
  %v1849 = vunpack.c.h.b16 %v1080
  %v1850 = vunpack.c.l.b16 %v1081
  %v1851 = vunpack.c.h.b16 %v1081
  %v1852 = vunpack.c.l.b16 %v1082
  %v1853 = vunpack.c.h.b16 %v1082
  %v1854 = vunpack.c.l.b16 %v1083
  %v1855 = vunpack.c.h.b16 %v1083
  %v1856 = vunpack.c.l.b16 %v1084
  %v1857 = vunpack.c.h.b16 %v1084
  %v1858 = vunpack.c.l.b16 %v1085
  %v1859 = vunpack.c.h.b16 %v1085
  %v1860 = vunpack.c.l.b16 %v1086
  %v1861 = vunpack.c.h.b16 %v1086
  %v1862 = vunpack.c.l.b16 %v1087
  %v1863 = vunpack.c.h.b16 %v1087
  %v1864 = vunpack.c.l.b16 %v1088
  %v1865 = vunpack.c.h.b16 %v1088
  %v1866 = vunpack.c.l.b16 %v1089
  %v1867 = vunpack.c.h.b16 %v1089
  %v1868 = vunpack.c.l.b16 %v1090
  %v1869 = vunpack.c.h.b16 %v1090
  %v1870 = vunpack.c.l.b16 %v1091
  %v1871 = vunpack.c.h.b16 %v1091
  %v1872 = vunpack.c.l.b16 %v1092
  %v1873 = vunpack.c.h.b16 %v1092
  %v1874 = vunpack.c.l.b16 %v1093
  %v1875 = vunpack.c.h.b16 %v1093
  %v1876 = vunpack.c.l.b16 %v1094
  %v1877 = vunpack.c.h.b16 %v1094
  %v1878 = vunpack.c.l.b16 %v1095
  %v1879 = vunpack.c.h.b16 %v1095
  %v1880 = vunpack.c.l.b16 %v1096
  %v1881 = vunpack.c.h.b16 %v1096
  %v1882 = vunpack.c.l.b16 %v1097
  %v1883 = vunpack.c.h.b16 %v1097
  %v1884 = vunpack.c.l.b16 %v1098
  %v1885 = vunpack.c.h.b16 %v1098
  %v1886 = vunpack.c.l.b16 %v1099
  %v1887 = vunpack.c.h.b16 %v1099
  %v1888 = vunpack.c.l.b16 %v1100
  %v1889 = vunpack.c.h.b16 %v1100
  %v1890 = vunpack.c.l.b16 %v1101
  %v1891 = vunpack.c.h.b16 %v1101
  %v1892 = vunpack.c.l.b16 %v1102
  %v1893 = vunpack.c.h.b16 %v1102
  %v1894 = vunpack.c.l.b16 %v1103
  %v1895 = vunpack.c.h.b16 %v1103
  %v1896 = vunpack.c.l.b16 %v1104
  %v1897 = vunpack.c.h.b16 %v1104
  %v1898 = vunpack.c.l.b16 %v1105
  %v1899 = vunpack.c.h.b16 %v1105
  %v1900 = vunpack.c.l.b16 %v1106
  %v1901 = vunpack.c.h.b16 %v1106
  %v1902 = vunpack.c.l.b16 %v1107
  %v1903 = vunpack.c.h.b16 %v1107
  %v1904 = vunpack.c.l.b16 %v1108
  %v1905 = vunpack.c.h.b16 %v1108
  %v1906 = vunpack.c.l.b16 %v1109
  %v1907 = vunpack.c.h.b16 %v1109
  %v1908 = vunpack.c.l.b16 %v1110
  %v1909 = vunpack.c.h.b16 %v1110
  %v1910 = vunpack.c.l.b16 %v1111
  %v1911 = vunpack.c.h.b16 %v1111
  %v1912 = vunpack.c.l.b16 %v1112
  %v1913 = vunpack.c.h.b16 %v1112
  %v1914 = vunpack.c.l.b16 %v1113
  %v1915 = vunpack.c.h.b16 %v1113
  %v1916 = vunpack.c.l.b16 %v1114
  %v1917 = vunpack.c.h.b16 %v1114
  %v1918 = vunpack.c.l.b16 %v1115
  %v1919 = vunpack.c.h.b16 %v1115
  %v1920 = vunpack.c.l.b16 %v1116
  %v1921 = vunpack.c.h.b16 %v1116
  %v1922 = vunpack.c.l.b16 %v1117
  %v1923 = vunpack.c.h.b16 %v1117
  %v1924 = vunpack.c.l.b16 %v1118
  %v1925 = vunpack.c.h.b16 %v1118
  %v1926 = vunpack.c.l.b16 %v1119
  %v1927 = vunpack.c.h.b16 %v1119
  %v1928 = vunpack.c.l.b16 %v1120
  %v1929 = vunpack.c.h.b16 %v1120
  %v1930 = vunpack.c.l.b16 %v1121
  %v1931 = vunpack.c.h.b16 %v1121
  %v1932 = vunpack.c.l.b16 %v1122
  %v1933 = vunpack.c.h.b16 %v1122
  %v1934 = vunpack.c.l.b16 %v1123
  %v1935 = vunpack.c.h.b16 %v1123
  %v1936 = vunpack.c.l.b16 %v1124
  %v1937 = vunpack.c.h.b16 %v1124
  %v1938 = vunpack.c.l.b16 %v1125
  %v1939 = vunpack.c.h.b16 %v1125
  %v1940 = vunpack.c.l.b16 %v1126
  %v1941 = vunpack.c.h.b16 %v1126
  %v1942 = vunpack.c.l.b16 %v1127
  %v1943 = vunpack.c.h.b16 %v1127
  %v1944 = vunpack.c.l.b16 %v1128
  %v1945 = vunpack.c.h.b16 %v1128
  %v1946 = vunpack.c.l.b16 %v1129
  %v1947 = vunpack.c.h.b16 %v1129
  %v1948 = vunpack.c.l.b16 %v1130
  %v1949 = vunpack.c.h.b16 %v1130
  %v1950 = vunpack.c.l.b16 %v1131
  %v1951 = vunpack.c.h.b16 %v1131
  %v1952 = vunpack.c.l.b16 %v1132
  %v1953 = vunpack.c.h.b16 %v1132
  %v1954 = vunpack.c.l.b16 %v1133
  %v1955 = vunpack.c.h.b16 %v1133
  %v1956 = vunpack.c.l.b16 %v1134
  %v1957 = vunpack.c.h.b16 %v1134
  %v1958 = vunpack.c.l.b16 %v1135
  %v1959 = vunpack.c.h.b16 %v1135
  %v1960 = vunpack.c.l.b16 %v1136
  %v1961 = vunpack.c.h.b16 %v1136
  %v1962 = vunpack.c.l.b16 %v1137
  %v1963 = vunpack.c.h.b16 %v1137
  %v1964 = vunpack.c.l.b16 %v1138
  %v1965 = vunpack.c.h.b16 %v1138
  %v1966 = vunpack.c.l.b16 %v1139
  %v1967 = vunpack.c.h.b16 %v1139
  %v1968 = vunpack.c.l.b16 %v1140
  %v1969 = vunpack.c.h.b16 %v1140
  %v1970 = vunpack.c.l.b16 %v1141
  %v1971 = vunpack.c.h.b16 %v1141
  %v1972 = vunpack.c.l.b16 %v1142
  %v1973 = vunpack.c.h.b16 %v1142
  %v1974 = vunpack.c.l.b16 %v1143
  %v1975 = vunpack.c.h.b16 %v1143
  %v1976 = vunpack.c.l.b16 %v1144
  %v1977 = vunpack.c.h.b16 %v1144
  %v1978 = vunpack.c.l.b16 %v1145
  %v1979 = vunpack.c.h.b16 %v1145
  %v1980 = vunpack.c.l.b16 %v1146
  %v1981 = vunpack.c.h.b16 %v1146
  %v1982 = vunpack.c.l.b16 %v1147
  %v1983 = vunpack.c.h.b16 %v1147
  %v1984 = vunpack.c.l.b16 %v1148
  %v1985 = vunpack.c.h.b16 %v1148
  %v1986 = vunpack.c.l.b16 %v1149
  %v1987 = vunpack.c.h.b16 %v1149
  %v1988 = vunpack.c.l.b16 %v1150
  %v1989 = vunpack.c.h.b16 %v1150
  %v1990 = vunpack.c.l.b16 %v1151
  %v1991 = vunpack.c.h.b16 %v1151
  %v1992 = vunpack.c.l.b16 %v1152
  %v1993 = vunpack.c.h.b16 %v1152
  %v1994 = vunpack.c.l.b16 %v1153
  %v1995 = vunpack.c.h.b16 %v1153
  %v1996 = vunpack.c.l.b16 %v1154
  %v1997 = vunpack.c.h.b16 %v1154
  %v1998 = vunpack.c.l.b16 %v1155
  %v1999 = vunpack.c.h.b16 %v1155
  %v2000 = vunpack.c.l.b16 %v1156
  %v2001 = vunpack.c.h.b16 %v1156
  %v2002 = vunpack.c.l.b16 %v1157
  %v2003 = vunpack.c.h.b16 %v1157
  %v2004 = vunpack.c.l.b16 %v1158
  %v2005 = vunpack.c.h.b16 %v1158
  %v2006 = vunpack.c.l.b16 %v1159
  %v2007 = vunpack.c.h.b16 %v1159
  %v2008 = vunpack.c.l.b16 %v1160
  %v2009 = vunpack.c.h.b16 %v1160
  %v2010 = vunpack.c.l.b16 %v1161
  %v2011 = vunpack.c.h.b16 %v1161
  %v2012 = vunpack.c.l.b16 %v1162
  %v2013 = vunpack.c.h.b16 %v1162
  %v2014 = vunpack.c.l.b16 %v1163
  %v2015 = vunpack.c.h.b16 %v1163
  %v2016 = vunpack.c.l.b16 %v1164
  %v2017 = vunpack.c.h.b16 %v1164
  %v2018 = vunpack.c.l.b16 %v1165
  %v2019 = vunpack.c.h.b16 %v1165
  %v2020 = vunpack.c.l.b16 %v1166
  %v2021 = vunpack.c.h.b16 %v1166
  %v2022 = vunpack.c.l.b16 %v1167
  %v2023 = vunpack.c.h.b16 %v1167
  %v2024 = vunpack.c.l.b16 %v1168
  %v2025 = vunpack.c.h.b16 %v1168
  %v2026 = vunpack.c.l.b16 %v1169
  %v2027 = vunpack.c.h.b16 %v1169
  %v2028 = vunpack.c.l.b16 %v1170
  %v2029 = vunpack.c.h.b16 %v1170
  %v2030 = vunpack.c.l.b16 %v1171
  %v2031 = vunpack.c.h.b16 %v1171
  %v2032 = vunpack.c.l.b16 %v1172
  %v2033 = vunpack.c.h.b16 %v1172
  %v2034 = vunpack.c.l.b16 %v1173
  %v2035 = vunpack.c.h.b16 %v1173
  %v2036 = vunpack.c.l.b16 %v1174
  %v2037 = vunpack.c.h.b16 %v1174
  %v2038 = vunpack.c.l.b16 %v1175
  %v2039 = vunpack.c.h.b16 %v1175
  %v2040 = vpack.c.b16 %v1468, %v1464
  %v2041 = vpack.c.b16 %v1469, %v1465
  %v2042 = vpack.c.b16 %v1470, %v1466
  %v2043 = vpack.c.b16 %v1471, %v1467
  %v2044 = vpack.c.b16 %v1476, %v1472
  %v2045 = vpack.c.b16 %v1477, %v1473
  %v2046 = vpack.c.b16 %v1478, %v1474
  %v2047 = vpack.c.b16 %v1479, %v1475
  %v2048 = vpack.c.b16 %v1484, %v1480
  %v2049 = vpack.c.b16 %v1485, %v1481
  %v2050 = vpack.c.b16 %v1486, %v1482
  %v2051 = vpack.c.b16 %v1487, %v1483
  %v2052 = vpack.c.b16 %v1492, %v1488
  %v2053 = vpack.c.b16 %v1493, %v1489
  %v2054 = vpack.c.b16 %v1494, %v1490
  %v2055 = vpack.c.b16 %v1495, %v1491
  %v2056 = vpack.c.b16 %v1500, %v1496
  %v2057 = vpack.c.b16 %v1501, %v1497
  %v2058 = vpack.c.b16 %v1502, %v1498
  %v2059 = vpack.c.b16 %v1503, %v1499
  %v2060 = vpack.c.b16 %v1508, %v1504
  %v2061 = vpack.c.b16 %v1509, %v1505
  %v2062 = vpack.c.b16 %v1510, %v1506
  %v2063 = vpack.c.b16 %v1511, %v1507
  %v2064 = vpack.c.b16 %v1516, %v1512
  %v2065 = vpack.c.b16 %v1517, %v1513
  %v2066 = vpack.c.b16 %v1518, %v1514
  %v2067 = vpack.c.b16 %v1519, %v1515
  %v2068 = vpack.c.b16 %v1524, %v1520
  %v2069 = vpack.c.b16 %v1525, %v1521
  %v2070 = vpack.c.b16 %v1526, %v1522
  %v2071 = vpack.c.b16 %v1527, %v1523
  %v2072 = vpack.c.b16 %v1532, %v1528
  %v2073 = vpack.c.b16 %v1533, %v1529
  %v2074 = vpack.c.b16 %v1534, %v1530
  %v2075 = vpack.c.b16 %v1535, %v1531
  %v2076 = vpack.c.b16 %v1540, %v1536
  %v2077 = vpack.c.b16 %v1541, %v1537
  %v2078 = vpack.c.b16 %v1542, %v1538
  %v2079 = vpack.c.b16 %v1543, %v1539
  %v2080 = vpack.c.b16 %v1548, %v1544
  %v2081 = vpack.c.b16 %v1549, %v1545
  %v2082 = vpack.c.b16 %v1550, %v1546
  %v2083 = vpack.c.b16 %v1551, %v1547
  %v2084 = vpack.c.b16 %v1556, %v1552
  %v2085 = vpack.c.b16 %v1557, %v1553
  %v2086 = vpack.c.b16 %v1558, %v1554
  %v2087 = vpack.c.b16 %v1559, %v1555
  %v2088 = vpack.c.b16 %v1564, %v1560
  %v2089 = vpack.c.b16 %v1565, %v1561
  %v2090 = vpack.c.b16 %v1566, %v1562
  %v2091 = vpack.c.b16 %v1567, %v1563
  %v2092 = vpack.c.b16 %v1572, %v1568
  %v2093 = vpack.c.b16 %v1573, %v1569
  %v2094 = vpack.c.b16 %v1574, %v1570
  %v2095 = vpack.c.b16 %v1575, %v1571
  %v2096 = vpack.c.b16 %v1580, %v1576
  %v2097 = vpack.c.b16 %v1581, %v1577
  %v2098 = vpack.c.b16 %v1582, %v1578
  %v2099 = vpack.c.b16 %v1583, %v1579
  %v2100 = vpack.c.b16 %v1588, %v1584
  %v2101 = vpack.c.b16 %v1589, %v1585
  %v2102 = vpack.c.b16 %v1590, %v1586
  %v2103 = vpack.c.b16 %v1591, %v1587
  %v2104 = vpack.c.b16 %v1596, %v1592
  %v2105 = vpack.c.b16 %v1597, %v1593
  %v2106 = vpack.c.b16 %v1598, %v1594
  %v2107 = vpack.c.b16 %v1599, %v1595
  %v2108 = vpack.c.b16 %v1604, %v1600
  %v2109 = vpack.c.b16 %v1605, %v1601
  %v2110 = vpack.c.b16 %v1606, %v1602
  %v2111 = vpack.c.b16 %v1607, %v1603
  %v2112 = vpack.c.b16 %v1612, %v1608
  %v2113 = vpack.c.b16 %v1613, %v1609
  %v2114 = vpack.c.b16 %v1614, %v1610
  %v2115 = vpack.c.b16 %v1615, %v1611
  %v2116 = vpack.c.b16 %v1620, %v1616
  %v2117 = vpack.c.b16 %v1621, %v1617
  %v2118 = vpack.c.b16 %v1622, %v1618
  %v2119 = vpack.c.b16 %v1623, %v1619
  %v2120 = vpack.c.b16 %v1628, %v1624
  %v2121 = vpack.c.b16 %v1629, %v1625
  %v2122 = vpack.c.b16 %v1630, %v1626
  %v2123 = vpack.c.b16 %v1631, %v1627
  %v2124 = vpack.c.b16 %v1636, %v1632
  %v2125 = vpack.c.b16 %v1637, %v1633
  %v2126 = vpack.c.b16 %v1638, %v1634
  %v2127 = vpack.c.b16 %v1639, %v1635
  %v2128 = vpack.c.b16 %v1644, %v1640
  %v2129 = vpack.c.b16 %v1645, %v1641
  %v2130 = vpack.c.b16 %v1646, %v1642
  %v2131 = vpack.c.b16 %v1647, %v1643
  %v2132 = vpack.c.b16 %v1652, %v1648
  %v2133 = vpack.c.b16 %v1653, %v1649
  %v2134 = vpack.c.b16 %v1654, %v1650
  %v2135 = vpack.c.b16 %v1655, %v1651
  %v2136 = vpack.c.b16 %v1660, %v1656
  %v2137 = vpack.c.b16 %v1661, %v1657
  %v2138 = vpack.c.b16 %v1662, %v1658
  %v2139 = vpack.c.b16 %v1663, %v1659
  %v2140 = vpack.c.b16 %v1668, %v1664
  %v2141 = vpack.c.b16 %v1669, %v1665
  %v2142 = vpack.c.b16 %v1670, %v1666
  %v2143 = vpack.c.b16 %v1671, %v1667
  %v2144 = vpack.c.b16 %v1676, %v1672
  %v2145 = vpack.c.b16 %v1677, %v1673
  %v2146 = vpack.c.b16 %v1678, %v1674
  %v2147 = vpack.c.b16 %v1679, %v1675
  %v2148 = vpack.c.b16 %v1684, %v1680
  %v2149 = vpack.c.b16 %v1685, %v1681
  %v2150 = vpack.c.b16 %v1686, %v1682
  %v2151 = vpack.c.b16 %v1687, %v1683
  %v2152 = vpack.c.b16 %v1692, %v1688
  %v2153 = vpack.c.b16 %v1693, %v1689
  %v2154 = vpack.c.b16 %v1694, %v1690
  %v2155 = vpack.c.b16 %v1695, %v1691
  %v2156 = vpack.c.b16 %v1700, %v1696
  %v2157 = vpack.c.b16 %v1701, %v1697
  %v2158 = vpack.c.b16 %v1702, %v1698
  %v2159 = vpack.c.b16 %v1703, %v1699
  %v2160 = vpack.c.b16 %v1708, %v1704
  %v2161 = vpack.c.b16 %v1709, %v1705
  %v2162 = vpack.c.b16 %v1710, %v1706
  %v2163 = vpack.c.b16 %v1711, %v1707
  %v2164 = vpack.c.b16 %v1716, %v1712
  %v2165 = vpack.c.b16 %v1717, %v1713
  %v2166 = vpack.c.b16 %v1718, %v1714
  %v2167 = vpack.c.b16 %v1719, %v1715
  %v2168 = vpack.c.b16 %v1724, %v1720
  %v2169 = vpack.c.b16 %v1725, %v1721
  %v2170 = vpack.c.b16 %v1726, %v1722
  %v2171 = vpack.c.b16 %v1727, %v1723
  %v2172 = vpack.c.b16 %v1732, %v1728
  %v2173 = vpack.c.b16 %v1733, %v1729
  %v2174 = vpack.c.b16 %v1734, %v1730
  %v2175 = vpack.c.b16 %v1735, %v1731
  %v2176 = vpack.c.b16 %v1740, %v1736
  %v2177 = vpack.c.b16 %v1741, %v1737
  %v2178 = vpack.c.b16 %v1742, %v1738
  %v2179 = vpack.c.b16 %v1743, %v1739
  %v2180 = vpack.c.b16 %v1748, %v1744
  %v2181 = vpack.c.b16 %v1749, %v1745
  %v2182 = vpack.c.b16 %v1750, %v1746
  %v2183 = vpack.c.b16 %v1751, %v1747
  %v2184 = vpack.c.b16 %v1756, %v1752
  %v2185 = vpack.c.b16 %v1757, %v1753
  %v2186 = vpack.c.b16 %v1758, %v1754
  %v2187 = vpack.c.b16 %v1759, %v1755
  %v2188 = vpack.c.b16 %v1764, %v1760
  %v2189 = vpack.c.b16 %v1765, %v1761
  %v2190 = vpack.c.b16 %v1766, %v1762
  %v2191 = vpack.c.b16 %v1767, %v1763
  %v2192 = vpack.c.b16 %v1772, %v1768
  %v2193 = vpack.c.b16 %v1773, %v1769
  %v2194 = vpack.c.b16 %v1774, %v1770
  %v2195 = vpack.c.b16 %v1775, %v1771
  %v2196 = vpack.c.b16 %v1780, %v1776
  %v2197 = vpack.c.b16 %v1781, %v1777
  %v2198 = vpack.c.b16 %v1782, %v1778
  %v2199 = vpack.c.b16 %v1783, %v1779
  %v2200 = vpack.c.b16 %v1788, %v1784
  %v2201 = vpack.c.b16 %v1789, %v1785
  %v2202 = vpack.c.b16 %v1790, %v1786
  %v2203 = vpack.c.b16 %v1791, %v1787
  %v2204 = vpack.c.b16 %v1796, %v1792
  %v2205 = vpack.c.b16 %v1797, %v1793
  %v2206 = vpack.c.b16 %v1798, %v1794
  %v2207 = vpack.c.b16 %v1799, %v1795
  %v2208 = vpack.c.b16 %v1804, %v1800
  %v2209 = vpack.c.b16 %v1805, %v1801
  %v2210 = vpack.c.b16 %v1806, %v1802
  %v2211 = vpack.c.b16 %v1807, %v1803
  %v2212 = vpack.c.b16 %v1812, %v1808
  %v2213 = vpack.c.b16 %v1813, %v1809
  %v2214 = vpack.c.b16 %v1814, %v1810
  %v2215 = vpack.c.b16 %v1815, %v1811
  %v2216 = vpack.c.b16 %v1820, %v1816
  %v2217 = vpack.c.b16 %v1821, %v1817
  %v2218 = vpack.c.b16 %v1822, %v1818
  %v2219 = vpack.c.b16 %v1823, %v1819
  %v2220 = vpack.c.b16 %v1828, %v1824
  %v2221 = vpack.c.b16 %v1829, %v1825
  %v2222 = vpack.c.b16 %v1830, %v1826
  %v2223 = vpack.c.b16 %v1831, %v1827
  %v2224 = vpack.c.b16 %v1836, %v1832
  %v2225 = vpack.c.b16 %v1837, %v1833
  %v2226 = vpack.c.b16 %v1838, %v1834
  %v2227 = vpack.c.b16 %v1839, %v1835
  %v2228 = vpack.c.b16 %v1844, %v1840
  %v2229 = vpack.c.b16 %v1845, %v1841
  %v2230 = vpack.c.b16 %v1846, %v1842
  %v2231 = vpack.c.b16 %v1847, %v1843
  %v2232 = vpack.c.b16 %v1852, %v1848
  %v2233 = vpack.c.b16 %v1853, %v1849
  %v2234 = vpack.c.b16 %v1854, %v1850
  %v2235 = vpack.c.b16 %v1855, %v1851
  %v2236 = vpack.c.b16 %v1860, %v1856
  %v2237 = vpack.c.b16 %v1861, %v1857
  %v2238 = vpack.c.b16 %v1862, %v1858
  %v2239 = vpack.c.b16 %v1863, %v1859
  %v2240 = vpack.c.b16 %v1868, %v1864
  %v2241 = vpack.c.b16 %v1869, %v1865
  %v2242 = vpack.c.b16 %v1870, %v1866
  %v2243 = vpack.c.b16 %v1871, %v1867
  %v2244 = vpack.c.b16 %v1876, %v1872
  %v2245 = vpack.c.b16 %v1877, %v1873
  %v2246 = vpack.c.b16 %v1878, %v1874
  %v2247 = vpack.c.b16 %v1879, %v1875
  %v2248 = vpack.c.b16 %v1884, %v1880
  %v2249 = vpack.c.b16 %v1885, %v1881
  %v2250 = vpack.c.b16 %v1886, %v1882
  %v2251 = vpack.c.b16 %v1887, %v1883
  %v2252 = vpack.c.b16 %v1892, %v1888
  %v2253 = vpack.c.b16 %v1893, %v1889
  %v2254 = vpack.c.b16 %v1894, %v1890
  %v2255 = vpack.c.b16 %v1895, %v1891
  %v2256 = vpack.c.b16 %v1900, %v1896
  %v2257 = vpack.c.b16 %v1901, %v1897
  %v2258 = vpack.c.b16 %v1902, %v1898
  %v2259 = vpack.c.b16 %v1903, %v1899
  %v2260 = vpack.c.b16 %v1908, %v1904
  %v2261 = vpack.c.b16 %v1909, %v1905
  %v2262 = vpack.c.b16 %v1910, %v1906
  %v2263 = vpack.c.b16 %v1911, %v1907
  %v2264 = vpack.c.b16 %v1916, %v1912
  %v2265 = vpack.c.b16 %v1917, %v1913
  %v2266 = vpack.c.b16 %v1918, %v1914
  %v2267 = vpack.c.b16 %v1919, %v1915
  %v2268 = vpack.c.b16 %v1924, %v1920
  %v2269 = vpack.c.b16 %v1925, %v1921
  %v2270 = vpack.c.b16 %v1926, %v1922
  %v2271 = vpack.c.b16 %v1927, %v1923
  %v2272 = vpack.c.b16 %v1932, %v1928
  %v2273 = vpack.c.b16 %v1933, %v1929
  %v2274 = vpack.c.b16 %v1934, %v1930
  %v2275 = vpack.c.b16 %v1935, %v1931
  %v2276 = vpack.c.b16 %v1940, %v1936
  %v2277 = vpack.c.b16 %v1941, %v1937
  %v2278 = vpack.c.b16 %v1942, %v1938
  %v2279 = vpack.c.b16 %v1943, %v1939
  %v2280 = vpack.c.b16 %v1948, %v1944
  %v2281 = vpack.c.b16 %v1949, %v1945
  %v2282 = vpack.c.b16 %v1950, %v1946
  %v2283 = vpack.c.b16 %v1951, %v1947
  %v2284 = vpack.c.b16 %v1956, %v1952
  %v2285 = vpack.c.b16 %v1957, %v1953
  %v2286 = vpack.c.b16 %v1958, %v1954
  %v2287 = vpack.c.b16 %v1959, %v1955
  %v2288 = vpack.c.b16 %v1964, %v1960
  %v2289 = vpack.c.b16 %v1965, %v1961
  %v2290 = vpack.c.b16 %v1966, %v1962
  %v2291 = vpack.c.b16 %v1967, %v1963
  %v2292 = vpack.c.b16 %v1972, %v1968
  %v2293 = vpack.c.b16 %v1973, %v1969
  %v2294 = vpack.c.b16 %v1974, %v1970
  %v2295 = vpack.c.b16 %v1975, %v1971
  %v2296 = vpack.c.b16 %v1980, %v1976
  %v2297 = vpack.c.b16 %v1981, %v1977
  %v2298 = vpack.c.b16 %v1982, %v1978
  %v2299 = vpack.c.b16 %v1983, %v1979
  %v2300 = vpack.c.b16 %v1988, %v1984
  %v2301 = vpack.c.b16 %v1989, %v1985
  %v2302 = vpack.c.b16 %v1990, %v1986
  %v2303 = vpack.c.b16 %v1991, %v1987
  %v2304 = vpack.c.b16 %v1996, %v1992
  %v2305 = vpack.c.b16 %v1997, %v1993
  %v2306 = vpack.c.b16 %v1998, %v1994
  %v2307 = vpack.c.b16 %v1999, %v1995
  %v2308 = vpack.c.b16 %v2004, %v2000
  %v2309 = vpack.c.b16 %v2005, %v2001
  %v2310 = vpack.c.b16 %v2006, %v2002
  %v2311 = vpack.c.b16 %v2007, %v2003
  %v2312 = vpack.c.b16 %v2012, %v2008
  %v2313 = vpack.c.b16 %v2013, %v2009
  %v2314 = vpack.c.b16 %v2014, %v2010
  %v2315 = vpack.c.b16 %v2015, %v2011
  %v2316 = vpack.c.b16 %v2020, %v2016
  %v2317 = vpack.c.b16 %v2021, %v2017
  %v2318 = vpack.c.b16 %v2022, %v2018
  %v2319 = vpack.c.b16 %v2023, %v2019
  %v2320 = vpack.c.b16 %v2028, %v2024
  %v2321 = vpack.c.b16 %v2029, %v2025
  %v2322 = vpack.c.b16 %v2030, %v2026
  %v2323 = vpack.c.b16 %v2031, %v2027
  %v2324 = vpack.c.b16 %v2036, %v2032
  %v2325 = vpack.c.b16 %v2037, %v2033
  %v2326 = vpack.c.b16 %v2038, %v2034
  %v2327 = vpack.c.b16 %v2039, %v2035
  %2616 = vmatprep.subr.bf16.mxu0 0
  %2617 = vmatpush1.bf16.msra.mxu0 %v856
  %2618 = vmatprep.subr.bf16.mxu0 0
  %2619 = vmatpush1.bf16.msra.mxu0 %v857
  %2620 = vmatprep.subr.bf16.mxu0 0
  %2621 = vmatpush1.bf16.msra.mxu0 %v858
  %2622 = vmatprep.subr.bf16.mxu0 0
  %2623 = vmatpush1.bf16.msra.mxu0 %v859
  %2624 = vmatprep.subr.bf16.mxu0 0
  %2625 = vmatpush1.bf16.msra.mxu0 %v860
  %2626 = vmatprep.subr.bf16.mxu0 0
  %2627 = vmatpush1.bf16.msra.mxu0 %v861
  %2628 = vmatprep.subr.bf16.mxu0 0
  %2629 = vmatpush1.bf16.msra.mxu0 %v862
  %2630 = vmatprep.subr.bf16.mxu0 0
  %2631 = vmatpush1.bf16.msra.mxu0 %v863
  %2632 = vmatprep.subr.bf16.mxu0 0
  %2633 = vmatpush1.bf16.msra.mxu0 %v864
  %2634 = vmatprep.subr.bf16.mxu0 0
  %2635 = vmatpush1.bf16.msra.mxu0 %v865
  %2636 = vmatprep.subr.bf16.mxu0 0
  %2637 = vmatpush1.bf16.msra.mxu0 %v866
  %2638 = vmatprep.subr.bf16.mxu0 0
  %2639 = vmatpush1.bf16.msra.mxu0 %v867
  %2640 = vmatprep.subr.bf16.mxu0 0
  %2641 = vmatpush1.bf16.msra.mxu0 %v868
  %2642 = vmatprep.subr.bf16.mxu0 0
  %2643 = vmatpush1.bf16.msra.mxu0 %v869
  %2644 = vmatprep.subr.bf16.mxu0 0
  %2645 = vmatpush1.bf16.msra.mxu0 %v870
  %2646 = vmatprep.subr.bf16.mxu0 0
  %2647 = vmatpush1.bf16.msra.mxu0 %v871
  %2648 = vmatprep.mubr.bf16.mxu0 %v2041
  %2649 = vmatmul.mubr.bf16.gmra.mrb[0].mxu0 %v2040
  %v2650 = vpop.f32.mrb[0].mxu0
  %v2651 = vadd.f32 0.0, %v2650
  %v2652 = vpop.f32.mrb[0].mxu0
  %v2653 = vpop.f32.mrb[0].mxu0
  %v2654 = vadd.f32 0.0, %v2653
  %v2655 = vpop.f32.mrb[0].mxu0
  %2656 = vmatprep.mubr.bf16.mxu0 %v2045
  %2657 = vmatmul.mubr.bf16.gmra.mrb[0].mxu0 %v2044
  %v2658 = vpop.f32.mrb[0].mxu0
  %v2659 = vadd.f32 0.0, %v2658
  %v2660 = vpop.f32.mrb[0].mxu0
  %v2661 = vpop.f32.mrb[0].mxu0
  %v2662 = vadd.f32 0.0, %v2661
  %v2663 = vpop.f32.mrb[0].mxu0
  %2664 = vmatprep.mubr.bf16.mxu0 %v2049
  %2665 = vmatmul.mubr.bf16.gmra.mrb[0].mxu0 %v2048
  %v2666 = vpop.f32.mrb[0].mxu0
  %v2667 = vadd.f32 0.0, %v2666
  %v2668 = vpop.f32.mrb[0].mxu0
  %v2669 = vpop.f32.mrb[0].mxu0
  %v2670 = vadd.f32 0.0, %v2669
  %v2671 = vpop.f32.mrb[0].mxu0
  %2672 = vmatprep.mubr.bf16.mxu0 %v2053
  %2673 = vmatmul.mubr.bf16.gmra.mrb[0].mxu0 %v2052
  %v2674 = vpop.f32.mrb[0].mxu0
  %v2675 = vadd.f32 0.0, %v2674
  %v2676 = vpop.f32.mrb[0].mxu0
  %v2677 = vpop.f32.mrb[0].mxu0
  %v2678 = vadd.f32 0.0, %v2677
  %v2679 = vpop.f32.mrb[0].mxu0
  %2680 = vmatprep.mubr.bf16.mxu0 %v2057
  %2681 = vmatmul.mubr.bf16.gmra.mrb[0].mxu0 %v2056
  %v2682 = vpop.f32.mrb[0].mxu0
  %v2683 = vadd.f32 0.0, %v2682
  %v2684 = vpop.f32.mrb[0].mxu0
  %v2685 = vpop.f32.mrb[0].mxu0
  %v2686 = vadd.f32 0.0, %v2685
  %v2687 = vpop.f32.mrb[0].mxu0
  %2688 = vmatprep.mubr.bf16.mxu0 %v2061
  %2689 = vmatmul.mubr.bf16.gmra.mrb[0].mxu0 %v2060
  %v2690 = vpop.f32.mrb[0].mxu0
  %v2691 = vadd.f32 0.0, %v2690
  %v2692 = vpop.f32.mrb[0].mxu0
  %v2693 = vpop.f32.mrb[0].mxu0
  %v2694 = vadd.f32 0.0, %v2693
  %v2695 = vpop.f32.mrb[0].mxu0
  %2696 = vmatprep.mubr.bf16.mxu0 %v2065
  %2697 = vmatmul.mubr.bf16.gmra.mrb[0].mxu0 %v2064
  %v2698 = vpop.f32.mrb[0].mxu0
  %v2699 = vadd.f32 0.0, %v2698
  %v2700 = vpop.f32.mrb[0].mxu0
  %v2701 = vpop.f32.mrb[0].mxu0
  %v2702 = vadd.f32 0.0, %v2701
  %v2703 = vpop.f32.mrb[0].mxu0
  %2704 = vmatprep.mubr.bf16.mxu0 %v2069
  %2705 = vmatmul.mubr.bf16.gmra.mrb[0].mxu0 %v2068
  %v2706 = vpop.f32.mrb[0].mxu0
  %v2707 = vadd.f32 0.0, %v2706
  %v2708 = vpop.f32.mrb[0].mxu0
  %v2709 = vpop.f32.mrb[0].mxu0
  %v2710 = vadd.f32 0.0, %v2709
  %v2711 = vpop.f32.mrb[0].mxu0
  %2712 = vmatprep.mubr.bf16.mxu0 %v2073
  %2713 = vmatmul.mubr.bf16.gmra.mrb[0].mxu0 %v2072
  %v2714 = vpop.f32.mrb[0].mxu0
  %v2715 = vadd.f32 0.0, %v2714
  %v2716 = vpop.f32.mrb[0].mxu0
  %v2717 = vpop.f32.mrb[0].mxu0
  %v2718 = vadd.f32 0.0, %v2717
  %v2719 = vpop.f32.mrb[0].mxu0
  %2720 = vmatprep.mubr.bf16.mxu0 %v2077
  %2721 = vmatmul.mubr.bf16.gmra.mrb[0].mxu0 %v2076
  %v2722 = vpop.f32.mrb[0].mxu0
  %v2723 = vadd.f32 0.0, %v2722
  %v2724 = vpop.f32.mrb[0].mxu0
  %v2725 = vpop.f32.mrb[0].mxu0
  %v2726 = vadd.f32 0.0, %v2725
  %v2727 = vpop.f32.mrb[0].mxu0
  %2728 = vmatprep.mubr.bf16.mxu0 %v2081
  %2729 = vmatmul.mubr.bf16.gmra.mrb[0].mxu0 %v2080
  %v2730 = vpop.f32.mrb[0].mxu0
  %v2731 = vadd.f32 0.0, %v2730
  %v2732 = vpop.f32.mrb[0].mxu0
  %v2733 = vpop.f32.mrb[0].mxu0
  %v2734 = vadd.f32 0.0, %v2733
  %v2735 = vpop.f32.mrb[0].mxu0
  %2736 = vmatprep.mubr.bf16.mxu0 %v2085
  %2737 = vmatmul.mubr.bf16.gmra.mrb[0].mxu0 %v2084
  %v2738 = vpop.f32.mrb[0].mxu0
  %v2739 = vadd.f32 0.0, %v2738
  %v2740 = vpop.f32.mrb[0].mxu0
  %v2741 = vpop.f32.mrb[0].mxu0
  %v2742 = vadd.f32 0.0, %v2741
  %v2743 = vpop.f32.mrb[0].mxu0
  %2744 = vmatprep.mubr.bf16.mxu0 %v2089
  %2745 = vmatmul.mubr.bf16.gmra.mrb[0].mxu0 %v2088
  %v2746 = vpop.f32.mrb[0].mxu0
  %v2747 = vadd.f32 0.0, %v2746
  %v2748 = vpop.f32.mrb[0].mxu0
  %v2749 = vpop.f32.mrb[0].mxu0
  %v2750 = vadd.f32 0.0, %v2749
  %v2751 = vpop.f32.mrb[0].mxu0
  %2752 = vmatprep.mubr.bf16.mxu0 %v2093
  %2753 = vmatmul.mubr.bf16.gmra.mrb[0].mxu0 %v2092
  %v2754 = vpop.f32.mrb[0].mxu0
  %v2755 = vadd.f32 0.0, %v2754
  %v2756 = vpop.f32.mrb[0].mxu0
  %v2757 = vpop.f32.mrb[0].mxu0
  %v2758 = vadd.f32 0.0, %v2757
  %v2759 = vpop.f32.mrb[0].mxu0
  %2760 = vmatprep.mubr.bf16.mxu0 %v2097
  %2761 = vmatmul.mubr.bf16.gmra.mrb[0].mxu0 %v2096
  %v2762 = vpop.f32.mrb[0].mxu0
  %v2763 = vadd.f32 0.0, %v2762
  %v2764 = vpop.f32.mrb[0].mxu0
  %v2765 = vpop.f32.mrb[0].mxu0
  %v2766 = vadd.f32 0.0, %v2765
  %v2767 = vpop.f32.mrb[0].mxu0
  %2768 = vmatprep.mubr.bf16.mxu0 %v2101
  %2769 = vmatmul.mubr.bf16.gmra.mrb[0].mxu0 %v2100
  %v2770 = vpop.f32.mrb[0].mxu0
  %v2771 = vadd.f32 0.0, %v2770
  %v2772 = vpop.f32.mrb[0].mxu0
  %v2773 = vpop.f32.mrb[0].mxu0
  %v2774 = vadd.f32 0.0, %v2773
  %v2775 = vpop.f32.mrb[0].mxu0
  %2776 = vmatprep.mubr.bf16.mxu0 %v2105
  %2777 = vmatmul.mubr.bf16.gmra.mrb[0].mxu0 %v2104
  %v2778 = vpop.f32.mrb[0].mxu0
  %v2779 = vadd.f32 0.0, %v2778
  %v2780 = vpop.f32.mrb[0].mxu0
  %v2781 = vpop.f32.mrb[0].mxu0
  %v2782 = vadd.f32 0.0, %v2781
  %v2783 = vpop.f32.mrb[0].mxu0
  %2784 = vmatprep.mubr.bf16.mxu0 %v2109
  %2785 = vmatmul.mubr.bf16.gmra.mrb[0].mxu0 %v2108
  %v2786 = vpop.f32.mrb[0].mxu0
  %v2787 = vadd.f32 0.0, %v2786
  %v2788 = vpop.f32.mrb[0].mxu0
  %v2789 = vpop.f32.mrb[0].mxu0
  %v2790 = vadd.f32 0.0, %v2789
  %v2791 = vpop.f32.mrb[0].mxu0
  %2792 = vmatprep.mubr.bf16.mxu0 %v2113
  %2793 = vmatmul.mubr.bf16.gmra.mrb[0].mxu0 %v2112
  %v2794 = vpop.f32.mrb[0].mxu0
  %v2795 = vadd.f32 0.0, %v2794
  %v2796 = vpop.f32.mrb[0].mxu0
  %v2797 = vpop.f32.mrb[0].mxu0
  %v2798 = vadd.f32 0.0, %v2797
  %v2799 = vpop.f32.mrb[0].mxu0
  %2800 = vmatprep.mubr.bf16.mxu0 %v2117
  %2801 = vmatmul.mubr.bf16.gmra.mrb[0].mxu0 %v2116
  %v2802 = vpop.f32.mrb[0].mxu0
  %v2803 = vadd.f32 0.0, %v2802
  %v2804 = vpop.f32.mrb[0].mxu0
  %v2805 = vpop.f32.mrb[0].mxu0
  %v2806 = vadd.f32 0.0, %v2805
  %v2807 = vpop.f32.mrb[0].mxu0
  %2808 = vmatprep.mubr.bf16.mxu0 %v2121
  %2809 = vmatmul.mubr.bf16.gmra.mrb[0].mxu0 %v2120
  %v2810 = vpop.f32.mrb[0].mxu0
  %v2811 = vadd.f32 0.0, %v2810
  %v2812 = vpop.f32.mrb[0].mxu0
  %v2813 = vpop.f32.mrb[0].mxu0
  %v2814 = vadd.f32 0.0, %v2813
  %v2815 = vpop.f32.mrb[0].mxu0
  %2816 = vmatprep.mubr.bf16.mxu0 %v2125
  %2817 = vmatmul.mubr.bf16.gmra.mrb[0].mxu0 %v2124
  %v2818 = vpop.f32.mrb[0].mxu0
  %v2819 = vadd.f32 0.0, %v2818
  %v2820 = vpop.f32.mrb[0].mxu0
  %v2821 = vpop.f32.mrb[0].mxu0
  %v2822 = vadd.f32 0.0, %v2821
  %v2823 = vpop.f32.mrb[0].mxu0
  %2824 = vmatprep.mubr.bf16.mxu0 %v2129
  %2825 = vmatmul.mubr.bf16.gmra.mrb[0].mxu0 %v2128
  %v2826 = vpop.f32.mrb[0].mxu0
  %v2827 = vadd.f32 0.0, %v2826
  %v2828 = vpop.f32.mrb[0].mxu0
  %v2829 = vpop.f32.mrb[0].mxu0
  %v2830 = vadd.f32 0.0, %v2829
  %v2831 = vpop.f32.mrb[0].mxu0
  %2832 = vmatprep.mubr.bf16.mxu0 %v2133
  %2833 = vmatmul.mubr.bf16.gmra.mrb[0].mxu0 %v2132
  %v2834 = vpop.f32.mrb[0].mxu0
  %v2835 = vadd.f32 0.0, %v2834
  %v2836 = vpop.f32.mrb[0].mxu0
  %v2837 = vpop.f32.mrb[0].mxu0
  %v2838 = vadd.f32 0.0, %v2837
  %v2839 = vpop.f32.mrb[0].mxu0
  %2840 = vmatprep.mubr.bf16.mxu0 %v2137
  %2841 = vmatmul.mubr.bf16.gmra.mrb[0].mxu0 %v2136
  %v2842 = vpop.f32.mrb[0].mxu0
  %v2843 = vadd.f32 0.0, %v2842
  %v2844 = vpop.f32.mrb[0].mxu0
  %v2845 = vpop.f32.mrb[0].mxu0
  %v2846 = vadd.f32 0.0, %v2845
  %v2847 = vpop.f32.mrb[0].mxu0
  %2848 = vmatprep.mubr.bf16.mxu0 %v2141
  %2849 = vmatmul.mubr.bf16.gmra.mrb[0].mxu0 %v2140
  %v2850 = vpop.f32.mrb[0].mxu0
  %v2851 = vadd.f32 0.0, %v2850
  %v2852 = vpop.f32.mrb[0].mxu0
  %v2853 = vpop.f32.mrb[0].mxu0
  %v2854 = vadd.f32 0.0, %v2853
  %v2855 = vpop.f32.mrb[0].mxu0
  %2856 = vmatprep.mubr.bf16.mxu0 %v2145
  %2857 = vmatmul.mubr.bf16.gmra.mrb[0].mxu0 %v2144
  %v2858 = vpop.f32.mrb[0].mxu0
  %v2859 = vadd.f32 0.0, %v2858
  %v2860 = vpop.f32.mrb[0].mxu0
  %v2861 = vpop.f32.mrb[0].mxu0
  %v2862 = vadd.f32 0.0, %v2861
  %v2863 = vpop.f32.mrb[0].mxu0
  %2864 = vmatprep.mubr.bf16.mxu0 %v2149
  %2865 = vmatmul.mubr.bf16.gmra.mrb[0].mxu0 %v2148
  %v2866 = vpop.f32.mrb[0].mxu0
  %v2867 = vadd.f32 0.0, %v2866
  %v2868 = vpop.f32.mrb[0].mxu0
  %v2869 = vpop.f32.mrb[0].mxu0
  %v2870 = vadd.f32 0.0, %v2869
  %v2871 = vpop.f32.mrb[0].mxu0
  %2872 = vmatprep.mubr.bf16.mxu0 %v2153
  %2873 = vmatmul.mubr.bf16.gmra.mrb[0].mxu0 %v2152
  %v2874 = vpop.f32.mrb[0].mxu0
  %v2875 = vadd.f32 0.0, %v2874
  %v2876 = vpop.f32.mrb[0].mxu0
  %v2877 = vpop.f32.mrb[0].mxu0
  %v2878 = vadd.f32 0.0, %v2877
  %v2879 = vpop.f32.mrb[0].mxu0
  %2880 = vmatprep.mubr.bf16.mxu0 %v2157
  %2881 = vmatmul.mubr.bf16.gmra.mrb[0].mxu0 %v2156
  %v2882 = vpop.f32.mrb[0].mxu0
  %v2883 = vadd.f32 0.0, %v2882
  %v2884 = vpop.f32.mrb[0].mxu0
  %v2885 = vpop.f32.mrb[0].mxu0
  %v2886 = vadd.f32 0.0, %v2885
  %v2887 = vpop.f32.mrb[0].mxu0
  %2888 = vmatprep.mubr.bf16.mxu0 %v2161
  %2889 = vmatmul.mubr.bf16.gmra.mrb[0].mxu0 %v2160
  %v2890 = vpop.f32.mrb[0].mxu0
  %v2891 = vadd.f32 0.0, %v2890
  %v2892 = vpop.f32.mrb[0].mxu0
  %v2893 = vpop.f32.mrb[0].mxu0
  %v2894 = vadd.f32 0.0, %v2893
  %v2895 = vpop.f32.mrb[0].mxu0
  %2896 = vmatprep.mubr.bf16.mxu0 %v2165
  %2897 = vmatmul.mubr.bf16.gmra.mrb[0].mxu0 %v2164
  %v2898 = vpop.f32.mrb[0].mxu0
  %v2899 = vadd.f32 0.0, %v2898
  %v2900 = vpop.f32.mrb[0].mxu0
  %v2901 = vpop.f32.mrb[0].mxu0
  %v2902 = vadd.f32 0.0, %v2901
  %v2903 = vpop.f32.mrb[0].mxu0
  %2904 = vmatprep.mubr.bf16.mxu0 %v2169
  %2905 = vmatmul.mubr.bf16.gmra.mrb[0].mxu0 %v2168
  %v2906 = vpop.f32.mrb[0].mxu0
  %v2907 = vadd.f32 0.0, %v2906
  %v2908 = vpop.f32.mrb[0].mxu0
  %v2909 = vpop.f32.mrb[0].mxu0
  %v2910 = vadd.f32 0.0, %v2909
  %v2911 = vpop.f32.mrb[0].mxu0
  %2912 = vmatprep.mubr.bf16.mxu0 %v2173
  %2913 = vmatmul.mubr.bf16.gmra.mrb[0].mxu0 %v2172
  %v2914 = vpop.f32.mrb[0].mxu0
  %v2915 = vadd.f32 0.0, %v2914
  %v2916 = vpop.f32.mrb[0].mxu0
  %v2917 = vpop.f32.mrb[0].mxu0
  %v2918 = vadd.f32 0.0, %v2917
  %v2919 = vpop.f32.mrb[0].mxu0
  %2920 = vmatprep.mubr.bf16.mxu0 %v2177
  %2921 = vmatmul.mubr.bf16.gmra.mrb[0].mxu0 %v2176
  %v2922 = vpop.f32.mrb[0].mxu0
  %v2923 = vadd.f32 0.0, %v2922
  %v2924 = vpop.f32.mrb[0].mxu0
  %v2925 = vpop.f32.mrb[0].mxu0
  %v2926 = vadd.f32 0.0, %v2925
  %v2927 = vpop.f32.mrb[0].mxu0
  %2928 = vmatprep.mubr.bf16.mxu0 %v2181
  %2929 = vmatmul.mubr.bf16.gmra.mrb[0].mxu0 %v2180
  %v2930 = vpop.f32.mrb[0].mxu0
  %v2931 = vadd.f32 0.0, %v2930
  %v2932 = vpop.f32.mrb[0].mxu0
  %v2933 = vpop.f32.mrb[0].mxu0
  %v2934 = vadd.f32 0.0, %v2933
  %v2935 = vpop.f32.mrb[0].mxu0
  %2936 = vmatprep.mubr.bf16.mxu0 %v2185
  %2937 = vmatmul.mubr.bf16.gmra.mrb[0].mxu0 %v2184
  %v2938 = vpop.f32.mrb[0].mxu0
  %v2939 = vadd.f32 0.0, %v2938
  %v2940 = vpop.f32.mrb[0].mxu0
  %v2941 = vpop.f32.mrb[0].mxu0
  %v2942 = vadd.f32 0.0, %v2941
  %v2943 = vpop.f32.mrb[0].mxu0
  %2944 = vmatprep.mubr.bf16.mxu0 %v2189
  %2945 = vmatmul.mubr.bf16.gmra.mrb[0].mxu0 %v2188
  %v2946 = vpop.f32.mrb[0].mxu0
  %v2947 = vadd.f32 0.0, %v2946
  %v2948 = vpop.f32.mrb[0].mxu0
  %v2949 = vpop.f32.mrb[0].mxu0
  %v2950 = vadd.f32 0.0, %v2949
  %v2951 = vpop.f32.mrb[0].mxu0
  %2952 = vmatprep.mubr.bf16.mxu0 %v2193
  %2953 = vmatmul.mubr.bf16.gmra.mrb[0].mxu0 %v2192
  %v2954 = vpop.f32.mrb[0].mxu0
  %v2955 = vadd.f32 0.0, %v2954
  %v2956 = vpop.f32.mrb[0].mxu0
  %v2957 = vpop.f32.mrb[0].mxu0
  %v2958 = vadd.f32 0.0, %v2957
  %v2959 = vpop.f32.mrb[0].mxu0
  %2960 = vmatprep.mubr.bf16.mxu0 %v2197
  %2961 = vmatmul.mubr.bf16.gmra.mrb[0].mxu0 %v2196
  %v2962 = vpop.f32.mrb[0].mxu0
  %v2963 = vadd.f32 0.0, %v2962
  %v2964 = vpop.f32.mrb[0].mxu0
  %v2965 = vpop.f32.mrb[0].mxu0
  %v2966 = vadd.f32 0.0, %v2965
  %v2967 = vpop.f32.mrb[0].mxu0
  %2968 = vmatprep.mubr.bf16.mxu0 %v2201
  %2969 = vmatmul.mubr.bf16.gmra.mrb[0].mxu0 %v2200
  %v2970 = vpop.f32.mrb[0].mxu0
  %v2971 = vadd.f32 0.0, %v2970
  %v2972 = vpop.f32.mrb[0].mxu0
  %v2973 = vpop.f32.mrb[0].mxu0
  %v2974 = vadd.f32 0.0, %v2973
  %v2975 = vpop.f32.mrb[0].mxu0
  %2976 = vmatprep.mubr.bf16.mxu0 %v2205
  %2977 = vmatmul.mubr.bf16.gmra.mrb[0].mxu0 %v2204
  %v2978 = vpop.f32.mrb[0].mxu0
  %v2979 = vadd.f32 0.0, %v2978
  %v2980 = vpop.f32.mrb[0].mxu0
  %v2981 = vpop.f32.mrb[0].mxu0
  %v2982 = vadd.f32 0.0, %v2981
  %v2983 = vpop.f32.mrb[0].mxu0
  %2984 = vmatprep.mubr.bf16.mxu0 %v2209
  %2985 = vmatmul.mubr.bf16.gmra.mrb[0].mxu0 %v2208
  %v2986 = vpop.f32.mrb[0].mxu0
  %v2987 = vadd.f32 0.0, %v2986
  %v2988 = vpop.f32.mrb[0].mxu0
  %v2989 = vpop.f32.mrb[0].mxu0
  %v2990 = vadd.f32 0.0, %v2989
  %v2991 = vpop.f32.mrb[0].mxu0
  %2992 = vmatprep.mubr.bf16.mxu0 %v2213
  %2993 = vmatmul.mubr.bf16.gmra.mrb[0].mxu0 %v2212
  %v2994 = vpop.f32.mrb[0].mxu0
  %v2995 = vadd.f32 0.0, %v2994
  %v2996 = vpop.f32.mrb[0].mxu0
  %v2997 = vpop.f32.mrb[0].mxu0
  %v2998 = vadd.f32 0.0, %v2997
  %v2999 = vpop.f32.mrb[0].mxu0
  %3000 = vmatprep.mubr.bf16.mxu0 %v2217
  %3001 = vmatmul.mubr.bf16.gmra.mrb[0].mxu0 %v2216
  %v3002 = vpop.f32.mrb[0].mxu0
  %v3003 = vadd.f32 0.0, %v3002
  %v3004 = vpop.f32.mrb[0].mxu0
  %v3005 = vpop.f32.mrb[0].mxu0
  %v3006 = vadd.f32 0.0, %v3005
  %v3007 = vpop.f32.mrb[0].mxu0
  %3008 = vmatprep.mubr.bf16.mxu0 %v2221
  %3009 = vmatmul.mubr.bf16.gmra.mrb[0].mxu0 %v2220
  %v3010 = vpop.f32.mrb[0].mxu0
  %v3011 = vadd.f32 0.0, %v3010
  %v3012 = vpop.f32.mrb[0].mxu0
  %v3013 = vpop.f32.mrb[0].mxu0
  %v3014 = vadd.f32 0.0, %v3013
  %v3015 = vpop.f32.mrb[0].mxu0
  %3016 = vmatprep.mubr.bf16.mxu0 %v2225
  %3017 = vmatmul.mubr.bf16.gmra.mrb[0].mxu0 %v2224
  %v3018 = vpop.f32.mrb[0].mxu0
  %v3019 = vadd.f32 0.0, %v3018
  %v3020 = vpop.f32.mrb[0].mxu0
  %v3021 = vpop.f32.mrb[0].mxu0
  %v3022 = vadd.f32 0.0, %v3021
  %v3023 = vpop.f32.mrb[0].mxu0
  %3024 = vmatprep.mubr.bf16.mxu0 %v2229
  %3025 = vmatmul.mubr.bf16.gmra.mrb[0].mxu0 %v2228
  %v3026 = vpop.f32.mrb[0].mxu0
  %v3027 = vadd.f32 0.0, %v3026
  %v3028 = vpop.f32.mrb[0].mxu0
  %v3029 = vpop.f32.mrb[0].mxu0
  %v3030 = vadd.f32 0.0, %v3029
  %v3031 = vpop.f32.mrb[0].mxu0
  %3032 = vmatprep.mubr.bf16.mxu0 %v2233
  %3033 = vmatmul.mubr.bf16.gmra.mrb[0].mxu0 %v2232
  %v3034 = vpop.f32.mrb[0].mxu0
  %v3035 = vadd.f32 0.0, %v3034
  %v3036 = vpop.f32.mrb[0].mxu0
  %v3037 = vpop.f32.mrb[0].mxu0
  %v3038 = vadd.f32 0.0, %v3037
  %v3039 = vpop.f32.mrb[0].mxu0
  %3040 = vmatprep.mubr.bf16.mxu0 %v2237
  %3041 = vmatmul.mubr.bf16.gmra.mrb[0].mxu0 %v2236
  %v3042 = vpop.f32.mrb[0].mxu0
  %v3043 = vadd.f32 0.0, %v3042
  %v3044 = vpop.f32.mrb[0].mxu0
  %v3045 = vpop.f32.mrb[0].mxu0
  %v3046 = vadd.f32 0.0, %v3045
  %v3047 = vpop.f32.mrb[0].mxu0
  %3048 = vmatprep.mubr.bf16.mxu0 %v2241
  %3049 = vmatmul.mubr.bf16.gmra.mrb[0].mxu0 %v2240
  %v3050 = vpop.f32.mrb[0].mxu0
  %v3051 = vadd.f32 0.0, %v3050
  %v3052 = vpop.f32.mrb[0].mxu0
  %v3053 = vpop.f32.mrb[0].mxu0
  %v3054 = vadd.f32 0.0, %v3053
  %v3055 = vpop.f32.mrb[0].mxu0
  %3056 = vmatprep.mubr.bf16.mxu0 %v2245
  %3057 = vmatmul.mubr.bf16.gmra.mrb[0].mxu0 %v2244
  %v3058 = vpop.f32.mrb[0].mxu0
  %v3059 = vadd.f32 0.0, %v3058
  %v3060 = vpop.f32.mrb[0].mxu0
  %v3061 = vpop.f32.mrb[0].mxu0
  %v3062 = vadd.f32 0.0, %v3061
  %v3063 = vpop.f32.mrb[0].mxu0
  %3064 = vmatprep.mubr.bf16.mxu0 %v2249
  %3065 = vmatmul.mubr.bf16.gmra.mrb[0].mxu0 %v2248
  %v3066 = vpop.f32.mrb[0].mxu0
  %v3067 = vadd.f32 0.0, %v3066
  %v3068 = vpop.f32.mrb[0].mxu0
  %v3069 = vpop.f32.mrb[0].mxu0
  %v3070 = vadd.f32 0.0, %v3069
  %v3071 = vpop.f32.mrb[0].mxu0
  %3072 = vmatprep.mubr.bf16.mxu0 %v2253
  %3073 = vmatmul.mubr.bf16.gmra.mrb[0].mxu0 %v2252
  %v3074 = vpop.f32.mrb[0].mxu0
  %v3075 = vadd.f32 0.0, %v3074
  %v3076 = vpop.f32.mrb[0].mxu0
  %v3077 = vpop.f32.mrb[0].mxu0
  %v3078 = vadd.f32 0.0, %v3077
  %v3079 = vpop.f32.mrb[0].mxu0
  %3080 = vmatprep.mubr.bf16.mxu0 %v2257
  %3081 = vmatmul.mubr.bf16.gmra.mrb[0].mxu0 %v2256
  %v3082 = vpop.f32.mrb[0].mxu0
  %v3083 = vadd.f32 0.0, %v3082
  %v3084 = vpop.f32.mrb[0].mxu0
  %v3085 = vpop.f32.mrb[0].mxu0
  %v3086 = vadd.f32 0.0, %v3085
  %v3087 = vpop.f32.mrb[0].mxu0
  %3088 = vmatprep.mubr.bf16.mxu0 %v2261
  %3089 = vmatmul.mubr.bf16.gmra.mrb[0].mxu0 %v2260
  %v3090 = vpop.f32.mrb[0].mxu0
  %v3091 = vadd.f32 0.0, %v3090
  %v3092 = vpop.f32.mrb[0].mxu0
  %v3093 = vpop.f32.mrb[0].mxu0
  %v3094 = vadd.f32 0.0, %v3093
  %v3095 = vpop.f32.mrb[0].mxu0
  %3096 = vmatprep.mubr.bf16.mxu0 %v2265
  %3097 = vmatmul.mubr.bf16.gmra.mrb[0].mxu0 %v2264
  %v3098 = vpop.f32.mrb[0].mxu0
  %v3099 = vadd.f32 0.0, %v3098
  %v3100 = vpop.f32.mrb[0].mxu0
  %v3101 = vpop.f32.mrb[0].mxu0
  %v3102 = vadd.f32 0.0, %v3101
  %v3103 = vpop.f32.mrb[0].mxu0
  %3104 = vmatprep.mubr.bf16.mxu0 %v2269
  %3105 = vmatmul.mubr.bf16.gmra.mrb[0].mxu0 %v2268
  %v3106 = vpop.f32.mrb[0].mxu0
  %v3107 = vadd.f32 0.0, %v3106
  %v3108 = vpop.f32.mrb[0].mxu0
  %v3109 = vpop.f32.mrb[0].mxu0
  %v3110 = vadd.f32 0.0, %v3109
  %v3111 = vpop.f32.mrb[0].mxu0
  %3112 = vmatprep.mubr.bf16.mxu0 %v2273
  %3113 = vmatmul.mubr.bf16.gmra.mrb[0].mxu0 %v2272
  %v3114 = vpop.f32.mrb[0].mxu0
  %v3115 = vadd.f32 0.0, %v3114
  %v3116 = vpop.f32.mrb[0].mxu0
  %v3117 = vpop.f32.mrb[0].mxu0
  %v3118 = vadd.f32 0.0, %v3117
  %v3119 = vpop.f32.mrb[0].mxu0
  %3120 = vmatprep.mubr.bf16.mxu0 %v2277
  %3121 = vmatmul.mubr.bf16.gmra.mrb[0].mxu0 %v2276
  %v3122 = vpop.f32.mrb[0].mxu0
  %v3123 = vadd.f32 0.0, %v3122
  %v3124 = vpop.f32.mrb[0].mxu0
  %v3125 = vpop.f32.mrb[0].mxu0
  %v3126 = vadd.f32 0.0, %v3125
  %v3127 = vpop.f32.mrb[0].mxu0
  %3128 = vmatprep.mubr.bf16.mxu0 %v2281
  %3129 = vmatmul.mubr.bf16.gmra.mrb[0].mxu0 %v2280
  %v3130 = vpop.f32.mrb[0].mxu0
  %v3131 = vadd.f32 0.0, %v3130
  %v3132 = vpop.f32.mrb[0].mxu0
  %v3133 = vpop.f32.mrb[0].mxu0
  %v3134 = vadd.f32 0.0, %v3133
  %v3135 = vpop.f32.mrb[0].mxu0
  %3136 = vmatprep.mubr.bf16.mxu0 %v2285
  %3137 = vmatmul.mubr.bf16.gmra.mrb[0].mxu0 %v2284
  %v3138 = vpop.f32.mrb[0].mxu0
  %v3139 = vadd.f32 0.0, %v3138
  %v3140 = vpop.f32.mrb[0].mxu0
  %v3141 = vpop.f32.mrb[0].mxu0
  %v3142 = vadd.f32 0.0, %v3141
  %v3143 = vpop.f32.mrb[0].mxu0
  %3144 = vmatprep.mubr.bf16.mxu0 %v2289
  %3145 = vmatmul.mubr.bf16.gmra.mrb[0].mxu0 %v2288
  %v3146 = vpop.f32.mrb[0].mxu0
  %v3147 = vadd.f32 0.0, %v3146
  %v3148 = vpop.f32.mrb[0].mxu0
  %v3149 = vpop.f32.mrb[0].mxu0
  %v3150 = vadd.f32 0.0, %v3149
  %v3151 = vpop.f32.mrb[0].mxu0
  %3152 = vmatprep.mubr.bf16.mxu0 %v2293
  %3153 = vmatmul.mubr.bf16.gmra.mrb[0].mxu0 %v2292
  %v3154 = vpop.f32.mrb[0].mxu0
  %v3155 = vadd.f32 0.0, %v3154
  %v3156 = vpop.f32.mrb[0].mxu0
  %v3157 = vpop.f32.mrb[0].mxu0
  %v3158 = vadd.f32 0.0, %v3157
  %v3159 = vpop.f32.mrb[0].mxu0
  %3160 = vmatprep.mubr.bf16.mxu0 %v2297
  %3161 = vmatmul.mubr.bf16.gmra.mrb[0].mxu0 %v2296
  %v3162 = vpop.f32.mrb[0].mxu0
  %v3163 = vadd.f32 0.0, %v3162
  %v3164 = vpop.f32.mrb[0].mxu0
  %v3165 = vpop.f32.mrb[0].mxu0
  %v3166 = vadd.f32 0.0, %v3165
  %v3167 = vpop.f32.mrb[0].mxu0
  %3168 = vmatprep.mubr.bf16.mxu0 %v2301
  %3169 = vmatmul.mubr.bf16.gmra.mrb[0].mxu0 %v2300
  %v3170 = vpop.f32.mrb[0].mxu0
  %v3171 = vadd.f32 0.0, %v3170
  %v3172 = vpop.f32.mrb[0].mxu0
  %v3173 = vpop.f32.mrb[0].mxu0
  %v3174 = vadd.f32 0.0, %v3173
  %v3175 = vpop.f32.mrb[0].mxu0
  %3176 = vmatprep.mubr.bf16.mxu0 %v2305
  %3177 = vmatmul.mubr.bf16.gmra.mrb[0].mxu0 %v2304
  %v3178 = vpop.f32.mrb[0].mxu0
  %v3179 = vadd.f32 0.0, %v3178
  %v3180 = vpop.f32.mrb[0].mxu0
  %v3181 = vpop.f32.mrb[0].mxu0
  %v3182 = vadd.f32 0.0, %v3181
  %v3183 = vpop.f32.mrb[0].mxu0
  %3184 = vmatprep.mubr.bf16.mxu0 %v2309
  %3185 = vmatmul.mubr.bf16.gmra.mrb[0].mxu0 %v2308
  %v3186 = vpop.f32.mrb[0].mxu0
  %v3187 = vadd.f32 0.0, %v3186
  %v3188 = vpop.f32.mrb[0].mxu0
  %v3189 = vpop.f32.mrb[0].mxu0
  %v3190 = vadd.f32 0.0, %v3189
  %v3191 = vpop.f32.mrb[0].mxu0
  %3192 = vmatprep.mubr.bf16.mxu0 %v2313
  %3193 = vmatmul.mubr.bf16.gmra.mrb[0].mxu0 %v2312
  %v3194 = vpop.f32.mrb[0].mxu0
  %v3195 = vadd.f32 0.0, %v3194
  %v3196 = vpop.f32.mrb[0].mxu0
  %v3197 = vpop.f32.mrb[0].mxu0
  %v3198 = vadd.f32 0.0, %v3197
  %v3199 = vpop.f32.mrb[0].mxu0
  %3200 = vmatprep.mubr.bf16.mxu0 %v2317
  %3201 = vmatmul.mubr.bf16.gmra.mrb[0].mxu0 %v2316
  %v3202 = vpop.f32.mrb[0].mxu0
  %v3203 = vadd.f32 0.0, %v3202
  %v3204 = vpop.f32.mrb[0].mxu0
  %v3205 = vpop.f32.mrb[0].mxu0
  %v3206 = vadd.f32 0.0, %v3205
  %v3207 = vpop.f32.mrb[0].mxu0
  %3208 = vmatprep.mubr.bf16.mxu0 %v2321
  %3209 = vmatmul.mubr.bf16.gmra.mrb[0].mxu0 %v2320
  %v3210 = vpop.f32.mrb[0].mxu0
  %v3211 = vadd.f32 0.0, %v3210
  %v3212 = vpop.f32.mrb[0].mxu0
  %v3213 = vpop.f32.mrb[0].mxu0
  %v3214 = vadd.f32 0.0, %v3213
  %v3215 = vpop.f32.mrb[0].mxu0
  %3216 = vmatprep.mubr.bf16.mxu0 %v2325
  %3217 = vmatmul.mubr.bf16.gmra.mrb[0].mxu0 %v2324
  %v3218 = vpop.f32.mrb[0].mxu0
  %v3219 = vadd.f32 0.0, %v3218
  %v3220 = vpop.f32.mrb[0].mxu0
  %v3221 = vpop.f32.mrb[0].mxu0
  %v3222 = vadd.f32 0.0, %v3221
  %v3223 = vpop.f32.mrb[0].mxu0
  %3224 = vdwg.mxu0
  %3225 = vmatprep.subr.bf16.mxu0 0
  %3226 = vmatpush1.bf16.msra.mxu0 %v872
  %3227 = vmatprep.subr.bf16.mxu0 0
  %3228 = vmatpush1.bf16.msra.mxu0 %v873
  %3229 = vmatprep.subr.bf16.mxu0 0
  %3230 = vmatpush1.bf16.msra.mxu0 %v874
  %3231 = vmatprep.subr.bf16.mxu0 0
  %3232 = vmatpush1.bf16.msra.mxu0 %v875
  %3233 = vmatprep.subr.bf16.mxu0 0
  %3234 = vmatpush1.bf16.msra.mxu0 %v876
  %3235 = vmatprep.subr.bf16.mxu0 0
  %3236 = vmatpush1.bf16.msra.mxu0 %v877
  %3237 = vmatprep.subr.bf16.mxu0 0
  %3238 = vmatpush1.bf16.msra.mxu0 %v878
  %3239 = vmatprep.subr.bf16.mxu0 0
  %3240 = vmatpush1.bf16.msra.mxu0 %v879
  %3241 = vmatprep.subr.bf16.mxu0 0
  %3242 = vmatpush1.bf16.msra.mxu0 %v880
  %3243 = vmatprep.subr.bf16.mxu0 0
  %3244 = vmatpush1.bf16.msra.mxu0 %v881
  %3245 = vmatprep.subr.bf16.mxu0 0
  %3246 = vmatpush1.bf16.msra.mxu0 %v882
  %3247 = vmatprep.subr.bf16.mxu0 0
  %3248 = vmatpush1.bf16.msra.mxu0 %v883
  %3249 = vmatprep.subr.bf16.mxu0 0
  %3250 = vmatpush1.bf16.msra.mxu0 %v884
  %3251 = vmatprep.subr.bf16.mxu0 0
  %3252 = vmatpush1.bf16.msra.mxu0 %v885
  %3253 = vmatprep.subr.bf16.mxu0 0
  %3254 = vmatpush1.bf16.msra.mxu0 %v886
  %3255 = vmatprep.subr.bf16.mxu0 0
  %3256 = vmatpush1.bf16.msra.mxu0 %v887
  %3257 = vmatprep.mubr.bf16.mxu0 %v2043
  %3258 = vmatmul.mubr.bf16.gmra.mrb[0].mxu0 %v2042
  %v3259 = vpop.f32.mrb[0].mxu0
  %v3260 = vadd.f32 %v2651, %v3259
  %v3261 = vpop.f32.mrb[0].mxu0
  %v3262 = vpop.f32.mrb[0].mxu0
  %v3263 = vadd.f32 %v2654, %v3262
  %v3264 = vpop.f32.mrb[0].mxu0
  %3265 = vmatprep.mubr.bf16.mxu0 %v2047
  %3266 = vmatmul.mubr.bf16.gmra.mrb[0].mxu0 %v2046
  %v3267 = vpop.f32.mrb[0].mxu0
  %v3268 = vadd.f32 %v2659, %v3267
  %v3269 = vpop.f32.mrb[0].mxu0
  %v3270 = vpop.f32.mrb[0].mxu0
  %v3271 = vadd.f32 %v2662, %v3270
  %v3272 = vpop.f32.mrb[0].mxu0
  %3273 = vmatprep.mubr.bf16.mxu0 %v2051
  %3274 = vmatmul.mubr.bf16.gmra.mrb[0].mxu0 %v2050
  %v3275 = vpop.f32.mrb[0].mxu0
  %v3276 = vadd.f32 %v2667, %v3275
  %v3277 = vpop.f32.mrb[0].mxu0
  %v3278 = vpop.f32.mrb[0].mxu0
  %v3279 = vadd.f32 %v2670, %v3278
  %v3280 = vpop.f32.mrb[0].mxu0
  %3281 = vmatprep.mubr.bf16.mxu0 %v2055
  %3282 = vmatmul.mubr.bf16.gmra.mrb[0].mxu0 %v2054
  %v3283 = vpop.f32.mrb[0].mxu0
  %v3284 = vadd.f32 %v2675, %v3283
  %v3285 = vpop.f32.mrb[0].mxu0
  %v3286 = vpop.f32.mrb[0].mxu0
  %v3287 = vadd.f32 %v2678, %v3286
  %v3288 = vpop.f32.mrb[0].mxu0
  %3289 = vmatprep.mubr.bf16.mxu0 %v2059
  %3290 = vmatmul.mubr.bf16.gmra.mrb[0].mxu0 %v2058
  %v3291 = vpop.f32.mrb[0].mxu0
  %v3292 = vadd.f32 %v2683, %v3291
  %v3293 = vpop.f32.mrb[0].mxu0
  %v3294 = vpop.f32.mrb[0].mxu0
  %v3295 = vadd.f32 %v2686, %v3294
  %v3296 = vpop.f32.mrb[0].mxu0
  %3297 = vmatprep.mubr.bf16.mxu0 %v2063
  %3298 = vmatmul.mubr.bf16.gmra.mrb[0].mxu0 %v2062
  %v3299 = vpop.f32.mrb[0].mxu0
  %v3300 = vadd.f32 %v2691, %v3299
  %v3301 = vpop.f32.mrb[0].mxu0
  %v3302 = vpop.f32.mrb[0].mxu0
  %v3303 = vadd.f32 %v2694, %v3302
  %v3304 = vpop.f32.mrb[0].mxu0
  %3305 = vmatprep.mubr.bf16.mxu0 %v2067
  %3306 = vmatmul.mubr.bf16.gmra.mrb[0].mxu0 %v2066
  %v3307 = vpop.f32.mrb[0].mxu0
  %v3308 = vadd.f32 %v2699, %v3307
  %v3309 = vpop.f32.mrb[0].mxu0
  %v3310 = vpop.f32.mrb[0].mxu0
  %v3311 = vadd.f32 %v2702, %v3310
  %v3312 = vpop.f32.mrb[0].mxu0
  %3313 = vmatprep.mubr.bf16.mxu0 %v2071
  %3314 = vmatmul.mubr.bf16.gmra.mrb[0].mxu0 %v2070
  %v3315 = vpop.f32.mrb[0].mxu0
  %v3316 = vadd.f32 %v2707, %v3315
  %v3317 = vpop.f32.mrb[0].mxu0
  %v3318 = vpop.f32.mrb[0].mxu0
  %v3319 = vadd.f32 %v2710, %v3318
  %v3320 = vpop.f32.mrb[0].mxu0
  %3321 = vmatprep.mubr.bf16.mxu0 %v2075
  %3322 = vmatmul.mubr.bf16.gmra.mrb[0].mxu0 %v2074
  %v3323 = vpop.f32.mrb[0].mxu0
  %v3324 = vadd.f32 %v2715, %v3323
  %v3325 = vpop.f32.mrb[0].mxu0
  %v3326 = vpop.f32.mrb[0].mxu0
  %v3327 = vadd.f32 %v2718, %v3326
  %v3328 = vpop.f32.mrb[0].mxu0
  %3329 = vmatprep.mubr.bf16.mxu0 %v2079
  %3330 = vmatmul.mubr.bf16.gmra.mrb[0].mxu0 %v2078
  %v3331 = vpop.f32.mrb[0].mxu0
  %v3332 = vadd.f32 %v2723, %v3331
  %v3333 = vpop.f32.mrb[0].mxu0
  %v3334 = vpop.f32.mrb[0].mxu0
  %v3335 = vadd.f32 %v2726, %v3334
  %v3336 = vpop.f32.mrb[0].mxu0
  %3337 = vmatprep.mubr.bf16.mxu0 %v2083
  %3338 = vmatmul.mubr.bf16.gmra.mrb[0].mxu0 %v2082
  %v3339 = vpop.f32.mrb[0].mxu0
  %v3340 = vadd.f32 %v2731, %v3339
  %v3341 = vpop.f32.mrb[0].mxu0
  %v3342 = vpop.f32.mrb[0].mxu0
  %v3343 = vadd.f32 %v2734, %v3342
  %v3344 = vpop.f32.mrb[0].mxu0
  %3345 = vmatprep.mubr.bf16.mxu0 %v2087
  %3346 = vmatmul.mubr.bf16.gmra.mrb[0].mxu0 %v2086
  %v3347 = vpop.f32.mrb[0].mxu0
  %v3348 = vadd.f32 %v2739, %v3347
  %v3349 = vpop.f32.mrb[0].mxu0
  %v3350 = vpop.f32.mrb[0].mxu0
  %v3351 = vadd.f32 %v2742, %v3350
  %v3352 = vpop.f32.mrb[0].mxu0
  %3353 = vmatprep.mubr.bf16.mxu0 %v2091
  %3354 = vmatmul.mubr.bf16.gmra.mrb[0].mxu0 %v2090
  %v3355 = vpop.f32.mrb[0].mxu0
  %v3356 = vadd.f32 %v2747, %v3355
  %v3357 = vpop.f32.mrb[0].mxu0
  %v3358 = vpop.f32.mrb[0].mxu0
  %v3359 = vadd.f32 %v2750, %v3358
  %v3360 = vpop.f32.mrb[0].mxu0
  %3361 = vmatprep.mubr.bf16.mxu0 %v2095
  %3362 = vmatmul.mubr.bf16.gmra.mrb[0].mxu0 %v2094
  %v3363 = vpop.f32.mrb[0].mxu0
  %v3364 = vadd.f32 %v2755, %v3363
  %v3365 = vpop.f32.mrb[0].mxu0
  %v3366 = vpop.f32.mrb[0].mxu0
  %v3367 = vadd.f32 %v2758, %v3366
  %v3368 = vpop.f32.mrb[0].mxu0
  %3369 = vmatprep.mubr.bf16.mxu0 %v2099
  %3370 = vmatmul.mubr.bf16.gmra.mrb[0].mxu0 %v2098
  %v3371 = vpop.f32.mrb[0].mxu0
  %v3372 = vadd.f32 %v2763, %v3371
  %v3373 = vpop.f32.mrb[0].mxu0
  %v3374 = vpop.f32.mrb[0].mxu0
  %v3375 = vadd.f32 %v2766, %v3374
  %v3376 = vpop.f32.mrb[0].mxu0
  %3377 = vmatprep.mubr.bf16.mxu0 %v2103
  %3378 = vmatmul.mubr.bf16.gmra.mrb[0].mxu0 %v2102
  %v3379 = vpop.f32.mrb[0].mxu0
  %v3380 = vadd.f32 %v2771, %v3379
  %v3381 = vpop.f32.mrb[0].mxu0
  %v3382 = vpop.f32.mrb[0].mxu0
  %v3383 = vadd.f32 %v2774, %v3382
  %v3384 = vpop.f32.mrb[0].mxu0
  %3385 = vmatprep.mubr.bf16.mxu0 %v2107
  %3386 = vmatmul.mubr.bf16.gmra.mrb[0].mxu0 %v2106
  %v3387 = vpop.f32.mrb[0].mxu0
  %v3388 = vadd.f32 %v2779, %v3387
  %v3389 = vpop.f32.mrb[0].mxu0
  %v3390 = vpop.f32.mrb[0].mxu0
  %v3391 = vadd.f32 %v2782, %v3390
  %v3392 = vpop.f32.mrb[0].mxu0
  %3393 = vmatprep.mubr.bf16.mxu0 %v2111
  %3394 = vmatmul.mubr.bf16.gmra.mrb[0].mxu0 %v2110
  %v3395 = vpop.f32.mrb[0].mxu0
  %v3396 = vadd.f32 %v2787, %v3395
  %v3397 = vpop.f32.mrb[0].mxu0
  %v3398 = vpop.f32.mrb[0].mxu0
  %v3399 = vadd.f32 %v2790, %v3398
  %v3400 = vpop.f32.mrb[0].mxu0
  %3401 = vmatprep.mubr.bf16.mxu0 %v2115
  %3402 = vmatmul.mubr.bf16.gmra.mrb[0].mxu0 %v2114
  %v3403 = vpop.f32.mrb[0].mxu0
  %v3404 = vadd.f32 %v2795, %v3403
  %v3405 = vpop.f32.mrb[0].mxu0
  %v3406 = vpop.f32.mrb[0].mxu0
  %v3407 = vadd.f32 %v2798, %v3406
  %v3408 = vpop.f32.mrb[0].mxu0
  %3409 = vmatprep.mubr.bf16.mxu0 %v2119
  %3410 = vmatmul.mubr.bf16.gmra.mrb[0].mxu0 %v2118
  %v3411 = vpop.f32.mrb[0].mxu0
  %v3412 = vadd.f32 %v2803, %v3411
  %v3413 = vpop.f32.mrb[0].mxu0
  %v3414 = vpop.f32.mrb[0].mxu0
  %v3415 = vadd.f32 %v2806, %v3414
  %v3416 = vpop.f32.mrb[0].mxu0
  %3417 = vmatprep.mubr.bf16.mxu0 %v2123
  %3418 = vmatmul.mubr.bf16.gmra.mrb[0].mxu0 %v2122
  %v3419 = vpop.f32.mrb[0].mxu0
  %v3420 = vadd.f32 %v2811, %v3419
  %v3421 = vpop.f32.mrb[0].mxu0
  %v3422 = vpop.f32.mrb[0].mxu0
  %v3423 = vadd.f32 %v2814, %v3422
  %v3424 = vpop.f32.mrb[0].mxu0
  %3425 = vmatprep.mubr.bf16.mxu0 %v2127
  %3426 = vmatmul.mubr.bf16.gmra.mrb[0].mxu0 %v2126
  %v3427 = vpop.f32.mrb[0].mxu0
  %v3428 = vadd.f32 %v2819, %v3427
  %v3429 = vpop.f32.mrb[0].mxu0
  %v3430 = vpop.f32.mrb[0].mxu0
  %v3431 = vadd.f32 %v2822, %v3430
  %v3432 = vpop.f32.mrb[0].mxu0
  %3433 = vmatprep.mubr.bf16.mxu0 %v2131
  %3434 = vmatmul.mubr.bf16.gmra.mrb[0].mxu0 %v2130
  %v3435 = vpop.f32.mrb[0].mxu0
  %v3436 = vadd.f32 %v2827, %v3435
  %v3437 = vpop.f32.mrb[0].mxu0
  %v3438 = vpop.f32.mrb[0].mxu0
  %v3439 = vadd.f32 %v2830, %v3438
  %v3440 = vpop.f32.mrb[0].mxu0
  %3441 = vmatprep.mubr.bf16.mxu0 %v2135
  %3442 = vmatmul.mubr.bf16.gmra.mrb[0].mxu0 %v2134
  %v3443 = vpop.f32.mrb[0].mxu0
  %v3444 = vadd.f32 %v2835, %v3443
  %v3445 = vpop.f32.mrb[0].mxu0
  %v3446 = vpop.f32.mrb[0].mxu0
  %v3447 = vadd.f32 %v2838, %v3446
  %v3448 = vpop.f32.mrb[0].mxu0
  %3449 = vmatprep.mubr.bf16.mxu0 %v2139
  %3450 = vmatmul.mubr.bf16.gmra.mrb[0].mxu0 %v2138
  %v3451 = vpop.f32.mrb[0].mxu0
  %v3452 = vadd.f32 %v2843, %v3451
  %v3453 = vpop.f32.mrb[0].mxu0
  %v3454 = vpop.f32.mrb[0].mxu0
  %v3455 = vadd.f32 %v2846, %v3454
  %v3456 = vpop.f32.mrb[0].mxu0
  %3457 = vmatprep.mubr.bf16.mxu0 %v2143
  %3458 = vmatmul.mubr.bf16.gmra.mrb[0].mxu0 %v2142
  %v3459 = vpop.f32.mrb[0].mxu0
  %v3460 = vadd.f32 %v2851, %v3459
  %v3461 = vpop.f32.mrb[0].mxu0
  %v3462 = vpop.f32.mrb[0].mxu0
  %v3463 = vadd.f32 %v2854, %v3462
  %v3464 = vpop.f32.mrb[0].mxu0
  %3465 = vmatprep.mubr.bf16.mxu0 %v2147
  %3466 = vmatmul.mubr.bf16.gmra.mrb[0].mxu0 %v2146
  %v3467 = vpop.f32.mrb[0].mxu0
  %v3468 = vadd.f32 %v2859, %v3467
  %v3469 = vpop.f32.mrb[0].mxu0
  %v3470 = vpop.f32.mrb[0].mxu0
  %v3471 = vadd.f32 %v2862, %v3470
  %v3472 = vpop.f32.mrb[0].mxu0
  %3473 = vmatprep.mubr.bf16.mxu0 %v2151
  %3474 = vmatmul.mubr.bf16.gmra.mrb[0].mxu0 %v2150
  %v3475 = vpop.f32.mrb[0].mxu0
  %v3476 = vadd.f32 %v2867, %v3475
  %v3477 = vpop.f32.mrb[0].mxu0
  %v3478 = vpop.f32.mrb[0].mxu0
  %v3479 = vadd.f32 %v2870, %v3478
  %v3480 = vpop.f32.mrb[0].mxu0
  %3481 = vmatprep.mubr.bf16.mxu0 %v2155
  %3482 = vmatmul.mubr.bf16.gmra.mrb[0].mxu0 %v2154
  %v3483 = vpop.f32.mrb[0].mxu0
  %v3484 = vadd.f32 %v2875, %v3483
  %v3485 = vpop.f32.mrb[0].mxu0
  %v3486 = vpop.f32.mrb[0].mxu0
  %v3487 = vadd.f32 %v2878, %v3486
  %v3488 = vpop.f32.mrb[0].mxu0
  %3489 = vmatprep.mubr.bf16.mxu0 %v2159
  %3490 = vmatmul.mubr.bf16.gmra.mrb[0].mxu0 %v2158
  %v3491 = vpop.f32.mrb[0].mxu0
  %v3492 = vadd.f32 %v2883, %v3491
  %v3493 = vpop.f32.mrb[0].mxu0
  %v3494 = vpop.f32.mrb[0].mxu0
  %v3495 = vadd.f32 %v2886, %v3494
  %v3496 = vpop.f32.mrb[0].mxu0
  %3497 = vmatprep.mubr.bf16.mxu0 %v2163
  %3498 = vmatmul.mubr.bf16.gmra.mrb[0].mxu0 %v2162
  %v3499 = vpop.f32.mrb[0].mxu0
  %v3500 = vadd.f32 %v2891, %v3499
  %v3501 = vpop.f32.mrb[0].mxu0
  %v3502 = vpop.f32.mrb[0].mxu0
  %v3503 = vadd.f32 %v2894, %v3502
  %v3504 = vpop.f32.mrb[0].mxu0
  %3505 = vmatprep.mubr.bf16.mxu0 %v2167
  %3506 = vmatmul.mubr.bf16.gmra.mrb[0].mxu0 %v2166
  %v3507 = vpop.f32.mrb[0].mxu0
  %v3508 = vadd.f32 %v2899, %v3507
  %v3509 = vpop.f32.mrb[0].mxu0
  %v3510 = vpop.f32.mrb[0].mxu0
  %v3511 = vadd.f32 %v2902, %v3510
  %v3512 = vpop.f32.mrb[0].mxu0
  %3513 = vmatprep.mubr.bf16.mxu0 %v2171
  %3514 = vmatmul.mubr.bf16.gmra.mrb[0].mxu0 %v2170
  %v3515 = vpop.f32.mrb[0].mxu0
  %v3516 = vadd.f32 %v2907, %v3515
  %v3517 = vpop.f32.mrb[0].mxu0
  %v3518 = vpop.f32.mrb[0].mxu0
  %v3519 = vadd.f32 %v2910, %v3518
  %v3520 = vpop.f32.mrb[0].mxu0
  %3521 = vmatprep.mubr.bf16.mxu0 %v2175
  %3522 = vmatmul.mubr.bf16.gmra.mrb[0].mxu0 %v2174
  %v3523 = vpop.f32.mrb[0].mxu0
  %v3524 = vadd.f32 %v2915, %v3523
  %v3525 = vpop.f32.mrb[0].mxu0
  %v3526 = vpop.f32.mrb[0].mxu0
  %v3527 = vadd.f32 %v2918, %v3526
  %v3528 = vpop.f32.mrb[0].mxu0
  %3529 = vmatprep.mubr.bf16.mxu0 %v2179
  %3530 = vmatmul.mubr.bf16.gmra.mrb[0].mxu0 %v2178
  %v3531 = vpop.f32.mrb[0].mxu0
  %v3532 = vadd.f32 %v2923, %v3531
  %v3533 = vpop.f32.mrb[0].mxu0
  %v3534 = vpop.f32.mrb[0].mxu0
  %v3535 = vadd.f32 %v2926, %v3534
  %v3536 = vpop.f32.mrb[0].mxu0
  %3537 = vmatprep.mubr.bf16.mxu0 %v2183
  %3538 = vmatmul.mubr.bf16.gmra.mrb[0].mxu0 %v2182
  %v3539 = vpop.f32.mrb[0].mxu0
  %v3540 = vadd.f32 %v2931, %v3539
  %v3541 = vpop.f32.mrb[0].mxu0
  %v3542 = vpop.f32.mrb[0].mxu0
  %v3543 = vadd.f32 %v2934, %v3542
  %v3544 = vpop.f32.mrb[0].mxu0
  %3545 = vmatprep.mubr.bf16.mxu0 %v2187
  %3546 = vmatmul.mubr.bf16.gmra.mrb[0].mxu0 %v2186
  %v3547 = vpop.f32.mrb[0].mxu0
  %v3548 = vadd.f32 %v2939, %v3547
  %v3549 = vpop.f32.mrb[0].mxu0
  %v3550 = vpop.f32.mrb[0].mxu0
  %v3551 = vadd.f32 %v2942, %v3550
  %v3552 = vpop.f32.mrb[0].mxu0
  %3553 = vmatprep.mubr.bf16.mxu0 %v2191
  %3554 = vmatmul.mubr.bf16.gmra.mrb[0].mxu0 %v2190
  %v3555 = vpop.f32.mrb[0].mxu0
  %v3556 = vadd.f32 %v2947, %v3555
  %v3557 = vpop.f32.mrb[0].mxu0
  %v3558 = vpop.f32.mrb[0].mxu0
  %v3559 = vadd.f32 %v2950, %v3558
  %v3560 = vpop.f32.mrb[0].mxu0
  %3561 = vmatprep.mubr.bf16.mxu0 %v2195
  %3562 = vmatmul.mubr.bf16.gmra.mrb[0].mxu0 %v2194
  %v3563 = vpop.f32.mrb[0].mxu0
  %v3564 = vadd.f32 %v2955, %v3563
  %v3565 = vpop.f32.mrb[0].mxu0
  %v3566 = vpop.f32.mrb[0].mxu0
  %v3567 = vadd.f32 %v2958, %v3566
  %v3568 = vpop.f32.mrb[0].mxu0
  %3569 = vmatprep.mubr.bf16.mxu0 %v2199
  %3570 = vmatmul.mubr.bf16.gmra.mrb[0].mxu0 %v2198
  %v3571 = vpop.f32.mrb[0].mxu0
  %v3572 = vadd.f32 %v2963, %v3571
  %v3573 = vpop.f32.mrb[0].mxu0
  %v3574 = vpop.f32.mrb[0].mxu0
  %v3575 = vadd.f32 %v2966, %v3574
  %v3576 = vpop.f32.mrb[0].mxu0
  %3577 = vmatprep.mubr.bf16.mxu0 %v2203
  %3578 = vmatmul.mubr.bf16.gmra.mrb[0].mxu0 %v2202
  %v3579 = vpop.f32.mrb[0].mxu0
  %v3580 = vadd.f32 %v2971, %v3579
  %v3581 = vpop.f32.mrb[0].mxu0
  %v3582 = vpop.f32.mrb[0].mxu0
  %v3583 = vadd.f32 %v2974, %v3582
  %v3584 = vpop.f32.mrb[0].mxu0
  %3585 = vmatprep.mubr.bf16.mxu0 %v2207
  %3586 = vmatmul.mubr.bf16.gmra.mrb[0].mxu0 %v2206
  %v3587 = vpop.f32.mrb[0].mxu0
  %v3588 = vadd.f32 %v2979, %v3587
  %v3589 = vpop.f32.mrb[0].mxu0
  %v3590 = vpop.f32.mrb[0].mxu0
  %v3591 = vadd.f32 %v2982, %v3590
  %v3592 = vpop.f32.mrb[0].mxu0
  %3593 = vmatprep.mubr.bf16.mxu0 %v2211
  %3594 = vmatmul.mubr.bf16.gmra.mrb[0].mxu0 %v2210
  %v3595 = vpop.f32.mrb[0].mxu0
  %v3596 = vadd.f32 %v2987, %v3595
  %v3597 = vpop.f32.mrb[0].mxu0
  %v3598 = vpop.f32.mrb[0].mxu0
  %v3599 = vadd.f32 %v2990, %v3598
  %v3600 = vpop.f32.mrb[0].mxu0
  %3601 = vmatprep.mubr.bf16.mxu0 %v2215
  %3602 = vmatmul.mubr.bf16.gmra.mrb[0].mxu0 %v2214
  %v3603 = vpop.f32.mrb[0].mxu0
  %v3604 = vadd.f32 %v2995, %v3603
  %v3605 = vpop.f32.mrb[0].mxu0
  %v3606 = vpop.f32.mrb[0].mxu0
  %v3607 = vadd.f32 %v2998, %v3606
  %v3608 = vpop.f32.mrb[0].mxu0
  %3609 = vmatprep.mubr.bf16.mxu0 %v2219
  %3610 = vmatmul.mubr.bf16.gmra.mrb[0].mxu0 %v2218
  %v3611 = vpop.f32.mrb[0].mxu0
  %v3612 = vadd.f32 %v3003, %v3611
  %v3613 = vpop.f32.mrb[0].mxu0
  %v3614 = vpop.f32.mrb[0].mxu0
  %v3615 = vadd.f32 %v3006, %v3614
  %v3616 = vpop.f32.mrb[0].mxu0
  %3617 = vmatprep.mubr.bf16.mxu0 %v2223
  %3618 = vmatmul.mubr.bf16.gmra.mrb[0].mxu0 %v2222
  %v3619 = vpop.f32.mrb[0].mxu0
  %v3620 = vadd.f32 %v3011, %v3619
  %v3621 = vpop.f32.mrb[0].mxu0
  %v3622 = vpop.f32.mrb[0].mxu0
  %v3623 = vadd.f32 %v3014, %v3622
  %v3624 = vpop.f32.mrb[0].mxu0
  %3625 = vmatprep.mubr.bf16.mxu0 %v2227
  %3626 = vmatmul.mubr.bf16.gmra.mrb[0].mxu0 %v2226
  %v3627 = vpop.f32.mrb[0].mxu0
  %v3628 = vadd.f32 %v3019, %v3627
  %v3629 = vpop.f32.mrb[0].mxu0
  %v3630 = vpop.f32.mrb[0].mxu0
  %v3631 = vadd.f32 %v3022, %v3630
  %v3632 = vpop.f32.mrb[0].mxu0
  %3633 = vmatprep.mubr.bf16.mxu0 %v2231
  %3634 = vmatmul.mubr.bf16.gmra.mrb[0].mxu0 %v2230
  %v3635 = vpop.f32.mrb[0].mxu0
  %v3636 = vadd.f32 %v3027, %v3635
  %v3637 = vpop.f32.mrb[0].mxu0
  %v3638 = vpop.f32.mrb[0].mxu0
  %v3639 = vadd.f32 %v3030, %v3638
  %v3640 = vpop.f32.mrb[0].mxu0
  %3641 = vmatprep.mubr.bf16.mxu0 %v2235
  %3642 = vmatmul.mubr.bf16.gmra.mrb[0].mxu0 %v2234
  %v3643 = vpop.f32.mrb[0].mxu0
  %v3644 = vadd.f32 %v3035, %v3643
  %v3645 = vpop.f32.mrb[0].mxu0
  %v3646 = vpop.f32.mrb[0].mxu0
  %v3647 = vadd.f32 %v3038, %v3646
  %v3648 = vpop.f32.mrb[0].mxu0
  %3649 = vmatprep.mubr.bf16.mxu0 %v2239
  %3650 = vmatmul.mubr.bf16.gmra.mrb[0].mxu0 %v2238
  %v3651 = vpop.f32.mrb[0].mxu0
  %v3652 = vadd.f32 %v3043, %v3651
  %v3653 = vpop.f32.mrb[0].mxu0
  %v3654 = vpop.f32.mrb[0].mxu0
  %v3655 = vadd.f32 %v3046, %v3654
  %v3656 = vpop.f32.mrb[0].mxu0
  %3657 = vmatprep.mubr.bf16.mxu0 %v2243
  %3658 = vmatmul.mubr.bf16.gmra.mrb[0].mxu0 %v2242
  %v3659 = vpop.f32.mrb[0].mxu0
  %v3660 = vadd.f32 %v3051, %v3659
  %v3661 = vpop.f32.mrb[0].mxu0
  %v3662 = vpop.f32.mrb[0].mxu0
  %v3663 = vadd.f32 %v3054, %v3662
  %v3664 = vpop.f32.mrb[0].mxu0
  %3665 = vmatprep.mubr.bf16.mxu0 %v2247
  %3666 = vmatmul.mubr.bf16.gmra.mrb[0].mxu0 %v2246
  %v3667 = vpop.f32.mrb[0].mxu0
  %v3668 = vadd.f32 %v3059, %v3667
  %v3669 = vpop.f32.mrb[0].mxu0
  %v3670 = vpop.f32.mrb[0].mxu0
  %v3671 = vadd.f32 %v3062, %v3670
  %v3672 = vpop.f32.mrb[0].mxu0
  %3673 = vmatprep.mubr.bf16.mxu0 %v2251
  %3674 = vmatmul.mubr.bf16.gmra.mrb[0].mxu0 %v2250
  %v3675 = vpop.f32.mrb[0].mxu0
  %v3676 = vadd.f32 %v3067, %v3675
  %v3677 = vpop.f32.mrb[0].mxu0
  %v3678 = vpop.f32.mrb[0].mxu0
  %v3679 = vadd.f32 %v3070, %v3678
  %v3680 = vpop.f32.mrb[0].mxu0
  %3681 = vmatprep.mubr.bf16.mxu0 %v2255
  %3682 = vmatmul.mubr.bf16.gmra.mrb[0].mxu0 %v2254
  %v3683 = vpop.f32.mrb[0].mxu0
  %v3684 = vadd.f32 %v3075, %v3683
  %v3685 = vpop.f32.mrb[0].mxu0
  %v3686 = vpop.f32.mrb[0].mxu0
  %v3687 = vadd.f32 %v3078, %v3686
  %v3688 = vpop.f32.mrb[0].mxu0
  %3689 = vmatprep.mubr.bf16.mxu0 %v2259
  %3690 = vmatmul.mubr.bf16.gmra.mrb[0].mxu0 %v2258
  %v3691 = vpop.f32.mrb[0].mxu0
  %v3692 = vadd.f32 %v3083, %v3691
  %v3693 = vpop.f32.mrb[0].mxu0
  %v3694 = vpop.f32.mrb[0].mxu0
  %v3695 = vadd.f32 %v3086, %v3694
  %v3696 = vpop.f32.mrb[0].mxu0
  %3697 = vmatprep.mubr.bf16.mxu0 %v2263
  %3698 = vmatmul.mubr.bf16.gmra.mrb[0].mxu0 %v2262
  %v3699 = vpop.f32.mrb[0].mxu0
  %v3700 = vadd.f32 %v3091, %v3699
  %v3701 = vpop.f32.mrb[0].mxu0
  %v3702 = vpop.f32.mrb[0].mxu0
  %v3703 = vadd.f32 %v3094, %v3702
  %v3704 = vpop.f32.mrb[0].mxu0
  %3705 = vmatprep.mubr.bf16.mxu0 %v2267
  %3706 = vmatmul.mubr.bf16.gmra.mrb[0].mxu0 %v2266
  %v3707 = vpop.f32.mrb[0].mxu0
  %v3708 = vadd.f32 %v3099, %v3707
  %v3709 = vpop.f32.mrb[0].mxu0
  %v3710 = vpop.f32.mrb[0].mxu0
  %v3711 = vadd.f32 %v3102, %v3710
  %v3712 = vpop.f32.mrb[0].mxu0
  %3713 = vmatprep.mubr.bf16.mxu0 %v2271
  %3714 = vmatmul.mubr.bf16.gmra.mrb[0].mxu0 %v2270
  %v3715 = vpop.f32.mrb[0].mxu0
  %v3716 = vadd.f32 %v3107, %v3715
  %v3717 = vpop.f32.mrb[0].mxu0
  %v3718 = vpop.f32.mrb[0].mxu0
  %v3719 = vadd.f32 %v3110, %v3718
  %v3720 = vpop.f32.mrb[0].mxu0
  %3721 = vmatprep.mubr.bf16.mxu0 %v2275
  %3722 = vmatmul.mubr.bf16.gmra.mrb[0].mxu0 %v2274
  %v3723 = vpop.f32.mrb[0].mxu0
  %v3724 = vadd.f32 %v3115, %v3723
  %v3725 = vpop.f32.mrb[0].mxu0
  %v3726 = vpop.f32.mrb[0].mxu0
  %v3727 = vadd.f32 %v3118, %v3726
  %v3728 = vpop.f32.mrb[0].mxu0
  %3729 = vmatprep.mubr.bf16.mxu0 %v2279
  %3730 = vmatmul.mubr.bf16.gmra.mrb[0].mxu0 %v2278
  %v3731 = vpop.f32.mrb[0].mxu0
  %v3732 = vadd.f32 %v3123, %v3731
  %v3733 = vpop.f32.mrb[0].mxu0
  %v3734 = vpop.f32.mrb[0].mxu0
  %v3735 = vadd.f32 %v3126, %v3734
  %v3736 = vpop.f32.mrb[0].mxu0
  %3737 = vmatprep.mubr.bf16.mxu0 %v2283
  %3738 = vmatmul.mubr.bf16.gmra.mrb[0].mxu0 %v2282
  %v3739 = vpop.f32.mrb[0].mxu0
  %v3740 = vadd.f32 %v3131, %v3739
  %v3741 = vpop.f32.mrb[0].mxu0
  %v3742 = vpop.f32.mrb[0].mxu0
  %v3743 = vadd.f32 %v3134, %v3742
  %v3744 = vpop.f32.mrb[0].mxu0
  %3745 = vmatprep.mubr.bf16.mxu0 %v2287
  %3746 = vmatmul.mubr.bf16.gmra.mrb[0].mxu0 %v2286
  %v3747 = vpop.f32.mrb[0].mxu0
  %v3748 = vadd.f32 %v3139, %v3747
  %v3749 = vpop.f32.mrb[0].mxu0
  %v3750 = vpop.f32.mrb[0].mxu0
  %v3751 = vadd.f32 %v3142, %v3750
  %v3752 = vpop.f32.mrb[0].mxu0
  %3753 = vmatprep.mubr.bf16.mxu0 %v2291
  %3754 = vmatmul.mubr.bf16.gmra.mrb[0].mxu0 %v2290
  %v3755 = vpop.f32.mrb[0].mxu0
  %v3756 = vadd.f32 %v3147, %v3755
  %v3757 = vpop.f32.mrb[0].mxu0
  %v3758 = vpop.f32.mrb[0].mxu0
  %v3759 = vadd.f32 %v3150, %v3758
  %v3760 = vpop.f32.mrb[0].mxu0
  %3761 = vmatprep.mubr.bf16.mxu0 %v2295
  %3762 = vmatmul.mubr.bf16.gmra.mrb[0].mxu0 %v2294
  %v3763 = vpop.f32.mrb[0].mxu0
  %v3764 = vadd.f32 %v3155, %v3763
  %v3765 = vpop.f32.mrb[0].mxu0
  %v3766 = vpop.f32.mrb[0].mxu0
  %v3767 = vadd.f32 %v3158, %v3766
  %v3768 = vpop.f32.mrb[0].mxu0
  %3769 = vmatprep.mubr.bf16.mxu0 %v2299
  %3770 = vmatmul.mubr.bf16.gmra.mrb[0].mxu0 %v2298
  %v3771 = vpop.f32.mrb[0].mxu0
  %v3772 = vadd.f32 %v3163, %v3771
  %v3773 = vpop.f32.mrb[0].mxu0
  %v3774 = vpop.f32.mrb[0].mxu0
  %v3775 = vadd.f32 %v3166, %v3774
  %v3776 = vpop.f32.mrb[0].mxu0
  %3777 = vmatprep.mubr.bf16.mxu0 %v2303
  %3778 = vmatmul.mubr.bf16.gmra.mrb[0].mxu0 %v2302
  %v3779 = vpop.f32.mrb[0].mxu0
  %v3780 = vadd.f32 %v3171, %v3779
  %v3781 = vpop.f32.mrb[0].mxu0
  %v3782 = vpop.f32.mrb[0].mxu0
  %v3783 = vadd.f32 %v3174, %v3782
  %v3784 = vpop.f32.mrb[0].mxu0
  %3785 = vmatprep.mubr.bf16.mxu0 %v2307
  %3786 = vmatmul.mubr.bf16.gmra.mrb[0].mxu0 %v2306
  %v3787 = vpop.f32.mrb[0].mxu0
  %v3788 = vadd.f32 %v3179, %v3787
  %v3789 = vpop.f32.mrb[0].mxu0
  %v3790 = vpop.f32.mrb[0].mxu0
  %v3791 = vadd.f32 %v3182, %v3790
  %v3792 = vpop.f32.mrb[0].mxu0
  %3793 = vmatprep.mubr.bf16.mxu0 %v2311
  %3794 = vmatmul.mubr.bf16.gmra.mrb[0].mxu0 %v2310
  %v3795 = vpop.f32.mrb[0].mxu0
  %v3796 = vadd.f32 %v3187, %v3795
  %v3797 = vpop.f32.mrb[0].mxu0
  %v3798 = vpop.f32.mrb[0].mxu0
  %v3799 = vadd.f32 %v3190, %v3798
  %v3800 = vpop.f32.mrb[0].mxu0
  %3801 = vmatprep.mubr.bf16.mxu0 %v2315
  %3802 = vmatmul.mubr.bf16.gmra.mrb[0].mxu0 %v2314
  %v3803 = vpop.f32.mrb[0].mxu0
  %v3804 = vadd.f32 %v3195, %v3803
  %v3805 = vpop.f32.mrb[0].mxu0
  %v3806 = vpop.f32.mrb[0].mxu0
  %v3807 = vadd.f32 %v3198, %v3806
  %v3808 = vpop.f32.mrb[0].mxu0
  %3809 = vmatprep.mubr.bf16.mxu0 %v2319
  %3810 = vmatmul.mubr.bf16.gmra.mrb[0].mxu0 %v2318
  %v3811 = vpop.f32.mrb[0].mxu0
  %v3812 = vadd.f32 %v3203, %v3811
  %v3813 = vpop.f32.mrb[0].mxu0
  %v3814 = vpop.f32.mrb[0].mxu0
  %v3815 = vadd.f32 %v3206, %v3814
  %v3816 = vpop.f32.mrb[0].mxu0
  %3817 = vmatprep.mubr.bf16.mxu0 %v2323
  %3818 = vmatmul.mubr.bf16.gmra.mrb[0].mxu0 %v2322
  %v3819 = vpop.f32.mrb[0].mxu0
  %v3820 = vadd.f32 %v3211, %v3819
  %v3821 = vpop.f32.mrb[0].mxu0
  %v3822 = vpop.f32.mrb[0].mxu0
  %v3823 = vadd.f32 %v3214, %v3822
  %v3824 = vpop.f32.mrb[0].mxu0
  %3825 = vmatprep.mubr.bf16.mxu0 %v2327
  %3826 = vmatmul.mubr.bf16.gmra.mrb[0].mxu0 %v2326
  %v3827 = vpop.f32.mrb[0].mxu0
  %v3828 = vadd.f32 %v3219, %v3827
  %v3829 = vpop.f32.mrb[0].mxu0
  %v3830 = vpop.f32.mrb[0].mxu0
  %v3831 = vadd.f32 %v3222, %v3830
  %v3832 = vpop.f32.mrb[0].mxu0
  %3833 = vdwg.mxu0
  %v3834 = vpack.c.bf16 %v3263, %v3260
  %v3835 = vpack.c.bf16 %v3271, %v3268
  %v3836 = vpack.c.bf16 %v3279, %v3276
  %v3837 = vpack.c.bf16 %v3287, %v3284
  %v3838 = vpack.c.bf16 %v3295, %v3292
  %v3839 = vpack.c.bf16 %v3303, %v3300
  %v3840 = vpack.c.bf16 %v3311, %v3308
  %v3841 = vpack.c.bf16 %v3319, %v3316
  %v3842 = vld [vmem:[%s4] sm:$0xf]
  %v3843 = vld [vmem:[%s4 + $0x4] sm:$0xf]
  %v3844 = vld [vmem:[%s4 + $0x8] sm:$0xf]
  %v3845 = vld [vmem:[%s4 + $0xc] sm:$0xf]
  %v3846 = vld [vmem:[%s4 + $0x10] sm:$0xf]
  %v3847 = vld [vmem:[%s4 + $0x14] sm:$0xf]
  %v3848 = vld [vmem:[%s4 + $0x18] sm:$0xf]
  %v3849 = vld [vmem:[%s4 + $0x1c] sm:$0xf]
  %v3850 = vld [vmem:[%s4 + $0x20] sm:$0xf]
  %v3851 = vld [vmem:[%s4 + $0x24] sm:$0xf]
  %v3852 = vld [vmem:[%s4 + $0x28] sm:$0xf]
  %v3853 = vld [vmem:[%s4 + $0x2c] sm:$0xf]
  %v3854 = vld [vmem:[%s4 + $0x30] sm:$0xf]
  %v3855 = vld [vmem:[%s4 + $0x34] sm:$0xf]
  %v3856 = vld [vmem:[%s4 + $0x38] sm:$0xf]
  %v3857 = vld [vmem:[%s4 + $0x3c] sm:$0xf]
  %v3858 = vpack.c.bf16 %v3327, %v3324
  %v3859 = vpack.c.bf16 %v3335, %v3332
  %v3860 = vpack.c.bf16 %v3343, %v3340
  %v3861 = vpack.c.bf16 %v3351, %v3348
  %v3862 = vpack.c.bf16 %v3359, %v3356
  %v3863 = vpack.c.bf16 %v3367, %v3364
  %v3864 = vpack.c.bf16 %v3375, %v3372
  %v3865 = vpack.c.bf16 %v3383, %v3380
  %v3866 = vld [vmem:[%s4 + $0x40] sm:$0xf]
  %v3867 = vld [vmem:[%s4 + $0x44] sm:$0xf]
  %v3868 = vld [vmem:[%s4 + $0x48] sm:$0xf]
  %v3869 = vld [vmem:[%s4 + $0x4c] sm:$0xf]
  %v3870 = vld [vmem:[%s4 + $0x50] sm:$0xf]
  %v3871 = vld [vmem:[%s4 + $0x54] sm:$0xf]
  %v3872 = vld [vmem:[%s4 + $0x58] sm:$0xf]
  %v3873 = vld [vmem:[%s4 + $0x5c] sm:$0xf]
  %v3874 = vld [vmem:[%s4 + $0x60] sm:$0xf]
  %v3875 = vld [vmem:[%s4 + $0x64] sm:$0xf]
  %v3876 = vld [vmem:[%s4 + $0x68] sm:$0xf]
  %v3877 = vld [vmem:[%s4 + $0x6c] sm:$0xf]
  %v3878 = vld [vmem:[%s4 + $0x70] sm:$0xf]
  %v3879 = vld [vmem:[%s4 + $0x74] sm:$0xf]
  %v3880 = vld [vmem:[%s4 + $0x78] sm:$0xf]
  %v3881 = vld [vmem:[%s4 + $0x7c] sm:$0xf]
  %v3898 = vunpack.c.l.b16 %v3866
  %v3899 = vunpack.c.l.b16 %v3867
  %v3900 = vunpack.c.l.b16 %v3868
  %v3901 = vunpack.c.l.b16 %v3869
  %v3902 = vunpack.c.l.b16 %v3870
  %v3903 = vunpack.c.l.b16 %v3871
  %v3904 = vunpack.c.l.b16 %v3872
  %v3905 = vunpack.c.l.b16 %v3873
  %v3906 = vunpack.c.l.b16 %v3874
  %v3907 = vunpack.c.l.b16 %v3875
  %v3908 = vunpack.c.l.b16 %v3876
  %v3909 = vunpack.c.l.b16 %v3877
  %v3910 = vunpack.c.l.b16 %v3878
  %v3911 = vunpack.c.l.b16 %v3879
  %v3912 = vunpack.c.l.b16 %v3880
  %v3913 = vunpack.c.l.b16 %v3881
  %v3914 = vpack.c.b16 %v3899, %v3898
  %v3915 = vpack.c.b16 %v3901, %v3900
  %v3916 = vpack.c.b16 %v3903, %v3902
  %v3917 = vpack.c.b16 %v3905, %v3904
  %v3918 = vpack.c.b16 %v3907, %v3906
  %v3919 = vpack.c.b16 %v3909, %v3908
  %v3920 = vpack.c.b16 %v3911, %v3910
  %v3921 = vpack.c.b16 %v3913, %v3912
  %3930 = vmatprep.subr.bf16.mxu0 0
  %3931 = vmatpush1.bf16.msra.mxu0 %v3914
  %3932 = vmatprep.subr.bf16.mxu0 0
  %3933 = vmatpush1.bf16.msra.mxu0 %v3915
  %3934 = vmatprep.subr.bf16.mxu0 0
  %3935 = vmatpush1.bf16.msra.mxu0 %v3916
  %3936 = vmatprep.subr.bf16.mxu0 0
  %3937 = vmatpush1.bf16.msra.mxu0 %v3917
  %3938 = vmatprep.subr.bf16.mxu0 0
  %3939 = vmatpush1.bf16.msra.mxu0 %v3918
  %3940 = vmatprep.subr.bf16.mxu0 0
  %3941 = vmatpush1.bf16.msra.mxu0 %v3919
  %3942 = vmatprep.subr.bf16.mxu0 0
  %3943 = vmatpush1.bf16.msra.mxu0 %v3920
  %3944 = vmatprep.subr.bf16.mxu0 0
  %3945 = vmatpush1.bf16.msra.mxu0 %v3921
  %3946 = vmatprep.subr.bf16.mxu0 0
  %3947 = vmatpush1.bf16.msra.mxu0 0
  %3948 = vmatprep.subr.bf16.mxu0 0
  %3949 = vmatpush1.bf16.msra.mxu0 0
  %3950 = vmatprep.subr.bf16.mxu0 0
  %3951 = vmatpush1.bf16.msra.mxu0 0
  %3952 = vmatprep.subr.bf16.mxu0 0
  %3953 = vmatpush1.bf16.msra.mxu0 0
  %3954 = vmatprep.subr.bf16.mxu0 0
  %3955 = vmatpush1.bf16.msra.mxu0 0
  %3956 = vmatprep.subr.bf16.mxu0 0
  %3957 = vmatpush1.bf16.msra.mxu0 0
  %3958 = vmatprep.subr.bf16.mxu0 0
  %3959 = vmatpush1.bf16.msra.mxu0 0
  %3960 = vmatprep.subr.bf16.mxu0 0
  %3961 = vmatpush1.bf16.msra.mxu0 0
  %3962 = vmatprep.mubr.bf16.mxu0 0
  %3963 = vmatmul.mubr.bf16.gmra.mrb[0].mxu0 %v3858
  %v3964 = vpop.f32.mrb[0].mxu0
  %v3965 = vadd.f32 0.0, %v3964
  %v3966 = vpop.f32.mrb[0].mxu0
  %v3967 = vpop.f32.mrb[0].mxu0
  %v3968 = vadd.f32 0.0, %v3967
  %v3969 = vpop.f32.mrb[0].mxu0
  %3970 = vmatprep.mubr.bf16.mxu0 0
  %3971 = vmatmul.mubr.bf16.gmra.mrb[0].mxu0 %v3859
  %v3972 = vpop.f32.mrb[0].mxu0
  %v3973 = vadd.f32 0.0, %v3972
  %v3974 = vpop.f32.mrb[0].mxu0
  %v3975 = vpop.f32.mrb[0].mxu0
  %v3976 = vadd.f32 0.0, %v3975
  %v3977 = vpop.f32.mrb[0].mxu0
  %3978 = vmatprep.mubr.bf16.mxu0 0
  %3979 = vmatmul.mubr.bf16.gmra.mrb[0].mxu0 %v3860
  %v3980 = vpop.f32.mrb[0].mxu0
  %v3981 = vadd.f32 0.0, %v3980
  %v3982 = vpop.f32.mrb[0].mxu0
  %v3983 = vpop.f32.mrb[0].mxu0
  %v3984 = vadd.f32 0.0, %v3983
  %v3985 = vpop.f32.mrb[0].mxu0
  %3986 = vmatprep.mubr.bf16.mxu0 0
  %3987 = vmatmul.mubr.bf16.gmra.mrb[0].mxu0 %v3861
  %v3988 = vpop.f32.mrb[0].mxu0
  %v3989 = vadd.f32 0.0, %v3988
  %v3990 = vpop.f32.mrb[0].mxu0
  %v3991 = vpop.f32.mrb[0].mxu0
  %v3992 = vadd.f32 0.0, %v3991
  %v3993 = vpop.f32.mrb[0].mxu0
  %3994 = vmatprep.mubr.bf16.mxu0 0
  %3995 = vmatmul.mubr.bf16.gmra.mrb[0].mxu0 %v3862
  %v3996 = vpop.f32.mrb[0].mxu0
  %v3997 = vadd.f32 0.0, %v3996
  %v3998 = vpop.f32.mrb[0].mxu0
  %v3999 = vpop.f32.mrb[0].mxu0
  %v4000 = vadd.f32 0.0, %v3999
  %v4001 = vpop.f32.mrb[0].mxu0
  %4002 = vmatprep.mubr.bf16.mxu0 0
  %4003 = vmatmul.mubr.bf16.gmra.mrb[0].mxu0 %v3863
  %v4004 = vpop.f32.mrb[0].mxu0
  %v4005 = vadd.f32 0.0, %v4004
  %v4006 = vpop.f32.mrb[0].mxu0
  %v4007 = vpop.f32.mrb[0].mxu0
  %v4008 = vadd.f32 0.0, %v4007
  %v4009 = vpop.f32.mrb[0].mxu0
  %4010 = vmatprep.mubr.bf16.mxu0 0
  %4011 = vmatmul.mubr.bf16.gmra.mrb[0].mxu0 %v3864
  %v4012 = vpop.f32.mrb[0].mxu0
  %v4013 = vadd.f32 0.0, %v4012
  %v4014 = vpop.f32.mrb[0].mxu0
  %v4015 = vpop.f32.mrb[0].mxu0
  %v4016 = vadd.f32 0.0, %v4015
  %v4017 = vpop.f32.mrb[0].mxu0
  %4018 = vmatprep.mubr.bf16.mxu0 0
  %4019 = vmatmul.mubr.bf16.gmra.mrb[0].mxu0 %v3865
  %v4020 = vpop.f32.mrb[0].mxu0
  %v4021 = vadd.f32 0.0, %v4020
  %v4022 = vpop.f32.mrb[0].mxu0
  %v4023 = vpop.f32.mrb[0].mxu0
  %v4024 = vadd.f32 0.0, %v4023
  %v4025 = vpop.f32.mrb[0].mxu0
  %4026 = vdwg.mxu0
  %v4043 = vunpack.c.l.b16 %v3842
  %v4044 = vunpack.c.l.b16 %v3843
  %v4045 = vunpack.c.l.b16 %v3844
  %v4046 = vunpack.c.l.b16 %v3845
  %v4047 = vunpack.c.l.b16 %v3846
  %v4048 = vunpack.c.l.b16 %v3847
  %v4049 = vunpack.c.l.b16 %v3848
  %v4050 = vunpack.c.l.b16 %v3849
  %v4051 = vunpack.c.l.b16 %v3850
  %v4052 = vunpack.c.l.b16 %v3851
  %v4053 = vunpack.c.l.b16 %v3852
  %v4054 = vunpack.c.l.b16 %v3853
  %v4055 = vunpack.c.l.b16 %v3854
  %v4056 = vunpack.c.l.b16 %v3855
  %v4057 = vunpack.c.l.b16 %v3856
  %v4058 = vunpack.c.l.b16 %v3857
  %v4059 = vpack.c.b16 %v4044, %v4043
  %v4060 = vpack.c.b16 %v4046, %v4045
  %v4061 = vpack.c.b16 %v4048, %v4047
  %v4062 = vpack.c.b16 %v4050, %v4049
  %v4063 = vpack.c.b16 %v4052, %v4051
  %v4064 = vpack.c.b16 %v4054, %v4053
  %v4065 = vpack.c.b16 %v4056, %v4055
  %v4066 = vpack.c.b16 %v4058, %v4057
  %4075 = vmatprep.subr.bf16.mxu0 0
  %4076 = vmatpush1.bf16.msra.mxu0 %v4059
  %4077 = vmatprep.subr.bf16.mxu0 0
  %4078 = vmatpush1.bf16.msra.mxu0 %v4060
  %4079 = vmatprep.subr.bf16.mxu0 0
  %4080 = vmatpush1.bf16.msra.mxu0 %v4061
  %4081 = vmatprep.subr.bf16.mxu0 0
  %4082 = vmatpush1.bf16.msra.mxu0 %v4062
  %4083 = vmatprep.subr.bf16.mxu0 0
  %4084 = vmatpush1.bf16.msra.mxu0 %v4063
  %4085 = vmatprep.subr.bf16.mxu0 0
  %4086 = vmatpush1.bf16.msra.mxu0 %v4064
  %4087 = vmatprep.subr.bf16.mxu0 0
  %4088 = vmatpush1.bf16.msra.mxu0 %v4065
  %4089 = vmatprep.subr.bf16.mxu0 0
  %4090 = vmatpush1.bf16.msra.mxu0 %v4066
  %4091 = vmatprep.subr.bf16.mxu0 0
  %4092 = vmatpush1.bf16.msra.mxu0 0
  %4093 = vmatprep.subr.bf16.mxu0 0
  %4094 = vmatpush1.bf16.msra.mxu0 0
  %4095 = vmatprep.subr.bf16.mxu0 0
  %4096 = vmatpush1.bf16.msra.mxu0 0
  %4097 = vmatprep.subr.bf16.mxu0 0
  %4098 = vmatpush1.bf16.msra.mxu0 0
  %4099 = vmatprep.subr.bf16.mxu0 0
  %4100 = vmatpush1.bf16.msra.mxu0 0
  %4101 = vmatprep.subr.bf16.mxu0 0
  %4102 = vmatpush1.bf16.msra.mxu0 0
  %4103 = vmatprep.subr.bf16.mxu0 0
  %4104 = vmatpush1.bf16.msra.mxu0 0
  %4105 = vmatprep.subr.bf16.mxu0 0
  %4106 = vmatpush1.bf16.msra.mxu0 0
  %4107 = vmatprep.mubr.bf16.mxu0 0
  %4108 = vmatmul.mubr.bf16.gmra.mrb[0].mxu0 %v3834
  %v4109 = vpop.f32.mrb[0].mxu0
  %v4110 = vadd.f32 %v3965, %v4109
  %v4111 = vpop.f32.mrb[0].mxu0
  %v4112 = vpop.f32.mrb[0].mxu0
  %v4113 = vadd.f32 %v3968, %v4112
  %v4114 = vpop.f32.mrb[0].mxu0
  %4115 = vmatprep.mubr.bf16.mxu0 0
  %4116 = vmatmul.mubr.bf16.gmra.mrb[0].mxu0 %v3835
  %v4117 = vpop.f32.mrb[0].mxu0
  %v4118 = vadd.f32 %v3973, %v4117
  %v4119 = vpop.f32.mrb[0].mxu0
  %v4120 = vpop.f32.mrb[0].mxu0
  %v4121 = vadd.f32 %v3976, %v4120
  %v4122 = vpop.f32.mrb[0].mxu0
  %4123 = vmatprep.mubr.bf16.mxu0 0
  %4124 = vmatmul.mubr.bf16.gmra.mrb[0].mxu0 %v3836
  %v4125 = vpop.f32.mrb[0].mxu0
  %v4126 = vadd.f32 %v3981, %v4125
  %v4127 = vpop.f32.mrb[0].mxu0
  %v4128 = vpop.f32.mrb[0].mxu0
  %v4129 = vadd.f32 %v3984, %v4128
  %v4130 = vpop.f32.mrb[0].mxu0
  %4131 = vmatprep.mubr.bf16.mxu0 0
  %4132 = vmatmul.mubr.bf16.gmra.mrb[0].mxu0 %v3837
  %v4133 = vpop.f32.mrb[0].mxu0
  %v4134 = vadd.f32 %v3989, %v4133
  %v4135 = vpop.f32.mrb[0].mxu0
  %v4136 = vpop.f32.mrb[0].mxu0
  %v4137 = vadd.f32 %v3992, %v4136
  %v4138 = vpop.f32.mrb[0].mxu0
  %4139 = vmatprep.mubr.bf16.mxu0 0
  %4140 = vmatmul.mubr.bf16.gmra.mrb[0].mxu0 %v3838
  %v4141 = vpop.f32.mrb[0].mxu0
  %v4142 = vadd.f32 %v3997, %v4141
  %v4143 = vpop.f32.mrb[0].mxu0
  %v4144 = vpop.f32.mrb[0].mxu0
  %v4145 = vadd.f32 %v4000, %v4144
  %v4146 = vpop.f32.mrb[0].mxu0
  %4147 = vmatprep.mubr.bf16.mxu0 0
  %4148 = vmatmul.mubr.bf16.gmra.mrb[0].mxu0 %v3839
  %v4149 = vpop.f32.mrb[0].mxu0
  %v4150 = vadd.f32 %v4005, %v4149
  %v4151 = vpop.f32.mrb[0].mxu0
  %v4152 = vpop.f32.mrb[0].mxu0
  %v4153 = vadd.f32 %v4008, %v4152
  %v4154 = vpop.f32.mrb[0].mxu0
  %4155 = vmatprep.mubr.bf16.mxu0 0
  %4156 = vmatmul.mubr.bf16.gmra.mrb[0].mxu0 %v3840
  %v4157 = vpop.f32.mrb[0].mxu0
  %v4158 = vadd.f32 %v4013, %v4157
  %v4159 = vpop.f32.mrb[0].mxu0
  %v4160 = vpop.f32.mrb[0].mxu0
  %v4161 = vadd.f32 %v4016, %v4160
  %v4162 = vpop.f32.mrb[0].mxu0
  %4163 = vmatprep.mubr.bf16.mxu0 0
  %4164 = vmatmul.mubr.bf16.gmra.mrb[0].mxu0 %v3841
  %v4165 = vpop.f32.mrb[0].mxu0
  %v4166 = vadd.f32 %v4021, %v4165
  %v4167 = vpop.f32.mrb[0].mxu0
  %v4168 = vpop.f32.mrb[0].mxu0
  %v4169 = vadd.f32 %v4024, %v4168
  %v4170 = vpop.f32.mrb[0].mxu0
  %4171 = vdwg.mxu0
  %v4172 = vpack.c.bf16 %v3391, %v3388
  %v4173 = vpack.c.bf16 %v3399, %v3396
  %v4174 = vpack.c.bf16 %v3407, %v3404
  %v4175 = vpack.c.bf16 %v3415, %v3412
  %v4176 = vpack.c.bf16 %v3423, %v3420
  %v4177 = vpack.c.bf16 %v3431, %v3428
  %v4178 = vpack.c.bf16 %v3439, %v3436
  %v4179 = vpack.c.bf16 %v3447, %v3444
  %v4180 = vld [vmem:[%s4 + $0x80] sm:$0xf]
  %v4181 = vld [vmem:[%s4 + $0x84] sm:$0xf]
  %v4182 = vld [vmem:[%s4 + $0x88] sm:$0xf]
  %v4183 = vld [vmem:[%s4 + $0x8c] sm:$0xf]
  %v4184 = vld [vmem:[%s4 + $0x90] sm:$0xf]
  %v4185 = vld [vmem:[%s4 + $0x94] sm:$0xf]
  %v4186 = vld [vmem:[%s4 + $0x98] sm:$0xf]
  %v4187 = vld [vmem:[%s4 + $0x9c] sm:$0xf]
  %v4188 = vld [vmem:[%s4 + $0xa0] sm:$0xf]
  %v4189 = vld [vmem:[%s4 + $0xa4] sm:$0xf]
  %v4190 = vld [vmem:[%s4 + $0xa8] sm:$0xf]
  %v4191 = vld [vmem:[%s4 + $0xac] sm:$0xf]
  %v4192 = vld [vmem:[%s4 + $0xb0] sm:$0xf]
  %v4193 = vld [vmem:[%s4 + $0xb4] sm:$0xf]
  %v4194 = vld [vmem:[%s4 + $0xb8] sm:$0xf]
  %v4195 = vld [vmem:[%s4 + $0xbc] sm:$0xf]
  %v4212 = vunpack.c.l.b16 %v4180
  %v4213 = vunpack.c.l.b16 %v4181
  %v4214 = vunpack.c.l.b16 %v4182
  %v4215 = vunpack.c.l.b16 %v4183
  %v4216 = vunpack.c.l.b16 %v4184
  %v4217 = vunpack.c.l.b16 %v4185
  %v4218 = vunpack.c.l.b16 %v4186
  %v4219 = vunpack.c.l.b16 %v4187
  %v4220 = vunpack.c.l.b16 %v4188
  %v4221 = vunpack.c.l.b16 %v4189
  %v4222 = vunpack.c.l.b16 %v4190
  %v4223 = vunpack.c.l.b16 %v4191
  %v4224 = vunpack.c.l.b16 %v4192
  %v4225 = vunpack.c.l.b16 %v4193
  %v4226 = vunpack.c.l.b16 %v4194
  %v4227 = vunpack.c.l.b16 %v4195
  %v4228 = vpack.c.b16 %v4213, %v4212
  %v4229 = vpack.c.b16 %v4215, %v4214
  %v4230 = vpack.c.b16 %v4217, %v4216
  %v4231 = vpack.c.b16 %v4219, %v4218
  %v4232 = vpack.c.b16 %v4221, %v4220
  %v4233 = vpack.c.b16 %v4223, %v4222
  %v4234 = vpack.c.b16 %v4225, %v4224
  %v4235 = vpack.c.b16 %v4227, %v4226
  %4244 = vmatprep.subr.bf16.mxu0 0
  %4245 = vmatpush1.bf16.msra.mxu0 %v4228
  %4246 = vmatprep.subr.bf16.mxu0 0
  %4247 = vmatpush1.bf16.msra.mxu0 %v4229
  %4248 = vmatprep.subr.bf16.mxu0 0
  %4249 = vmatpush1.bf16.msra.mxu0 %v4230
  %4250 = vmatprep.subr.bf16.mxu0 0
  %4251 = vmatpush1.bf16.msra.mxu0 %v4231
  %4252 = vmatprep.subr.bf16.mxu0 0
  %4253 = vmatpush1.bf16.msra.mxu0 %v4232
  %4254 = vmatprep.subr.bf16.mxu0 0
  %4255 = vmatpush1.bf16.msra.mxu0 %v4233
  %4256 = vmatprep.subr.bf16.mxu0 0
  %4257 = vmatpush1.bf16.msra.mxu0 %v4234
  %4258 = vmatprep.subr.bf16.mxu0 0
  %4259 = vmatpush1.bf16.msra.mxu0 %v4235
  %4260 = vmatprep.subr.bf16.mxu0 0
  %4261 = vmatpush1.bf16.msra.mxu0 0
  %4262 = vmatprep.subr.bf16.mxu0 0
  %4263 = vmatpush1.bf16.msra.mxu0 0
  %4264 = vmatprep.subr.bf16.mxu0 0
  %4265 = vmatpush1.bf16.msra.mxu0 0
  %4266 = vmatprep.subr.bf16.mxu0 0
  %4267 = vmatpush1.bf16.msra.mxu0 0
  %4268 = vmatprep.subr.bf16.mxu0 0
  %4269 = vmatpush1.bf16.msra.mxu0 0
  %4270 = vmatprep.subr.bf16.mxu0 0
  %4271 = vmatpush1.bf16.msra.mxu0 0
  %4272 = vmatprep.subr.bf16.mxu0 0
  %4273 = vmatpush1.bf16.msra.mxu0 0
  %4274 = vmatprep.subr.bf16.mxu0 0
  %4275 = vmatpush1.bf16.msra.mxu0 0
  %4276 = vmatprep.mubr.bf16.mxu0 0
  %4277 = vmatmul.mubr.bf16.gmra.mrb[0].mxu0 %v4172
  %v4278 = vpop.f32.mrb[0].mxu0
  %v4279 = vadd.f32 0.0, %v4278
  %v4280 = vpop.f32.mrb[0].mxu0
  %v4281 = vpop.f32.mrb[0].mxu0
  %v4282 = vadd.f32 0.0, %v4281
  %v4283 = vpop.f32.mrb[0].mxu0
  %4284 = vmatprep.mubr.bf16.mxu0 0
  %4285 = vmatmul.mubr.bf16.gmra.mrb[0].mxu0 %v4173
  %v4286 = vpop.f32.mrb[0].mxu0
  %v4287 = vadd.f32 0.0, %v4286
  %v4288 = vpop.f32.mrb[0].mxu0
  %v4289 = vpop.f32.mrb[0].mxu0
  %v4290 = vadd.f32 0.0, %v4289
  %v4291 = vpop.f32.mrb[0].mxu0
  %4292 = vmatprep.mubr.bf16.mxu0 0
  %4293 = vmatmul.mubr.bf16.gmra.mrb[0].mxu0 %v4174
  %v4294 = vpop.f32.mrb[0].mxu0
  %v4295 = vadd.f32 0.0, %v4294
  %v4296 = vpop.f32.mrb[0].mxu0
  %v4297 = vpop.f32.mrb[0].mxu0
  %v4298 = vadd.f32 0.0, %v4297
  %v4299 = vpop.f32.mrb[0].mxu0
  %4300 = vmatprep.mubr.bf16.mxu0 0
  %4301 = vmatmul.mubr.bf16.gmra.mrb[0].mxu0 %v4175
  %v4302 = vpop.f32.mrb[0].mxu0
  %v4303 = vadd.f32 0.0, %v4302
  %v4304 = vpop.f32.mrb[0].mxu0
  %v4305 = vpop.f32.mrb[0].mxu0
  %v4306 = vadd.f32 0.0, %v4305
  %v4307 = vpop.f32.mrb[0].mxu0
  %4308 = vmatprep.mubr.bf16.mxu0 0
  %4309 = vmatmul.mubr.bf16.gmra.mrb[0].mxu0 %v4176
  %v4310 = vpop.f32.mrb[0].mxu0
  %v4311 = vadd.f32 0.0, %v4310
  %v4312 = vpop.f32.mrb[0].mxu0
  %v4313 = vpop.f32.mrb[0].mxu0
  %v4314 = vadd.f32 0.0, %v4313
  %v4315 = vpop.f32.mrb[0].mxu0
  %4316 = vmatprep.mubr.bf16.mxu0 0
  %4317 = vmatmul.mubr.bf16.gmra.mrb[0].mxu0 %v4177
  %v4318 = vpop.f32.mrb[0].mxu0
  %v4319 = vadd.f32 0.0, %v4318
  %v4320 = vpop.f32.mrb[0].mxu0
  %v4321 = vpop.f32.mrb[0].mxu0
  %v4322 = vadd.f32 0.0, %v4321
  %v4323 = vpop.f32.mrb[0].mxu0
  %4324 = vmatprep.mubr.bf16.mxu0 0
  %4325 = vmatmul.mubr.bf16.gmra.mrb[0].mxu0 %v4178
  %v4326 = vpop.f32.mrb[0].mxu0
  %v4327 = vadd.f32 0.0, %v4326
  %v4328 = vpop.f32.mrb[0].mxu0
  %v4329 = vpop.f32.mrb[0].mxu0
  %v4330 = vadd.f32 0.0, %v4329
  %v4331 = vpop.f32.mrb[0].mxu0
  %4332 = vmatprep.mubr.bf16.mxu0 0
  %4333 = vmatmul.mubr.bf16.gmra.mrb[0].mxu0 %v4179
  %v4334 = vpop.f32.mrb[0].mxu0
  %v4335 = vadd.f32 0.0, %v4334
  %v4336 = vpop.f32.mrb[0].mxu0
  %v4337 = vpop.f32.mrb[0].mxu0
  %v4338 = vadd.f32 0.0, %v4337
  %v4339 = vpop.f32.mrb[0].mxu0
  %4340 = vdwg.mxu0
  %v4341 = vadd.f32 %v4110, %v4279
  %v4342 = vadd.f32 %v4113, %v4282
  %v4343 = vadd.f32 %v4118, %v4287
  %v4344 = vadd.f32 %v4121, %v4290
  %v4345 = vadd.f32 %v4126, %v4295
  %v4346 = vadd.f32 %v4129, %v4298
  %v4347 = vadd.f32 %v4134, %v4303
  %v4348 = vadd.f32 %v4137, %v4306
  %v4349 = vadd.f32 %v4142, %v4311
  %v4350 = vadd.f32 %v4145, %v4314
  %v4351 = vadd.f32 %v4150, %v4319
  %v4352 = vadd.f32 %v4153, %v4322
  %v4353 = vadd.f32 %v4158, %v4327
  %v4354 = vadd.f32 %v4161, %v4330
  %v4355 = vadd.f32 %v4166, %v4335
  %v4356 = vadd.f32 %v4169, %v4338
  %v4357 = vpack.c.bf16 %v3455, %v3452
  %v4358 = vpack.c.bf16 %v3463, %v3460
  %v4359 = vpack.c.bf16 %v3471, %v3468
  %v4360 = vpack.c.bf16 %v3479, %v3476
  %v4361 = vpack.c.bf16 %v3487, %v3484
  %v4362 = vpack.c.bf16 %v3495, %v3492
  %v4363 = vpack.c.bf16 %v3503, %v3500
  %v4364 = vpack.c.bf16 %v3511, %v3508
  %v4365 = vld [vmem:[%s4 + $0xc0] sm:$0xf]
  %v4366 = vld [vmem:[%s4 + $0xc4] sm:$0xf]
  %v4367 = vld [vmem:[%s4 + $0xc8] sm:$0xf]
  %v4368 = vld [vmem:[%s4 + $0xcc] sm:$0xf]
  %v4369 = vld [vmem:[%s4 + $0xd0] sm:$0xf]
  %v4370 = vld [vmem:[%s4 + $0xd4] sm:$0xf]
  %v4371 = vld [vmem:[%s4 + $0xd8] sm:$0xf]
  %v4372 = vld [vmem:[%s4 + $0xdc] sm:$0xf]
  %v4373 = vld [vmem:[%s4 + $0xe0] sm:$0xf]
  %v4374 = vld [vmem:[%s4 + $0xe4] sm:$0xf]
  %v4375 = vld [vmem:[%s4 + $0xe8] sm:$0xf]
  %v4376 = vld [vmem:[%s4 + $0xec] sm:$0xf]
  %v4377 = vld [vmem:[%s4 + $0xf0] sm:$0xf]
  %v4378 = vld [vmem:[%s4 + $0xf4] sm:$0xf]
  %v4379 = vld [vmem:[%s4 + $0xf8] sm:$0xf]
  %v4380 = vld [vmem:[%s4 + $0xfc] sm:$0xf]
  %v4397 = vunpack.c.l.b16 %v4365
  %v4398 = vunpack.c.l.b16 %v4366
  %v4399 = vunpack.c.l.b16 %v4367
  %v4400 = vunpack.c.l.b16 %v4368
  %v4401 = vunpack.c.l.b16 %v4369
  %v4402 = vunpack.c.l.b16 %v4370
  %v4403 = vunpack.c.l.b16 %v4371
  %v4404 = vunpack.c.l.b16 %v4372
  %v4405 = vunpack.c.l.b16 %v4373
  %v4406 = vunpack.c.l.b16 %v4374
  %v4407 = vunpack.c.l.b16 %v4375
  %v4408 = vunpack.c.l.b16 %v4376
  %v4409 = vunpack.c.l.b16 %v4377
  %v4410 = vunpack.c.l.b16 %v4378
  %v4411 = vunpack.c.l.b16 %v4379
  %v4412 = vunpack.c.l.b16 %v4380
  %v4413 = vpack.c.b16 %v4398, %v4397
  %v4414 = vpack.c.b16 %v4400, %v4399
  %v4415 = vpack.c.b16 %v4402, %v4401
  %v4416 = vpack.c.b16 %v4404, %v4403
  %v4417 = vpack.c.b16 %v4406, %v4405
  %v4418 = vpack.c.b16 %v4408, %v4407
  %v4419 = vpack.c.b16 %v4410, %v4409
  %v4420 = vpack.c.b16 %v4412, %v4411
  %4429 = vmatprep.subr.bf16.mxu0 0
  %4430 = vmatpush1.bf16.msra.mxu0 %v4413
  %4431 = vmatprep.subr.bf16.mxu0 0
  %4432 = vmatpush1.bf16.msra.mxu0 %v4414
  %4433 = vmatprep.subr.bf16.mxu0 0
  %4434 = vmatpush1.bf16.msra.mxu0 %v4415
  %4435 = vmatprep.subr.bf16.mxu0 0
  %4436 = vmatpush1.bf16.msra.mxu0 %v4416
  %4437 = vmatprep.subr.bf16.mxu0 0
  %4438 = vmatpush1.bf16.msra.mxu0 %v4417
  %4439 = vmatprep.subr.bf16.mxu0 0
  %4440 = vmatpush1.bf16.msra.mxu0 %v4418
  %4441 = vmatprep.subr.bf16.mxu0 0
  %4442 = vmatpush1.bf16.msra.mxu0 %v4419
  %4443 = vmatprep.subr.bf16.mxu0 0
  %4444 = vmatpush1.bf16.msra.mxu0 %v4420
  %4445 = vmatprep.subr.bf16.mxu0 0
  %4446 = vmatpush1.bf16.msra.mxu0 0
  %4447 = vmatprep.subr.bf16.mxu0 0
  %4448 = vmatpush1.bf16.msra.mxu0 0
  %4449 = vmatprep.subr.bf16.mxu0 0
  %4450 = vmatpush1.bf16.msra.mxu0 0
  %4451 = vmatprep.subr.bf16.mxu0 0
  %4452 = vmatpush1.bf16.msra.mxu0 0
  %4453 = vmatprep.subr.bf16.mxu0 0
  %4454 = vmatpush1.bf16.msra.mxu0 0
  %4455 = vmatprep.subr.bf16.mxu0 0
  %4456 = vmatpush1.bf16.msra.mxu0 0
  %4457 = vmatprep.subr.bf16.mxu0 0
  %4458 = vmatpush1.bf16.msra.mxu0 0
  %4459 = vmatprep.subr.bf16.mxu0 0
  %4460 = vmatpush1.bf16.msra.mxu0 0
  %4461 = vmatprep.mubr.bf16.mxu0 0
  %4462 = vmatmul.mubr.bf16.gmra.mrb[0].mxu0 %v4357
  %v4463 = vpop.f32.mrb[0].mxu0
  %v4464 = vadd.f32 0.0, %v4463
  %v4465 = vpop.f32.mrb[0].mxu0
  %v4466 = vpop.f32.mrb[0].mxu0
  %v4467 = vadd.f32 0.0, %v4466
  %v4468 = vpop.f32.mrb[0].mxu0
  %4469 = vmatprep.mubr.bf16.mxu0 0
  %4470 = vmatmul.mubr.bf16.gmra.mrb[0].mxu0 %v4358
  %v4471 = vpop.f32.mrb[0].mxu0
  %v4472 = vadd.f32 0.0, %v4471
  %v4473 = vpop.f32.mrb[0].mxu0
  %v4474 = vpop.f32.mrb[0].mxu0
  %v4475 = vadd.f32 0.0, %v4474
  %v4476 = vpop.f32.mrb[0].mxu0
  %4477 = vmatprep.mubr.bf16.mxu0 0
  %4478 = vmatmul.mubr.bf16.gmra.mrb[0].mxu0 %v4359
  %v4479 = vpop.f32.mrb[0].mxu0
  %v4480 = vadd.f32 0.0, %v4479
  %v4481 = vpop.f32.mrb[0].mxu0
  %v4482 = vpop.f32.mrb[0].mxu0
  %v4483 = vadd.f32 0.0, %v4482
  %v4484 = vpop.f32.mrb[0].mxu0
  %4485 = vmatprep.mubr.bf16.mxu0 0
  %4486 = vmatmul.mubr.bf16.gmra.mrb[0].mxu0 %v4360
  %v4487 = vpop.f32.mrb[0].mxu0
  %v4488 = vadd.f32 0.0, %v4487
  %v4489 = vpop.f32.mrb[0].mxu0
  %v4490 = vpop.f32.mrb[0].mxu0
  %v4491 = vadd.f32 0.0, %v4490
  %v4492 = vpop.f32.mrb[0].mxu0
  %4493 = vmatprep.mubr.bf16.mxu0 0
  %4494 = vmatmul.mubr.bf16.gmra.mrb[0].mxu0 %v4361
  %v4495 = vpop.f32.mrb[0].mxu0
  %v4496 = vadd.f32 0.0, %v4495
  %v4497 = vpop.f32.mrb[0].mxu0
  %v4498 = vpop.f32.mrb[0].mxu0
  %v4499 = vadd.f32 0.0, %v4498
  %v4500 = vpop.f32.mrb[0].mxu0
  %4501 = vmatprep.mubr.bf16.mxu0 0
  %4502 = vmatmul.mubr.bf16.gmra.mrb[0].mxu0 %v4362
  %v4503 = vpop.f32.mrb[0].mxu0
  %v4504 = vadd.f32 0.0, %v4503
  %v4505 = vpop.f32.mrb[0].mxu0
  %v4506 = vpop.f32.mrb[0].mxu0
  %v4507 = vadd.f32 0.0, %v4506
  %v4508 = vpop.f32.mrb[0].mxu0
  %4509 = vmatprep.mubr.bf16.mxu0 0
  %4510 = vmatmul.mubr.bf16.gmra.mrb[0].mxu0 %v4363
  %v4511 = vpop.f32.mrb[0].mxu0
  %v4512 = vadd.f32 0.0, %v4511
  %v4513 = vpop.f32.mrb[0].mxu0
  %v4514 = vpop.f32.mrb[0].mxu0
  %v4515 = vadd.f32 0.0, %v4514
  %v4516 = vpop.f32.mrb[0].mxu0
  %4517 = vmatprep.mubr.bf16.mxu0 0
  %4518 = vmatmul.mubr.bf16.gmra.mrb[0].mxu0 %v4364
  %v4519 = vpop.f32.mrb[0].mxu0
  %v4520 = vadd.f32 0.0, %v4519
  %v4521 = vpop.f32.mrb[0].mxu0
  %v4522 = vpop.f32.mrb[0].mxu0
  %v4523 = vadd.f32 0.0, %v4522
  %v4524 = vpop.f32.mrb[0].mxu0
  %4525 = vdwg.mxu0
  %v4526 = vadd.f32 %v4341, %v4464
  %v4527 = vadd.f32 %v4342, %v4467
  %v4528 = vadd.f32 %v4343, %v4472
  %v4529 = vadd.f32 %v4344, %v4475
  %v4530 = vadd.f32 %v4345, %v4480
  %v4531 = vadd.f32 %v4346, %v4483
  %v4532 = vadd.f32 %v4347, %v4488
  %v4533 = vadd.f32 %v4348, %v4491
  %v4534 = vadd.f32 %v4349, %v4496
  %v4535 = vadd.f32 %v4350, %v4499
  %v4536 = vadd.f32 %v4351, %v4504
  %v4537 = vadd.f32 %v4352, %v4507
  %v4538 = vadd.f32 %v4353, %v4512
  %v4539 = vadd.f32 %v4354, %v4515
  %v4540 = vadd.f32 %v4355, %v4520
  %v4541 = vadd.f32 %v4356, %v4523
  %v4542 = vpack.c.bf16 %v3519, %v3516
  %v4543 = vpack.c.bf16 %v3527, %v3524
  %v4544 = vpack.c.bf16 %v3535, %v3532
  %v4545 = vpack.c.bf16 %v3543, %v3540
  %v4546 = vpack.c.bf16 %v3551, %v3548
  %v4547 = vpack.c.bf16 %v3559, %v3556
  %v4548 = vpack.c.bf16 %v3567, %v3564
  %v4549 = vpack.c.bf16 %v3575, %v3572
  %v4550 = vld [vmem:[%s4 + $0x100] sm:$0xf]
  %v4551 = vld [vmem:[%s4 + $0x104] sm:$0xf]
  %v4552 = vld [vmem:[%s4 + $0x108] sm:$0xf]
  %v4553 = vld [vmem:[%s4 + $0x10c] sm:$0xf]
  %v4554 = vld [vmem:[%s4 + $0x110] sm:$0xf]
  %v4555 = vld [vmem:[%s4 + $0x114] sm:$0xf]
  %v4556 = vld [vmem:[%s4 + $0x118] sm:$0xf]
  %v4557 = vld [vmem:[%s4 + $0x11c] sm:$0xf]
  %v4558 = vld [vmem:[%s4 + $0x120] sm:$0xf]
  %v4559 = vld [vmem:[%s4 + $0x124] sm:$0xf]
  %v4560 = vld [vmem:[%s4 + $0x128] sm:$0xf]
  %v4561 = vld [vmem:[%s4 + $0x12c] sm:$0xf]
  %v4562 = vld [vmem:[%s4 + $0x130] sm:$0xf]
  %v4563 = vld [vmem:[%s4 + $0x134] sm:$0xf]
  %v4564 = vld [vmem:[%s4 + $0x138] sm:$0xf]
  %v4565 = vld [vmem:[%s4 + $0x13c] sm:$0xf]
  %v4582 = vunpack.c.l.b16 %v4550
  %v4583 = vunpack.c.l.b16 %v4551
  %v4584 = vunpack.c.l.b16 %v4552
  %v4585 = vunpack.c.l.b16 %v4553
  %v4586 = vunpack.c.l.b16 %v4554
  %v4587 = vunpack.c.l.b16 %v4555
  %v4588 = vunpack.c.l.b16 %v4556
  %v4589 = vunpack.c.l.b16 %v4557
  %v4590 = vunpack.c.l.b16 %v4558
  %v4591 = vunpack.c.l.b16 %v4559
  %v4592 = vunpack.c.l.b16 %v4560
  %v4593 = vunpack.c.l.b16 %v4561
  %v4594 = vunpack.c.l.b16 %v4562
  %v4595 = vunpack.c.l.b16 %v4563
  %v4596 = vunpack.c.l.b16 %v4564
  %v4597 = vunpack.c.l.b16 %v4565
  %v4598 = vpack.c.b16 %v4583, %v4582
  %v4599 = vpack.c.b16 %v4585, %v4584
  %v4600 = vpack.c.b16 %v4587, %v4586
  %v4601 = vpack.c.b16 %v4589, %v4588
  %v4602 = vpack.c.b16 %v4591, %v4590
  %v4603 = vpack.c.b16 %v4593, %v4592
  %v4604 = vpack.c.b16 %v4595, %v4594
  %v4605 = vpack.c.b16 %v4597, %v4596
  %4614 = vmatprep.subr.bf16.mxu0 0
  %4615 = vmatpush1.bf16.msra.mxu0 %v4598
  %4616 = vmatprep.subr.bf16.mxu0 0
  %4617 = vmatpush1.bf16.msra.mxu0 %v4599
  %4618 = vmatprep.subr.bf16.mxu0 0
  %4619 = vmatpush1.bf16.msra.mxu0 %v4600
  %4620 = vmatprep.subr.bf16.mxu0 0
  %4621 = vmatpush1.bf16.msra.mxu0 %v4601
  %4622 = vmatprep.subr.bf16.mxu0 0
  %4623 = vmatpush1.bf16.msra.mxu0 %v4602
  %4624 = vmatprep.subr.bf16.mxu0 0
  %4625 = vmatpush1.bf16.msra.mxu0 %v4603
  %4626 = vmatprep.subr.bf16.mxu0 0
  %4627 = vmatpush1.bf16.msra.mxu0 %v4604
  %4628 = vmatprep.subr.bf16.mxu0 0
  %4629 = vmatpush1.bf16.msra.mxu0 %v4605
  %4630 = vmatprep.subr.bf16.mxu0 0
  %4631 = vmatpush1.bf16.msra.mxu0 0
  %4632 = vmatprep.subr.bf16.mxu0 0
  %4633 = vmatpush1.bf16.msra.mxu0 0
  %4634 = vmatprep.subr.bf16.mxu0 0
  %4635 = vmatpush1.bf16.msra.mxu0 0
  %4636 = vmatprep.subr.bf16.mxu0 0
  %4637 = vmatpush1.bf16.msra.mxu0 0
  %4638 = vmatprep.subr.bf16.mxu0 0
  %4639 = vmatpush1.bf16.msra.mxu0 0
  %4640 = vmatprep.subr.bf16.mxu0 0
  %4641 = vmatpush1.bf16.msra.mxu0 0
  %4642 = vmatprep.subr.bf16.mxu0 0
  %4643 = vmatpush1.bf16.msra.mxu0 0
  %4644 = vmatprep.subr.bf16.mxu0 0
  %4645 = vmatpush1.bf16.msra.mxu0 0
  %4646 = vmatprep.mubr.bf16.mxu0 0
  %4647 = vmatmul.mubr.bf16.gmra.mrb[0].mxu0 %v4542
  %v4648 = vpop.f32.mrb[0].mxu0
  %v4649 = vadd.f32 0.0, %v4648
  %v4650 = vpop.f32.mrb[0].mxu0
  %v4651 = vpop.f32.mrb[0].mxu0
  %v4652 = vadd.f32 0.0, %v4651
  %v4653 = vpop.f32.mrb[0].mxu0
  %4654 = vmatprep.mubr.bf16.mxu0 0
  %4655 = vmatmul.mubr.bf16.gmra.mrb[0].mxu0 %v4543
  %v4656 = vpop.f32.mrb[0].mxu0
  %v4657 = vadd.f32 0.0, %v4656
  %v4658 = vpop.f32.mrb[0].mxu0
  %v4659 = vpop.f32.mrb[0].mxu0
  %v4660 = vadd.f32 0.0, %v4659
  %v4661 = vpop.f32.mrb[0].mxu0
  %4662 = vmatprep.mubr.bf16.mxu0 0
  %4663 = vmatmul.mubr.bf16.gmra.mrb[0].mxu0 %v4544
  %v4664 = vpop.f32.mrb[0].mxu0
  %v4665 = vadd.f32 0.0, %v4664
  %v4666 = vpop.f32.mrb[0].mxu0
  %v4667 = vpop.f32.mrb[0].mxu0
  %v4668 = vadd.f32 0.0, %v4667
  %v4669 = vpop.f32.mrb[0].mxu0
  %4670 = vmatprep.mubr.bf16.mxu0 0
  %4671 = vmatmul.mubr.bf16.gmra.mrb[0].mxu0 %v4545
  %v4672 = vpop.f32.mrb[0].mxu0
  %v4673 = vadd.f32 0.0, %v4672
  %v4674 = vpop.f32.mrb[0].mxu0
  %v4675 = vpop.f32.mrb[0].mxu0
  %v4676 = vadd.f32 0.0, %v4675
  %v4677 = vpop.f32.mrb[0].mxu0
  %4678 = vmatprep.mubr.bf16.mxu0 0
  %4679 = vmatmul.mubr.bf16.gmra.mrb[0].mxu0 %v4546
  %v4680 = vpop.f32.mrb[0].mxu0
  %v4681 = vadd.f32 0.0, %v4680
  %v4682 = vpop.f32.mrb[0].mxu0
  %v4683 = vpop.f32.mrb[0].mxu0
  %v4684 = vadd.f32 0.0, %v4683
  %v4685 = vpop.f32.mrb[0].mxu0
  %4686 = vmatprep.mubr.bf16.mxu0 0
  %4687 = vmatmul.mubr.bf16.gmra.mrb[0].mxu0 %v4547
  %v4688 = vpop.f32.mrb[0].mxu0
  %v4689 = vadd.f32 0.0, %v4688
  %v4690 = vpop.f32.mrb[0].mxu0
  %v4691 = vpop.f32.mrb[0].mxu0
  %v4692 = vadd.f32 0.0, %v4691
  %v4693 = vpop.f32.mrb[0].mxu0
  %4694 = vmatprep.mubr.bf16.mxu0 0
  %4695 = vmatmul.mubr.bf16.gmra.mrb[0].mxu0 %v4548
  %v4696 = vpop.f32.mrb[0].mxu0
  %v4697 = vadd.f32 0.0, %v4696
  %v4698 = vpop.f32.mrb[0].mxu0
  %v4699 = vpop.f32.mrb[0].mxu0
  %v4700 = vadd.f32 0.0, %v4699
  %v4701 = vpop.f32.mrb[0].mxu0
  %4702 = vmatprep.mubr.bf16.mxu0 0
  %4703 = vmatmul.mubr.bf16.gmra.mrb[0].mxu0 %v4549
  %v4704 = vpop.f32.mrb[0].mxu0
  %v4705 = vadd.f32 0.0, %v4704
  %v4706 = vpop.f32.mrb[0].mxu0
  %v4707 = vpop.f32.mrb[0].mxu0
  %v4708 = vadd.f32 0.0, %v4707
  %v4709 = vpop.f32.mrb[0].mxu0
  %4710 = vdwg.mxu0
  %v4711 = vadd.f32 %v4526, %v4649
  %v4712 = vadd.f32 %v4527, %v4652
  %v4713 = vadd.f32 %v4528, %v4657
  %v4714 = vadd.f32 %v4529, %v4660
  %v4715 = vadd.f32 %v4530, %v4665
  %v4716 = vadd.f32 %v4531, %v4668
  %v4717 = vadd.f32 %v4532, %v4673
  %v4718 = vadd.f32 %v4533, %v4676
  %v4719 = vadd.f32 %v4534, %v4681
  %v4720 = vadd.f32 %v4535, %v4684
  %v4721 = vadd.f32 %v4536, %v4689
  %v4722 = vadd.f32 %v4537, %v4692
  %v4723 = vadd.f32 %v4538, %v4697
  %v4724 = vadd.f32 %v4539, %v4700
  %v4725 = vadd.f32 %v4540, %v4705
  %v4726 = vadd.f32 %v4541, %v4708
  %v4727 = vpack.c.bf16 %v3583, %v3580
  %v4728 = vpack.c.bf16 %v3591, %v3588
  %v4729 = vpack.c.bf16 %v3599, %v3596
  %v4730 = vpack.c.bf16 %v3607, %v3604
  %v4731 = vpack.c.bf16 %v3615, %v3612
  %v4732 = vpack.c.bf16 %v3623, %v3620
  %v4733 = vpack.c.bf16 %v3631, %v3628
  %v4734 = vpack.c.bf16 %v3639, %v3636
  %v4735 = vld [vmem:[%s4 + $0x140] sm:$0xf]
  %v4736 = vld [vmem:[%s4 + $0x144] sm:$0xf]
  %v4737 = vld [vmem:[%s4 + $0x148] sm:$0xf]
  %v4738 = vld [vmem:[%s4 + $0x14c] sm:$0xf]
  %v4739 = vld [vmem:[%s4 + $0x150] sm:$0xf]
  %v4740 = vld [vmem:[%s4 + $0x154] sm:$0xf]
  %v4741 = vld [vmem:[%s4 + $0x158] sm:$0xf]
  %v4742 = vld [vmem:[%s4 + $0x15c] sm:$0xf]
  %v4743 = vld [vmem:[%s4 + $0x160] sm:$0xf]
  %v4744 = vld [vmem:[%s4 + $0x164] sm:$0xf]
  %v4745 = vld [vmem:[%s4 + $0x168] sm:$0xf]
  %v4746 = vld [vmem:[%s4 + $0x16c] sm:$0xf]
  %v4747 = vld [vmem:[%s4 + $0x170] sm:$0xf]
  %v4748 = vld [vmem:[%s4 + $0x174] sm:$0xf]
  %v4749 = vld [vmem:[%s4 + $0x178] sm:$0xf]
  %v4750 = vld [vmem:[%s4 + $0x17c] sm:$0xf]
  %v4767 = vunpack.c.l.b16 %v4735
  %v4768 = vunpack.c.l.b16 %v4736
  %v4769 = vunpack.c.l.b16 %v4737
  %v4770 = vunpack.c.l.b16 %v4738
  %v4771 = vunpack.c.l.b16 %v4739
  %v4772 = vunpack.c.l.b16 %v4740
  %v4773 = vunpack.c.l.b16 %v4741
  %v4774 = vunpack.c.l.b16 %v4742
  %v4775 = vunpack.c.l.b16 %v4743
  %v4776 = vunpack.c.l.b16 %v4744
  %v4777 = vunpack.c.l.b16 %v4745
  %v4778 = vunpack.c.l.b16 %v4746
  %v4779 = vunpack.c.l.b16 %v4747
  %v4780 = vunpack.c.l.b16 %v4748
  %v4781 = vunpack.c.l.b16 %v4749
  %v4782 = vunpack.c.l.b16 %v4750
  %v4783 = vpack.c.b16 %v4768, %v4767
  %v4784 = vpack.c.b16 %v4770, %v4769
  %v4785 = vpack.c.b16 %v4772, %v4771
  %v4786 = vpack.c.b16 %v4774, %v4773
  %v4787 = vpack.c.b16 %v4776, %v4775
  %v4788 = vpack.c.b16 %v4778, %v4777
  %v4789 = vpack.c.b16 %v4780, %v4779
  %v4790 = vpack.c.b16 %v4782, %v4781
  %4799 = vmatprep.subr.bf16.mxu0 0
  %4800 = vmatpush1.bf16.msra.mxu0 %v4783
  %4801 = vmatprep.subr.bf16.mxu0 0
  %4802 = vmatpush1.bf16.msra.mxu0 %v4784
  %4803 = vmatprep.subr.bf16.mxu0 0
  %4804 = vmatpush1.bf16.msra.mxu0 %v4785
  %4805 = vmatprep.subr.bf16.mxu0 0
  %4806 = vmatpush1.bf16.msra.mxu0 %v4786
  %4807 = vmatprep.subr.bf16.mxu0 0
  %4808 = vmatpush1.bf16.msra.mxu0 %v4787
  %4809 = vmatprep.subr.bf16.mxu0 0
  %4810 = vmatpush1.bf16.msra.mxu0 %v4788
  %4811 = vmatprep.subr.bf16.mxu0 0
  %4812 = vmatpush1.bf16.msra.mxu0 %v4789
  %4813 = vmatprep.subr.bf16.mxu0 0
  %4814 = vmatpush1.bf16.msra.mxu0 %v4790
  %4815 = vmatprep.subr.bf16.mxu0 0
  %4816 = vmatpush1.bf16.msra.mxu0 0
  %4817 = vmatprep.subr.bf16.mxu0 0
  %4818 = vmatpush1.bf16.msra.mxu0 0
  %4819 = vmatprep.subr.bf16.mxu0 0
  %4820 = vmatpush1.bf16.msra.mxu0 0
  %4821 = vmatprep.subr.bf16.mxu0 0
  %4822 = vmatpush1.bf16.msra.mxu0 0
  %4823 = vmatprep.subr.bf16.mxu0 0
  %4824 = vmatpush1.bf16.msra.mxu0 0
  %4825 = vmatprep.subr.bf16.mxu0 0
  %4826 = vmatpush1.bf16.msra.mxu0 0
  %4827 = vmatprep.subr.bf16.mxu0 0
  %4828 = vmatpush1.bf16.msra.mxu0 0
  %4829 = vmatprep.subr.bf16.mxu0 0
  %4830 = vmatpush1.bf16.msra.mxu0 0
  %4831 = vmatprep.mubr.bf16.mxu0 0
  %4832 = vmatmul.mubr.bf16.gmra.mrb[0].mxu0 %v4727
  %v4833 = vpop.f32.mrb[0].mxu0
  %v4834 = vadd.f32 0.0, %v4833
  %v4835 = vpop.f32.mrb[0].mxu0
  %v4836 = vpop.f32.mrb[0].mxu0
  %v4837 = vadd.f32 0.0, %v4836
  %v4838 = vpop.f32.mrb[0].mxu0
  %4839 = vmatprep.mubr.bf16.mxu0 0
  %4840 = vmatmul.mubr.bf16.gmra.mrb[0].mxu0 %v4728
  %v4841 = vpop.f32.mrb[0].mxu0
  %v4842 = vadd.f32 0.0, %v4841
  %v4843 = vpop.f32.mrb[0].mxu0
  %v4844 = vpop.f32.mrb[0].mxu0
  %v4845 = vadd.f32 0.0, %v4844
  %v4846 = vpop.f32.mrb[0].mxu0
  %4847 = vmatprep.mubr.bf16.mxu0 0
  %4848 = vmatmul.mubr.bf16.gmra.mrb[0].mxu0 %v4729
  %v4849 = vpop.f32.mrb[0].mxu0
  %v4850 = vadd.f32 0.0, %v4849
  %v4851 = vpop.f32.mrb[0].mxu0
  %v4852 = vpop.f32.mrb[0].mxu0
  %v4853 = vadd.f32 0.0, %v4852
  %v4854 = vpop.f32.mrb[0].mxu0
  %4855 = vmatprep.mubr.bf16.mxu0 0
  %4856 = vmatmul.mubr.bf16.gmra.mrb[0].mxu0 %v4730
  %v4857 = vpop.f32.mrb[0].mxu0
  %v4858 = vadd.f32 0.0, %v4857
  %v4859 = vpop.f32.mrb[0].mxu0
  %v4860 = vpop.f32.mrb[0].mxu0
  %v4861 = vadd.f32 0.0, %v4860
  %v4862 = vpop.f32.mrb[0].mxu0
  %4863 = vmatprep.mubr.bf16.mxu0 0
  %4864 = vmatmul.mubr.bf16.gmra.mrb[0].mxu0 %v4731
  %v4865 = vpop.f32.mrb[0].mxu0
  %v4866 = vadd.f32 0.0, %v4865
  %v4867 = vpop.f32.mrb[0].mxu0
  %v4868 = vpop.f32.mrb[0].mxu0
  %v4869 = vadd.f32 0.0, %v4868
  %v4870 = vpop.f32.mrb[0].mxu0
  %4871 = vmatprep.mubr.bf16.mxu0 0
  %4872 = vmatmul.mubr.bf16.gmra.mrb[0].mxu0 %v4732
  %v4873 = vpop.f32.mrb[0].mxu0
  %v4874 = vadd.f32 0.0, %v4873
  %v4875 = vpop.f32.mrb[0].mxu0
  %v4876 = vpop.f32.mrb[0].mxu0
  %v4877 = vadd.f32 0.0, %v4876
  %v4878 = vpop.f32.mrb[0].mxu0
  %4879 = vmatprep.mubr.bf16.mxu0 0
  %4880 = vmatmul.mubr.bf16.gmra.mrb[0].mxu0 %v4733
  %v4881 = vpop.f32.mrb[0].mxu0
  %v4882 = vadd.f32 0.0, %v4881
  %v4883 = vpop.f32.mrb[0].mxu0
  %v4884 = vpop.f32.mrb[0].mxu0
  %v4885 = vadd.f32 0.0, %v4884
  %v4886 = vpop.f32.mrb[0].mxu0
  %4887 = vmatprep.mubr.bf16.mxu0 0
  %4888 = vmatmul.mubr.bf16.gmra.mrb[0].mxu0 %v4734
  %v4889 = vpop.f32.mrb[0].mxu0
  %v4890 = vadd.f32 0.0, %v4889
  %v4891 = vpop.f32.mrb[0].mxu0
  %v4892 = vpop.f32.mrb[0].mxu0
  %v4893 = vadd.f32 0.0, %v4892
  %v4894 = vpop.f32.mrb[0].mxu0
  %4895 = vdwg.mxu0
  %v4896 = vadd.f32 %v4711, %v4834
  %v4897 = vadd.f32 %v4712, %v4837
  %v4898 = vadd.f32 %v4713, %v4842
  %v4899 = vadd.f32 %v4714, %v4845
  %v4900 = vadd.f32 %v4715, %v4850
  %v4901 = vadd.f32 %v4716, %v4853
  %v4902 = vadd.f32 %v4717, %v4858
  %v4903 = vadd.f32 %v4718, %v4861
  %v4904 = vadd.f32 %v4719, %v4866
  %v4905 = vadd.f32 %v4720, %v4869
  %v4906 = vadd.f32 %v4721, %v4874
  %v4907 = vadd.f32 %v4722, %v4877
  %v4908 = vadd.f32 %v4723, %v4882
  %v4909 = vadd.f32 %v4724, %v4885
  %v4910 = vadd.f32 %v4725, %v4890
  %v4911 = vadd.f32 %v4726, %v4893
  %v4912 = vpack.c.bf16 %v3647, %v3644
  %v4913 = vpack.c.bf16 %v3655, %v3652
  %v4914 = vpack.c.bf16 %v3663, %v3660
  %v4915 = vpack.c.bf16 %v3671, %v3668
  %v4916 = vpack.c.bf16 %v3679, %v3676
  %v4917 = vpack.c.bf16 %v3687, %v3684
  %v4918 = vpack.c.bf16 %v3695, %v3692
  %v4919 = vpack.c.bf16 %v3703, %v3700
  %v4920 = vld [vmem:[%s4 + $0x180] sm:$0xf]
  %v4921 = vld [vmem:[%s4 + $0x184] sm:$0xf]
  %v4922 = vld [vmem:[%s4 + $0x188] sm:$0xf]
  %v4923 = vld [vmem:[%s4 + $0x18c] sm:$0xf]
  %v4924 = vld [vmem:[%s4 + $0x190] sm:$0xf]
  %v4925 = vld [vmem:[%s4 + $0x194] sm:$0xf]
  %v4926 = vld [vmem:[%s4 + $0x198] sm:$0xf]
  %v4927 = vld [vmem:[%s4 + $0x19c] sm:$0xf]
  %v4928 = vld [vmem:[%s4 + $0x1a0] sm:$0xf]
  %v4929 = vld [vmem:[%s4 + $0x1a4] sm:$0xf]
  %v4930 = vld [vmem:[%s4 + $0x1a8] sm:$0xf]
  %v4931 = vld [vmem:[%s4 + $0x1ac] sm:$0xf]
  %v4932 = vld [vmem:[%s4 + $0x1b0] sm:$0xf]
  %v4933 = vld [vmem:[%s4 + $0x1b4] sm:$0xf]
  %v4934 = vld [vmem:[%s4 + $0x1b8] sm:$0xf]
  %v4935 = vld [vmem:[%s4 + $0x1bc] sm:$0xf]
  %v4952 = vunpack.c.l.b16 %v4920
  %v4953 = vunpack.c.l.b16 %v4921
  %v4954 = vunpack.c.l.b16 %v4922
  %v4955 = vunpack.c.l.b16 %v4923
  %v4956 = vunpack.c.l.b16 %v4924
  %v4957 = vunpack.c.l.b16 %v4925
  %v4958 = vunpack.c.l.b16 %v4926
  %v4959 = vunpack.c.l.b16 %v4927
  %v4960 = vunpack.c.l.b16 %v4928
  %v4961 = vunpack.c.l.b16 %v4929
  %v4962 = vunpack.c.l.b16 %v4930
  %v4963 = vunpack.c.l.b16 %v4931
  %v4964 = vunpack.c.l.b16 %v4932
  %v4965 = vunpack.c.l.b16 %v4933
  %v4966 = vunpack.c.l.b16 %v4934
  %v4967 = vunpack.c.l.b16 %v4935
  %v4968 = vpack.c.b16 %v4953, %v4952
  %v4969 = vpack.c.b16 %v4955, %v4954
  %v4970 = vpack.c.b16 %v4957, %v4956
  %v4971 = vpack.c.b16 %v4959, %v4958
  %v4972 = vpack.c.b16 %v4961, %v4960
  %v4973 = vpack.c.b16 %v4963, %v4962
  %v4974 = vpack.c.b16 %v4965, %v4964
  %v4975 = vpack.c.b16 %v4967, %v4966
  %4984 = vmatprep.subr.bf16.mxu0 0
  %4985 = vmatpush1.bf16.msra.mxu0 %v4968
  %4986 = vmatprep.subr.bf16.mxu0 0
  %4987 = vmatpush1.bf16.msra.mxu0 %v4969
  %4988 = vmatprep.subr.bf16.mxu0 0
  %4989 = vmatpush1.bf16.msra.mxu0 %v4970
  %4990 = vmatprep.subr.bf16.mxu0 0
  %4991 = vmatpush1.bf16.msra.mxu0 %v4971
  %4992 = vmatprep.subr.bf16.mxu0 0
  %4993 = vmatpush1.bf16.msra.mxu0 %v4972
  %4994 = vmatprep.subr.bf16.mxu0 0
  %4995 = vmatpush1.bf16.msra.mxu0 %v4973
  %4996 = vmatprep.subr.bf16.mxu0 0
  %4997 = vmatpush1.bf16.msra.mxu0 %v4974
  %4998 = vmatprep.subr.bf16.mxu0 0
  %4999 = vmatpush1.bf16.msra.mxu0 %v4975
  %5000 = vmatprep.subr.bf16.mxu0 0
  %5001 = vmatpush1.bf16.msra.mxu0 0
  %5002 = vmatprep.subr.bf16.mxu0 0
  %5003 = vmatpush1.bf16.msra.mxu0 0
  %5004 = vmatprep.subr.bf16.mxu0 0
  %5005 = vmatpush1.bf16.msra.mxu0 0
  %5006 = vmatprep.subr.bf16.mxu0 0
  %5007 = vmatpush1.bf16.msra.mxu0 0
  %5008 = vmatprep.subr.bf16.mxu0 0
  %5009 = vmatpush1.bf16.msra.mxu0 0
  %5010 = vmatprep.subr.bf16.mxu0 0
  %5011 = vmatpush1.bf16.msra.mxu0 0
  %5012 = vmatprep.subr.bf16.mxu0 0
  %5013 = vmatpush1.bf16.msra.mxu0 0
  %5014 = vmatprep.subr.bf16.mxu0 0
  %5015 = vmatpush1.bf16.msra.mxu0 0
  %5016 = vmatprep.mubr.bf16.mxu0 0
  %5017 = vmatmul.mubr.bf16.gmra.mrb[0].mxu0 %v4912
  %v5018 = vpop.f32.mrb[0].mxu0
  %v5019 = vadd.f32 0.0, %v5018
  %v5020 = vpop.f32.mrb[0].mxu0
  %v5021 = vpop.f32.mrb[0].mxu0
  %v5022 = vadd.f32 0.0, %v5021
  %v5023 = vpop.f32.mrb[0].mxu0
  %5024 = vmatprep.mubr.bf16.mxu0 0
  %5025 = vmatmul.mubr.bf16.gmra.mrb[0].mxu0 %v4913
  %v5026 = vpop.f32.mrb[0].mxu0
  %v5027 = vadd.f32 0.0, %v5026
  %v5028 = vpop.f32.mrb[0].mxu0
  %v5029 = vpop.f32.mrb[0].mxu0
  %v5030 = vadd.f32 0.0, %v5029
  %v5031 = vpop.f32.mrb[0].mxu0
  %5032 = vmatprep.mubr.bf16.mxu0 0
  %5033 = vmatmul.mubr.bf16.gmra.mrb[0].mxu0 %v4914
  %v5034 = vpop.f32.mrb[0].mxu0
  %v5035 = vadd.f32 0.0, %v5034
  %v5036 = vpop.f32.mrb[0].mxu0
  %v5037 = vpop.f32.mrb[0].mxu0
  %v5038 = vadd.f32 0.0, %v5037
  %v5039 = vpop.f32.mrb[0].mxu0
  %5040 = vmatprep.mubr.bf16.mxu0 0
  %5041 = vmatmul.mubr.bf16.gmra.mrb[0].mxu0 %v4915
  %v5042 = vpop.f32.mrb[0].mxu0
  %v5043 = vadd.f32 0.0, %v5042
  %v5044 = vpop.f32.mrb[0].mxu0
  %v5045 = vpop.f32.mrb[0].mxu0
  %v5046 = vadd.f32 0.0, %v5045
  %v5047 = vpop.f32.mrb[0].mxu0
  %5048 = vmatprep.mubr.bf16.mxu0 0
  %5049 = vmatmul.mubr.bf16.gmra.mrb[0].mxu0 %v4916
  %v5050 = vpop.f32.mrb[0].mxu0
  %v5051 = vadd.f32 0.0, %v5050
  %v5052 = vpop.f32.mrb[0].mxu0
  %v5053 = vpop.f32.mrb[0].mxu0
  %v5054 = vadd.f32 0.0, %v5053
  %v5055 = vpop.f32.mrb[0].mxu0
  %5056 = vmatprep.mubr.bf16.mxu0 0
  %5057 = vmatmul.mubr.bf16.gmra.mrb[0].mxu0 %v4917
  %v5058 = vpop.f32.mrb[0].mxu0
  %v5059 = vadd.f32 0.0, %v5058
  %v5060 = vpop.f32.mrb[0].mxu0
  %v5061 = vpop.f32.mrb[0].mxu0
  %v5062 = vadd.f32 0.0, %v5061
  %v5063 = vpop.f32.mrb[0].mxu0
  %5064 = vmatprep.mubr.bf16.mxu0 0
  %5065 = vmatmul.mubr.bf16.gmra.mrb[0].mxu0 %v4918
  %v5066 = vpop.f32.mrb[0].mxu0
  %v5067 = vadd.f32 0.0, %v5066
  %v5068 = vpop.f32.mrb[0].mxu0
  %v5069 = vpop.f32.mrb[0].mxu0
  %v5070 = vadd.f32 0.0, %v5069
  %v5071 = vpop.f32.mrb[0].mxu0
  %5072 = vmatprep.mubr.bf16.mxu0 0
  %5073 = vmatmul.mubr.bf16.gmra.mrb[0].mxu0 %v4919
  %v5074 = vpop.f32.mrb[0].mxu0
  %v5075 = vadd.f32 0.0, %v5074
  %v5076 = vpop.f32.mrb[0].mxu0
  %v5077 = vpop.f32.mrb[0].mxu0
  %v5078 = vadd.f32 0.0, %v5077
  %v5079 = vpop.f32.mrb[0].mxu0
  %5080 = vdwg.mxu0
  %v5081 = vadd.f32 %v4896, %v5019
  %v5082 = vadd.f32 %v4897, %v5022
  %v5083 = vadd.f32 %v4898, %v5027
  %v5084 = vadd.f32 %v4899, %v5030
  %v5085 = vadd.f32 %v4900, %v5035
  %v5086 = vadd.f32 %v4901, %v5038
  %v5087 = vadd.f32 %v4902, %v5043
  %v5088 = vadd.f32 %v4903, %v5046
  %v5089 = vadd.f32 %v4904, %v5051
  %v5090 = vadd.f32 %v4905, %v5054
  %v5091 = vadd.f32 %v4906, %v5059
  %v5092 = vadd.f32 %v4907, %v5062
  %v5093 = vadd.f32 %v4908, %v5067
  %v5094 = vadd.f32 %v4909, %v5070
  %v5095 = vadd.f32 %v4910, %v5075
  %v5096 = vadd.f32 %v4911, %v5078
  %v5097 = vpack.c.bf16 %v3711, %v3708
  %v5098 = vpack.c.bf16 %v3719, %v3716
  %v5099 = vpack.c.bf16 %v3727, %v3724
  %v5100 = vpack.c.bf16 %v3735, %v3732
  %v5101 = vpack.c.bf16 %v3743, %v3740
  %v5102 = vpack.c.bf16 %v3751, %v3748
  %v5103 = vpack.c.bf16 %v3759, %v3756
  %v5104 = vpack.c.bf16 %v3767, %v3764
  %v5105 = vld [vmem:[%s4 + $0x1c0] sm:$0xf]
  %v5106 = vld [vmem:[%s4 + $0x1c4] sm:$0xf]
  %v5107 = vld [vmem:[%s4 + $0x1c8] sm:$0xf]
  %v5108 = vld [vmem:[%s4 + $0x1cc] sm:$0xf]
  %v5109 = vld [vmem:[%s4 + $0x1d0] sm:$0xf]
  %v5110 = vld [vmem:[%s4 + $0x1d4] sm:$0xf]
  %v5111 = vld [vmem:[%s4 + $0x1d8] sm:$0xf]
  %v5112 = vld [vmem:[%s4 + $0x1dc] sm:$0xf]
  %v5113 = vld [vmem:[%s4 + $0x1e0] sm:$0xf]
  %v5114 = vld [vmem:[%s4 + $0x1e4] sm:$0xf]
  %v5115 = vld [vmem:[%s4 + $0x1e8] sm:$0xf]
  %v5116 = vld [vmem:[%s4 + $0x1ec] sm:$0xf]
  %v5117 = vld [vmem:[%s4 + $0x1f0] sm:$0xf]
  %v5118 = vld [vmem:[%s4 + $0x1f4] sm:$0xf]
  %v5119 = vld [vmem:[%s4 + $0x1f8] sm:$0xf]
  %v5120 = vld [vmem:[%s4 + $0x1fc] sm:$0xf]
  %v5137 = vunpack.c.l.b16 %v5105
  %v5138 = vunpack.c.l.b16 %v5106
  %v5139 = vunpack.c.l.b16 %v5107
  %v5140 = vunpack.c.l.b16 %v5108
  %v5141 = vunpack.c.l.b16 %v5109
  %v5142 = vunpack.c.l.b16 %v5110
  %v5143 = vunpack.c.l.b16 %v5111
  %v5144 = vunpack.c.l.b16 %v5112
  %v5145 = vunpack.c.l.b16 %v5113
  %v5146 = vunpack.c.l.b16 %v5114
  %v5147 = vunpack.c.l.b16 %v5115
  %v5148 = vunpack.c.l.b16 %v5116
  %v5149 = vunpack.c.l.b16 %v5117
  %v5150 = vunpack.c.l.b16 %v5118
  %v5151 = vunpack.c.l.b16 %v5119
  %v5152 = vunpack.c.l.b16 %v5120
  %v5153 = vpack.c.b16 %v5138, %v5137
  %v5154 = vpack.c.b16 %v5140, %v5139
  %v5155 = vpack.c.b16 %v5142, %v5141
  %v5156 = vpack.c.b16 %v5144, %v5143
  %v5157 = vpack.c.b16 %v5146, %v5145
  %v5158 = vpack.c.b16 %v5148, %v5147
  %v5159 = vpack.c.b16 %v5150, %v5149
  %v5160 = vpack.c.b16 %v5152, %v5151
  %5169 = vmatprep.subr.bf16.mxu0 0
  %5170 = vmatpush1.bf16.msra.mxu0 %v5153
  %5171 = vmatprep.subr.bf16.mxu0 0
  %5172 = vmatpush1.bf16.msra.mxu0 %v5154
  %5173 = vmatprep.subr.bf16.mxu0 0
  %5174 = vmatpush1.bf16.msra.mxu0 %v5155
  %5175 = vmatprep.subr.bf16.mxu0 0
  %5176 = vmatpush1.bf16.msra.mxu0 %v5156
  %5177 = vmatprep.subr.bf16.mxu0 0
  %5178 = vmatpush1.bf16.msra.mxu0 %v5157
  %5179 = vmatprep.subr.bf16.mxu0 0
  %5180 = vmatpush1.bf16.msra.mxu0 %v5158
  %5181 = vmatprep.subr.bf16.mxu0 0
  %5182 = vmatpush1.bf16.msra.mxu0 %v5159
  %5183 = vmatprep.subr.bf16.mxu0 0
  %5184 = vmatpush1.bf16.msra.mxu0 %v5160
  %5185 = vmatprep.subr.bf16.mxu0 0
  %5186 = vmatpush1.bf16.msra.mxu0 0
  %5187 = vmatprep.subr.bf16.mxu0 0
  %5188 = vmatpush1.bf16.msra.mxu0 0
  %5189 = vmatprep.subr.bf16.mxu0 0
  %5190 = vmatpush1.bf16.msra.mxu0 0
  %5191 = vmatprep.subr.bf16.mxu0 0
  %5192 = vmatpush1.bf16.msra.mxu0 0
  %5193 = vmatprep.subr.bf16.mxu0 0
  %5194 = vmatpush1.bf16.msra.mxu0 0
  %5195 = vmatprep.subr.bf16.mxu0 0
  %5196 = vmatpush1.bf16.msra.mxu0 0
  %5197 = vmatprep.subr.bf16.mxu0 0
  %5198 = vmatpush1.bf16.msra.mxu0 0
  %5199 = vmatprep.subr.bf16.mxu0 0
  %5200 = vmatpush1.bf16.msra.mxu0 0
  %5201 = vmatprep.mubr.bf16.mxu0 0
  %5202 = vmatmul.mubr.bf16.gmra.mrb[0].mxu0 %v5097
  %v5203 = vpop.f32.mrb[0].mxu0
  %v5204 = vadd.f32 0.0, %v5203
  %v5205 = vpop.f32.mrb[0].mxu0
  %v5206 = vpop.f32.mrb[0].mxu0
  %v5207 = vadd.f32 0.0, %v5206
  %v5208 = vpop.f32.mrb[0].mxu0
  %5209 = vmatprep.mubr.bf16.mxu0 0
  %5210 = vmatmul.mubr.bf16.gmra.mrb[0].mxu0 %v5098
  %v5211 = vpop.f32.mrb[0].mxu0
  %v5212 = vadd.f32 0.0, %v5211
  %v5213 = vpop.f32.mrb[0].mxu0
  %v5214 = vpop.f32.mrb[0].mxu0
  %v5215 = vadd.f32 0.0, %v5214
  %v5216 = vpop.f32.mrb[0].mxu0
  %5217 = vmatprep.mubr.bf16.mxu0 0
  %5218 = vmatmul.mubr.bf16.gmra.mrb[0].mxu0 %v5099
  %v5219 = vpop.f32.mrb[0].mxu0
  %v5220 = vadd.f32 0.0, %v5219
  %v5221 = vpop.f32.mrb[0].mxu0
  %v5222 = vpop.f32.mrb[0].mxu0
  %v5223 = vadd.f32 0.0, %v5222
  %v5224 = vpop.f32.mrb[0].mxu0
  %5225 = vmatprep.mubr.bf16.mxu0 0
  %5226 = vmatmul.mubr.bf16.gmra.mrb[0].mxu0 %v5100
  %v5227 = vpop.f32.mrb[0].mxu0
  %v5228 = vadd.f32 0.0, %v5227
  %v5229 = vpop.f32.mrb[0].mxu0
  %v5230 = vpop.f32.mrb[0].mxu0
  %v5231 = vadd.f32 0.0, %v5230
  %v5232 = vpop.f32.mrb[0].mxu0
  %5233 = vmatprep.mubr.bf16.mxu0 0
  %5234 = vmatmul.mubr.bf16.gmra.mrb[0].mxu0 %v5101
  %v5235 = vpop.f32.mrb[0].mxu0
  %v5236 = vadd.f32 0.0, %v5235
  %v5237 = vpop.f32.mrb[0].mxu0
  %v5238 = vpop.f32.mrb[0].mxu0
  %v5239 = vadd.f32 0.0, %v5238
  %v5240 = vpop.f32.mrb[0].mxu0
  %5241 = vmatprep.mubr.bf16.mxu0 0
  %5242 = vmatmul.mubr.bf16.gmra.mrb[0].mxu0 %v5102
  %v5243 = vpop.f32.mrb[0].mxu0
  %v5244 = vadd.f32 0.0, %v5243
  %v5245 = vpop.f32.mrb[0].mxu0
  %v5246 = vpop.f32.mrb[0].mxu0
  %v5247 = vadd.f32 0.0, %v5246
  %v5248 = vpop.f32.mrb[0].mxu0
  %5249 = vmatprep.mubr.bf16.mxu0 0
  %5250 = vmatmul.mubr.bf16.gmra.mrb[0].mxu0 %v5103
  %v5251 = vpop.f32.mrb[0].mxu0
  %v5252 = vadd.f32 0.0, %v5251
  %v5253 = vpop.f32.mrb[0].mxu0
  %v5254 = vpop.f32.mrb[0].mxu0
  %v5255 = vadd.f32 0.0, %v5254
  %v5256 = vpop.f32.mrb[0].mxu0
  %5257 = vmatprep.mubr.bf16.mxu0 0
  %5258 = vmatmul.mubr.bf16.gmra.mrb[0].mxu0 %v5104
  %v5259 = vpop.f32.mrb[0].mxu0
  %v5260 = vadd.f32 0.0, %v5259
  %v5261 = vpop.f32.mrb[0].mxu0
  %v5262 = vpop.f32.mrb[0].mxu0
  %v5263 = vadd.f32 0.0, %v5262
  %v5264 = vpop.f32.mrb[0].mxu0
  %5265 = vdwg.mxu0
  %v5266 = vadd.f32 %v5081, %v5204
  %v5267 = vadd.f32 %v5082, %v5207
  %v5268 = vadd.f32 %v5083, %v5212
  %v5269 = vadd.f32 %v5084, %v5215
  %v5270 = vadd.f32 %v5085, %v5220
  %v5271 = vadd.f32 %v5086, %v5223
  %v5272 = vadd.f32 %v5087, %v5228
  %v5273 = vadd.f32 %v5088, %v5231
  %v5274 = vadd.f32 %v5089, %v5236
  %v5275 = vadd.f32 %v5090, %v5239
  %v5276 = vadd.f32 %v5091, %v5244
  %v5277 = vadd.f32 %v5092, %v5247
  %v5278 = vadd.f32 %v5093, %v5252
  %v5279 = vadd.f32 %v5094, %v5255
  %v5280 = vadd.f32 %v5095, %v5260
  %v5281 = vadd.f32 %v5096, %v5263
  %v5282 = vpack.c.bf16 %v3775, %v3772
  %v5283 = vpack.c.bf16 %v3783, %v3780
  %v5284 = vpack.c.bf16 %v3791, %v3788
  %v5285 = vpack.c.bf16 %v3799, %v3796
  %v5286 = vpack.c.bf16 %v3807, %v3804
  %v5287 = vpack.c.bf16 %v3815, %v3812
  %v5288 = vpack.c.bf16 %v3823, %v3820
  %v5289 = vpack.c.bf16 %v3831, %v3828
  %v5290 = vld [vmem:[%s4 + $0x200] sm:$0xf]
  %v5291 = vld [vmem:[%s4 + $0x204] sm:$0xf]
  %v5292 = vld [vmem:[%s4 + $0x208] sm:$0xf]
  %v5293 = vld [vmem:[%s4 + $0x20c] sm:$0xf]
  %v5294 = vld [vmem:[%s4 + $0x210] sm:$0xf]
  %v5295 = vld [vmem:[%s4 + $0x214] sm:$0xf]
  %v5296 = vld [vmem:[%s4 + $0x218] sm:$0xf]
  %v5297 = vld [vmem:[%s4 + $0x21c] sm:$0xf]
  %v5298 = vld [vmem:[%s4 + $0x220] sm:$0xf]
  %v5299 = vld [vmem:[%s4 + $0x224] sm:$0xf]
  %v5300 = vld [vmem:[%s4 + $0x228] sm:$0xf]
  %v5301 = vld [vmem:[%s4 + $0x22c] sm:$0xf]
  %v5302 = vld [vmem:[%s4 + $0x230] sm:$0xf]
  %v5303 = vld [vmem:[%s4 + $0x234] sm:$0xf]
  %v5304 = vld [vmem:[%s4 + $0x238] sm:$0xf]
  %v5305 = vld [vmem:[%s4 + $0x23c] sm:$0xf]
  %v5322 = vunpack.c.l.b16 %v5290
  %v5323 = vunpack.c.l.b16 %v5291
  %v5324 = vunpack.c.l.b16 %v5292
  %v5325 = vunpack.c.l.b16 %v5293
  %v5326 = vunpack.c.l.b16 %v5294
  %v5327 = vunpack.c.l.b16 %v5295
  %v5328 = vunpack.c.l.b16 %v5296
  %v5329 = vunpack.c.l.b16 %v5297
  %v5330 = vunpack.c.l.b16 %v5298
  %v5331 = vunpack.c.l.b16 %v5299
  %v5332 = vunpack.c.l.b16 %v5300
  %v5333 = vunpack.c.l.b16 %v5301
  %v5334 = vunpack.c.l.b16 %v5302
  %v5335 = vunpack.c.l.b16 %v5303
  %v5336 = vunpack.c.l.b16 %v5304
  %v5337 = vunpack.c.l.b16 %v5305
  %v5338 = vpack.c.b16 %v5323, %v5322
  %v5339 = vpack.c.b16 %v5325, %v5324
  %v5340 = vpack.c.b16 %v5327, %v5326
  %v5341 = vpack.c.b16 %v5329, %v5328
  %v5342 = vpack.c.b16 %v5331, %v5330
  %v5343 = vpack.c.b16 %v5333, %v5332
  %v5344 = vpack.c.b16 %v5335, %v5334
  %v5345 = vpack.c.b16 %v5337, %v5336
  %5354 = vmatprep.subr.bf16.mxu0 0
  %5355 = vmatpush1.bf16.msra.mxu0 %v5338
  %5356 = vmatprep.subr.bf16.mxu0 0
  %5357 = vmatpush1.bf16.msra.mxu0 %v5339
  %5358 = vmatprep.subr.bf16.mxu0 0
  %5359 = vmatpush1.bf16.msra.mxu0 %v5340
  %5360 = vmatprep.subr.bf16.mxu0 0
  %5361 = vmatpush1.bf16.msra.mxu0 %v5341
  %5362 = vmatprep.subr.bf16.mxu0 0
  %5363 = vmatpush1.bf16.msra.mxu0 %v5342
  %5364 = vmatprep.subr.bf16.mxu0 0
  %5365 = vmatpush1.bf16.msra.mxu0 %v5343
  %5366 = vmatprep.subr.bf16.mxu0 0
  %5367 = vmatpush1.bf16.msra.mxu0 %v5344
  %5368 = vmatprep.subr.bf16.mxu0 0
  %5369 = vmatpush1.bf16.msra.mxu0 %v5345
  %5370 = vmatprep.subr.bf16.mxu0 0
  %5371 = vmatpush1.bf16.msra.mxu0 0
  %5372 = vmatprep.subr.bf16.mxu0 0
  %5373 = vmatpush1.bf16.msra.mxu0 0
  %5374 = vmatprep.subr.bf16.mxu0 0
  %5375 = vmatpush1.bf16.msra.mxu0 0
  %5376 = vmatprep.subr.bf16.mxu0 0
  %5377 = vmatpush1.bf16.msra.mxu0 0
  %5378 = vmatprep.subr.bf16.mxu0 0
  %5379 = vmatpush1.bf16.msra.mxu0 0
  %5380 = vmatprep.subr.bf16.mxu0 0
  %5381 = vmatpush1.bf16.msra.mxu0 0
  %5382 = vmatprep.subr.bf16.mxu0 0
  %5383 = vmatpush1.bf16.msra.mxu0 0
  %5384 = vmatprep.subr.bf16.mxu0 0
  %5385 = vmatpush1.bf16.msra.mxu0 0
  %5386 = vmatprep.mubr.bf16.mxu0 0
  %5387 = vmatmul.mubr.bf16.gmra.mrb[0].mxu0 %v5282
  %v5388 = vpop.f32.mrb[0].mxu0
  %v5389 = vadd.f32 0.0, %v5388
  %v5390 = vpop.f32.mrb[0].mxu0
  %v5391 = vpop.f32.mrb[0].mxu0
  %v5392 = vadd.f32 0.0, %v5391
  %v5393 = vpop.f32.mrb[0].mxu0
  %5394 = vmatprep.mubr.bf16.mxu0 0
  %5395 = vmatmul.mubr.bf16.gmra.mrb[0].mxu0 %v5283
  %v5396 = vpop.f32.mrb[0].mxu0
  %v5397 = vadd.f32 0.0, %v5396
  %v5398 = vpop.f32.mrb[0].mxu0
  %v5399 = vpop.f32.mrb[0].mxu0
  %v5400 = vadd.f32 0.0, %v5399
  %v5401 = vpop.f32.mrb[0].mxu0
  %5402 = vmatprep.mubr.bf16.mxu0 0
  %5403 = vmatmul.mubr.bf16.gmra.mrb[0].mxu0 %v5284
  %v5404 = vpop.f32.mrb[0].mxu0
  %v5405 = vadd.f32 0.0, %v5404
  %v5406 = vpop.f32.mrb[0].mxu0
  %v5407 = vpop.f32.mrb[0].mxu0
  %v5408 = vadd.f32 0.0, %v5407
  %v5409 = vpop.f32.mrb[0].mxu0
  %5410 = vmatprep.mubr.bf16.mxu0 0
  %5411 = vmatmul.mubr.bf16.gmra.mrb[0].mxu0 %v5285
  %v5412 = vpop.f32.mrb[0].mxu0
  %v5413 = vadd.f32 0.0, %v5412
  %v5414 = vpop.f32.mrb[0].mxu0
  %v5415 = vpop.f32.mrb[0].mxu0
  %v5416 = vadd.f32 0.0, %v5415
  %v5417 = vpop.f32.mrb[0].mxu0
  %5418 = vmatprep.mubr.bf16.mxu0 0
  %5419 = vmatmul.mubr.bf16.gmra.mrb[0].mxu0 %v5286
  %v5420 = vpop.f32.mrb[0].mxu0
  %v5421 = vadd.f32 0.0, %v5420
  %v5422 = vpop.f32.mrb[0].mxu0
  %v5423 = vpop.f32.mrb[0].mxu0
  %v5424 = vadd.f32 0.0, %v5423
  %v5425 = vpop.f32.mrb[0].mxu0
  %5426 = vmatprep.mubr.bf16.mxu0 0
  %5427 = vmatmul.mubr.bf16.gmra.mrb[0].mxu0 %v5287
  %v5428 = vpop.f32.mrb[0].mxu0
  %v5429 = vadd.f32 0.0, %v5428
  %v5430 = vpop.f32.mrb[0].mxu0
  %v5431 = vpop.f32.mrb[0].mxu0
  %v5432 = vadd.f32 0.0, %v5431
  %v5433 = vpop.f32.mrb[0].mxu0
  %5434 = vmatprep.mubr.bf16.mxu0 0
  %5435 = vmatmul.mubr.bf16.gmra.mrb[0].mxu0 %v5288
  %v5436 = vpop.f32.mrb[0].mxu0
  %v5437 = vadd.f32 0.0, %v5436
  %v5438 = vpop.f32.mrb[0].mxu0
  %v5439 = vpop.f32.mrb[0].mxu0
  %v5440 = vadd.f32 0.0, %v5439
  %v5441 = vpop.f32.mrb[0].mxu0
  %5442 = vmatprep.mubr.bf16.mxu0 0
  %5443 = vmatmul.mubr.bf16.gmra.mrb[0].mxu0 %v5289
  %v5444 = vpop.f32.mrb[0].mxu0
  %v5445 = vadd.f32 0.0, %v5444
  %v5446 = vpop.f32.mrb[0].mxu0
  %v5447 = vpop.f32.mrb[0].mxu0
  %v5448 = vadd.f32 0.0, %v5447
  %v5449 = vpop.f32.mrb[0].mxu0
  %5450 = vdwg.mxu0
  %v5451 = vadd.f32 %v5266, %v5389
  %v5452 = vadd.f32 %v5267, %v5392
  %v5453 = vadd.f32 %v5268, %v5397
  %v5454 = vadd.f32 %v5269, %v5400
  %v5455 = vadd.f32 %v5270, %v5405
  %v5456 = vadd.f32 %v5271, %v5408
  %v5457 = vadd.f32 %v5272, %v5413
  %v5458 = vadd.f32 %v5273, %v5416
  %v5459 = vadd.f32 %v5274, %v5421
  %v5460 = vadd.f32 %v5275, %v5424
  %v5461 = vadd.f32 %v5276, %v5429
  %v5462 = vadd.f32 %v5277, %v5432
  %v5463 = vadd.f32 %v5278, %v5437
  %v5464 = vadd.f32 %v5279, %v5440
  %v5465 = vadd.f32 %v5280, %v5445
  %v5466 = vadd.f32 %v5281, %v5448
  %v5467 = vld [vmem:[%s5] sm:$0x1]
  %v5468 = vlaneseq
  %v5469 = vshrl.u32 %v5468, 7
  %v5470 = vsub.s32 0, %v5469
  %v5471 = vrot.slane %v5467, %v5470
  %v5472 = vadd.f32 %v5451, %v5471
  %v5473 = vadd.f32 %v5452, %v5471
  %v5474 = vadd.f32 %v5453, %v5471
  %v5475 = vadd.f32 %v5454, %v5471
  %v5476 = vadd.f32 %v5455, %v5471
  %v5477 = vadd.f32 %v5456, %v5471
  %v5478 = vadd.f32 %v5457, %v5471
  %v5479 = vadd.f32 %v5458, %v5471
  %v5480 = vadd.f32 %v5459, %v5471
  %v5481 = vadd.f32 %v5460, %v5471
  %v5482 = vadd.f32 %v5461, %v5471
  %v5483 = vadd.f32 %v5462, %v5471
  %v5484 = vadd.f32 %v5463, %v5471
  %v5485 = vadd.f32 %v5464, %v5471
  %v5486 = vadd.f32 %v5465, %v5471
  %v5487 = vadd.f32 %v5466, %v5471
  %vm5488 = vcmp.ge.f32.partialorder %v5472, 0.0
  %vm5489 = vcmp.ge.f32.partialorder %v5473, 0.0
  %vm5490 = vcmp.ge.f32.partialorder %v5474, 0.0
  %vm5491 = vcmp.ge.f32.partialorder %v5475, 0.0
  %vm5492 = vcmp.ge.f32.partialorder %v5476, 0.0
  %vm5493 = vcmp.ge.f32.partialorder %v5477, 0.0
  %vm5494 = vcmp.ge.f32.partialorder %v5478, 0.0
  %vm5495 = vcmp.ge.f32.partialorder %v5479, 0.0
  %vm5496 = vcmp.ge.f32.partialorder %v5480, 0.0
  %vm5497 = vcmp.ge.f32.partialorder %v5481, 0.0
  %vm5498 = vcmp.ge.f32.partialorder %v5482, 0.0
  %vm5499 = vcmp.ge.f32.partialorder %v5483, 0.0
  %vm5500 = vcmp.ge.f32.partialorder %v5484, 0.0
  %vm5501 = vcmp.ge.f32.partialorder %v5485, 0.0
  %vm5502 = vcmp.ge.f32.partialorder %v5486, 0.0
  %vm5503 = vcmp.ge.f32.partialorder %v5487, 0.0
  %v5504 = vmul.f32 %v5472, 0.2
  %v5505 = vmul.f32 %v5473, 0.2
  %v5506 = vmul.f32 %v5474, 0.2
  %v5507 = vmul.f32 %v5475, 0.2
  %v5508 = vmul.f32 %v5476, 0.2
  %v5509 = vmul.f32 %v5477, 0.2
  %v5510 = vmul.f32 %v5478, 0.2
  %v5511 = vmul.f32 %v5479, 0.2
  %v5512 = vmul.f32 %v5480, 0.2
  %v5513 = vmul.f32 %v5481, 0.2
  %v5514 = vmul.f32 %v5482, 0.2
  %v5515 = vmul.f32 %v5483, 0.2
  %v5516 = vmul.f32 %v5484, 0.2
  %v5517 = vmul.f32 %v5485, 0.2
  %v5518 = vmul.f32 %v5486, 0.2
  %v5519 = vmul.f32 %v5487, 0.2
  %v5520 = vsel %vm5488, %v5472, %v5504
  %v5521 = vsel %vm5489, %v5473, %v5505
  %v5522 = vsel %vm5490, %v5474, %v5506
  %v5523 = vsel %vm5491, %v5475, %v5507
  %v5524 = vsel %vm5492, %v5476, %v5508
  %v5525 = vsel %vm5493, %v5477, %v5509
  %v5526 = vsel %vm5494, %v5478, %v5510
  %v5527 = vsel %vm5495, %v5479, %v5511
  %v5528 = vsel %vm5496, %v5480, %v5512
  %v5529 = vsel %vm5497, %v5481, %v5513
  %v5530 = vsel %vm5498, %v5482, %v5514
  %v5531 = vsel %vm5499, %v5483, %v5515
  %v5532 = vsel %vm5500, %v5484, %v5516
  %v5533 = vsel %vm5501, %v5485, %v5517
  %v5534 = vsel %vm5502, %v5486, %v5518
  %v5535 = vsel %vm5503, %v5487, %v5519
  %v5536 = vld [vmem:[%s5 + $0x1] sm:$0x1]
  %v5537 = vlaneseq
  %v5538 = vshrl.u32 %v5537, 7
  %v5539 = vsub.s32 0, %v5538
  %v5540 = vrot.slane %v5536, %v5539
  %v5541 = vmul.f32 %v5520, %v5540
  %v5542 = vmul.f32 %v5521, %v5540
  %v5543 = vmul.f32 %v5522, %v5540
  %v5544 = vmul.f32 %v5523, %v5540
  %v5545 = vmul.f32 %v5524, %v5540
  %v5546 = vmul.f32 %v5525, %v5540
  %v5547 = vmul.f32 %v5526, %v5540
  %v5548 = vmul.f32 %v5527, %v5540
  %v5549 = vmul.f32 %v5528, %v5540
  %v5550 = vmul.f32 %v5529, %v5540
  %v5551 = vmul.f32 %v5530, %v5540
  %v5552 = vmul.f32 %v5531, %v5540
  %v5553 = vmul.f32 %v5532, %v5540
  %v5554 = vmul.f32 %v5533, %v5540
  %v5555 = vmul.f32 %v5534, %v5540
  %v5556 = vmul.f32 %v5535, %v5540
  %v5557 = vld [vmem:[%s5 + $0x2] sm:$0x1]
  %v5558 = vlaneseq
  %v5559 = vshrl.u32 %v5558, 7
  %v5560 = vsub.s32 0, %v5559
  %v5561 = vrot.slane %v5557, %v5560
  %v5562 = vadd.f32 %v5541, %v5561
  %v5563 = vadd.f32 %v5542, %v5561
  %v5564 = vadd.f32 %v5543, %v5561
  %v5565 = vadd.f32 %v5544, %v5561
  %v5566 = vadd.f32 %v5545, %v5561
  %v5567 = vadd.f32 %v5546, %v5561
  %v5568 = vadd.f32 %v5547, %v5561
  %v5569 = vadd.f32 %v5548, %v5561
  %v5570 = vadd.f32 %v5549, %v5561
  %v5571 = vadd.f32 %v5550, %v5561
  %v5572 = vadd.f32 %v5551, %v5561
  %v5573 = vadd.f32 %v5552, %v5561
  %v5574 = vadd.f32 %v5553, %v5561
  %v5575 = vadd.f32 %v5554, %v5561
  %v5576 = vadd.f32 %v5555, %v5561
  %v5577 = vadd.f32 %v5556, %v5561
  %v5578 = vpack.c.bf16 %v5563, %v5562
  %v5579 = vpack.c.bf16 %v5565, %v5564
  %v5580 = vpack.c.bf16 %v5567, %v5566
  %v5581 = vpack.c.bf16 %v5569, %v5568
  %v5582 = vpack.c.bf16 %v5571, %v5570
  %v5583 = vpack.c.bf16 %v5573, %v5572
  %v5584 = vpack.c.bf16 %v5575, %v5574
  %v5585 = vpack.c.bf16 %v5577, %v5576
  %v5586 = vld [vmem:[%s6] sm:$0xf]
  %v5587 = vld [vmem:[%s6 + $0x4] sm:$0xf]
  %v5588 = vld [vmem:[%s6 + $0x8] sm:$0xf]
  %v5589 = vld [vmem:[%s6 + $0xc] sm:$0xf]
  %v5590 = vld [vmem:[%s6 + $0x10] sm:$0xf]
  %v5591 = vld [vmem:[%s6 + $0x14] sm:$0xf]
  %v5592 = vld [vmem:[%s6 + $0x18] sm:$0xf]
  %v5593 = vld [vmem:[%s6 + $0x1c] sm:$0xf]
  %v5594 = vld [vmem:[%s6 + $0x20] sm:$0xf]
  %v5595 = vld [vmem:[%s6 + $0x24] sm:$0xf]
  %v5596 = vld [vmem:[%s6 + $0x28] sm:$0xf]
  %v5597 = vld [vmem:[%s6 + $0x2c] sm:$0xf]
  %v5598 = vld [vmem:[%s6 + $0x30] sm:$0xf]
  %v5599 = vld [vmem:[%s6 + $0x34] sm:$0xf]
  %v5600 = vld [vmem:[%s6 + $0x38] sm:$0xf]
  %v5601 = vld [vmem:[%s6 + $0x3c] sm:$0xf]
  %v5602 = vld [vmem:[%s6 + $0x40] sm:$0xf]
  %v5603 = vld [vmem:[%s6 + $0x44] sm:$0xf]
  %v5604 = vld [vmem:[%s6 + $0x48] sm:$0xf]
  %v5605 = vld [vmem:[%s6 + $0x4c] sm:$0xf]
  %v5606 = vld [vmem:[%s6 + $0x50] sm:$0xf]
  %v5607 = vld [vmem:[%s6 + $0x54] sm:$0xf]
  %v5608 = vld [vmem:[%s6 + $0x58] sm:$0xf]
  %v5609 = vld [vmem:[%s6 + $0x5c] sm:$0xf]
  %v5610 = vld [vmem:[%s6 + $0x60] sm:$0xf]
  %v5611 = vld [vmem:[%s6 + $0x64] sm:$0xf]
  %v5612 = vld [vmem:[%s6 + $0x68] sm:$0xf]
  %v5613 = vld [vmem:[%s6 + $0x6c] sm:$0xf]
  %v5614 = vld [vmem:[%s6 + $0x70] sm:$0xf]
  %v5615 = vld [vmem:[%s6 + $0x74] sm:$0xf]
  %v5616 = vld [vmem:[%s6 + $0x78] sm:$0xf]
  %v5617 = vld [vmem:[%s6 + $0x7c] sm:$0xf]
  %v5618 = vld [vmem:[%s6 + $0x80] sm:$0xf]
  %v5619 = vld [vmem:[%s6 + $0x84] sm:$0xf]
  %v5620 = vld [vmem:[%s6 + $0x88] sm:$0xf]
  %v5621 = vld [vmem:[%s6 + $0x8c] sm:$0xf]
  %v5658 = vunpack.c.l.b16 %v5586
  %v5659 = vunpack.c.l.b16 %v5587
  %v5660 = vunpack.c.l.b16 %v5588
  %v5661 = vunpack.c.l.b16 %v5589
  %v5662 = vunpack.c.l.b16 %v5590
  %v5663 = vunpack.c.l.b16 %v5591
  %v5664 = vunpack.c.l.b16 %v5592
  %v5665 = vunpack.c.l.b16 %v5593
  %v5666 = vunpack.c.l.b16 %v5594
  %v5667 = vunpack.c.l.b16 %v5595
  %v5668 = vunpack.c.l.b16 %v5596
  %v5669 = vunpack.c.l.b16 %v5597
  %v5670 = vunpack.c.l.b16 %v5598
  %v5671 = vunpack.c.l.b16 %v5599
  %v5672 = vunpack.c.l.b16 %v5600
  %v5673 = vunpack.c.l.b16 %v5601
  %v5674 = vunpack.c.l.b16 %v5602
  %v5675 = vunpack.c.l.b16 %v5603
  %v5676 = vunpack.c.l.b16 %v5604
  %v5677 = vunpack.c.l.b16 %v5605
  %v5678 = vunpack.c.l.b16 %v5606
  %v5679 = vunpack.c.l.b16 %v5607
  %v5680 = vunpack.c.l.b16 %v5608
  %v5681 = vunpack.c.l.b16 %v5609
  %v5682 = vunpack.c.l.b16 %v5610
  %v5683 = vunpack.c.l.b16 %v5611
  %v5684 = vunpack.c.l.b16 %v5612
  %v5685 = vunpack.c.l.b16 %v5613
  %v5686 = vunpack.c.l.b16 %v5614
  %v5687 = vunpack.c.l.b16 %v5615
  %v5688 = vunpack.c.l.b16 %v5616
  %v5689 = vunpack.c.l.b16 %v5617
  %v5690 = vunpack.c.l.b16 %v5618
  %v5691 = vunpack.c.l.b16 %v5619
  %v5692 = vunpack.c.l.b16 %v5620
  %v5693 = vunpack.c.l.b16 %v5621
  %v5694 = vpack.c.b16 %v5659, %v5658
  %v5695 = vpack.c.b16 %v5661, %v5660
  %v5696 = vpack.c.b16 %v5663, %v5662
  %v5697 = vpack.c.b16 %v5665, %v5664
  %v5698 = vpack.c.b16 %v5667, %v5666
  %v5699 = vpack.c.b16 %v5669, %v5668
  %v5700 = vpack.c.b16 %v5671, %v5670
  %v5701 = vpack.c.b16 %v5673, %v5672
  %v5702 = vpack.c.b16 %v5675, %v5674
  %v5703 = vpack.c.b16 %v5677, %v5676
  %v5704 = vpack.c.b16 %v5679, %v5678
  %v5705 = vpack.c.b16 %v5681, %v5680
  %v5706 = vpack.c.b16 %v5683, %v5682
  %v5707 = vpack.c.b16 %v5685, %v5684
  %v5708 = vpack.c.b16 %v5687, %v5686
  %v5709 = vpack.c.b16 %v5689, %v5688
  %v5710 = vpack.c.b16 %v5691, %v5690
  %v5711 = vpack.c.b16 %v5693, %v5692
  %5730 = vmatprep.subr.bf16.mxu0 0
  %5731 = vmatpush1.bf16.msra.mxu0 %v5578
  %5732 = vmatprep.subr.bf16.mxu0 0
  %5733 = vmatpush1.bf16.msra.mxu0 %v5579
  %5734 = vmatprep.subr.bf16.mxu0 0
  %5735 = vmatpush1.bf16.msra.mxu0 %v5580
  %5736 = vmatprep.subr.bf16.mxu0 0
  %5737 = vmatpush1.bf16.msra.mxu0 %v5581
  %5738 = vmatprep.subr.bf16.mxu0 0
  %5739 = vmatpush1.bf16.msra.mxu0 %v5582
  %5740 = vmatprep.subr.bf16.mxu0 0
  %5741 = vmatpush1.bf16.msra.mxu0 %v5583
  %5742 = vmatprep.subr.bf16.mxu0 0
  %5743 = vmatpush1.bf16.msra.mxu0 %v5584
  %5744 = vmatprep.subr.bf16.mxu0 0
  %5745 = vmatpush1.bf16.msra.mxu0 %v5585
  %5746 = vmatprep.subr.bf16.mxu0 0
  %5747 = vmatpush1.bf16.msra.mxu0 0
  %5748 = vmatprep.subr.bf16.mxu0 0
  %5749 = vmatpush1.bf16.msra.mxu0 0
  %5750 = vmatprep.subr.bf16.mxu0 0
  %5751 = vmatpush1.bf16.msra.mxu0 0
  %5752 = vmatprep.subr.bf16.mxu0 0
  %5753 = vmatpush1.bf16.msra.mxu0 0
  %5754 = vmatprep.subr.bf16.mxu0 0
  %5755 = vmatpush1.bf16.msra.mxu0 0
  %5756 = vmatprep.subr.bf16.mxu0 0
  %5757 = vmatpush1.bf16.msra.mxu0 0
  %5758 = vmatprep.subr.bf16.mxu0 0
  %5759 = vmatpush1.bf16.msra.mxu0 0
  %5760 = vmatprep.subr.bf16.mxu0 0
  %5761 = vmatpush1.bf16.msra.mxu0 0
  %5762 = vmatprep.mubr.bf16.mxu0 0
  %5763 = vmatmul.mubr.bf16.gmra.mrb[0].mxu0 %v5694
  %v5764 = vpop.f32.mrb[0].mxu0
  %v5765 = vadd.f32 0.0, %v5764
  %v5766 = vpop.f32.mrb[0].mxu0
  %v5767 = vpop.f32.mrb[0].mxu0
  %v5768 = vadd.f32 0.0, %v5767
  %v5769 = vpop.f32.mrb[0].mxu0
  %5770 = vmatprep.mubr.bf16.mxu0 0
  %5771 = vmatmul.mubr.bf16.gmra.mrb[0].mxu0 %v5695
  %v5772 = vpop.f32.mrb[0].mxu0
  %v5773 = vadd.f32 0.0, %v5772
  %v5774 = vpop.f32.mrb[0].mxu0
  %v5775 = vpop.f32.mrb[0].mxu0
  %v5776 = vadd.f32 0.0, %v5775
  %v5777 = vpop.f32.mrb[0].mxu0
  %5778 = vmatprep.mubr.bf16.mxu0 0
  %5779 = vmatmul.mubr.bf16.gmra.mrb[0].mxu0 %v5696
  %v5780 = vpop.f32.mrb[0].mxu0
  %v5781 = vadd.f32 0.0, %v5780
  %v5782 = vpop.f32.mrb[0].mxu0
  %v5783 = vpop.f32.mrb[0].mxu0
  %v5784 = vadd.f32 0.0, %v5783
  %v5785 = vpop.f32.mrb[0].mxu0
  %5786 = vmatprep.mubr.bf16.mxu0 0
  %5787 = vmatmul.mubr.bf16.gmra.mrb[0].mxu0 %v5697
  %v5788 = vpop.f32.mrb[0].mxu0
  %v5789 = vadd.f32 0.0, %v5788
  %v5790 = vpop.f32.mrb[0].mxu0
  %v5791 = vpop.f32.mrb[0].mxu0
  %v5792 = vadd.f32 0.0, %v5791
  %v5793 = vpop.f32.mrb[0].mxu0
  %5794 = vmatprep.mubr.bf16.mxu0 0
  %5795 = vmatmul.mubr.bf16.gmra.mrb[0].mxu0 %v5698
  %v5796 = vpop.f32.mrb[0].mxu0
  %v5797 = vadd.f32 0.0, %v5796
  %v5798 = vpop.f32.mrb[0].mxu0
  %v5799 = vpop.f32.mrb[0].mxu0
  %v5800 = vadd.f32 0.0, %v5799
  %v5801 = vpop.f32.mrb[0].mxu0
  %5802 = vmatprep.mubr.bf16.mxu0 0
  %5803 = vmatmul.mubr.bf16.gmra.mrb[0].mxu0 %v5699
  %v5804 = vpop.f32.mrb[0].mxu0
  %v5805 = vadd.f32 0.0, %v5804
  %v5806 = vpop.f32.mrb[0].mxu0
  %v5807 = vpop.f32.mrb[0].mxu0
  %v5808 = vadd.f32 0.0, %v5807
  %v5809 = vpop.f32.mrb[0].mxu0
  %5810 = vmatprep.mubr.bf16.mxu0 0
  %5811 = vmatmul.mubr.bf16.gmra.mrb[0].mxu0 %v5700
  %v5812 = vpop.f32.mrb[0].mxu0
  %v5813 = vadd.f32 0.0, %v5812
  %v5814 = vpop.f32.mrb[0].mxu0
  %v5815 = vpop.f32.mrb[0].mxu0
  %v5816 = vadd.f32 0.0, %v5815
  %v5817 = vpop.f32.mrb[0].mxu0
  %5818 = vmatprep.mubr.bf16.mxu0 0
  %5819 = vmatmul.mubr.bf16.gmra.mrb[0].mxu0 %v5701
  %v5820 = vpop.f32.mrb[0].mxu0
  %v5821 = vadd.f32 0.0, %v5820
  %v5822 = vpop.f32.mrb[0].mxu0
  %v5823 = vpop.f32.mrb[0].mxu0
  %v5824 = vadd.f32 0.0, %v5823
  %v5825 = vpop.f32.mrb[0].mxu0
  %5826 = vmatprep.mubr.bf16.mxu0 0
  %5827 = vmatmul.mubr.bf16.gmra.mrb[0].mxu0 %v5702
  %v5828 = vpop.f32.mrb[0].mxu0
  %v5829 = vadd.f32 0.0, %v5828
  %v5830 = vpop.f32.mrb[0].mxu0
  %v5831 = vpop.f32.mrb[0].mxu0
  %v5832 = vadd.f32 0.0, %v5831
  %v5833 = vpop.f32.mrb[0].mxu0
  %5834 = vmatprep.mubr.bf16.mxu0 0
  %5835 = vmatmul.mubr.bf16.gmra.mrb[0].mxu0 %v5703
  %v5836 = vpop.f32.mrb[0].mxu0
  %v5837 = vadd.f32 0.0, %v5836
  %v5838 = vpop.f32.mrb[0].mxu0
  %v5839 = vpop.f32.mrb[0].mxu0
  %v5840 = vadd.f32 0.0, %v5839
  %v5841 = vpop.f32.mrb[0].mxu0
  %5842 = vmatprep.mubr.bf16.mxu0 0
  %5843 = vmatmul.mubr.bf16.gmra.mrb[0].mxu0 %v5704
  %v5844 = vpop.f32.mrb[0].mxu0
  %v5845 = vadd.f32 0.0, %v5844
  %v5846 = vpop.f32.mrb[0].mxu0
  %v5847 = vpop.f32.mrb[0].mxu0
  %v5848 = vadd.f32 0.0, %v5847
  %v5849 = vpop.f32.mrb[0].mxu0
  %5850 = vmatprep.mubr.bf16.mxu0 0
  %5851 = vmatmul.mubr.bf16.gmra.mrb[0].mxu0 %v5705
  %v5852 = vpop.f32.mrb[0].mxu0
  %v5853 = vadd.f32 0.0, %v5852
  %v5854 = vpop.f32.mrb[0].mxu0
  %v5855 = vpop.f32.mrb[0].mxu0
  %v5856 = vadd.f32 0.0, %v5855
  %v5857 = vpop.f32.mrb[0].mxu0
  %5858 = vmatprep.mubr.bf16.mxu0 0
  %5859 = vmatmul.mubr.bf16.gmra.mrb[0].mxu0 %v5706
  %v5860 = vpop.f32.mrb[0].mxu0
  %v5861 = vadd.f32 0.0, %v5860
  %v5862 = vpop.f32.mrb[0].mxu0
  %v5863 = vpop.f32.mrb[0].mxu0
  %v5864 = vadd.f32 0.0, %v5863
  %v5865 = vpop.f32.mrb[0].mxu0
  %5866 = vmatprep.mubr.bf16.mxu0 0
  %5867 = vmatmul.mubr.bf16.gmra.mrb[0].mxu0 %v5707
  %v5868 = vpop.f32.mrb[0].mxu0
  %v5869 = vadd.f32 0.0, %v5868
  %v5870 = vpop.f32.mrb[0].mxu0
  %v5871 = vpop.f32.mrb[0].mxu0
  %v5872 = vadd.f32 0.0, %v5871
  %v5873 = vpop.f32.mrb[0].mxu0
  %5874 = vmatprep.mubr.bf16.mxu0 0
  %5875 = vmatmul.mubr.bf16.gmra.mrb[0].mxu0 %v5708
  %v5876 = vpop.f32.mrb[0].mxu0
  %v5877 = vadd.f32 0.0, %v5876
  %v5878 = vpop.f32.mrb[0].mxu0
  %v5879 = vpop.f32.mrb[0].mxu0
  %v5880 = vadd.f32 0.0, %v5879
  %v5881 = vpop.f32.mrb[0].mxu0
  %5882 = vmatprep.mubr.bf16.mxu0 0
  %5883 = vmatmul.mubr.bf16.gmra.mrb[0].mxu0 %v5709
  %v5884 = vpop.f32.mrb[0].mxu0
  %v5885 = vadd.f32 0.0, %v5884
  %v5886 = vpop.f32.mrb[0].mxu0
  %v5887 = vpop.f32.mrb[0].mxu0
  %v5888 = vadd.f32 0.0, %v5887
  %v5889 = vpop.f32.mrb[0].mxu0
  %5890 = vmatprep.mubr.bf16.mxu0 0
  %5891 = vmatmul.mubr.bf16.gmra.mrb[0].mxu0 %v5710
  %v5892 = vpop.f32.mrb[0].mxu0
  %v5893 = vadd.f32 0.0, %v5892
  %v5894 = vpop.f32.mrb[0].mxu0
  %v5895 = vpop.f32.mrb[0].mxu0
  %v5896 = vadd.f32 0.0, %v5895
  %v5897 = vpop.f32.mrb[0].mxu0
  %5898 = vmatprep.mubr.bf16.mxu0 0
  %5899 = vmatmul.mubr.bf16.gmra.mrb[0].mxu0 %v5711
  %v5900 = vpop.f32.mrb[0].mxu0
  %v5901 = vadd.f32 0.0, %v5900
  %v5902 = vpop.f32.mrb[0].mxu0
  %v5903 = vpop.f32.mrb[0].mxu0
  %v5904 = vadd.f32 0.0, %v5903
  %v5905 = vpop.f32.mrb[0].mxu0
  %5906 = vdwg.mxu0
  %v5907 = vpack.c.bf16 %v5768, %v5765
  %v5908 = vpack.c.bf16 %v5776, %v5773
  %v5909 = vld [vmem:[%s7] sm:$0xf]
  %v5910 = vld [vmem:[%s7 + $0x4] sm:$0xf]
  %v5911 = vld [vmem:[%s7 + $0x8] sm:$0xf]
  %v5912 = vld [vmem:[%s7 + $0xc] sm:$0xf]
  %v5913 = vld [vmem:[%s7 + $0x10] sm:$0xf]
  %v5914 = vld [vmem:[%s7 + $0x14] sm:$0xf]
  %v5915 = vld [vmem:[%s7 + $0x18] sm:$0xf]
  %v5916 = vld [vmem:[%s7 + $0x1c] sm:$0xf]
  %v5917 = vld [vmem:[%s7 + $0x20] sm:$0xf]
  %v5918 = vld [vmem:[%s7 + $0x24] sm:$0xf]
  %v5919 = vld [vmem:[%s7 + $0x28] sm:$0xf]
  %v5920 = vld [vmem:[%s7 + $0x2c] sm:$0xf]
  %v5921 = vld [vmem:[%s7 + $0x30] sm:$0xf]
  %v5922 = vld [vmem:[%s7 + $0x34] sm:$0xf]
  %v5923 = vld [vmem:[%s7 + $0x38] sm:$0xf]
  %v5924 = vld [vmem:[%s7 + $0x3c] sm:$0xf]
  %v5925 = vpack.c.bf16 %v5784, %v5781
  %v5926 = vpack.c.bf16 %v5792, %v5789
  %v5927 = vld [vmem:[%s7 + $0x40] sm:$0xf]
  %v5928 = vld [vmem:[%s7 + $0x44] sm:$0xf]
  %v5929 = vld [vmem:[%s7 + $0x48] sm:$0xf]
  %v5930 = vld [vmem:[%s7 + $0x4c] sm:$0xf]
  %v5931 = vld [vmem:[%s7 + $0x50] sm:$0xf]
  %v5932 = vld [vmem:[%s7 + $0x54] sm:$0xf]
  %v5933 = vld [vmem:[%s7 + $0x58] sm:$0xf]
  %v5934 = vld [vmem:[%s7 + $0x5c] sm:$0xf]
  %v5935 = vld [vmem:[%s7 + $0x60] sm:$0xf]
  %v5936 = vld [vmem:[%s7 + $0x64] sm:$0xf]
  %v5937 = vld [vmem:[%s7 + $0x68] sm:$0xf]
  %v5938 = vld [vmem:[%s7 + $0x6c] sm:$0xf]
  %v5939 = vld [vmem:[%s7 + $0x70] sm:$0xf]
  %v5940 = vld [vmem:[%s7 + $0x74] sm:$0xf]
  %v5941 = vld [vmem:[%s7 + $0x78] sm:$0xf]
  %v5942 = vld [vmem:[%s7 + $0x7c] sm:$0xf]
  %v5959 = vunpack.c.l.b16 %v5927
  %v5960 = vunpack.c.l.b16 %v5928
  %v5961 = vunpack.c.l.b16 %v5929
  %v5962 = vunpack.c.l.b16 %v5930
  %v5963 = vunpack.c.l.b16 %v5931
  %v5964 = vunpack.c.l.b16 %v5932
  %v5965 = vunpack.c.l.b16 %v5933
  %v5966 = vunpack.c.l.b16 %v5934
  %v5967 = vunpack.c.l.b16 %v5935
  %v5968 = vunpack.c.l.b16 %v5936
  %v5969 = vunpack.c.l.b16 %v5937
  %v5970 = vunpack.c.l.b16 %v5938
  %v5971 = vunpack.c.l.b16 %v5939
  %v5972 = vunpack.c.l.b16 %v5940
  %v5973 = vunpack.c.l.b16 %v5941
  %v5974 = vunpack.c.l.b16 %v5942
  %v5975 = vpack.c.b16 %v5960, %v5959
  %v5976 = vpack.c.b16 %v5962, %v5961
  %v5977 = vpack.c.b16 %v5964, %v5963
  %v5978 = vpack.c.b16 %v5966, %v5965
  %v5979 = vpack.c.b16 %v5968, %v5967
  %v5980 = vpack.c.b16 %v5970, %v5969
  %v5981 = vpack.c.b16 %v5972, %v5971
  %v5982 = vpack.c.b16 %v5974, %v5973
  %5991 = vmatprep.subr.bf16.mxu0 0
  %5992 = vmatpush1.bf16.msra.mxu0 %v5975
  %5993 = vmatprep.subr.bf16.mxu0 0
  %5994 = vmatpush1.bf16.msra.mxu0 %v5976
  %5995 = vmatprep.subr.bf16.mxu0 0
  %5996 = vmatpush1.bf16.msra.mxu0 %v5977
  %5997 = vmatprep.subr.bf16.mxu0 0
  %5998 = vmatpush1.bf16.msra.mxu0 %v5978
  %5999 = vmatprep.subr.bf16.mxu0 0
  %6000 = vmatpush1.bf16.msra.mxu0 %v5979
  %6001 = vmatprep.subr.bf16.mxu0 0
  %6002 = vmatpush1.bf16.msra.mxu0 %v5980
  %6003 = vmatprep.subr.bf16.mxu0 0
  %6004 = vmatpush1.bf16.msra.mxu0 %v5981
  %6005 = vmatprep.subr.bf16.mxu0 0
  %6006 = vmatpush1.bf16.msra.mxu0 %v5982
  %6007 = vmatprep.subr.bf16.mxu0 0
  %6008 = vmatpush1.bf16.msra.mxu0 0
  %6009 = vmatprep.subr.bf16.mxu0 0
  %6010 = vmatpush1.bf16.msra.mxu0 0
  %6011 = vmatprep.subr.bf16.mxu0 0
  %6012 = vmatpush1.bf16.msra.mxu0 0
  %6013 = vmatprep.subr.bf16.mxu0 0
  %6014 = vmatpush1.bf16.msra.mxu0 0
  %6015 = vmatprep.subr.bf16.mxu0 0
  %6016 = vmatpush1.bf16.msra.mxu0 0
  %6017 = vmatprep.subr.bf16.mxu0 0
  %6018 = vmatpush1.bf16.msra.mxu0 0
  %6019 = vmatprep.subr.bf16.mxu0 0
  %6020 = vmatpush1.bf16.msra.mxu0 0
  %6021 = vmatprep.subr.bf16.mxu0 0
  %6022 = vmatpush1.bf16.msra.mxu0 0
  %6023 = vmatprep.mubr.bf16.mxu0 0
  %6024 = vmatmul.mubr.bf16.gmra.mrb[0].mxu0 %v5925
  %v6025 = vpop.f32.mrb[0].mxu0
  %v6026 = vadd.f32 0.0, %v6025
  %v6027 = vpop.f32.mrb[0].mxu0
  %v6028 = vpop.f32.mrb[0].mxu0
  %v6029 = vadd.f32 0.0, %v6028
  %v6030 = vpop.f32.mrb[0].mxu0
  %6031 = vmatprep.mubr.bf16.mxu0 0
  %6032 = vmatmul.mubr.bf16.gmra.mrb[0].mxu0 %v5926
  %v6033 = vpop.f32.mrb[0].mxu0
  %v6034 = vadd.f32 0.0, %v6033
  %v6035 = vpop.f32.mrb[0].mxu0
  %v6036 = vpop.f32.mrb[0].mxu0
  %v6037 = vadd.f32 0.0, %v6036
  %v6038 = vpop.f32.mrb[0].mxu0
  %6039 = vdwg.mxu0
  %v6056 = vunpack.c.l.b16 %v5909
  %v6057 = vunpack.c.l.b16 %v5910
  %v6058 = vunpack.c.l.b16 %v5911
  %v6059 = vunpack.c.l.b16 %v5912
  %v6060 = vunpack.c.l.b16 %v5913
  %v6061 = vunpack.c.l.b16 %v5914
  %v6062 = vunpack.c.l.b16 %v5915
  %v6063 = vunpack.c.l.b16 %v5916
  %v6064 = vunpack.c.l.b16 %v5917
  %v6065 = vunpack.c.l.b16 %v5918
  %v6066 = vunpack.c.l.b16 %v5919
  %v6067 = vunpack.c.l.b16 %v5920
  %v6068 = vunpack.c.l.b16 %v5921
  %v6069 = vunpack.c.l.b16 %v5922
  %v6070 = vunpack.c.l.b16 %v5923
  %v6071 = vunpack.c.l.b16 %v5924
  %v6072 = vpack.c.b16 %v6057, %v6056
  %v6073 = vpack.c.b16 %v6059, %v6058
  %v6074 = vpack.c.b16 %v6061, %v6060
  %v6075 = vpack.c.b16 %v6063, %v6062
  %v6076 = vpack.c.b16 %v6065, %v6064
  %v6077 = vpack.c.b16 %v6067, %v6066
  %v6078 = vpack.c.b16 %v6069, %v6068
  %v6079 = vpack.c.b16 %v6071, %v6070
  %6088 = vmatprep.subr.bf16.mxu0 0
  %6089 = vmatpush1.bf16.msra.mxu0 %v6072
  %6090 = vmatprep.subr.bf16.mxu0 0
  %6091 = vmatpush1.bf16.msra.mxu0 %v6073
  %6092 = vmatprep.subr.bf16.mxu0 0
  %6093 = vmatpush1.bf16.msra.mxu0 %v6074
  %6094 = vmatprep.subr.bf16.mxu0 0
  %6095 = vmatpush1.bf16.msra.mxu0 %v6075
  %6096 = vmatprep.subr.bf16.mxu0 0
  %6097 = vmatpush1.bf16.msra.mxu0 %v6076
  %6098 = vmatprep.subr.bf16.mxu0 0
  %6099 = vmatpush1.bf16.msra.mxu0 %v6077
  %6100 = vmatprep.subr.bf16.mxu0 0
  %6101 = vmatpush1.bf16.msra.mxu0 %v6078
  %6102 = vmatprep.subr.bf16.mxu0 0
  %6103 = vmatpush1.bf16.msra.mxu0 %v6079
  %6104 = vmatprep.subr.bf16.mxu0 0
  %6105 = vmatpush1.bf16.msra.mxu0 0
  %6106 = vmatprep.subr.bf16.mxu0 0
  %6107 = vmatpush1.bf16.msra.mxu0 0
  %6108 = vmatprep.subr.bf16.mxu0 0
  %6109 = vmatpush1.bf16.msra.mxu0 0
  %6110 = vmatprep.subr.bf16.mxu0 0
  %6111 = vmatpush1.bf16.msra.mxu0 0
  %6112 = vmatprep.subr.bf16.mxu0 0
  %6113 = vmatpush1.bf16.msra.mxu0 0
  %6114 = vmatprep.subr.bf16.mxu0 0
  %6115 = vmatpush1.bf16.msra.mxu0 0
  %6116 = vmatprep.subr.bf16.mxu0 0
  %6117 = vmatpush1.bf16.msra.mxu0 0
  %6118 = vmatprep.subr.bf16.mxu0 0
  %6119 = vmatpush1.bf16.msra.mxu0 0
  %6120 = vmatprep.mubr.bf16.mxu0 0
  %6121 = vmatmul.mubr.bf16.gmra.mrb[0].mxu0 %v5907
  %v6122 = vpop.f32.mrb[0].mxu0
  %v6123 = vadd.f32 %v6026, %v6122
  %v6124 = vpop.f32.mrb[0].mxu0
  %v6125 = vpop.f32.mrb[0].mxu0
  %v6126 = vadd.f32 %v6029, %v6125
  %v6127 = vpop.f32.mrb[0].mxu0
  %6128 = vmatprep.mubr.bf16.mxu0 0
  %6129 = vmatmul.mubr.bf16.gmra.mrb[0].mxu0 %v5908
  %v6130 = vpop.f32.mrb[0].mxu0
  %v6131 = vadd.f32 %v6034, %v6130
  %v6132 = vpop.f32.mrb[0].mxu0
  %v6133 = vpop.f32.mrb[0].mxu0
  %v6134 = vadd.f32 %v6037, %v6133
  %v6135 = vpop.f32.mrb[0].mxu0
  %6136 = vdwg.mxu0
  %v6137 = vpack.c.bf16 %v5800, %v5797
  %v6138 = vpack.c.bf16 %v5808, %v5805
  %v6139 = vld [vmem:[%s7 + $0x80] sm:$0xf]
  %v6140 = vld [vmem:[%s7 + $0x84] sm:$0xf]
  %v6141 = vld [vmem:[%s7 + $0x88] sm:$0xf]
  %v6142 = vld [vmem:[%s7 + $0x8c] sm:$0xf]
  %v6143 = vld [vmem:[%s7 + $0x90] sm:$0xf]
  %v6144 = vld [vmem:[%s7 + $0x94] sm:$0xf]
  %v6145 = vld [vmem:[%s7 + $0x98] sm:$0xf]
  %v6146 = vld [vmem:[%s7 + $0x9c] sm:$0xf]
  %v6147 = vld [vmem:[%s7 + $0xa0] sm:$0xf]
  %v6148 = vld [vmem:[%s7 + $0xa4] sm:$0xf]
  %v6149 = vld [vmem:[%s7 + $0xa8] sm:$0xf]
  %v6150 = vld [vmem:[%s7 + $0xac] sm:$0xf]
  %v6151 = vld [vmem:[%s7 + $0xb0] sm:$0xf]
  %v6152 = vld [vmem:[%s7 + $0xb4] sm:$0xf]
  %v6153 = vld [vmem:[%s7 + $0xb8] sm:$0xf]
  %v6154 = vld [vmem:[%s7 + $0xbc] sm:$0xf]
  %v6171 = vunpack.c.l.b16 %v6139
  %v6172 = vunpack.c.l.b16 %v6140
  %v6173 = vunpack.c.l.b16 %v6141
  %v6174 = vunpack.c.l.b16 %v6142
  %v6175 = vunpack.c.l.b16 %v6143
  %v6176 = vunpack.c.l.b16 %v6144
  %v6177 = vunpack.c.l.b16 %v6145
  %v6178 = vunpack.c.l.b16 %v6146
  %v6179 = vunpack.c.l.b16 %v6147
  %v6180 = vunpack.c.l.b16 %v6148
  %v6181 = vunpack.c.l.b16 %v6149
  %v6182 = vunpack.c.l.b16 %v6150
  %v6183 = vunpack.c.l.b16 %v6151
  %v6184 = vunpack.c.l.b16 %v6152
  %v6185 = vunpack.c.l.b16 %v6153
  %v6186 = vunpack.c.l.b16 %v6154
  %v6187 = vpack.c.b16 %v6172, %v6171
  %v6188 = vpack.c.b16 %v6174, %v6173
  %v6189 = vpack.c.b16 %v6176, %v6175
  %v6190 = vpack.c.b16 %v6178, %v6177
  %v6191 = vpack.c.b16 %v6180, %v6179
  %v6192 = vpack.c.b16 %v6182, %v6181
  %v6193 = vpack.c.b16 %v6184, %v6183
  %v6194 = vpack.c.b16 %v6186, %v6185
  %6203 = vmatprep.subr.bf16.mxu0 0
  %6204 = vmatpush1.bf16.msra.mxu0 %v6187
  %6205 = vmatprep.subr.bf16.mxu0 0
  %6206 = vmatpush1.bf16.msra.mxu0 %v6188
  %6207 = vmatprep.subr.bf16.mxu0 0
  %6208 = vmatpush1.bf16.msra.mxu0 %v6189
  %6209 = vmatprep.subr.bf16.mxu0 0
  %6210 = vmatpush1.bf16.msra.mxu0 %v6190
  %6211 = vmatprep.subr.bf16.mxu0 0
  %6212 = vmatpush1.bf16.msra.mxu0 %v6191
  %6213 = vmatprep.subr.bf16.mxu0 0
  %6214 = vmatpush1.bf16.msra.mxu0 %v6192
  %6215 = vmatprep.subr.bf16.mxu0 0
  %6216 = vmatpush1.bf16.msra.mxu0 %v6193
  %6217 = vmatprep.subr.bf16.mxu0 0
  %6218 = vmatpush1.bf16.msra.mxu0 %v6194
  %6219 = vmatprep.subr.bf16.mxu0 0
  %6220 = vmatpush1.bf16.msra.mxu0 0
  %6221 = vmatprep.subr.bf16.mxu0 0
  %6222 = vmatpush1.bf16.msra.mxu0 0
  %6223 = vmatprep.subr.bf16.mxu0 0
  %6224 = vmatpush1.bf16.msra.mxu0 0
  %6225 = vmatprep.subr.bf16.mxu0 0
  %6226 = vmatpush1.bf16.msra.mxu0 0
  %6227 = vmatprep.subr.bf16.mxu0 0
  %6228 = vmatpush1.bf16.msra.mxu0 0
  %6229 = vmatprep.subr.bf16.mxu0 0
  %6230 = vmatpush1.bf16.msra.mxu0 0
  %6231 = vmatprep.subr.bf16.mxu0 0
  %6232 = vmatpush1.bf16.msra.mxu0 0
  %6233 = vmatprep.subr.bf16.mxu0 0
  %6234 = vmatpush1.bf16.msra.mxu0 0
  %6235 = vmatprep.mubr.bf16.mxu0 0
  %6236 = vmatmul.mubr.bf16.gmra.mrb[0].mxu0 %v6137
  %v6237 = vpop.f32.mrb[0].mxu0
  %v6238 = vadd.f32 0.0, %v6237
  %v6239 = vpop.f32.mrb[0].mxu0
  %v6240 = vpop.f32.mrb[0].mxu0
  %v6241 = vadd.f32 0.0, %v6240
  %v6242 = vpop.f32.mrb[0].mxu0
  %6243 = vmatprep.mubr.bf16.mxu0 0
  %6244 = vmatmul.mubr.bf16.gmra.mrb[0].mxu0 %v6138
  %v6245 = vpop.f32.mrb[0].mxu0
  %v6246 = vadd.f32 0.0, %v6245
  %v6247 = vpop.f32.mrb[0].mxu0
  %v6248 = vpop.f32.mrb[0].mxu0
  %v6249 = vadd.f32 0.0, %v6248
  %v6250 = vpop.f32.mrb[0].mxu0
  %6251 = vdwg.mxu0
  %v6252 = vadd.f32 %v6123, %v6238
  %v6253 = vadd.f32 %v6126, %v6241
  %v6254 = vadd.f32 %v6131, %v6246
  %v6255 = vadd.f32 %v6134, %v6249
  %v6256 = vpack.c.bf16 %v5816, %v5813
  %v6257 = vpack.c.bf16 %v5824, %v5821
  %v6258 = vld [vmem:[%s7 + $0xc0] sm:$0xf]
  %v6259 = vld [vmem:[%s7 + $0xc4] sm:$0xf]
  %v6260 = vld [vmem:[%s7 + $0xc8] sm:$0xf]
  %v6261 = vld [vmem:[%s7 + $0xcc] sm:$0xf]
  %v6262 = vld [vmem:[%s7 + $0xd0] sm:$0xf]
  %v6263 = vld [vmem:[%s7 + $0xd4] sm:$0xf]
  %v6264 = vld [vmem:[%s7 + $0xd8] sm:$0xf]
  %v6265 = vld [vmem:[%s7 + $0xdc] sm:$0xf]
  %v6266 = vld [vmem:[%s7 + $0xe0] sm:$0xf]
  %v6267 = vld [vmem:[%s7 + $0xe4] sm:$0xf]
  %v6268 = vld [vmem:[%s7 + $0xe8] sm:$0xf]
  %v6269 = vld [vmem:[%s7 + $0xec] sm:$0xf]
  %v6270 = vld [vmem:[%s7 + $0xf0] sm:$0xf]
  %v6271 = vld [vmem:[%s7 + $0xf4] sm:$0xf]
  %v6272 = vld [vmem:[%s7 + $0xf8] sm:$0xf]
  %v6273 = vld [vmem:[%s7 + $0xfc] sm:$0xf]
  %v6290 = vunpack.c.l.b16 %v6258
  %v6291 = vunpack.c.l.b16 %v6259
  %v6292 = vunpack.c.l.b16 %v6260
  %v6293 = vunpack.c.l.b16 %v6261
  %v6294 = vunpack.c.l.b16 %v6262
  %v6295 = vunpack.c.l.b16 %v6263
  %v6296 = vunpack.c.l.b16 %v6264
  %v6297 = vunpack.c.l.b16 %v6265
  %v6298 = vunpack.c.l.b16 %v6266
  %v6299 = vunpack.c.l.b16 %v6267
  %v6300 = vunpack.c.l.b16 %v6268
  %v6301 = vunpack.c.l.b16 %v6269
  %v6302 = vunpack.c.l.b16 %v6270
  %v6303 = vunpack.c.l.b16 %v6271
  %v6304 = vunpack.c.l.b16 %v6272
  %v6305 = vunpack.c.l.b16 %v6273
  %v6306 = vpack.c.b16 %v6291, %v6290
  %v6307 = vpack.c.b16 %v6293, %v6292
  %v6308 = vpack.c.b16 %v6295, %v6294
  %v6309 = vpack.c.b16 %v6297, %v6296
  %v6310 = vpack.c.b16 %v6299, %v6298
  %v6311 = vpack.c.b16 %v6301, %v6300
  %v6312 = vpack.c.b16 %v6303, %v6302
  %v6313 = vpack.c.b16 %v6305, %v6304
  %6322 = vmatprep.subr.bf16.mxu0 0
  %6323 = vmatpush1.bf16.msra.mxu0 %v6306
  %6324 = vmatprep.subr.bf16.mxu0 0
  %6325 = vmatpush1.bf16.msra.mxu0 %v6307
  %6326 = vmatprep.subr.bf16.mxu0 0
  %6327 = vmatpush1.bf16.msra.mxu0 %v6308
  %6328 = vmatprep.subr.bf16.mxu0 0
  %6329 = vmatpush1.bf16.msra.mxu0 %v6309
  %6330 = vmatprep.subr.bf16.mxu0 0
  %6331 = vmatpush1.bf16.msra.mxu0 %v6310
  %6332 = vmatprep.subr.bf16.mxu0 0
  %6333 = vmatpush1.bf16.msra.mxu0 %v6311
  %6334 = vmatprep.subr.bf16.mxu0 0
  %6335 = vmatpush1.bf16.msra.mxu0 %v6312
  %6336 = vmatprep.subr.bf16.mxu0 0
  %6337 = vmatpush1.bf16.msra.mxu0 %v6313
  %6338 = vmatprep.subr.bf16.mxu0 0
  %6339 = vmatpush1.bf16.msra.mxu0 0
  %6340 = vmatprep.subr.bf16.mxu0 0
  %6341 = vmatpush1.bf16.msra.mxu0 0
  %6342 = vmatprep.subr.bf16.mxu0 0
  %6343 = vmatpush1.bf16.msra.mxu0 0
  %6344 = vmatprep.subr.bf16.mxu0 0
  %6345 = vmatpush1.bf16.msra.mxu0 0
  %6346 = vmatprep.subr.bf16.mxu0 0
  %6347 = vmatpush1.bf16.msra.mxu0 0
  %6348 = vmatprep.subr.bf16.mxu0 0
  %6349 = vmatpush1.bf16.msra.mxu0 0
  %6350 = vmatprep.subr.bf16.mxu0 0
  %6351 = vmatpush1.bf16.msra.mxu0 0
  %6352 = vmatprep.subr.bf16.mxu0 0
  %6353 = vmatpush1.bf16.msra.mxu0 0
  %6354 = vmatprep.mubr.bf16.mxu0 0
  %6355 = vmatmul.mubr.bf16.gmra.mrb[0].mxu0 %v6256
  %v6356 = vpop.f32.mrb[0].mxu0
  %v6357 = vadd.f32 0.0, %v6356
  %v6358 = vpop.f32.mrb[0].mxu0
  %v6359 = vpop.f32.mrb[0].mxu0
  %v6360 = vadd.f32 0.0, %v6359
  %v6361 = vpop.f32.mrb[0].mxu0
  %6362 = vmatprep.mubr.bf16.mxu0 0
  %6363 = vmatmul.mubr.bf16.gmra.mrb[0].mxu0 %v6257
  %v6364 = vpop.f32.mrb[0].mxu0
  %v6365 = vadd.f32 0.0, %v6364
  %v6366 = vpop.f32.mrb[0].mxu0
  %v6367 = vpop.f32.mrb[0].mxu0
  %v6368 = vadd.f32 0.0, %v6367
  %v6369 = vpop.f32.mrb[0].mxu0
  %6370 = vdwg.mxu0
  %v6371 = vadd.f32 %v6252, %v6357
  %v6372 = vadd.f32 %v6253, %v6360
  %v6373 = vadd.f32 %v6254, %v6365
  %v6374 = vadd.f32 %v6255, %v6368
  %v6375 = vpack.c.bf16 %v5832, %v5829
  %v6376 = vpack.c.bf16 %v5840, %v5837
  %v6377 = vld [vmem:[%s7 + $0x100] sm:$0xf]
  %v6378 = vld [vmem:[%s7 + $0x104] sm:$0xf]
  %v6379 = vld [vmem:[%s7 + $0x108] sm:$0xf]
  %v6380 = vld [vmem:[%s7 + $0x10c] sm:$0xf]
  %v6381 = vld [vmem:[%s7 + $0x110] sm:$0xf]
  %v6382 = vld [vmem:[%s7 + $0x114] sm:$0xf]
  %v6383 = vld [vmem:[%s7 + $0x118] sm:$0xf]
  %v6384 = vld [vmem:[%s7 + $0x11c] sm:$0xf]
  %v6385 = vld [vmem:[%s7 + $0x120] sm:$0xf]
  %v6386 = vld [vmem:[%s7 + $0x124] sm:$0xf]
  %v6387 = vld [vmem:[%s7 + $0x128] sm:$0xf]
  %v6388 = vld [vmem:[%s7 + $0x12c] sm:$0xf]
  %v6389 = vld [vmem:[%s7 + $0x130] sm:$0xf]
  %v6390 = vld [vmem:[%s7 + $0x134] sm:$0xf]
  %v6391 = vld [vmem:[%s7 + $0x138] sm:$0xf]
  %v6392 = vld [vmem:[%s7 + $0x13c] sm:$0xf]
  %v6409 = vunpack.c.l.b16 %v6377
  %v6410 = vunpack.c.l.b16 %v6378
  %v6411 = vunpack.c.l.b16 %v6379
  %v6412 = vunpack.c.l.b16 %v6380
  %v6413 = vunpack.c.l.b16 %v6381
  %v6414 = vunpack.c.l.b16 %v6382
  %v6415 = vunpack.c.l.b16 %v6383
  %v6416 = vunpack.c.l.b16 %v6384
  %v6417 = vunpack.c.l.b16 %v6385
  %v6418 = vunpack.c.l.b16 %v6386
  %v6419 = vunpack.c.l.b16 %v6387
  %v6420 = vunpack.c.l.b16 %v6388
  %v6421 = vunpack.c.l.b16 %v6389
  %v6422 = vunpack.c.l.b16 %v6390
  %v6423 = vunpack.c.l.b16 %v6391
  %v6424 = vunpack.c.l.b16 %v6392
  %v6425 = vpack.c.b16 %v6410, %v6409
  %v6426 = vpack.c.b16 %v6412, %v6411
  %v6427 = vpack.c.b16 %v6414, %v6413
  %v6428 = vpack.c.b16 %v6416, %v6415
  %v6429 = vpack.c.b16 %v6418, %v6417
  %v6430 = vpack.c.b16 %v6420, %v6419
  %v6431 = vpack.c.b16 %v6422, %v6421
  %v6432 = vpack.c.b16 %v6424, %v6423
  %6441 = vmatprep.subr.bf16.mxu0 0
  %6442 = vmatpush1.bf16.msra.mxu0 %v6425
  %6443 = vmatprep.subr.bf16.mxu0 0
  %6444 = vmatpush1.bf16.msra.mxu0 %v6426
  %6445 = vmatprep.subr.bf16.mxu0 0
  %6446 = vmatpush1.bf16.msra.mxu0 %v6427
  %6447 = vmatprep.subr.bf16.mxu0 0
  %6448 = vmatpush1.bf16.msra.mxu0 %v6428
  %6449 = vmatprep.subr.bf16.mxu0 0
  %6450 = vmatpush1.bf16.msra.mxu0 %v6429
  %6451 = vmatprep.subr.bf16.mxu0 0
  %6452 = vmatpush1.bf16.msra.mxu0 %v6430
  %6453 = vmatprep.subr.bf16.mxu0 0
  %6454 = vmatpush1.bf16.msra.mxu0 %v6431
  %6455 = vmatprep.subr.bf16.mxu0 0
  %6456 = vmatpush1.bf16.msra.mxu0 %v6432
  %6457 = vmatprep.subr.bf16.mxu0 0
  %6458 = vmatpush1.bf16.msra.mxu0 0
  %6459 = vmatprep.subr.bf16.mxu0 0
  %6460 = vmatpush1.bf16.msra.mxu0 0
  %6461 = vmatprep.subr.bf16.mxu0 0
  %6462 = vmatpush1.bf16.msra.mxu0 0
  %6463 = vmatprep.subr.bf16.mxu0 0
  %6464 = vmatpush1.bf16.msra.mxu0 0
  %6465 = vmatprep.subr.bf16.mxu0 0
  %6466 = vmatpush1.bf16.msra.mxu0 0
  %6467 = vmatprep.subr.bf16.mxu0 0
  %6468 = vmatpush1.bf16.msra.mxu0 0
  %6469 = vmatprep.subr.bf16.mxu0 0
  %6470 = vmatpush1.bf16.msra.mxu0 0
  %6471 = vmatprep.subr.bf16.mxu0 0
  %6472 = vmatpush1.bf16.msra.mxu0 0
  %6473 = vmatprep.mubr.bf16.mxu0 0
  %6474 = vmatmul.mubr.bf16.gmra.mrb[0].mxu0 %v6375
  %v6475 = vpop.f32.mrb[0].mxu0
  %v6476 = vadd.f32 0.0, %v6475
  %v6477 = vpop.f32.mrb[0].mxu0
  %v6478 = vpop.f32.mrb[0].mxu0
  %v6479 = vadd.f32 0.0, %v6478
  %v6480 = vpop.f32.mrb[0].mxu0
  %6481 = vmatprep.mubr.bf16.mxu0 0
  %6482 = vmatmul.mubr.bf16.gmra.mrb[0].mxu0 %v6376
  %v6483 = vpop.f32.mrb[0].mxu0
  %v6484 = vadd.f32 0.0, %v6483
  %v6485 = vpop.f32.mrb[0].mxu0
  %v6486 = vpop.f32.mrb[0].mxu0
  %v6487 = vadd.f32 0.0, %v6486
  %v6488 = vpop.f32.mrb[0].mxu0
  %6489 = vdwg.mxu0
  %v6490 = vadd.f32 %v6371, %v6476
  %v6491 = vadd.f32 %v6372, %v6479
  %v6492 = vadd.f32 %v6373, %v6484
  %v6493 = vadd.f32 %v6374, %v6487
  %v6494 = vpack.c.bf16 %v5848, %v5845
  %v6495 = vpack.c.bf16 %v5856, %v5853
  %v6496 = vld [vmem:[%s7 + $0x140] sm:$0xf]
  %v6497 = vld [vmem:[%s7 + $0x144] sm:$0xf]
  %v6498 = vld [vmem:[%s7 + $0x148] sm:$0xf]
  %v6499 = vld [vmem:[%s7 + $0x14c] sm:$0xf]
  %v6500 = vld [vmem:[%s7 + $0x150] sm:$0xf]
  %v6501 = vld [vmem:[%s7 + $0x154] sm:$0xf]
  %v6502 = vld [vmem:[%s7 + $0x158] sm:$0xf]
  %v6503 = vld [vmem:[%s7 + $0x15c] sm:$0xf]
  %v6504 = vld [vmem:[%s7 + $0x160] sm:$0xf]
  %v6505 = vld [vmem:[%s7 + $0x164] sm:$0xf]
  %v6506 = vld [vmem:[%s7 + $0x168] sm:$0xf]
  %v6507 = vld [vmem:[%s7 + $0x16c] sm:$0xf]
  %v6508 = vld [vmem:[%s7 + $0x170] sm:$0xf]
  %v6509 = vld [vmem:[%s7 + $0x174] sm:$0xf]
  %v6510 = vld [vmem:[%s7 + $0x178] sm:$0xf]
  %v6511 = vld [vmem:[%s7 + $0x17c] sm:$0xf]
  %v6528 = vunpack.c.l.b16 %v6496
  %v6529 = vunpack.c.l.b16 %v6497
  %v6530 = vunpack.c.l.b16 %v6498
  %v6531 = vunpack.c.l.b16 %v6499
  %v6532 = vunpack.c.l.b16 %v6500
  %v6533 = vunpack.c.l.b16 %v6501
  %v6534 = vunpack.c.l.b16 %v6502
  %v6535 = vunpack.c.l.b16 %v6503
  %v6536 = vunpack.c.l.b16 %v6504
  %v6537 = vunpack.c.l.b16 %v6505
  %v6538 = vunpack.c.l.b16 %v6506
  %v6539 = vunpack.c.l.b16 %v6507
  %v6540 = vunpack.c.l.b16 %v6508
  %v6541 = vunpack.c.l.b16 %v6509
  %v6542 = vunpack.c.l.b16 %v6510
  %v6543 = vunpack.c.l.b16 %v6511
  %v6544 = vpack.c.b16 %v6529, %v6528
  %v6545 = vpack.c.b16 %v6531, %v6530
  %v6546 = vpack.c.b16 %v6533, %v6532
  %v6547 = vpack.c.b16 %v6535, %v6534
  %v6548 = vpack.c.b16 %v6537, %v6536
  %v6549 = vpack.c.b16 %v6539, %v6538
  %v6550 = vpack.c.b16 %v6541, %v6540
  %v6551 = vpack.c.b16 %v6543, %v6542
  %6560 = vmatprep.subr.bf16.mxu0 0
  %6561 = vmatpush1.bf16.msra.mxu0 %v6544
  %6562 = vmatprep.subr.bf16.mxu0 0
  %6563 = vmatpush1.bf16.msra.mxu0 %v6545
  %6564 = vmatprep.subr.bf16.mxu0 0
  %6565 = vmatpush1.bf16.msra.mxu0 %v6546
  %6566 = vmatprep.subr.bf16.mxu0 0
  %6567 = vmatpush1.bf16.msra.mxu0 %v6547
  %6568 = vmatprep.subr.bf16.mxu0 0
  %6569 = vmatpush1.bf16.msra.mxu0 %v6548
  %6570 = vmatprep.subr.bf16.mxu0 0
  %6571 = vmatpush1.bf16.msra.mxu0 %v6549
  %6572 = vmatprep.subr.bf16.mxu0 0
  %6573 = vmatpush1.bf16.msra.mxu0 %v6550
  %6574 = vmatprep.subr.bf16.mxu0 0
  %6575 = vmatpush1.bf16.msra.mxu0 %v6551
  %6576 = vmatprep.subr.bf16.mxu0 0
  %6577 = vmatpush1.bf16.msra.mxu0 0
  %6578 = vmatprep.subr.bf16.mxu0 0
  %6579 = vmatpush1.bf16.msra.mxu0 0
  %6580 = vmatprep.subr.bf16.mxu0 0
  %6581 = vmatpush1.bf16.msra.mxu0 0
  %6582 = vmatprep.subr.bf16.mxu0 0
  %6583 = vmatpush1.bf16.msra.mxu0 0
  %6584 = vmatprep.subr.bf16.mxu0 0
  %6585 = vmatpush1.bf16.msra.mxu0 0
  %6586 = vmatprep.subr.bf16.mxu0 0
  %6587 = vmatpush1.bf16.msra.mxu0 0
  %6588 = vmatprep.subr.bf16.mxu0 0
  %6589 = vmatpush1.bf16.msra.mxu0 0
  %6590 = vmatprep.subr.bf16.mxu0 0
  %6591 = vmatpush1.bf16.msra.mxu0 0
  %6592 = vmatprep.mubr.bf16.mxu0 0
  %6593 = vmatmul.mubr.bf16.gmra.mrb[0].mxu0 %v6494
  %v6594 = vpop.f32.mrb[0].mxu0
  %v6595 = vadd.f32 0.0, %v6594
  %v6596 = vpop.f32.mrb[0].mxu0
  %v6597 = vpop.f32.mrb[0].mxu0
  %v6598 = vadd.f32 0.0, %v6597
  %v6599 = vpop.f32.mrb[0].mxu0
  %6600 = vmatprep.mubr.bf16.mxu0 0
  %6601 = vmatmul.mubr.bf16.gmra.mrb[0].mxu0 %v6495
  %v6602 = vpop.f32.mrb[0].mxu0
  %v6603 = vadd.f32 0.0, %v6602
  %v6604 = vpop.f32.mrb[0].mxu0
  %v6605 = vpop.f32.mrb[0].mxu0
  %v6606 = vadd.f32 0.0, %v6605
  %v6607 = vpop.f32.mrb[0].mxu0
  %6608 = vdwg.mxu0
  %v6609 = vadd.f32 %v6490, %v6595
  %v6610 = vadd.f32 %v6491, %v6598
  %v6611 = vadd.f32 %v6492, %v6603
  %v6612 = vadd.f32 %v6493, %v6606
  %v6613 = vpack.c.bf16 %v5864, %v5861
  %v6614 = vpack.c.bf16 %v5872, %v5869
  %v6615 = vld [vmem:[%s7 + $0x180] sm:$0xf]
  %v6616 = vld [vmem:[%s7 + $0x184] sm:$0xf]
  %v6617 = vld [vmem:[%s7 + $0x188] sm:$0xf]
  %v6618 = vld [vmem:[%s7 + $0x18c] sm:$0xf]
  %v6619 = vld [vmem:[%s7 + $0x190] sm:$0xf]
  %v6620 = vld [vmem:[%s7 + $0x194] sm:$0xf]
  %v6621 = vld [vmem:[%s7 + $0x198] sm:$0xf]
  %v6622 = vld [vmem:[%s7 + $0x19c] sm:$0xf]
  %v6623 = vld [vmem:[%s7 + $0x1a0] sm:$0xf]
  %v6624 = vld [vmem:[%s7 + $0x1a4] sm:$0xf]
  %v6625 = vld [vmem:[%s7 + $0x1a8] sm:$0xf]
  %v6626 = vld [vmem:[%s7 + $0x1ac] sm:$0xf]
  %v6627 = vld [vmem:[%s7 + $0x1b0] sm:$0xf]
  %v6628 = vld [vmem:[%s7 + $0x1b4] sm:$0xf]
  %v6629 = vld [vmem:[%s7 + $0x1b8] sm:$0xf]
  %v6630 = vld [vmem:[%s7 + $0x1bc] sm:$0xf]
  %v6647 = vunpack.c.l.b16 %v6615
  %v6648 = vunpack.c.l.b16 %v6616
  %v6649 = vunpack.c.l.b16 %v6617
  %v6650 = vunpack.c.l.b16 %v6618
  %v6651 = vunpack.c.l.b16 %v6619
  %v6652 = vunpack.c.l.b16 %v6620
  %v6653 = vunpack.c.l.b16 %v6621
  %v6654 = vunpack.c.l.b16 %v6622
  %v6655 = vunpack.c.l.b16 %v6623
  %v6656 = vunpack.c.l.b16 %v6624
  %v6657 = vunpack.c.l.b16 %v6625
  %v6658 = vunpack.c.l.b16 %v6626
  %v6659 = vunpack.c.l.b16 %v6627
  %v6660 = vunpack.c.l.b16 %v6628
  %v6661 = vunpack.c.l.b16 %v6629
  %v6662 = vunpack.c.l.b16 %v6630
  %v6663 = vpack.c.b16 %v6648, %v6647
  %v6664 = vpack.c.b16 %v6650, %v6649
  %v6665 = vpack.c.b16 %v6652, %v6651
  %v6666 = vpack.c.b16 %v6654, %v6653
  %v6667 = vpack.c.b16 %v6656, %v6655
  %v6668 = vpack.c.b16 %v6658, %v6657
  %v6669 = vpack.c.b16 %v6660, %v6659
  %v6670 = vpack.c.b16 %v6662, %v6661
  %6679 = vmatprep.subr.bf16.mxu0 0
  %6680 = vmatpush1.bf16.msra.mxu0 %v6663
  %6681 = vmatprep.subr.bf16.mxu0 0
  %6682 = vmatpush1.bf16.msra.mxu0 %v6664
  %6683 = vmatprep.subr.bf16.mxu0 0
  %6684 = vmatpush1.bf16.msra.mxu0 %v6665
  %6685 = vmatprep.subr.bf16.mxu0 0
  %6686 = vmatpush1.bf16.msra.mxu0 %v6666
  %6687 = vmatprep.subr.bf16.mxu0 0
  %6688 = vmatpush1.bf16.msra.mxu0 %v6667
  %6689 = vmatprep.subr.bf16.mxu0 0
  %6690 = vmatpush1.bf16.msra.mxu0 %v6668
  %6691 = vmatprep.subr.bf16.mxu0 0
  %6692 = vmatpush1.bf16.msra.mxu0 %v6669
  %6693 = vmatprep.subr.bf16.mxu0 0
  %6694 = vmatpush1.bf16.msra.mxu0 %v6670
  %6695 = vmatprep.subr.bf16.mxu0 0
  %6696 = vmatpush1.bf16.msra.mxu0 0
  %6697 = vmatprep.subr.bf16.mxu0 0
  %6698 = vmatpush1.bf16.msra.mxu0 0
  %6699 = vmatprep.subr.bf16.mxu0 0
  %6700 = vmatpush1.bf16.msra.mxu0 0
  %6701 = vmatprep.subr.bf16.mxu0 0
  %6702 = vmatpush1.bf16.msra.mxu0 0
  %6703 = vmatprep.subr.bf16.mxu0 0
  %6704 = vmatpush1.bf16.msra.mxu0 0
  %6705 = vmatprep.subr.bf16.mxu0 0
  %6706 = vmatpush1.bf16.msra.mxu0 0
  %6707 = vmatprep.subr.bf16.mxu0 0
  %6708 = vmatpush1.bf16.msra.mxu0 0
  %6709 = vmatprep.subr.bf16.mxu0 0
  %6710 = vmatpush1.bf16.msra.mxu0 0
  %6711 = vmatprep.mubr.bf16.mxu0 0
  %6712 = vmatmul.mubr.bf16.gmra.mrb[0].mxu0 %v6613
  %v6713 = vpop.f32.mrb[0].mxu0
  %v6714 = vadd.f32 0.0, %v6713
  %v6715 = vpop.f32.mrb[0].mxu0
  %v6716 = vpop.f32.mrb[0].mxu0
  %v6717 = vadd.f32 0.0, %v6716
  %v6718 = vpop.f32.mrb[0].mxu0
  %6719 = vmatprep.mubr.bf16.mxu0 0
  %6720 = vmatmul.mubr.bf16.gmra.mrb[0].mxu0 %v6614
  %v6721 = vpop.f32.mrb[0].mxu0
  %v6722 = vadd.f32 0.0, %v6721
  %v6723 = vpop.f32.mrb[0].mxu0
  %v6724 = vpop.f32.mrb[0].mxu0
  %v6725 = vadd.f32 0.0, %v6724
  %v6726 = vpop.f32.mrb[0].mxu0
  %6727 = vdwg.mxu0
  %v6728 = vadd.f32 %v6609, %v6714
  %v6729 = vadd.f32 %v6610, %v6717
  %v6730 = vadd.f32 %v6611, %v6722
  %v6731 = vadd.f32 %v6612, %v6725
  %v6732 = vpack.c.bf16 %v5880, %v5877
  %v6733 = vpack.c.bf16 %v5888, %v5885
  %v6734 = vld [vmem:[%s7 + $0x1c0] sm:$0xf]
  %v6735 = vld [vmem:[%s7 + $0x1c4] sm:$0xf]
  %v6736 = vld [vmem:[%s7 + $0x1c8] sm:$0xf]
  %v6737 = vld [vmem:[%s7 + $0x1cc] sm:$0xf]
  %v6738 = vld [vmem:[%s7 + $0x1d0] sm:$0xf]
  %v6739 = vld [vmem:[%s7 + $0x1d4] sm:$0xf]
  %v6740 = vld [vmem:[%s7 + $0x1d8] sm:$0xf]
  %v6741 = vld [vmem:[%s7 + $0x1dc] sm:$0xf]
  %v6742 = vld [vmem:[%s7 + $0x1e0] sm:$0xf]
  %v6743 = vld [vmem:[%s7 + $0x1e4] sm:$0xf]
  %v6744 = vld [vmem:[%s7 + $0x1e8] sm:$0xf]
  %v6745 = vld [vmem:[%s7 + $0x1ec] sm:$0xf]
  %v6746 = vld [vmem:[%s7 + $0x1f0] sm:$0xf]
  %v6747 = vld [vmem:[%s7 + $0x1f4] sm:$0xf]
  %v6748 = vld [vmem:[%s7 + $0x1f8] sm:$0xf]
  %v6749 = vld [vmem:[%s7 + $0x1fc] sm:$0xf]
  %v6766 = vunpack.c.l.b16 %v6734
  %v6767 = vunpack.c.l.b16 %v6735
  %v6768 = vunpack.c.l.b16 %v6736
  %v6769 = vunpack.c.l.b16 %v6737
  %v6770 = vunpack.c.l.b16 %v6738
  %v6771 = vunpack.c.l.b16 %v6739
  %v6772 = vunpack.c.l.b16 %v6740
  %v6773 = vunpack.c.l.b16 %v6741
  %v6774 = vunpack.c.l.b16 %v6742
  %v6775 = vunpack.c.l.b16 %v6743
  %v6776 = vunpack.c.l.b16 %v6744
  %v6777 = vunpack.c.l.b16 %v6745
  %v6778 = vunpack.c.l.b16 %v6746
  %v6779 = vunpack.c.l.b16 %v6747
  %v6780 = vunpack.c.l.b16 %v6748
  %v6781 = vunpack.c.l.b16 %v6749
  %v6782 = vpack.c.b16 %v6767, %v6766
  %v6783 = vpack.c.b16 %v6769, %v6768
  %v6784 = vpack.c.b16 %v6771, %v6770
  %v6785 = vpack.c.b16 %v6773, %v6772
  %v6786 = vpack.c.b16 %v6775, %v6774
  %v6787 = vpack.c.b16 %v6777, %v6776
  %v6788 = vpack.c.b16 %v6779, %v6778
  %v6789 = vpack.c.b16 %v6781, %v6780
  %6798 = vmatprep.subr.bf16.mxu0 0
  %6799 = vmatpush1.bf16.msra.mxu0 %v6782
  %6800 = vmatprep.subr.bf16.mxu0 0
  %6801 = vmatpush1.bf16.msra.mxu0 %v6783
  %6802 = vmatprep.subr.bf16.mxu0 0
  %6803 = vmatpush1.bf16.msra.mxu0 %v6784
  %6804 = vmatprep.subr.bf16.mxu0 0
  %6805 = vmatpush1.bf16.msra.mxu0 %v6785
  %6806 = vmatprep.subr.bf16.mxu0 0
  %6807 = vmatpush1.bf16.msra.mxu0 %v6786
  %6808 = vmatprep.subr.bf16.mxu0 0
  %6809 = vmatpush1.bf16.msra.mxu0 %v6787
  %6810 = vmatprep.subr.bf16.mxu0 0
  %6811 = vmatpush1.bf16.msra.mxu0 %v6788
  %6812 = vmatprep.subr.bf16.mxu0 0
  %6813 = vmatpush1.bf16.msra.mxu0 %v6789
  %6814 = vmatprep.subr.bf16.mxu0 0
  %6815 = vmatpush1.bf16.msra.mxu0 0
  %6816 = vmatprep.subr.bf16.mxu0 0
  %6817 = vmatpush1.bf16.msra.mxu0 0
  %6818 = vmatprep.subr.bf16.mxu0 0
  %6819 = vmatpush1.bf16.msra.mxu0 0
  %6820 = vmatprep.subr.bf16.mxu0 0
  %6821 = vmatpush1.bf16.msra.mxu0 0
  %6822 = vmatprep.subr.bf16.mxu0 0
  %6823 = vmatpush1.bf16.msra.mxu0 0
  %6824 = vmatprep.subr.bf16.mxu0 0
  %6825 = vmatpush1.bf16.msra.mxu0 0
  %6826 = vmatprep.subr.bf16.mxu0 0
  %6827 = vmatpush1.bf16.msra.mxu0 0
  %6828 = vmatprep.subr.bf16.mxu0 0
  %6829 = vmatpush1.bf16.msra.mxu0 0
  %6830 = vmatprep.mubr.bf16.mxu0 0
  %6831 = vmatmul.mubr.bf16.gmra.mrb[0].mxu0 %v6732
  %v6832 = vpop.f32.mrb[0].mxu0
  %v6833 = vadd.f32 0.0, %v6832
  %v6834 = vpop.f32.mrb[0].mxu0
  %v6835 = vpop.f32.mrb[0].mxu0
  %v6836 = vadd.f32 0.0, %v6835
  %v6837 = vpop.f32.mrb[0].mxu0
  %6838 = vmatprep.mubr.bf16.mxu0 0
  %6839 = vmatmul.mubr.bf16.gmra.mrb[0].mxu0 %v6733
  %v6840 = vpop.f32.mrb[0].mxu0
  %v6841 = vadd.f32 0.0, %v6840
  %v6842 = vpop.f32.mrb[0].mxu0
  %v6843 = vpop.f32.mrb[0].mxu0
  %v6844 = vadd.f32 0.0, %v6843
  %v6845 = vpop.f32.mrb[0].mxu0
  %6846 = vdwg.mxu0
  %v6847 = vadd.f32 %v6728, %v6833
  %v6848 = vadd.f32 %v6729, %v6836
  %v6849 = vadd.f32 %v6730, %v6841
  %v6850 = vadd.f32 %v6731, %v6844
  %v6851 = vpack.c.bf16 %v5896, %v5893
  %v6852 = vpack.c.bf16 %v5904, %v5901
  %v6853 = vld [vmem:[%s7 + $0x200] sm:$0xf]
  %v6854 = vld [vmem:[%s7 + $0x204] sm:$0xf]
  %v6855 = vld [vmem:[%s7 + $0x208] sm:$0xf]
  %v6856 = vld [vmem:[%s7 + $0x20c] sm:$0xf]
  %v6857 = vld [vmem:[%s7 + $0x210] sm:$0xf]
  %v6858 = vld [vmem:[%s7 + $0x214] sm:$0xf]
  %v6859 = vld [vmem:[%s7 + $0x218] sm:$0xf]
  %v6860 = vld [vmem:[%s7 + $0x21c] sm:$0xf]
  %v6861 = vld [vmem:[%s7 + $0x220] sm:$0xf]
  %v6862 = vld [vmem:[%s7 + $0x224] sm:$0xf]
  %v6863 = vld [vmem:[%s7 + $0x228] sm:$0xf]
  %v6864 = vld [vmem:[%s7 + $0x22c] sm:$0xf]
  %v6865 = vld [vmem:[%s7 + $0x230] sm:$0xf]
  %v6866 = vld [vmem:[%s7 + $0x234] sm:$0xf]
  %v6867 = vld [vmem:[%s7 + $0x238] sm:$0xf]
  %v6868 = vld [vmem:[%s7 + $0x23c] sm:$0xf]
  %v6885 = vunpack.c.l.b16 %v6853
  %v6886 = vunpack.c.l.b16 %v6854
  %v6887 = vunpack.c.l.b16 %v6855
  %v6888 = vunpack.c.l.b16 %v6856
  %v6889 = vunpack.c.l.b16 %v6857
  %v6890 = vunpack.c.l.b16 %v6858
  %v6891 = vunpack.c.l.b16 %v6859
  %v6892 = vunpack.c.l.b16 %v6860
  %v6893 = vunpack.c.l.b16 %v6861
  %v6894 = vunpack.c.l.b16 %v6862
  %v6895 = vunpack.c.l.b16 %v6863
  %v6896 = vunpack.c.l.b16 %v6864
  %v6897 = vunpack.c.l.b16 %v6865
  %v6898 = vunpack.c.l.b16 %v6866
  %v6899 = vunpack.c.l.b16 %v6867
  %v6900 = vunpack.c.l.b16 %v6868
  %v6901 = vpack.c.b16 %v6886, %v6885
  %v6902 = vpack.c.b16 %v6888, %v6887
  %v6903 = vpack.c.b16 %v6890, %v6889
  %v6904 = vpack.c.b16 %v6892, %v6891
  %v6905 = vpack.c.b16 %v6894, %v6893
  %v6906 = vpack.c.b16 %v6896, %v6895
  %v6907 = vpack.c.b16 %v6898, %v6897
  %v6908 = vpack.c.b16 %v6900, %v6899
  %6917 = vmatprep.subr.bf16.mxu0 0
  %6918 = vmatpush1.bf16.msra.mxu0 %v6901
  %6919 = vmatprep.subr.bf16.mxu0 0
  %6920 = vmatpush1.bf16.msra.mxu0 %v6902
  %6921 = vmatprep.subr.bf16.mxu0 0
  %6922 = vmatpush1.bf16.msra.mxu0 %v6903
  %6923 = vmatprep.subr.bf16.mxu0 0
  %6924 = vmatpush1.bf16.msra.mxu0 %v6904
  %6925 = vmatprep.subr.bf16.mxu0 0
  %6926 = vmatpush1.bf16.msra.mxu0 %v6905
  %6927 = vmatprep.subr.bf16.mxu0 0
  %6928 = vmatpush1.bf16.msra.mxu0 %v6906
  %6929 = vmatprep.subr.bf16.mxu0 0
  %6930 = vmatpush1.bf16.msra.mxu0 %v6907
  %6931 = vmatprep.subr.bf16.mxu0 0
  %6932 = vmatpush1.bf16.msra.mxu0 %v6908
  %6933 = vmatprep.subr.bf16.mxu0 0
  %6934 = vmatpush1.bf16.msra.mxu0 0
  %6935 = vmatprep.subr.bf16.mxu0 0
  %6936 = vmatpush1.bf16.msra.mxu0 0
  %6937 = vmatprep.subr.bf16.mxu0 0
  %6938 = vmatpush1.bf16.msra.mxu0 0
  %6939 = vmatprep.subr.bf16.mxu0 0
  %6940 = vmatpush1.bf16.msra.mxu0 0
  %6941 = vmatprep.subr.bf16.mxu0 0
  %6942 = vmatpush1.bf16.msra.mxu0 0
  %6943 = vmatprep.subr.bf16.mxu0 0
  %6944 = vmatpush1.bf16.msra.mxu0 0
  %6945 = vmatprep.subr.bf16.mxu0 0
  %6946 = vmatpush1.bf16.msra.mxu0 0
  %6947 = vmatprep.subr.bf16.mxu0 0
  %6948 = vmatpush1.bf16.msra.mxu0 0
  %6949 = vmatprep.mubr.bf16.mxu0 0
  %6950 = vmatmul.mubr.bf16.gmra.mrb[0].mxu0 %v6851
  %v6951 = vpop.f32.mrb[0].mxu0
  %v6952 = vadd.f32 0.0, %v6951
  %v6953 = vpop.f32.mrb[0].mxu0
  %v6954 = vpop.f32.mrb[0].mxu0
  %v6955 = vadd.f32 0.0, %v6954
  %v6956 = vpop.f32.mrb[0].mxu0
  %6957 = vmatprep.mubr.bf16.mxu0 0
  %6958 = vmatmul.mubr.bf16.gmra.mrb[0].mxu0 %v6852
  %v6959 = vpop.f32.mrb[0].mxu0
  %v6960 = vadd.f32 0.0, %v6959
  %v6961 = vpop.f32.mrb[0].mxu0
  %v6962 = vpop.f32.mrb[0].mxu0
  %v6963 = vadd.f32 0.0, %v6962
  %v6964 = vpop.f32.mrb[0].mxu0
  %6965 = vdwg.mxu0
  %v6966 = vadd.f32 %v6847, %v6952
  %v6967 = vadd.f32 %v6848, %v6955
  %v6968 = vadd.f32 %v6849, %v6960
  %v6969 = vadd.f32 %v6850, %v6963
  %v6970 = vld [vmem:[%s8] sm:$0x1]
  %v6971 = vlaneseq
  %v6972 = vshrl.u32 %v6971, 7
  %v6973 = vsub.s32 0, %v6972
  %v6974 = vrot.slane %v6970, %v6973
  %v6975 = vadd.f32 %v6966, %v6974
  %v6976 = vadd.f32 %v6967, %v6974
  %v6977 = vadd.f32 %v6968, %v6974
  %v6978 = vadd.f32 %v6969, %v6974
  %vm6979 = vcmp.ge.f32.partialorder %v6975, 0.0
  %vm6980 = vcmp.ge.f32.partialorder %v6976, 0.0
  %vm6981 = vcmp.ge.f32.partialorder %v6977, 0.0
  %vm6982 = vcmp.ge.f32.partialorder %v6978, 0.0
  %v6983 = vmul.f32 %v6975, 0.2
  %v6984 = vmul.f32 %v6976, 0.2
  %v6985 = vmul.f32 %v6977, 0.2
  %v6986 = vmul.f32 %v6978, 0.2
  %v6987 = vsel %vm6979, %v6975, %v6983
  %v6988 = vsel %vm6980, %v6976, %v6984
  %v6989 = vsel %vm6981, %v6977, %v6985
  %v6990 = vsel %vm6982, %v6978, %v6986
  %v6991 = vld [vmem:[%s8 + $0x1] sm:$0x1]
  %v6992 = vlaneseq
  %v6993 = vshrl.u32 %v6992, 7
  %v6994 = vsub.s32 0, %v6993
  %v6995 = vrot.slane %v6991, %v6994
  %v6996 = vmul.f32 %v6987, %v6995
  %v6997 = vmul.f32 %v6988, %v6995
  %v6998 = vmul.f32 %v6989, %v6995
  %v6999 = vmul.f32 %v6990, %v6995
  %v7000 = vld [vmem:[%s8 + $0x2] sm:$0x1]
  %v7001 = vlaneseq
  %v7002 = vshrl.u32 %v7001, 7
  %v7003 = vsub.s32 0, %v7002
  %v7004 = vrot.slane %v7000, %v7003
  %v7005 = vadd.f32 %v6996, %v7004
  %v7006 = vadd.f32 %v6997, %v7004
  %v7007 = vadd.f32 %v6998, %v7004
  %v7008 = vadd.f32 %v6999, %v7004
  %v7009 = vpack.c.bf16 %v7006, %v7005
  %v7010 = vpack.c.bf16 %v7008, %v7007
  %v7011 = vld [vmem:[%s9] sm:$0xf]
  %v7012 = vld [vmem:[%s9 + $0x4] sm:$0xf]
  %v7013 = vld [vmem:[%s9 + $0x8] sm:$0xf]
  %v7014 = vld [vmem:[%s9 + $0xc] sm:$0xf]
  %v7015 = vld [vmem:[%s9 + $0x10] sm:$0xf]
  %v7016 = vld [vmem:[%s9 + $0x14] sm:$0xf]
  %v7017 = vld [vmem:[%s9 + $0x18] sm:$0xf]
  %v7018 = vld [vmem:[%s9 + $0x1c] sm:$0xf]
  %v7019 = vld [vmem:[%s9 + $0x20] sm:$0xf]
  %v7029 = vunpack.c.l.b16 %v7011
  %v7030 = vunpack.c.l.b16 %v7012
  %v7031 = vunpack.c.l.b16 %v7013
  %v7032 = vunpack.c.l.b16 %v7014
  %v7033 = vunpack.c.l.b16 %v7015
  %v7034 = vunpack.c.l.b16 %v7016
  %v7035 = vunpack.c.l.b16 %v7017
  %v7036 = vunpack.c.l.b16 %v7018
  %v7037 = vunpack.c.l.b16 %v7019
  %v7038 = vpack.c.b16 %v7030, %v7029
  %v7039 = vpack.c.b16 %v7032, %v7031
  %v7040 = vpack.c.b16 %v7034, %v7033
  %v7041 = vpack.c.b16 %v7036, %v7035
  %v7042 = vpack.c.b16 %v7037, %v7037
  %vm7043 = vcmask 261120
  %v7045 = vsel %vm7043, %v7038, 0
  %v7048 = vsel %vm7043, %v7039, 0
  %v7051 = vsel %vm7043, %v7040, 0
  %v7054 = vsel %vm7043, %v7041, 0
  %v7057 = vsel %vm7043, %v7042, 0
  %7059 = vmatprep.subr.bf16.mxu0 0
  %7060 = vmatpush1.bf16.msra.mxu0 %v7009
  %7061 = vmatprep.subr.bf16.mxu0 0
  %7062 = vmatpush1.bf16.msra.mxu0 %v7010
  %7063 = vmatprep.subr.bf16.mxu0 0
  %7064 = vmatpush1.bf16.msra.mxu0 0
  %7065 = vmatprep.subr.bf16.mxu0 0
  %7066 = vmatpush1.bf16.msra.mxu0 0
  %7067 = vmatprep.subr.bf16.mxu0 0
  %7068 = vmatpush1.bf16.msra.mxu0 0
  %7069 = vmatprep.subr.bf16.mxu0 0
  %7070 = vmatpush1.bf16.msra.mxu0 0
  %7071 = vmatprep.subr.bf16.mxu0 0
  %7072 = vmatpush1.bf16.msra.mxu0 0
  %7073 = vmatprep.subr.bf16.mxu0 0
  %7074 = vmatpush1.bf16.msra.mxu0 0
  %7075 = vmatprep.subr.bf16.mxu0 0
  %7076 = vmatpush1.bf16.msra.mxu0 0
  %7077 = vmatprep.subr.bf16.mxu0 0
  %7078 = vmatpush1.bf16.msra.mxu0 0
  %7079 = vmatprep.subr.bf16.mxu0 0
  %7080 = vmatpush1.bf16.msra.mxu0 0
  %7081 = vmatprep.subr.bf16.mxu0 0
  %7082 = vmatpush1.bf16.msra.mxu0 0
  %7083 = vmatprep.subr.bf16.mxu0 0
  %7084 = vmatpush1.bf16.msra.mxu0 0
  %7085 = vmatprep.subr.bf16.mxu0 0
  %7086 = vmatpush1.bf16.msra.mxu0 0
  %7087 = vmatprep.subr.bf16.mxu0 0
  %7088 = vmatpush1.bf16.msra.mxu0 0
  %7089 = vmatprep.subr.bf16.mxu0 0
  %7090 = vmatpush1.bf16.msra.mxu0 0
  %7091 = vmatprep.mubr.bf16.mxu0 0
  %7092 = vmatmul.mubr.bf16.gmra.mrb[0].mxu0 %v7045
  %v7093 = vpop.f32.mrb[0].mxu0
  %v7094 = vadd.f32 0.0, %v7093
  %v7095 = vpop.f32.mrb[0].mxu0
  %v7096 = vpop.f32.mrb[0].mxu0
  %v7097 = vadd.f32 0.0, %v7096
  %v7098 = vpop.f32.mrb[0].mxu0
  %7099 = vmatprep.mubr.bf16.mxu0 0
  %7100 = vmatmul.mubr.bf16.gmra.mrb[0].mxu0 %v7048
  %v7101 = vpop.f32.mrb[0].mxu0
  %v7102 = vadd.f32 0.0, %v7101
  %v7103 = vpop.f32.mrb[0].mxu0
  %v7104 = vpop.f32.mrb[0].mxu0
  %v7105 = vadd.f32 0.0, %v7104
  %v7106 = vpop.f32.mrb[0].mxu0
  %7107 = vmatprep.mubr.bf16.mxu0 0
  %7108 = vmatmul.mubr.bf16.gmra.mrb[0].mxu0 %v7051
  %v7109 = vpop.f32.mrb[0].mxu0
  %v7110 = vadd.f32 0.0, %v7109
  %v7111 = vpop.f32.mrb[0].mxu0
  %v7112 = vpop.f32.mrb[0].mxu0
  %v7113 = vadd.f32 0.0, %v7112
  %v7114 = vpop.f32.mrb[0].mxu0
  %7115 = vmatprep.mubr.bf16.mxu0 0
  %7116 = vmatmul.mubr.bf16.gmra.mrb[0].mxu0 %v7054
  %v7117 = vpop.f32.mrb[0].mxu0
  %v7118 = vadd.f32 0.0, %v7117
  %v7119 = vpop.f32.mrb[0].mxu0
  %v7120 = vpop.f32.mrb[0].mxu0
  %v7121 = vadd.f32 0.0, %v7120
  %v7122 = vpop.f32.mrb[0].mxu0
  %7123 = vmatprep.mubr.bf16.mxu0 0
  %7124 = vmatmul.mubr.bf16.gmra.mrb[0].mxu0 %v7057
  %v7125 = vpop.f32.mrb[0].mxu0
  %v7126 = vadd.f32 0.0, %v7125
  %v7127 = vpop.f32.mrb[0].mxu0
  %v7128 = vpop.f32.mrb[0].mxu0
  %v7129 = vpop.f32.mrb[0].mxu0
  %7130 = vdwg.mxu0
  %v7131 = vpack.c.bf16 %v7094, %v7094
  %v7132 = vld [vmem:[%s10] sm:$0xff]
  %v7133 = vld [vmem:[%s10 + $0x8] sm:$0xff]
  %v7134 = vld [vmem:[%s10 + $0x10] sm:$0xff]
  %v7135 = vld [vmem:[%s10 + $0x18] sm:$0xff]
  %v7136 = vld [vmem:[%s10 + $0x20] sm:$0xff]
  %v7137 = vld [vmem:[%s10 + $0x28] sm:$0xff]
  %v7138 = vld [vmem:[%s10 + $0x30] sm:$0xff]
  %v7139 = vld [vmem:[%s10 + $0x38] sm:$0xff]
  %v7140 = vld [vmem:[%s10 + $0x40] sm:$0xff]
  %v7141 = vld [vmem:[%s10 + $0x48] sm:$0xff]
  %v7142 = vld [vmem:[%s10 + $0x50] sm:$0xff]
  %v7143 = vld [vmem:[%s10 + $0x58] sm:$0xff]
  %v7144 = vld [vmem:[%s10 + $0x60] sm:$0xff]
  %v7145 = vld [vmem:[%s10 + $0x68] sm:$0xff]
  %v7146 = vld [vmem:[%s10 + $0x70] sm:$0xff]
  %v7147 = vld [vmem:[%s10 + $0x78] sm:$0xff]
  %v7148 = vpack.c.bf16 %v7097, %v7097
  %v7149 = vld [vmem:[%s10 + $0x80] sm:$0xff]
  %v7150 = vld [vmem:[%s10 + $0x88] sm:$0xff]
  %v7151 = vld [vmem:[%s10 + $0x90] sm:$0xff]
  %v7152 = vld [vmem:[%s10 + $0x98] sm:$0xff]
  %v7153 = vld [vmem:[%s10 + $0xa0] sm:$0xff]
  %v7154 = vld [vmem:[%s10 + $0xa8] sm:$0xff]
  %v7155 = vld [vmem:[%s10 + $0xb0] sm:$0xff]
  %v7156 = vld [vmem:[%s10 + $0xb8] sm:$0xff]
  %v7157 = vld [vmem:[%s10 + $0xc0] sm:$0xff]
  %v7158 = vld [vmem:[%s10 + $0xc8] sm:$0xff]
  %v7159 = vld [vmem:[%s10 + $0xd0] sm:$0xff]
  %v7160 = vld [vmem:[%s10 + $0xd8] sm:$0xff]
  %v7161 = vld [vmem:[%s10 + $0xe0] sm:$0xff]
  %v7162 = vld [vmem:[%s10 + $0xe8] sm:$0xff]
  %v7163 = vld [vmem:[%s10 + $0xf0] sm:$0xff]
  %v7164 = vld [vmem:[%s10 + $0xf8] sm:$0xff]
  %v7181 = vunpack.c.l.b16 %v7149
  %v7182 = vunpack.c.h.b16 %v7149
  %v7183 = vunpack.c.l.b16 %v7150
  %v7184 = vunpack.c.h.b16 %v7150
  %v7185 = vunpack.c.l.b16 %v7151
  %v7186 = vunpack.c.h.b16 %v7151
  %v7187 = vunpack.c.l.b16 %v7152
  %v7188 = vunpack.c.h.b16 %v7152
  %v7189 = vunpack.c.l.b16 %v7153
  %v7190 = vunpack.c.h.b16 %v7153
  %v7191 = vunpack.c.l.b16 %v7154
  %v7192 = vunpack.c.h.b16 %v7154
  %v7193 = vunpack.c.l.b16 %v7155
  %v7194 = vunpack.c.h.b16 %v7155
  %v7195 = vunpack.c.l.b16 %v7156
  %v7196 = vunpack.c.h.b16 %v7156
  %v7197 = vunpack.c.l.b16 %v7157
  %v7198 = vunpack.c.h.b16 %v7157
  %v7199 = vunpack.c.l.b16 %v7158
  %v7200 = vunpack.c.h.b16 %v7158
  %v7201 = vunpack.c.l.b16 %v7159
  %v7202 = vunpack.c.h.b16 %v7159
  %v7203 = vunpack.c.l.b16 %v7160
  %v7204 = vunpack.c.h.b16 %v7160
  %v7205 = vunpack.c.l.b16 %v7161
  %v7206 = vunpack.c.h.b16 %v7161
  %v7207 = vunpack.c.l.b16 %v7162
  %v7208 = vunpack.c.h.b16 %v7162
  %v7209 = vunpack.c.l.b16 %v7163
  %v7210 = vunpack.c.h.b16 %v7163
  %v7211 = vunpack.c.l.b16 %v7164
  %v7212 = vunpack.c.h.b16 %v7164
  %v7213 = vpack.c.b16 %v7183, %v7181
  %v7214 = vpack.c.b16 %v7184, %v7182
  %v7215 = vpack.c.b16 %v7187, %v7185
  %v7216 = vpack.c.b16 %v7188, %v7186
  %v7217 = vpack.c.b16 %v7191, %v7189
  %v7218 = vpack.c.b16 %v7192, %v7190
  %v7219 = vpack.c.b16 %v7195, %v7193
  %v7220 = vpack.c.b16 %v7196, %v7194
  %v7221 = vpack.c.b16 %v7199, %v7197
  %v7222 = vpack.c.b16 %v7200, %v7198
  %v7223 = vpack.c.b16 %v7203, %v7201
  %v7224 = vpack.c.b16 %v7204, %v7202
  %v7225 = vpack.c.b16 %v7207, %v7205
  %v7226 = vpack.c.b16 %v7208, %v7206
  %v7227 = vpack.c.b16 %v7211, %v7209
  %v7228 = vpack.c.b16 %v7212, %v7210
  %7245 = vmatprep.subr.bf16.mxu0 %v7214
  %7246 = vmatpush1.bf16.msra.mxu0 %v7213
  %7247 = vmatprep.subr.bf16.mxu0 %v7216
  %7248 = vmatpush1.bf16.msra.mxu0 %v7215
  %7249 = vmatprep.subr.bf16.mxu0 %v7218
  %7250 = vmatpush1.bf16.msra.mxu0 %v7217
  %7251 = vmatprep.subr.bf16.mxu0 %v7220
  %7252 = vmatpush1.bf16.msra.mxu0 %v7219
  %7253 = vmatprep.subr.bf16.mxu0 %v7222
  %7254 = vmatpush1.bf16.msra.mxu0 %v7221
  %7255 = vmatprep.subr.bf16.mxu0 %v7224
  %7256 = vmatpush1.bf16.msra.mxu0 %v7223
  %7257 = vmatprep.subr.bf16.mxu0 %v7226
  %7258 = vmatpush1.bf16.msra.mxu0 %v7225
  %7259 = vmatprep.subr.bf16.mxu0 %v7228
  %7260 = vmatpush1.bf16.msra.mxu0 %v7227
  %7261 = vmatprep.subr.bf16.mxu0 0
  %7262 = vmatpush1.bf16.msra.mxu0 0
  %7263 = vmatprep.subr.bf16.mxu0 0
  %7264 = vmatpush1.bf16.msra.mxu0 0
  %7265 = vmatprep.subr.bf16.mxu0 0
  %7266 = vmatpush1.bf16.msra.mxu0 0
  %7267 = vmatprep.subr.bf16.mxu0 0
  %7268 = vmatpush1.bf16.msra.mxu0 0
  %7269 = vmatprep.subr.bf16.mxu0 0
  %7270 = vmatpush1.bf16.msra.mxu0 0
  %7271 = vmatprep.subr.bf16.mxu0 0
  %7272 = vmatpush1.bf16.msra.mxu0 0
  %7273 = vmatprep.subr.bf16.mxu0 0
  %7274 = vmatpush1.bf16.msra.mxu0 0
  %7275 = vmatprep.subr.bf16.mxu0 0
  %7276 = vmatpush1.bf16.msra.mxu0 0
  %7277 = vmatprep.mubr.bf16.mxu0 0
  %7278 = vmatmul.mubr.bf16.gmra.mrb[0].mxu0 %v7148
  %v7279 = vpop.f32.mrb[0].mxu0
  %v7280 = vadd.f32 0.0, %v7279
  %v7281 = vpop.f32.mrb[0].mxu0
  %v7282 = vadd.f32 0.0, %v7281
  %v7283 = vpop.f32.mrb[0].mxu0
  %v7284 = vpop.f32.mrb[0].mxu0
  %7285 = vdwg.mxu0
  %v7302 = vunpack.c.l.b16 %v7132
  %v7303 = vunpack.c.h.b16 %v7132
  %v7304 = vunpack.c.l.b16 %v7133
  %v7305 = vunpack.c.h.b16 %v7133
  %v7306 = vunpack.c.l.b16 %v7134
  %v7307 = vunpack.c.h.b16 %v7134
  %v7308 = vunpack.c.l.b16 %v7135
  %v7309 = vunpack.c.h.b16 %v7135
  %v7310 = vunpack.c.l.b16 %v7136
  %v7311 = vunpack.c.h.b16 %v7136
  %v7312 = vunpack.c.l.b16 %v7137
  %v7313 = vunpack.c.h.b16 %v7137
  %v7314 = vunpack.c.l.b16 %v7138
  %v7315 = vunpack.c.h.b16 %v7138
  %v7316 = vunpack.c.l.b16 %v7139
  %v7317 = vunpack.c.h.b16 %v7139
  %v7318 = vunpack.c.l.b16 %v7140
  %v7319 = vunpack.c.h.b16 %v7140
  %v7320 = vunpack.c.l.b16 %v7141
  %v7321 = vunpack.c.h.b16 %v7141
  %v7322 = vunpack.c.l.b16 %v7142
  %v7323 = vunpack.c.h.b16 %v7142
  %v7324 = vunpack.c.l.b16 %v7143
  %v7325 = vunpack.c.h.b16 %v7143
  %v7326 = vunpack.c.l.b16 %v7144
  %v7327 = vunpack.c.h.b16 %v7144
  %v7328 = vunpack.c.l.b16 %v7145
  %v7329 = vunpack.c.h.b16 %v7145
  %v7330 = vunpack.c.l.b16 %v7146
  %v7331 = vunpack.c.h.b16 %v7146
  %v7332 = vunpack.c.l.b16 %v7147
  %v7333 = vunpack.c.h.b16 %v7147
  %v7334 = vpack.c.b16 %v7304, %v7302
  %v7335 = vpack.c.b16 %v7305, %v7303
  %v7336 = vpack.c.b16 %v7308, %v7306
  %v7337 = vpack.c.b16 %v7309, %v7307
  %v7338 = vpack.c.b16 %v7312, %v7310
  %v7339 = vpack.c.b16 %v7313, %v7311
  %v7340 = vpack.c.b16 %v7316, %v7314
  %v7341 = vpack.c.b16 %v7317, %v7315
  %v7342 = vpack.c.b16 %v7320, %v7318
  %v7343 = vpack.c.b16 %v7321, %v7319
  %v7344 = vpack.c.b16 %v7324, %v7322
  %v7345 = vpack.c.b16 %v7325, %v7323
  %v7346 = vpack.c.b16 %v7328, %v7326
  %v7347 = vpack.c.b16 %v7329, %v7327
  %v7348 = vpack.c.b16 %v7332, %v7330
  %v7349 = vpack.c.b16 %v7333, %v7331
  %7366 = vmatprep.subr.bf16.mxu0 %v7335
  %7367 = vmatpush1.bf16.msra.mxu0 %v7334
  %7368 = vmatprep.subr.bf16.mxu0 %v7337
  %7369 = vmatpush1.bf16.msra.mxu0 %v7336
  %7370 = vmatprep.subr.bf16.mxu0 %v7339
  %7371 = vmatpush1.bf16.msra.mxu0 %v7338
  %7372 = vmatprep.subr.bf16.mxu0 %v7341
  %7373 = vmatpush1.bf16.msra.mxu0 %v7340
  %7374 = vmatprep.subr.bf16.mxu0 %v7343
  %7375 = vmatpush1.bf16.msra.mxu0 %v7342
  %7376 = vmatprep.subr.bf16.mxu0 %v7345
  %7377 = vmatpush1.bf16.msra.mxu0 %v7344
  %7378 = vmatprep.subr.bf16.mxu0 %v7347
  %7379 = vmatpush1.bf16.msra.mxu0 %v7346
  %7380 = vmatprep.subr.bf16.mxu0 %v7349
  %7381 = vmatpush1.bf16.msra.mxu0 %v7348
  %7382 = vmatprep.subr.bf16.mxu0 0
  %7383 = vmatpush1.bf16.msra.mxu0 0
  %7384 = vmatprep.subr.bf16.mxu0 0
  %7385 = vmatpush1.bf16.msra.mxu0 0
  %7386 = vmatprep.subr.bf16.mxu0 0
  %7387 = vmatpush1.bf16.msra.mxu0 0
  %7388 = vmatprep.subr.bf16.mxu0 0
  %7389 = vmatpush1.bf16.msra.mxu0 0
  %7390 = vmatprep.subr.bf16.mxu0 0
  %7391 = vmatpush1.bf16.msra.mxu0 0
  %7392 = vmatprep.subr.bf16.mxu0 0
  %7393 = vmatpush1.bf16.msra.mxu0 0
  %7394 = vmatprep.subr.bf16.mxu0 0
  %7395 = vmatpush1.bf16.msra.mxu0 0
  %7396 = vmatprep.subr.bf16.mxu0 0
  %7397 = vmatpush1.bf16.msra.mxu0 0
  %7398 = vmatprep.mubr.bf16.mxu0 0
  %7399 = vmatmul.mubr.bf16.gmra.mrb[0].mxu0 %v7131
  %v7400 = vpop.f32.mrb[0].mxu0
  %v7401 = vadd.f32 %v7280, %v7400
  %v7402 = vpop.f32.mrb[0].mxu0
  %v7403 = vadd.f32 %v7282, %v7402
  %v7404 = vpop.f32.mrb[0].mxu0
  %v7405 = vpop.f32.mrb[0].mxu0
  %7406 = vdwg.mxu0
  %v7407 = vpack.c.bf16 %v7102, %v7102
  %v7408 = vld [vmem:[%s10 + $0x100] sm:$0xff]
  %v7409 = vld [vmem:[%s10 + $0x108] sm:$0xff]
  %v7410 = vld [vmem:[%s10 + $0x110] sm:$0xff]
  %v7411 = vld [vmem:[%s10 + $0x118] sm:$0xff]
  %v7412 = vld [vmem:[%s10 + $0x120] sm:$0xff]
  %v7413 = vld [vmem:[%s10 + $0x128] sm:$0xff]
  %v7414 = vld [vmem:[%s10 + $0x130] sm:$0xff]
  %v7415 = vld [vmem:[%s10 + $0x138] sm:$0xff]
  %v7416 = vld [vmem:[%s10 + $0x140] sm:$0xff]
  %v7417 = vld [vmem:[%s10 + $0x148] sm:$0xff]
  %v7418 = vld [vmem:[%s10 + $0x150] sm:$0xff]
  %v7419 = vld [vmem:[%s10 + $0x158] sm:$0xff]
  %v7420 = vld [vmem:[%s10 + $0x160] sm:$0xff]
  %v7421 = vld [vmem:[%s10 + $0x168] sm:$0xff]
  %v7422 = vld [vmem:[%s10 + $0x170] sm:$0xff]
  %v7423 = vld [vmem:[%s10 + $0x178] sm:$0xff]
  %v7440 = vunpack.c.l.b16 %v7408
  %v7441 = vunpack.c.h.b16 %v7408
  %v7442 = vunpack.c.l.b16 %v7409
  %v7443 = vunpack.c.h.b16 %v7409
  %v7444 = vunpack.c.l.b16 %v7410
  %v7445 = vunpack.c.h.b16 %v7410
  %v7446 = vunpack.c.l.b16 %v7411
  %v7447 = vunpack.c.h.b16 %v7411
  %v7448 = vunpack.c.l.b16 %v7412
  %v7449 = vunpack.c.h.b16 %v7412
  %v7450 = vunpack.c.l.b16 %v7413
  %v7451 = vunpack.c.h.b16 %v7413
  %v7452 = vunpack.c.l.b16 %v7414
  %v7453 = vunpack.c.h.b16 %v7414
  %v7454 = vunpack.c.l.b16 %v7415
  %v7455 = vunpack.c.h.b16 %v7415
  %v7456 = vunpack.c.l.b16 %v7416
  %v7457 = vunpack.c.h.b16 %v7416
  %v7458 = vunpack.c.l.b16 %v7417
  %v7459 = vunpack.c.h.b16 %v7417
  %v7460 = vunpack.c.l.b16 %v7418
  %v7461 = vunpack.c.h.b16 %v7418
  %v7462 = vunpack.c.l.b16 %v7419
  %v7463 = vunpack.c.h.b16 %v7419
  %v7464 = vunpack.c.l.b16 %v7420
  %v7465 = vunpack.c.h.b16 %v7420
  %v7466 = vunpack.c.l.b16 %v7421
  %v7467 = vunpack.c.h.b16 %v7421
  %v7468 = vunpack.c.l.b16 %v7422
  %v7469 = vunpack.c.h.b16 %v7422
  %v7470 = vunpack.c.l.b16 %v7423
  %v7471 = vunpack.c.h.b16 %v7423
  %v7472 = vpack.c.b16 %v7442, %v7440
  %v7473 = vpack.c.b16 %v7443, %v7441
  %v7474 = vpack.c.b16 %v7446, %v7444
  %v7475 = vpack.c.b16 %v7447, %v7445
  %v7476 = vpack.c.b16 %v7450, %v7448
  %v7477 = vpack.c.b16 %v7451, %v7449
  %v7478 = vpack.c.b16 %v7454, %v7452
  %v7479 = vpack.c.b16 %v7455, %v7453
  %v7480 = vpack.c.b16 %v7458, %v7456
  %v7481 = vpack.c.b16 %v7459, %v7457
  %v7482 = vpack.c.b16 %v7462, %v7460
  %v7483 = vpack.c.b16 %v7463, %v7461
  %v7484 = vpack.c.b16 %v7466, %v7464
  %v7485 = vpack.c.b16 %v7467, %v7465
  %v7486 = vpack.c.b16 %v7470, %v7468
  %v7487 = vpack.c.b16 %v7471, %v7469
  %7504 = vmatprep.subr.bf16.mxu0 %v7473
  %7505 = vmatpush1.bf16.msra.mxu0 %v7472
  %7506 = vmatprep.subr.bf16.mxu0 %v7475
  %7507 = vmatpush1.bf16.msra.mxu0 %v7474
  %7508 = vmatprep.subr.bf16.mxu0 %v7477
  %7509 = vmatpush1.bf16.msra.mxu0 %v7476
  %7510 = vmatprep.subr.bf16.mxu0 %v7479
  %7511 = vmatpush1.bf16.msra.mxu0 %v7478
  %7512 = vmatprep.subr.bf16.mxu0 %v7481
  %7513 = vmatpush1.bf16.msra.mxu0 %v7480
  %7514 = vmatprep.subr.bf16.mxu0 %v7483
  %7515 = vmatpush1.bf16.msra.mxu0 %v7482
  %7516 = vmatprep.subr.bf16.mxu0 %v7485
  %7517 = vmatpush1.bf16.msra.mxu0 %v7484
  %7518 = vmatprep.subr.bf16.mxu0 %v7487
  %7519 = vmatpush1.bf16.msra.mxu0 %v7486
  %7520 = vmatprep.subr.bf16.mxu0 0
  %7521 = vmatpush1.bf16.msra.mxu0 0
  %7522 = vmatprep.subr.bf16.mxu0 0
  %7523 = vmatpush1.bf16.msra.mxu0 0
  %7524 = vmatprep.subr.bf16.mxu0 0
  %7525 = vmatpush1.bf16.msra.mxu0 0
  %7526 = vmatprep.subr.bf16.mxu0 0
  %7527 = vmatpush1.bf16.msra.mxu0 0
  %7528 = vmatprep.subr.bf16.mxu0 0
  %7529 = vmatpush1.bf16.msra.mxu0 0
  %7530 = vmatprep.subr.bf16.mxu0 0
  %7531 = vmatpush1.bf16.msra.mxu0 0
  %7532 = vmatprep.subr.bf16.mxu0 0
  %7533 = vmatpush1.bf16.msra.mxu0 0
  %7534 = vmatprep.subr.bf16.mxu0 0
  %7535 = vmatpush1.bf16.msra.mxu0 0
  %7536 = vmatprep.mubr.bf16.mxu0 0
  %7537 = vmatmul.mubr.bf16.gmra.mrb[0].mxu0 %v7407
  %v7538 = vpop.f32.mrb[0].mxu0
  %v7539 = vadd.f32 0.0, %v7538
  %v7540 = vpop.f32.mrb[0].mxu0
  %v7541 = vadd.f32 0.0, %v7540
  %v7542 = vpop.f32.mrb[0].mxu0
  %v7543 = vpop.f32.mrb[0].mxu0
  %7544 = vdwg.mxu0
  %v7545 = vadd.f32 %v7401, %v7539
  %v7546 = vadd.f32 %v7403, %v7541
  %v7547 = vpack.c.bf16 %v7105, %v7105
  %v7548 = vld [vmem:[%s10 + $0x180] sm:$0xff]
  %v7549 = vld [vmem:[%s10 + $0x188] sm:$0xff]
  %v7550 = vld [vmem:[%s10 + $0x190] sm:$0xff]
  %v7551 = vld [vmem:[%s10 + $0x198] sm:$0xff]
  %v7552 = vld [vmem:[%s10 + $0x1a0] sm:$0xff]
  %v7553 = vld [vmem:[%s10 + $0x1a8] sm:$0xff]
  %v7554 = vld [vmem:[%s10 + $0x1b0] sm:$0xff]
  %v7555 = vld [vmem:[%s10 + $0x1b8] sm:$0xff]
  %v7556 = vld [vmem:[%s10 + $0x1c0] sm:$0xff]
  %v7557 = vld [vmem:[%s10 + $0x1c8] sm:$0xff]
  %v7558 = vld [vmem:[%s10 + $0x1d0] sm:$0xff]
  %v7559 = vld [vmem:[%s10 + $0x1d8] sm:$0xff]
  %v7560 = vld [vmem:[%s10 + $0x1e0] sm:$0xff]
  %v7561 = vld [vmem:[%s10 + $0x1e8] sm:$0xff]
  %v7562 = vld [vmem:[%s10 + $0x1f0] sm:$0xff]
  %v7563 = vld [vmem:[%s10 + $0x1f8] sm:$0xff]
  %v7580 = vunpack.c.l.b16 %v7548
  %v7581 = vunpack.c.h.b16 %v7548
  %v7582 = vunpack.c.l.b16 %v7549
  %v7583 = vunpack.c.h.b16 %v7549
  %v7584 = vunpack.c.l.b16 %v7550
  %v7585 = vunpack.c.h.b16 %v7550
  %v7586 = vunpack.c.l.b16 %v7551
  %v7587 = vunpack.c.h.b16 %v7551
  %v7588 = vunpack.c.l.b16 %v7552
  %v7589 = vunpack.c.h.b16 %v7552
  %v7590 = vunpack.c.l.b16 %v7553
  %v7591 = vunpack.c.h.b16 %v7553
  %v7592 = vunpack.c.l.b16 %v7554
  %v7593 = vunpack.c.h.b16 %v7554
  %v7594 = vunpack.c.l.b16 %v7555
  %v7595 = vunpack.c.h.b16 %v7555
  %v7596 = vunpack.c.l.b16 %v7556
  %v7597 = vunpack.c.h.b16 %v7556
  %v7598 = vunpack.c.l.b16 %v7557
  %v7599 = vunpack.c.h.b16 %v7557
  %v7600 = vunpack.c.l.b16 %v7558
  %v7601 = vunpack.c.h.b16 %v7558
  %v7602 = vunpack.c.l.b16 %v7559
  %v7603 = vunpack.c.h.b16 %v7559
  %v7604 = vunpack.c.l.b16 %v7560
  %v7605 = vunpack.c.h.b16 %v7560
  %v7606 = vunpack.c.l.b16 %v7561
  %v7607 = vunpack.c.h.b16 %v7561
  %v7608 = vunpack.c.l.b16 %v7562
  %v7609 = vunpack.c.h.b16 %v7562
  %v7610 = vunpack.c.l.b16 %v7563
  %v7611 = vunpack.c.h.b16 %v7563
  %v7612 = vpack.c.b16 %v7582, %v7580
  %v7613 = vpack.c.b16 %v7583, %v7581
  %v7614 = vpack.c.b16 %v7586, %v7584
  %v7615 = vpack.c.b16 %v7587, %v7585
  %v7616 = vpack.c.b16 %v7590, %v7588
  %v7617 = vpack.c.b16 %v7591, %v7589
  %v7618 = vpack.c.b16 %v7594, %v7592
  %v7619 = vpack.c.b16 %v7595, %v7593
  %v7620 = vpack.c.b16 %v7598, %v7596
  %v7621 = vpack.c.b16 %v7599, %v7597
  %v7622 = vpack.c.b16 %v7602, %v7600
  %v7623 = vpack.c.b16 %v7603, %v7601
  %v7624 = vpack.c.b16 %v7606, %v7604
  %v7625 = vpack.c.b16 %v7607, %v7605
  %v7626 = vpack.c.b16 %v7610, %v7608
  %v7627 = vpack.c.b16 %v7611, %v7609
  %7644 = vmatprep.subr.bf16.mxu0 %v7613
  %7645 = vmatpush1.bf16.msra.mxu0 %v7612
  %7646 = vmatprep.subr.bf16.mxu0 %v7615
  %7647 = vmatpush1.bf16.msra.mxu0 %v7614
  %7648 = vmatprep.subr.bf16.mxu0 %v7617
  %7649 = vmatpush1.bf16.msra.mxu0 %v7616
  %7650 = vmatprep.subr.bf16.mxu0 %v7619
  %7651 = vmatpush1.bf16.msra.mxu0 %v7618
  %7652 = vmatprep.subr.bf16.mxu0 %v7621
  %7653 = vmatpush1.bf16.msra.mxu0 %v7620
  %7654 = vmatprep.subr.bf16.mxu0 %v7623
  %7655 = vmatpush1.bf16.msra.mxu0 %v7622
  %7656 = vmatprep.subr.bf16.mxu0 %v7625
  %7657 = vmatpush1.bf16.msra.mxu0 %v7624
  %7658 = vmatprep.subr.bf16.mxu0 %v7627
  %7659 = vmatpush1.bf16.msra.mxu0 %v7626
  %7660 = vmatprep.subr.bf16.mxu0 0
  %7661 = vmatpush1.bf16.msra.mxu0 0
  %7662 = vmatprep.subr.bf16.mxu0 0
  %7663 = vmatpush1.bf16.msra.mxu0 0
  %7664 = vmatprep.subr.bf16.mxu0 0
  %7665 = vmatpush1.bf16.msra.mxu0 0
  %7666 = vmatprep.subr.bf16.mxu0 0
  %7667 = vmatpush1.bf16.msra.mxu0 0
  %7668 = vmatprep.subr.bf16.mxu0 0
  %7669 = vmatpush1.bf16.msra.mxu0 0
  %7670 = vmatprep.subr.bf16.mxu0 0
  %7671 = vmatpush1.bf16.msra.mxu0 0
  %7672 = vmatprep.subr.bf16.mxu0 0
  %7673 = vmatpush1.bf16.msra.mxu0 0
  %7674 = vmatprep.subr.bf16.mxu0 0
  %7675 = vmatpush1.bf16.msra.mxu0 0
  %7676 = vmatprep.mubr.bf16.mxu0 0
  %7677 = vmatmul.mubr.bf16.gmra.mrb[0].mxu0 %v7547
  %v7678 = vpop.f32.mrb[0].mxu0
  %v7679 = vadd.f32 0.0, %v7678
  %v7680 = vpop.f32.mrb[0].mxu0
  %v7681 = vadd.f32 0.0, %v7680
  %v7682 = vpop.f32.mrb[0].mxu0
  %v7683 = vpop.f32.mrb[0].mxu0
  %7684 = vdwg.mxu0
  %v7685 = vadd.f32 %v7545, %v7679
  %v7686 = vadd.f32 %v7546, %v7681
  %v7687 = vpack.c.bf16 %v7110, %v7110
  %v7688 = vld [vmem:[%s10 + $0x200] sm:$0xff]
  %v7689 = vld [vmem:[%s10 + $0x208] sm:$0xff]
  %v7690 = vld [vmem:[%s10 + $0x210] sm:$0xff]
  %v7691 = vld [vmem:[%s10 + $0x218] sm:$0xff]
  %v7692 = vld [vmem:[%s10 + $0x220] sm:$0xff]
  %v7693 = vld [vmem:[%s10 + $0x228] sm:$0xff]
  %v7694 = vld [vmem:[%s10 + $0x230] sm:$0xff]
  %v7695 = vld [vmem:[%s10 + $0x238] sm:$0xff]
  %v7696 = vld [vmem:[%s10 + $0x240] sm:$0xff]
  %v7697 = vld [vmem:[%s10 + $0x248] sm:$0xff]
  %v7698 = vld [vmem:[%s10 + $0x250] sm:$0xff]
  %v7699 = vld [vmem:[%s10 + $0x258] sm:$0xff]
  %v7700 = vld [vmem:[%s10 + $0x260] sm:$0xff]
  %v7701 = vld [vmem:[%s10 + $0x268] sm:$0xff]
  %v7702 = vld [vmem:[%s10 + $0x270] sm:$0xff]
  %v7703 = vld [vmem:[%s10 + $0x278] sm:$0xff]
  %v7720 = vunpack.c.l.b16 %v7688
  %v7721 = vunpack.c.h.b16 %v7688
  %v7722 = vunpack.c.l.b16 %v7689
  %v7723 = vunpack.c.h.b16 %v7689
  %v7724 = vunpack.c.l.b16 %v7690
  %v7725 = vunpack.c.h.b16 %v7690
  %v7726 = vunpack.c.l.b16 %v7691
  %v7727 = vunpack.c.h.b16 %v7691
  %v7728 = vunpack.c.l.b16 %v7692
  %v7729 = vunpack.c.h.b16 %v7692
  %v7730 = vunpack.c.l.b16 %v7693
  %v7731 = vunpack.c.h.b16 %v7693
  %v7732 = vunpack.c.l.b16 %v7694
  %v7733 = vunpack.c.h.b16 %v7694
  %v7734 = vunpack.c.l.b16 %v7695
  %v7735 = vunpack.c.h.b16 %v7695
  %v7736 = vunpack.c.l.b16 %v7696
  %v7737 = vunpack.c.h.b16 %v7696
  %v7738 = vunpack.c.l.b16 %v7697
  %v7739 = vunpack.c.h.b16 %v7697
  %v7740 = vunpack.c.l.b16 %v7698
  %v7741 = vunpack.c.h.b16 %v7698
  %v7742 = vunpack.c.l.b16 %v7699
  %v7743 = vunpack.c.h.b16 %v7699
  %v7744 = vunpack.c.l.b16 %v7700
  %v7745 = vunpack.c.h.b16 %v7700
  %v7746 = vunpack.c.l.b16 %v7701
  %v7747 = vunpack.c.h.b16 %v7701
  %v7748 = vunpack.c.l.b16 %v7702
  %v7749 = vunpack.c.h.b16 %v7702
  %v7750 = vunpack.c.l.b16 %v7703
  %v7751 = vunpack.c.h.b16 %v7703
  %v7752 = vpack.c.b16 %v7722, %v7720
  %v7753 = vpack.c.b16 %v7723, %v7721
  %v7754 = vpack.c.b16 %v7726, %v7724
  %v7755 = vpack.c.b16 %v7727, %v7725
  %v7756 = vpack.c.b16 %v7730, %v7728
  %v7757 = vpack.c.b16 %v7731, %v7729
  %v7758 = vpack.c.b16 %v7734, %v7732
  %v7759 = vpack.c.b16 %v7735, %v7733
  %v7760 = vpack.c.b16 %v7738, %v7736
  %v7761 = vpack.c.b16 %v7739, %v7737
  %v7762 = vpack.c.b16 %v7742, %v7740
  %v7763 = vpack.c.b16 %v7743, %v7741
  %v7764 = vpack.c.b16 %v7746, %v7744
  %v7765 = vpack.c.b16 %v7747, %v7745
  %v7766 = vpack.c.b16 %v7750, %v7748
  %v7767 = vpack.c.b16 %v7751, %v7749
  %7784 = vmatprep.subr.bf16.mxu0 %v7753
  %7785 = vmatpush1.bf16.msra.mxu0 %v7752
  %7786 = vmatprep.subr.bf16.mxu0 %v7755
  %7787 = vmatpush1.bf16.msra.mxu0 %v7754
  %7788 = vmatprep.subr.bf16.mxu0 %v7757
  %7789 = vmatpush1.bf16.msra.mxu0 %v7756
  %7790 = vmatprep.subr.bf16.mxu0 %v7759
  %7791 = vmatpush1.bf16.msra.mxu0 %v7758
  %7792 = vmatprep.subr.bf16.mxu0 %v7761
  %7793 = vmatpush1.bf16.msra.mxu0 %v7760
  %7794 = vmatprep.subr.bf16.mxu0 %v7763
  %7795 = vmatpush1.bf16.msra.mxu0 %v7762
  %7796 = vmatprep.subr.bf16.mxu0 %v7765
  %7797 = vmatpush1.bf16.msra.mxu0 %v7764
  %7798 = vmatprep.subr.bf16.mxu0 %v7767
  %7799 = vmatpush1.bf16.msra.mxu0 %v7766
  %7800 = vmatprep.subr.bf16.mxu0 0
  %7801 = vmatpush1.bf16.msra.mxu0 0
  %7802 = vmatprep.subr.bf16.mxu0 0
  %7803 = vmatpush1.bf16.msra.mxu0 0
  %7804 = vmatprep.subr.bf16.mxu0 0
  %7805 = vmatpush1.bf16.msra.mxu0 0
  %7806 = vmatprep.subr.bf16.mxu0 0
  %7807 = vmatpush1.bf16.msra.mxu0 0
  %7808 = vmatprep.subr.bf16.mxu0 0
  %7809 = vmatpush1.bf16.msra.mxu0 0
  %7810 = vmatprep.subr.bf16.mxu0 0
  %7811 = vmatpush1.bf16.msra.mxu0 0
  %7812 = vmatprep.subr.bf16.mxu0 0
  %7813 = vmatpush1.bf16.msra.mxu0 0
  %7814 = vmatprep.subr.bf16.mxu0 0
  %7815 = vmatpush1.bf16.msra.mxu0 0
  %7816 = vmatprep.mubr.bf16.mxu0 0
  %7817 = vmatmul.mubr.bf16.gmra.mrb[0].mxu0 %v7687
  %v7818 = vpop.f32.mrb[0].mxu0
  %v7819 = vadd.f32 0.0, %v7818
  %v7820 = vpop.f32.mrb[0].mxu0
  %v7821 = vadd.f32 0.0, %v7820
  %v7822 = vpop.f32.mrb[0].mxu0
  %v7823 = vpop.f32.mrb[0].mxu0
  %7824 = vdwg.mxu0
  %v7825 = vadd.f32 %v7685, %v7819
  %v7826 = vadd.f32 %v7686, %v7821
  %v7827 = vpack.c.bf16 %v7113, %v7113
  %v7828 = vld [vmem:[%s10 + $0x280] sm:$0xff]
  %v7829 = vld [vmem:[%s10 + $0x288] sm:$0xff]
  %v7830 = vld [vmem:[%s10 + $0x290] sm:$0xff]
  %v7831 = vld [vmem:[%s10 + $0x298] sm:$0xff]
  %v7832 = vld [vmem:[%s10 + $0x2a0] sm:$0xff]
  %v7833 = vld [vmem:[%s10 + $0x2a8] sm:$0xff]
  %v7834 = vld [vmem:[%s10 + $0x2b0] sm:$0xff]
  %v7835 = vld [vmem:[%s10 + $0x2b8] sm:$0xff]
  %v7836 = vld [vmem:[%s10 + $0x2c0] sm:$0xff]
  %v7837 = vld [vmem:[%s10 + $0x2c8] sm:$0xff]
  %v7838 = vld [vmem:[%s10 + $0x2d0] sm:$0xff]
  %v7839 = vld [vmem:[%s10 + $0x2d8] sm:$0xff]
  %v7840 = vld [vmem:[%s10 + $0x2e0] sm:$0xff]
  %v7841 = vld [vmem:[%s10 + $0x2e8] sm:$0xff]
  %v7842 = vld [vmem:[%s10 + $0x2f0] sm:$0xff]
  %v7843 = vld [vmem:[%s10 + $0x2f8] sm:$0xff]
  %v7860 = vunpack.c.l.b16 %v7828
  %v7861 = vunpack.c.h.b16 %v7828
  %v7862 = vunpack.c.l.b16 %v7829
  %v7863 = vunpack.c.h.b16 %v7829
  %v7864 = vunpack.c.l.b16 %v7830
  %v7865 = vunpack.c.h.b16 %v7830
  %v7866 = vunpack.c.l.b16 %v7831
  %v7867 = vunpack.c.h.b16 %v7831
  %v7868 = vunpack.c.l.b16 %v7832
  %v7869 = vunpack.c.h.b16 %v7832
  %v7870 = vunpack.c.l.b16 %v7833
  %v7871 = vunpack.c.h.b16 %v7833
  %v7872 = vunpack.c.l.b16 %v7834
  %v7873 = vunpack.c.h.b16 %v7834
  %v7874 = vunpack.c.l.b16 %v7835
  %v7875 = vunpack.c.h.b16 %v7835
  %v7876 = vunpack.c.l.b16 %v7836
  %v7877 = vunpack.c.h.b16 %v7836
  %v7878 = vunpack.c.l.b16 %v7837
  %v7879 = vunpack.c.h.b16 %v7837
  %v7880 = vunpack.c.l.b16 %v7838
  %v7881 = vunpack.c.h.b16 %v7838
  %v7882 = vunpack.c.l.b16 %v7839
  %v7883 = vunpack.c.h.b16 %v7839
  %v7884 = vunpack.c.l.b16 %v7840
  %v7885 = vunpack.c.h.b16 %v7840
  %v7886 = vunpack.c.l.b16 %v7841
  %v7887 = vunpack.c.h.b16 %v7841
  %v7888 = vunpack.c.l.b16 %v7842
  %v7889 = vunpack.c.h.b16 %v7842
  %v7890 = vunpack.c.l.b16 %v7843
  %v7891 = vunpack.c.h.b16 %v7843
  %v7892 = vpack.c.b16 %v7862, %v7860
  %v7893 = vpack.c.b16 %v7863, %v7861
  %v7894 = vpack.c.b16 %v7866, %v7864
  %v7895 = vpack.c.b16 %v7867, %v7865
  %v7896 = vpack.c.b16 %v7870, %v7868
  %v7897 = vpack.c.b16 %v7871, %v7869
  %v7898 = vpack.c.b16 %v7874, %v7872
  %v7899 = vpack.c.b16 %v7875, %v7873
  %v7900 = vpack.c.b16 %v7878, %v7876
  %v7901 = vpack.c.b16 %v7879, %v7877
  %v7902 = vpack.c.b16 %v7882, %v7880
  %v7903 = vpack.c.b16 %v7883, %v7881
  %v7904 = vpack.c.b16 %v7886, %v7884
  %v7905 = vpack.c.b16 %v7887, %v7885
  %v7906 = vpack.c.b16 %v7890, %v7888
  %v7907 = vpack.c.b16 %v7891, %v7889
  %7924 = vmatprep.subr.bf16.mxu0 %v7893
  %7925 = vmatpush1.bf16.msra.mxu0 %v7892
  %7926 = vmatprep.subr.bf16.mxu0 %v7895
  %7927 = vmatpush1.bf16.msra.mxu0 %v7894
  %7928 = vmatprep.subr.bf16.mxu0 %v7897
  %7929 = vmatpush1.bf16.msra.mxu0 %v7896
  %7930 = vmatprep.subr.bf16.mxu0 %v7899
  %7931 = vmatpush1.bf16.msra.mxu0 %v7898
  %7932 = vmatprep.subr.bf16.mxu0 %v7901
  %7933 = vmatpush1.bf16.msra.mxu0 %v7900
  %7934 = vmatprep.subr.bf16.mxu0 %v7903
  %7935 = vmatpush1.bf16.msra.mxu0 %v7902
  %7936 = vmatprep.subr.bf16.mxu0 %v7905
  %7937 = vmatpush1.bf16.msra.mxu0 %v7904
  %7938 = vmatprep.subr.bf16.mxu0 %v7907
  %7939 = vmatpush1.bf16.msra.mxu0 %v7906
  %7940 = vmatprep.subr.bf16.mxu0 0
  %7941 = vmatpush1.bf16.msra.mxu0 0
  %7942 = vmatprep.subr.bf16.mxu0 0
  %7943 = vmatpush1.bf16.msra.mxu0 0
  %7944 = vmatprep.subr.bf16.mxu0 0
  %7945 = vmatpush1.bf16.msra.mxu0 0
  %7946 = vmatprep.subr.bf16.mxu0 0
  %7947 = vmatpush1.bf16.msra.mxu0 0
  %7948 = vmatprep.subr.bf16.mxu0 0
  %7949 = vmatpush1.bf16.msra.mxu0 0
  %7950 = vmatprep.subr.bf16.mxu0 0
  %7951 = vmatpush1.bf16.msra.mxu0 0
  %7952 = vmatprep.subr.bf16.mxu0 0
  %7953 = vmatpush1.bf16.msra.mxu0 0
  %7954 = vmatprep.subr.bf16.mxu0 0
  %7955 = vmatpush1.bf16.msra.mxu0 0
  %7956 = vmatprep.mubr.bf16.mxu0 0
  %7957 = vmatmul.mubr.bf16.gmra.mrb[0].mxu0 %v7827
  %v7958 = vpop.f32.mrb[0].mxu0
  %v7959 = vadd.f32 0.0, %v7958
  %v7960 = vpop.f32.mrb[0].mxu0
  %v7961 = vadd.f32 0.0, %v7960
  %v7962 = vpop.f32.mrb[0].mxu0
  %v7963 = vpop.f32.mrb[0].mxu0
  %7964 = vdwg.mxu0
  %v7965 = vadd.f32 %v7825, %v7959
  %v7966 = vadd.f32 %v7826, %v7961
  %v7967 = vpack.c.bf16 %v7118, %v7118
  %v7968 = vld [vmem:[%s10 + $0x300] sm:$0xff]
  %v7969 = vld [vmem:[%s10 + $0x308] sm:$0xff]
  %v7970 = vld [vmem:[%s10 + $0x310] sm:$0xff]
  %v7971 = vld [vmem:[%s10 + $0x318] sm:$0xff]
  %v7972 = vld [vmem:[%s10 + $0x320] sm:$0xff]
  %v7973 = vld [vmem:[%s10 + $0x328] sm:$0xff]
  %v7974 = vld [vmem:[%s10 + $0x330] sm:$0xff]
  %v7975 = vld [vmem:[%s10 + $0x338] sm:$0xff]
  %v7976 = vld [vmem:[%s10 + $0x340] sm:$0xff]
  %v7977 = vld [vmem:[%s10 + $0x348] sm:$0xff]
  %v7978 = vld [vmem:[%s10 + $0x350] sm:$0xff]
  %v7979 = vld [vmem:[%s10 + $0x358] sm:$0xff]
  %v7980 = vld [vmem:[%s10 + $0x360] sm:$0xff]
  %v7981 = vld [vmem:[%s10 + $0x368] sm:$0xff]
  %v7982 = vld [vmem:[%s10 + $0x370] sm:$0xff]
  %v7983 = vld [vmem:[%s10 + $0x378] sm:$0xff]
  %v8000 = vunpack.c.l.b16 %v7968
  %v8001 = vunpack.c.h.b16 %v7968
  %v8002 = vunpack.c.l.b16 %v7969
  %v8003 = vunpack.c.h.b16 %v7969
  %v8004 = vunpack.c.l.b16 %v7970
  %v8005 = vunpack.c.h.b16 %v7970
  %v8006 = vunpack.c.l.b16 %v7971
  %v8007 = vunpack.c.h.b16 %v7971
  %v8008 = vunpack.c.l.b16 %v7972
  %v8009 = vunpack.c.h.b16 %v7972
  %v8010 = vunpack.c.l.b16 %v7973
  %v8011 = vunpack.c.h.b16 %v7973
  %v8012 = vunpack.c.l.b16 %v7974
  %v8013 = vunpack.c.h.b16 %v7974
  %v8014 = vunpack.c.l.b16 %v7975
  %v8015 = vunpack.c.h.b16 %v7975
  %v8016 = vunpack.c.l.b16 %v7976
  %v8017 = vunpack.c.h.b16 %v7976
  %v8018 = vunpack.c.l.b16 %v7977
  %v8019 = vunpack.c.h.b16 %v7977
  %v8020 = vunpack.c.l.b16 %v7978
  %v8021 = vunpack.c.h.b16 %v7978
  %v8022 = vunpack.c.l.b16 %v7979
  %v8023 = vunpack.c.h.b16 %v7979
  %v8024 = vunpack.c.l.b16 %v7980
  %v8025 = vunpack.c.h.b16 %v7980
  %v8026 = vunpack.c.l.b16 %v7981
  %v8027 = vunpack.c.h.b16 %v7981
  %v8028 = vunpack.c.l.b16 %v7982
  %v8029 = vunpack.c.h.b16 %v7982
  %v8030 = vunpack.c.l.b16 %v7983
  %v8031 = vunpack.c.h.b16 %v7983
  %v8032 = vpack.c.b16 %v8002, %v8000
  %v8033 = vpack.c.b16 %v8003, %v8001
  %v8034 = vpack.c.b16 %v8006, %v8004
  %v8035 = vpack.c.b16 %v8007, %v8005
  %v8036 = vpack.c.b16 %v8010, %v8008
  %v8037 = vpack.c.b16 %v8011, %v8009
  %v8038 = vpack.c.b16 %v8014, %v8012
  %v8039 = vpack.c.b16 %v8015, %v8013
  %v8040 = vpack.c.b16 %v8018, %v8016
  %v8041 = vpack.c.b16 %v8019, %v8017
  %v8042 = vpack.c.b16 %v8022, %v8020
  %v8043 = vpack.c.b16 %v8023, %v8021
  %v8044 = vpack.c.b16 %v8026, %v8024
  %v8045 = vpack.c.b16 %v8027, %v8025
  %v8046 = vpack.c.b16 %v8030, %v8028
  %v8047 = vpack.c.b16 %v8031, %v8029
  %8064 = vmatprep.subr.bf16.mxu0 %v8033
  %8065 = vmatpush1.bf16.msra.mxu0 %v8032
  %8066 = vmatprep.subr.bf16.mxu0 %v8035
  %8067 = vmatpush1.bf16.msra.mxu0 %v8034
  %8068 = vmatprep.subr.bf16.mxu0 %v8037
  %8069 = vmatpush1.bf16.msra.mxu0 %v8036
  %8070 = vmatprep.subr.bf16.mxu0 %v8039
  %8071 = vmatpush1.bf16.msra.mxu0 %v8038
  %8072 = vmatprep.subr.bf16.mxu0 %v8041
  %8073 = vmatpush1.bf16.msra.mxu0 %v8040
  %8074 = vmatprep.subr.bf16.mxu0 %v8043
  %8075 = vmatpush1.bf16.msra.mxu0 %v8042
  %8076 = vmatprep.subr.bf16.mxu0 %v8045
  %8077 = vmatpush1.bf16.msra.mxu0 %v8044
  %8078 = vmatprep.subr.bf16.mxu0 %v8047
  %8079 = vmatpush1.bf16.msra.mxu0 %v8046
  %8080 = vmatprep.subr.bf16.mxu0 0
  %8081 = vmatpush1.bf16.msra.mxu0 0
  %8082 = vmatprep.subr.bf16.mxu0 0
  %8083 = vmatpush1.bf16.msra.mxu0 0
  %8084 = vmatprep.subr.bf16.mxu0 0
  %8085 = vmatpush1.bf16.msra.mxu0 0
  %8086 = vmatprep.subr.bf16.mxu0 0
  %8087 = vmatpush1.bf16.msra.mxu0 0
  %8088 = vmatprep.subr.bf16.mxu0 0
  %8089 = vmatpush1.bf16.msra.mxu0 0
  %8090 = vmatprep.subr.bf16.mxu0 0
  %8091 = vmatpush1.bf16.msra.mxu0 0
  %8092 = vmatprep.subr.bf16.mxu0 0
  %8093 = vmatpush1.bf16.msra.mxu0 0
  %8094 = vmatprep.subr.bf16.mxu0 0
  %8095 = vmatpush1.bf16.msra.mxu0 0
  %8096 = vmatprep.mubr.bf16.mxu0 0
  %8097 = vmatmul.mubr.bf16.gmra.mrb[0].mxu0 %v7967
  %v8098 = vpop.f32.mrb[0].mxu0
  %v8099 = vadd.f32 0.0, %v8098
  %v8100 = vpop.f32.mrb[0].mxu0
  %v8101 = vadd.f32 0.0, %v8100
  %v8102 = vpop.f32.mrb[0].mxu0
  %v8103 = vpop.f32.mrb[0].mxu0
  %8104 = vdwg.mxu0
  %v8105 = vadd.f32 %v7965, %v8099
  %v8106 = vadd.f32 %v7966, %v8101
  %v8107 = vpack.c.bf16 %v7121, %v7121
  %v8108 = vld [vmem:[%s10 + $0x380] sm:$0xff]
  %v8109 = vld [vmem:[%s10 + $0x388] sm:$0xff]
  %v8110 = vld [vmem:[%s10 + $0x390] sm:$0xff]
  %v8111 = vld [vmem:[%s10 + $0x398] sm:$0xff]
  %v8112 = vld [vmem:[%s10 + $0x3a0] sm:$0xff]
  %v8113 = vld [vmem:[%s10 + $0x3a8] sm:$0xff]
  %v8114 = vld [vmem:[%s10 + $0x3b0] sm:$0xff]
  %v8115 = vld [vmem:[%s10 + $0x3b8] sm:$0xff]
  %v8116 = vld [vmem:[%s10 + $0x3c0] sm:$0xff]
  %v8117 = vld [vmem:[%s10 + $0x3c8] sm:$0xff]
  %v8118 = vld [vmem:[%s10 + $0x3d0] sm:$0xff]
  %v8119 = vld [vmem:[%s10 + $0x3d8] sm:$0xff]
  %v8120 = vld [vmem:[%s10 + $0x3e0] sm:$0xff]
  %v8121 = vld [vmem:[%s10 + $0x3e8] sm:$0xff]
  %v8122 = vld [vmem:[%s10 + $0x3f0] sm:$0xff]
  %v8123 = vld [vmem:[%s10 + $0x3f8] sm:$0xff]
  %v8140 = vunpack.c.l.b16 %v8108
  %v8141 = vunpack.c.h.b16 %v8108
  %v8142 = vunpack.c.l.b16 %v8109
  %v8143 = vunpack.c.h.b16 %v8109
  %v8144 = vunpack.c.l.b16 %v8110
  %v8145 = vunpack.c.h.b16 %v8110
  %v8146 = vunpack.c.l.b16 %v8111
  %v8147 = vunpack.c.h.b16 %v8111
  %v8148 = vunpack.c.l.b16 %v8112
  %v8149 = vunpack.c.h.b16 %v8112
  %v8150 = vunpack.c.l.b16 %v8113
  %v8151 = vunpack.c.h.b16 %v8113
  %v8152 = vunpack.c.l.b16 %v8114
  %v8153 = vunpack.c.h.b16 %v8114
  %v8154 = vunpack.c.l.b16 %v8115
  %v8155 = vunpack.c.h.b16 %v8115
  %v8156 = vunpack.c.l.b16 %v8116
  %v8157 = vunpack.c.h.b16 %v8116
  %v8158 = vunpack.c.l.b16 %v8117
  %v8159 = vunpack.c.h.b16 %v8117
  %v8160 = vunpack.c.l.b16 %v8118
  %v8161 = vunpack.c.h.b16 %v8118
  %v8162 = vunpack.c.l.b16 %v8119
  %v8163 = vunpack.c.h.b16 %v8119
  %v8164 = vunpack.c.l.b16 %v8120
  %v8165 = vunpack.c.h.b16 %v8120
  %v8166 = vunpack.c.l.b16 %v8121
  %v8167 = vunpack.c.h.b16 %v8121
  %v8168 = vunpack.c.l.b16 %v8122
  %v8169 = vunpack.c.h.b16 %v8122
  %v8170 = vunpack.c.l.b16 %v8123
  %v8171 = vunpack.c.h.b16 %v8123
  %v8172 = vpack.c.b16 %v8142, %v8140
  %v8173 = vpack.c.b16 %v8143, %v8141
  %v8174 = vpack.c.b16 %v8146, %v8144
  %v8175 = vpack.c.b16 %v8147, %v8145
  %v8176 = vpack.c.b16 %v8150, %v8148
  %v8177 = vpack.c.b16 %v8151, %v8149
  %v8178 = vpack.c.b16 %v8154, %v8152
  %v8179 = vpack.c.b16 %v8155, %v8153
  %v8180 = vpack.c.b16 %v8158, %v8156
  %v8181 = vpack.c.b16 %v8159, %v8157
  %v8182 = vpack.c.b16 %v8162, %v8160
  %v8183 = vpack.c.b16 %v8163, %v8161
  %v8184 = vpack.c.b16 %v8166, %v8164
  %v8185 = vpack.c.b16 %v8167, %v8165
  %v8186 = vpack.c.b16 %v8170, %v8168
  %v8187 = vpack.c.b16 %v8171, %v8169
  %8204 = vmatprep.subr.bf16.mxu0 %v8173
  %8205 = vmatpush1.bf16.msra.mxu0 %v8172
  %8206 = vmatprep.subr.bf16.mxu0 %v8175
  %8207 = vmatpush1.bf16.msra.mxu0 %v8174
  %8208 = vmatprep.subr.bf16.mxu0 %v8177
  %8209 = vmatpush1.bf16.msra.mxu0 %v8176
  %8210 = vmatprep.subr.bf16.mxu0 %v8179
  %8211 = vmatpush1.bf16.msra.mxu0 %v8178
  %8212 = vmatprep.subr.bf16.mxu0 %v8181
  %8213 = vmatpush1.bf16.msra.mxu0 %v8180
  %8214 = vmatprep.subr.bf16.mxu0 %v8183
  %8215 = vmatpush1.bf16.msra.mxu0 %v8182
  %8216 = vmatprep.subr.bf16.mxu0 %v8185
  %8217 = vmatpush1.bf16.msra.mxu0 %v8184
  %8218 = vmatprep.subr.bf16.mxu0 %v8187
  %8219 = vmatpush1.bf16.msra.mxu0 %v8186
  %8220 = vmatprep.subr.bf16.mxu0 0
  %8221 = vmatpush1.bf16.msra.mxu0 0
  %8222 = vmatprep.subr.bf16.mxu0 0
  %8223 = vmatpush1.bf16.msra.mxu0 0
  %8224 = vmatprep.subr.bf16.mxu0 0
  %8225 = vmatpush1.bf16.msra.mxu0 0
  %8226 = vmatprep.subr.bf16.mxu0 0
  %8227 = vmatpush1.bf16.msra.mxu0 0
  %8228 = vmatprep.subr.bf16.mxu0 0
  %8229 = vmatpush1.bf16.msra.mxu0 0
  %8230 = vmatprep.subr.bf16.mxu0 0
  %8231 = vmatpush1.bf16.msra.mxu0 0
  %8232 = vmatprep.subr.bf16.mxu0 0
  %8233 = vmatpush1.bf16.msra.mxu0 0
  %8234 = vmatprep.subr.bf16.mxu0 0
  %8235 = vmatpush1.bf16.msra.mxu0 0
  %8236 = vmatprep.mubr.bf16.mxu0 0
  %8237 = vmatmul.mubr.bf16.gmra.mrb[0].mxu0 %v8107
  %v8238 = vpop.f32.mrb[0].mxu0
  %v8239 = vadd.f32 0.0, %v8238
  %v8240 = vpop.f32.mrb[0].mxu0
  %v8241 = vadd.f32 0.0, %v8240
  %v8242 = vpop.f32.mrb[0].mxu0
  %v8243 = vpop.f32.mrb[0].mxu0
  %8244 = vdwg.mxu0
  %v8245 = vadd.f32 %v8105, %v8239
  %v8246 = vadd.f32 %v8106, %v8241
  %v8247 = vpack.c.bf16 %v7126, %v7126
  %v8248 = vld [vmem:[%s10 + $0x400] sm:$0xff]
  %v8249 = vld [vmem:[%s10 + $0x408] sm:$0xff]
  %v8250 = vld [vmem:[%s10 + $0x410] sm:$0xff]
  %v8251 = vld [vmem:[%s10 + $0x418] sm:$0xff]
  %v8252 = vld [vmem:[%s10 + $0x420] sm:$0xff]
  %v8253 = vld [vmem:[%s10 + $0x428] sm:$0xff]
  %v8254 = vld [vmem:[%s10 + $0x430] sm:$0xff]
  %v8255 = vld [vmem:[%s10 + $0x438] sm:$0xff]
  %v8256 = vld [vmem:[%s10 + $0x440] sm:$0xff]
  %v8257 = vld [vmem:[%s10 + $0x448] sm:$0xff]
  %v8258 = vld [vmem:[%s10 + $0x450] sm:$0xff]
  %v8259 = vld [vmem:[%s10 + $0x458] sm:$0xff]
  %v8260 = vld [vmem:[%s10 + $0x460] sm:$0xff]
  %v8261 = vld [vmem:[%s10 + $0x468] sm:$0xff]
  %v8262 = vld [vmem:[%s10 + $0x470] sm:$0xff]
  %v8263 = vld [vmem:[%s10 + $0x478] sm:$0xff]
  %v8280 = vunpack.c.l.b16 %v8248
  %v8281 = vunpack.c.h.b16 %v8248
  %v8282 = vunpack.c.l.b16 %v8249
  %v8283 = vunpack.c.h.b16 %v8249
  %v8284 = vunpack.c.l.b16 %v8250
  %v8285 = vunpack.c.h.b16 %v8250
  %v8286 = vunpack.c.l.b16 %v8251
  %v8287 = vunpack.c.h.b16 %v8251
  %v8288 = vunpack.c.l.b16 %v8252
  %v8289 = vunpack.c.h.b16 %v8252
  %v8290 = vunpack.c.l.b16 %v8253
  %v8291 = vunpack.c.h.b16 %v8253
  %v8292 = vunpack.c.l.b16 %v8254
  %v8293 = vunpack.c.h.b16 %v8254
  %v8294 = vunpack.c.l.b16 %v8255
  %v8295 = vunpack.c.h.b16 %v8255
  %v8296 = vunpack.c.l.b16 %v8256
  %v8297 = vunpack.c.h.b16 %v8256
  %v8298 = vunpack.c.l.b16 %v8257
  %v8299 = vunpack.c.h.b16 %v8257
  %v8300 = vunpack.c.l.b16 %v8258
  %v8301 = vunpack.c.h.b16 %v8258
  %v8302 = vunpack.c.l.b16 %v8259
  %v8303 = vunpack.c.h.b16 %v8259
  %v8304 = vunpack.c.l.b16 %v8260
  %v8305 = vunpack.c.h.b16 %v8260
  %v8306 = vunpack.c.l.b16 %v8261
  %v8307 = vunpack.c.h.b16 %v8261
  %v8308 = vunpack.c.l.b16 %v8262
  %v8309 = vunpack.c.h.b16 %v8262
  %v8310 = vunpack.c.l.b16 %v8263
  %v8311 = vunpack.c.h.b16 %v8263
  %v8312 = vpack.c.b16 %v8282, %v8280
  %v8313 = vpack.c.b16 %v8283, %v8281
  %v8314 = vpack.c.b16 %v8286, %v8284
  %v8315 = vpack.c.b16 %v8287, %v8285
  %v8316 = vpack.c.b16 %v8290, %v8288
  %v8317 = vpack.c.b16 %v8291, %v8289
  %v8318 = vpack.c.b16 %v8294, %v8292
  %v8319 = vpack.c.b16 %v8295, %v8293
  %v8320 = vpack.c.b16 %v8298, %v8296
  %v8321 = vpack.c.b16 %v8299, %v8297
  %v8322 = vpack.c.b16 %v8302, %v8300
  %v8323 = vpack.c.b16 %v8303, %v8301
  %v8324 = vpack.c.b16 %v8306, %v8304
  %v8325 = vpack.c.b16 %v8307, %v8305
  %v8326 = vpack.c.b16 %v8310, %v8308
  %v8327 = vpack.c.b16 %v8311, %v8309
  %8344 = vmatprep.subr.bf16.mxu0 %v8313
  %8345 = vmatpush1.bf16.msra.mxu0 %v8312
  %8346 = vmatprep.subr.bf16.mxu0 %v8315
  %8347 = vmatpush1.bf16.msra.mxu0 %v8314
  %8348 = vmatprep.subr.bf16.mxu0 %v8317
  %8349 = vmatpush1.bf16.msra.mxu0 %v8316
  %8350 = vmatprep.subr.bf16.mxu0 %v8319
  %8351 = vmatpush1.bf16.msra.mxu0 %v8318
  %8352 = vmatprep.subr.bf16.mxu0 %v8321
  %8353 = vmatpush1.bf16.msra.mxu0 %v8320
  %8354 = vmatprep.subr.bf16.mxu0 %v8323
  %8355 = vmatpush1.bf16.msra.mxu0 %v8322
  %8356 = vmatprep.subr.bf16.mxu0 %v8325
  %8357 = vmatpush1.bf16.msra.mxu0 %v8324
  %8358 = vmatprep.subr.bf16.mxu0 %v8327
  %8359 = vmatpush1.bf16.msra.mxu0 %v8326
  %8360 = vmatprep.subr.bf16.mxu0 0
  %8361 = vmatpush1.bf16.msra.mxu0 0
  %8362 = vmatprep.subr.bf16.mxu0 0
  %8363 = vmatpush1.bf16.msra.mxu0 0
  %8364 = vmatprep.subr.bf16.mxu0 0
  %8365 = vmatpush1.bf16.msra.mxu0 0
  %8366 = vmatprep.subr.bf16.mxu0 0
  %8367 = vmatpush1.bf16.msra.mxu0 0
  %8368 = vmatprep.subr.bf16.mxu0 0
  %8369 = vmatpush1.bf16.msra.mxu0 0
  %8370 = vmatprep.subr.bf16.mxu0 0
  %8371 = vmatpush1.bf16.msra.mxu0 0
  %8372 = vmatprep.subr.bf16.mxu0 0
  %8373 = vmatpush1.bf16.msra.mxu0 0
  %8374 = vmatprep.subr.bf16.mxu0 0
  %8375 = vmatpush1.bf16.msra.mxu0 0
  %8376 = vmatprep.mubr.bf16.mxu0 0
  %8377 = vmatmul.mubr.bf16.gmra.mrb[0].mxu0 %v8247
  %v8378 = vpop.f32.mrb[0].mxu0
  %v8379 = vadd.f32 0.0, %v8378
  %v8380 = vpop.f32.mrb[0].mxu0
  %v8381 = vadd.f32 0.0, %v8380
  %v8382 = vpop.f32.mrb[0].mxu0
  %v8383 = vpop.f32.mrb[0].mxu0
  %8384 = vdwg.mxu0
  %v8385 = vadd.f32 %v8245, %v8379
  %v8386 = vadd.f32 %v8246, %v8381
  %v8387 = vld [vmem:[%s11] ss:$4 sm:$0x3]
  %v8389 = vlaneseq
  %v8390 = vshrl.u32 %v8389, 7
  %v8391 = vsub.s32 0, %v8390
  %v8392 = vrot.slane %v8387, %v8391
  %v8393 = vlaneseq
  %v8394 = vshrl.u32 %v8393, 7
  %v8395 = vsub.s32 1, %v8394
  %v8396 = vrot.slane %v8387, %v8395
  %v8399 = vadd.f32 %v8385, %v8392
  %v8400 = vadd.f32 %v8386, %v8396
  %vm8401 = vcmp.ge.f32.partialorder %v8399, 0.0
  %vm8402 = vcmp.ge.f32.partialorder %v8400, 0.0
  %v8403 = vmul.f32 %v8399, 0.2
  %v8404 = vmul.f32 %v8400, 0.2
  %v8405 = vsel %vm8401, %v8399, %v8403
  %v8406 = vsel %vm8402, %v8400, %v8404
  %s8407 = scalar_lea.vmem %s11, 1
  %v8408 = vld [vmem:[%s8407] ss:$4 sm:$0x3]
  %v8410 = vlaneseq
  %v8411 = vshrl.u32 %v8410, 7
  %v8412 = vsub.s32 0, %v8411
  %v8413 = vrot.slane %v8408, %v8412
  %v8414 = vlaneseq
  %v8415 = vshrl.u32 %v8414, 7
  %v8416 = vsub.s32 1, %v8415
  %v8417 = vrot.slane %v8408, %v8416
  %v8420 = vmul.f32 %v8405, %v8413
  %v8421 = vmul.f32 %v8406, %v8417
  %s8422 = scalar_lea.vmem %s11, 2
  %v8423 = vld [vmem:[%s8422] ss:$4 sm:$0x3]
  %v8425 = vlaneseq
  %v8426 = vshrl.u32 %v8425, 7
  %v8427 = vsub.s32 0, %v8426
  %v8428 = vrot.slane %v8423, %v8427
  %v8429 = vlaneseq
  %v8430 = vshrl.u32 %v8429, 7
  %v8431 = vsub.s32 1, %v8430
  %v8432 = vrot.slane %v8423, %v8431
  %v8435 = vadd.f32 %v8420, %v8428
  %v8436 = vadd.f32 %v8421, %v8432
  %v8437 = vld [vmem:[%s12] sm:$0xff]
  %v8438 = vld [vmem:[%s12 + $0x8] sm:$0xff]
  %v8439 = vmul.f32 %v8435, %v8437
  %v8440 = vmul.f32 %v8436, %v8438
  %v8441 = vadd.f32 %v8439, %v8440
  %8442 = vadd.xlane.f32.xlu0 %v8441
  %v8443 = vpop.xlane.xlu0 %8442
  %vm8444 = vcmask 1043456
  %v8445 = vsel %vm8444, %v8443, 0.0
  %v8446 = vrot.slane %v8445, 4
  %v8447 = vadd.f32 %v8445, %v8446
  %v8448 = vrot.slane %v8447, 2
  %v8449 = vadd.f32 %v8447, %v8448
  %v8450 = vrot.slane %v8449, 1
  %v8451 = vadd.f32 %v8449, %v8450
  %v8453 = vrot.slane %v8443, 4
  %v8455 = vsel %vm8444, %v8453, 0.0
  %v8456 = vrot.slane %v8455, 4
  %v8457 = vadd.f32 %v8455, %v8456
  %v8458 = vrot.slane %v8457, 2
  %v8459 = vadd.f32 %v8457, %v8458
  %v8460 = vrot.slane %v8459, 1
  %v8461 = vadd.f32 %v8459, %v8460
  %vm8462 = vcmask 1040384
  %v8463 = vsel %vm8462, %v8451, %v8461
  %v8464 = vld [vmem:[#allocation2] sm:$0x1]
  %v8466 = vlaneseq
  %v8467 = vshrl.u32 %v8466, 7
  %v8468 = vsub.s32 0, %v8467
  %v8469 = vrot.slane %v8464, %v8468
  %v8471 = vadd.f32 %v8463, %v8469
  %v8472 = vsub.f32 0.0, %v8471
  %v8473 = vmul.f32 %v8472, 1.442695
  %v8474 = vpow.pop %v8473
  %v8475 = vadd.f32 %v8474, 1.0
  %v8476 = vrcp.pop %v8475
  %vm8477 = vcmask 1024
  %8478 = vst.msk [vmem:[%s14] sm:$0x3] %vm8477, %v8476
  // Predicated region
  $region58: #{discriminator_forward.1} parent=0 // pred_check
    _
  $region59: #{discriminator_forward.1} parent=0 // pred_check_branch
    %8480 = sbr.rel (0) target = $region61
  $region60: #{discriminator_forward.1} parent=0 // pred_region
    _
  $region61: #{discriminator_forward.1} parent=0 // pred_fallthru
    _
  // Predicated region
  $region62: #{discriminator_forward.1} parent=0 // pred_check
    _
  $region63: #{discriminator_forward.1} parent=0 // pred_check_branch
    %8482 = sbr.rel (0) target = $region65
  $region64: #{discriminator_forward.1} parent=0 // pred_region
    _
  $region65: #{discriminator_forward.1} parent=0 // pred_fallthru
    _

</llo_original>
